<compile_context>
chip_gen: v7x
topology: tpu7x:2x2x1
jax: 0.10.0
libtpu: 0.0.40
codegen_flags: <defaults>
</compile_context>

<pallas_src>
import functools

import jax
import jax.numpy as jnp
from jax.experimental import pallas as pl
from jax.experimental.pallas import tpu as pltpu

C_SLAB = 128   # lane-padded channel width of the activation slab / packed conv weights


def _fused_tcn_kernel(x_ref, *refs, B, L, K, block_cfg, pad_off):
    """Whole CustomModel forward in a single kernel (everything VMEM/vreg resident).

    x_ref     : (B, C_in, L) f32 -- raw PyTorch NCL input, transposed in-kernel.
    refs      : per block [w1 (K*128,Cout) bf16, b1 (1,Cout) f32, w2, b2,
                 (wd (128,Cout) bf16, bd (1,Cout) f32 when the block has a downsample)],
                then wc (Cout,4) bf16, bc (1,4) f32, then o_ref (B*L,4) f32, then scratch:
                slab_ref (pad_rows,128) bf16 and col_ref (B*L, K*128) bf16 (im2col).
    block_cfg : static ((dilation, has_downsample), ...) per TemporalBlock.
    pad_off   : static sublane-aligned row at which activations start inside the slab.
    """
    *w_refs, o_ref, slab_ref, col_ref = refs
    BL = B * L
    cin0 = x_ref.shape[1]

    # Within-batch time index of every slab row, built in-kernel (no t_idx input, no modulo).
    g = jax.lax.broadcasted_iota(jnp.int32, (BL, 1), 0)
    t_idx = g
    for b in range(1, B):                       # subtract L for every crossed batch boundary
        t_idx = t_idx - jnp.where(g >= b * L, L, 0)

    # Zero the slab once. Rows outside [pad_off, pad_off+BL) are never written again and act
    # as the conv zero-padding for every layer. Columns >= the real channel count may later
    # hold stale finite activations; the packed weights have exactly-zero rows there, so
    # they contribute 0 to every dot (invariant documented per the review).
    slab_ref[...] = jnp.zeros(slab_ref.shape, slab_ref.dtype)

    # NCL -> channels-last: per-batch 2-D transpose written straight into the slab as bf16.
    for b in range(B):
        xb_t = jnp.transpose(x_ref[b], (1, 0))                       # (L, C_in)
        slab_ref[pad_off + b * L:pad_off + b * L + L, :cin0] = xb_t.astype(slab_ref.dtype)

    def conv_same(w_ref, b_ref, dilation, valid):
        """'Same'-padded dilated Conv1d as ONE im2col matmul (BL, K*128) x (K*128, Cout)."""
        pad = (K - 1) * dilation // 2                # == PyTorch padding=(k-1)*d//2
        for k in range(K):                           # static unroll over the taps
            s = k * dilation - pad                   # relative time shift of tap k
            win = slab_ref[pad_off + s:pad_off + s + BL, :]          # full-lane window load
            if s != 0:
                win = jnp.where(valid[k], win, 0)    # kill cross-batch leakage (one vsel)
            col_ref[:, k * C_SLAB:(k + 1) * C_SLAB] = win            # 128-lane-aligned store
        return jnp.dot(col_ref[...], w_ref[...],
                       preferred_element_type=jnp.float32) + b_ref[...]

    h = None                                         # block input / output as f32 vreg value
    i = 0
    for blk_idx, (dilation, has_down) in enumerate(block_cfg):       # TemporalBlock x 3
        w1, b1, w2, b2 = w_refs[i:i + 4]
        i += 4
        if has_down:
            wd, bd = w_refs[i:i + 2]
            i += 2

        if blk_idx > 0:                              # slab <- this block's input activations
            slab_ref[pad_off:pad_off + BL, :h.shape[1]] = h.astype(slab_ref.dtype)

        # Per-tap validity masks, shared by conv1 and conv2 (same dilation).
        pad = (K - 1) * dilation // 2
        valid = []
        for k in range(K):
            s = k * dilation - pad
            valid.append(None if s == 0
                         else jnp.logical_and(t_idx + s >= 0, t_idx + s < L))

        # Residual path, computed before conv1's output overwrites the slab.
        if has_down:                                 # 1x1 downsample on the block input
            res = jnp.dot(slab_ref[pad_off:pad_off + BL, :], wd[...],
                          preferred_element_type=jnp.float32) + bd[...]
        elif h is not None:
            res = h
        else:                                        # identity residual on the raw input
            res = slab_ref[pad_off:pad_off + BL, :cin0].astype(jnp.float32)

        out = jnp.maximum(conv_same(w1, b1, dilation, valid), 0.0)   # conv1 -> relu (dropout=id)
        slab_ref[pad_off:pad_off + BL, :out.shape[1]] = out.astype(slab_ref.dtype)
        out = jnp.maximum(conv_same(w2, b2, dilation, valid), 0.0)   # conv2 -> relu (dropout=id)
        h = jnp.maximum(out + res, 0.0)                              # relu(out + res)

    wc, bc = w_refs[i:i + 2]                         # classifier Linear(64 -> 4)
    y = jnp.dot(h.astype(jnp.bfloat16), wc[...],
                preferred_element_type=jnp.float32) + bc[...]
    o_ref[...] = y.astype(o_ref.dtype)               # single store for the whole output


def custom_model(packed, x_ncl):
    """x_ncl: (B, C_in, L) (PyTorch NCL). Returns (B, L, 4) = classifier(tcn(x).permute(0,2,1))."""
    B, _, L = x_ncl.shape
    BL = B * L
    K = packed["kernel_size"]
    block_cfg = tuple(packed["block_cfg"])

    flat_in = [x_ncl.astype(jnp.float32)]            # no wrapper transpose/tile: done in-kernel
    for blk in packed["blocks"]:
        flat_in += [blk["w1"], blk["b1"], blk["w2"], blk["b2"]]
        if blk["wd"] is not None:
            flat_in += [blk["wd"], blk["bd"]]
    flat_in += [packed["wc"], packed["bc"]]

    max_pad = (K - 1) * max(d for d, _ in block_cfg) // 2
    pad_off = -(-max_pad // 16) * 16                 # bf16 sublane-tile aligned activation slot
    pad_rows = pad_off + BL + pad_off                # zero rows on both sides of the slab

    kernel = functools.partial(_fused_tcn_kernel, B=B, L=L, K=K,
                               block_cfg=block_cfg, pad_off=pad_off)

    # Grid-less on purpose: one latency-bound invocation, < 1 MiB VMEM footprint.
    # TODO(synk): add a ("parallel",) batch grid axis once B*L grows so v7x's 2nd core is used.
    y2d = pl.pallas_call(
        kernel,
        out_shape=jax.ShapeDtypeStruct((BL, 4), jnp.float32),
        in_specs=[pl.BlockSpec(memory_space=pltpu.MemorySpace.VMEM)] * len(flat_in),
        out_specs=pl.BlockSpec(memory_space=pltpu.MemorySpace.VMEM),
        scratch_shapes=[pltpu.VMEM((pad_rows, C_SLAB), jnp.bfloat16),   # padded activation slab
                        pltpu.VMEM((BL, K * C_SLAB), jnp.bfloat16)],    # im2col scratch
    )(*flat_in)
    return y2d.reshape(B, L, 4)


def init_params(key, input_size=68, num_channels=(64, 64, 64), kernel_size=7):
    """Deterministic synthetic parameters with the same shapes as the PyTorch module.

    weight_norm at PyTorch init gives w = g * v / ||v|| = v, so raw weights are equivalent.
    PyTorch Conv1d weights are (Cout, Cin, K); stored here tap-major as (K, Cin, Cout) so
    each tap is an MXU-ready (Cin, Cout) matrix. Biases are stored as (1, Cout) rows.
    """
    scale = 0.05
    params = {"blocks": []}
    for i, out_c in enumerate(num_channels):
        in_c = input_size if i == 0 else num_channels[i - 1]
        key, k1, k2, k3, k4, k5, k6 = jax.random.split(key, 7)
        blk = {
            "w1": scale * jax.random.normal(k1, (kernel_size, in_c, out_c), jnp.float32),
            "b1": scale * jax.random.normal(k2, (1, out_c), jnp.float32),
            "w2": scale * jax.random.normal(k3, (kernel_size, out_c, out_c), jnp.float32),
            "b2": scale * jax.random.normal(k4, (1, out_c), jnp.float32),
            # 1x1 downsample only when the channel count changes (block 0: 68 -> 64)
            "wd": scale * jax.random.normal(k5, (in_c, out_c), jnp.float32)
                  if in_c != out_c else None,
            "bd": scale * jax.random.normal(k6, (1, out_c), jnp.float32)
                  if in_c != out_c else None,
        }
        params["blocks"].append(blk)
    key, kc1, kc2 = jax.random.split(key, 3)
    params["wc"] = scale * jax.random.normal(kc1, (num_channels[-1], 4), jnp.float32)
    params["bc"] = scale * jax.random.normal(kc2, (1, 4), jnp.float32)
    return params


def pack_params(params):
    """One-time kernel-side repack: lane-pad Cin to 128 (zero rows), flatten the K taps into a
    single (K*128, Cout) matrix per conv, and cast weights to bf16. Biases stay f32."""
    K = params["blocks"][0]["w1"].shape[0]
    packed = {"kernel_size": K, "block_cfg": [], "blocks": [],
              "wc": params["wc"].astype(jnp.bfloat16),
              "bc": params["bc"].astype(jnp.float32)}

    def lane_pad_conv(w):                            # (K, Cin, Cout) -> (K*128, Cout) bf16
        k, cin, cout = w.shape
        wp = jnp.zeros((k, C_SLAB, cout), jnp.float32).at[:, :cin, :].set(w)
        return wp.reshape(k * C_SLAB, cout).astype(jnp.bfloat16)

    for i, blk in enumerate(params["blocks"]):
        has_down = blk["wd"] is not None
        pb = {"w1": lane_pad_conv(blk["w1"]), "b1": blk["b1"].astype(jnp.float32),
              "w2": lane_pad_conv(blk["w2"]), "b2": blk["b2"].astype(jnp.float32),
              "wd": None, "bd": None}
        if has_down:
            cin, cout = blk["wd"].shape
            wdp = jnp.zeros((C_SLAB, cout), jnp.float32).at[:cin, :].set(blk["wd"])
            pb["wd"] = wdp.astype(jnp.bfloat16)
            pb["bd"] = blk["bd"].astype(jnp.float32)
        packed["blocks"].append(pb)
        packed["block_cfg"].append((2 ** i, has_down))   # CustomModel: dilation_size = 2**i
    return packed


def _reference_forward(params, x_ncl):
    """Plain-XLA f32 reference (jnp.pad + einsum) used to sanity-check the fused kernel."""
    x = jnp.transpose(x_ncl, (0, 2, 1)).astype(jnp.float32)      # (B, L, C)
    L = x.shape[1]
    hp = "highest"
    for i, blk in enumerate(params["blocks"]):
        d = 2 ** i
        K = blk["w1"].shape[0]
        p = (K - 1) * d // 2

        def conv(inp, w, b):
            xp = jnp.pad(inp, ((0, 0), (p, p), (0, 0)))
            out = b
            for k in range(K):
                out = out + jnp.einsum("blc,cd->bld",
                                       xp[:, k * d:k * d + L, :], w[k], precision=hp)
            return out

        out = jax.nn.relu(conv(x, blk["w1"], blk["b1"]))
        out = jax.nn.relu(conv(out, blk["w2"], blk["b2"]))
        if blk["wd"] is not None:
            res = jnp.einsum("blc,cd->bld", x, blk["wd"], precision=hp) + blk["bd"]
        else:
            res = x
        x = jax.nn.relu(out + res)
    return jnp.einsum("blc,cd->bld", x, params["wc"], precision=hp) + params["bc"]


if __name__ == "__main__":
    key = jax.random.PRNGKey(0)
    k_x, k_p = jax.random.split(key)

    B, C_IN, L = 2, 68, 16
    x = jax.random.normal(k_x, (B, C_IN, L), jnp.float32)
    params = init_params(k_p)
    packed = pack_params(params)          # one-time bf16 / lane-padded / tap-flattened repack

    y = custom_model(packed, x)
    y = jax.block_until_ready(y)
    assert y.shape == (B, L, 4), y.shape
    assert bool(jnp.all(jnp.isfinite(y)))

    # bf16 MXU inputs (f32 accumulate) vs. an f32 'highest' reference: expected max abs
    # deviation ~1e-2 at these scales, well inside the stated tolerance.
    y_ref = _reference_forward(params, x)
    err = float(jnp.max(jnp.abs(y - y_ref)))
    assert jnp.allclose(y, y_ref, rtol=5e-2, atol=5e-2), err
    print("KERNEL_OK")
</pallas_src>

<mosaic_0001>
module attributes {stable_mosaic.version = 11 : i64} {
  func.func @_fused_tcn_kernel(%arg0: memref<2x68x16xf32, #tpu.memory_space<vmem>>, %arg1: memref<896x64xbf16, #tpu.memory_space<vmem>>, %arg2: memref<1x64xf32, #tpu.memory_space<vmem>>, %arg3: memref<896x64xbf16, #tpu.memory_space<vmem>>, %arg4: memref<1x64xf32, #tpu.memory_space<vmem>>, %arg5: memref<128x64xbf16, #tpu.memory_space<vmem>>, %arg6: memref<1x64xf32, #tpu.memory_space<vmem>>, %arg7: memref<896x64xbf16, #tpu.memory_space<vmem>>, %arg8: memref<1x64xf32, #tpu.memory_space<vmem>>, %arg9: memref<896x64xbf16, #tpu.memory_space<vmem>>, %arg10: memref<1x64xf32, #tpu.memory_space<vmem>>, %arg11: memref<896x64xbf16, #tpu.memory_space<vmem>>, %arg12: memref<1x64xf32, #tpu.memory_space<vmem>>, %arg13: memref<896x64xbf16, #tpu.memory_space<vmem>>, %arg14: memref<1x64xf32, #tpu.memory_space<vmem>>, %arg15: memref<64x4xbf16, #tpu.memory_space<vmem>>, %arg16: memref<1x4xf32, #tpu.memory_space<vmem>>, %arg17: memref<32x4xf32, #tpu.memory_space<vmem>>, %arg18: memref<64x128xbf16, #tpu.memory_space<vmem>>, %arg19: memref<32x896xbf16, #tpu.memory_space<vmem>>) attributes {dimension_semantics = [], scalar_prefetch = 0 : i64, scratch_operands = 2 : i64, tpu.core_type = #tpu.core_type<tc>} {
    %0 = tpu.iota {dimensions = array<i32: 0>} : vector<32x1xi32>
    %c16_i32 = arith.constant 16 : i32
    %1 = vector.broadcast %c16_i32 : i32 to vector<32x1xi32>
    %2 = arith.cmpi sge, %0, %1 : vector<32x1xi32>
    %c16_i32_0 = arith.constant 16 : i32
    %c0_i32 = arith.constant 0 : i32
    %3 = vector.broadcast %c16_i32_0 : i32 to vector<32x1xi32>
    %4 = vector.broadcast %c0_i32 : i32 to vector<32x1xi32>
    %5 = arith.select %2, %3, %4 : vector<32x1xi1>, vector<32x1xi32>
    %6 = arith.subi %0, %5 : vector<32x1xi32>
    %cst = arith.constant 0.000000e+00 : bf16
    %7 = vector.broadcast %cst : bf16 to vector<64x128xbf16>
    %c0 = arith.constant 0 : index
    %c0_1 = arith.constant 0 : index
    %8 = vector.load %arg18[%c0, %c0_1] : memref<64x128xbf16, #tpu.memory_space<vmem>>, vector<64x128xbf16>
    tpu.vector_store %arg18[%c0, %c0_1], %7 {strides = array<i32>} : memref<64x128xbf16, #tpu.memory_space<vmem>>, vector<64x128xbf16>,
    %c0_2 = arith.constant 0 : index
    %c0_3 = arith.constant 0 : index
    %c0_4 = arith.constant 0 : index
    %9 = vector.load %arg0[%c0_2, %c0_3, %c0_4] : memref<2x68x16xf32, #tpu.memory_space<vmem>>, vector<1x68x16xf32>
    %10 = vector.shape_cast %9 : vector<1x68x16xf32> to vector<68x16xf32>
    %11 = tpu.transpose %10, [1, 0] : vector<68x16xf32> -> vector<16x68xf32>
    %12 = arith.truncf %11 : vector<16x68xf32> to vector<16x68xbf16>
    %c16 = arith.constant 16 : index
    %c0_5 = arith.constant 0 : index
    %13 = vector.load %arg18[%c16, %c0_5] : memref<64x128xbf16, #tpu.memory_space<vmem>>, vector<16x68xbf16>
    tpu.vector_store %arg18[%c16, %c0_5], %12 {strides = array<i32>} : memref<64x128xbf16, #tpu.memory_space<vmem>>, vector<16x68xbf16>,
    %c1 = arith.constant 1 : index
    %c0_6 = arith.constant 0 : index
    %c0_7 = arith.constant 0 : index
    %14 = vector.load %arg0[%c1, %c0_6, %c0_7] : memref<2x68x16xf32, #tpu.memory_space<vmem>>, vector<1x68x16xf32>
    %15 = vector.shape_cast %14 : vector<1x68x16xf32> to vector<68x16xf32>
    %16 = tpu.transpose %15, [1, 0] : vector<68x16xf32> -> vector<16x68xf32>
    %17 = arith.truncf %16 : vector<16x68xf32> to vector<16x68xbf16>
    %c32 = arith.constant 32 : index
    %c0_8 = arith.constant 0 : index
    %18 = vector.load %arg18[%c32, %c0_8] : memref<64x128xbf16, #tpu.memory_space<vmem>>, vector<16x68xbf16>
    tpu.vector_store %arg18[%c32, %c0_8], %17 {strides = array<i32>} : memref<64x128xbf16, #tpu.memory_space<vmem>>, vector<16x68xbf16>,
    %c-3_i32 = arith.constant -3 : i32
    %19 = vector.broadcast %c-3_i32 : i32 to vector<32x1xi32>
    %20 = arith.addi %6, %19 : vector<32x1xi32>
    %c0_i32_9 = arith.constant 0 : i32
    %21 = vector.broadcast %c0_i32_9 : i32 to vector<32x1xi32>
    %22 = arith.cmpi sge, %20, %21 : vector<32x1xi32>
    %c-3_i32_10 = arith.constant -3 : i32
    %23 = vector.broadcast %c-3_i32_10 : i32 to vector<32x1xi32>
    %24 = arith.addi %6, %23 : vector<32x1xi32>
    %c16_i32_11 = arith.constant 16 : i32
    %25 = vector.broadcast %c16_i32_11 : i32 to vector<32x1xi32>
    %26 = arith.cmpi slt, %24, %25 : vector<32x1xi32>
    %27 = arith.andi %22, %26 : vector<32x1xi1>
    %c-2_i32 = arith.constant -2 : i32
    %28 = vector.broadcast %c-2_i32 : i32 to vector<32x1xi32>
    %29 = arith.addi %6, %28 : vector<32x1xi32>
    %c0_i32_12 = arith.constant 0 : i32
    %30 = vector.broadcast %c0_i32_12 : i32 to vector<32x1xi32>
    %31 = arith.cmpi sge, %29, %30 : vector<32x1xi32>
    %c-2_i32_13 = arith.constant -2 : i32
    %32 = vector.broadcast %c-2_i32_13 : i32 to vector<32x1xi32>
    %33 = arith.addi %6, %32 : vector<32x1xi32>
    %c16_i32_14 = arith.constant 16 : i32
    %34 = vector.broadcast %c16_i32_14 : i32 to vector<32x1xi32>
    %35 = arith.cmpi slt, %33, %34 : vector<32x1xi32>
    %36 = arith.andi %31, %35 : vector<32x1xi1>
    %c-1_i32 = arith.constant -1 : i32
    %37 = vector.broadcast %c-1_i32 : i32 to vector<32x1xi32>
    %38 = arith.addi %6, %37 : vector<32x1xi32>
    %c0_i32_15 = arith.constant 0 : i32
    %39 = vector.broadcast %c0_i32_15 : i32 to vector<32x1xi32>
    %40 = arith.cmpi sge, %38, %39 : vector<32x1xi32>
    %c-1_i32_16 = arith.constant -1 : i32
    %41 = vector.broadcast %c-1_i32_16 : i32 to vector<32x1xi32>
    %42 = arith.addi %6, %41 : vector<32x1xi32>
    %c16_i32_17 = arith.constant 16 : i32
    %43 = vector.broadcast %c16_i32_17 : i32 to vector<32x1xi32>
    %44 = arith.cmpi slt, %42, %43 : vector<32x1xi32>
    %45 = arith.andi %40, %44 : vector<32x1xi1>
    %c1_i32 = arith.constant 1 : i32
    %46 = vector.broadcast %c1_i32 : i32 to vector<32x1xi32>
    %47 = arith.addi %6, %46 : vector<32x1xi32>
    %c0_i32_18 = arith.constant 0 : i32
    %48 = vector.broadcast %c0_i32_18 : i32 to vector<32x1xi32>
    %49 = arith.cmpi sge, %47, %48 : vector<32x1xi32>
    %c1_i32_19 = arith.constant 1 : i32
    %50 = vector.broadcast %c1_i32_19 : i32 to vector<32x1xi32>
    %51 = arith.addi %6, %50 : vector<32x1xi32>
    %c16_i32_20 = arith.constant 16 : i32
    %52 = vector.broadcast %c16_i32_20 : i32 to vector<32x1xi32>
    %53 = arith.cmpi slt, %51, %52 : vector<32x1xi32>
    %54 = arith.andi %49, %53 : vector<32x1xi1>
    %c2_i32 = arith.constant 2 : i32
    %55 = vector.broadcast %c2_i32 : i32 to vector<32x1xi32>
    %56 = arith.addi %6, %55 : vector<32x1xi32>
    %c0_i32_21 = arith.constant 0 : i32
    %57 = vector.broadcast %c0_i32_21 : i32 to vector<32x1xi32>
    %58 = arith.cmpi sge, %56, %57 : vector<32x1xi32>
    %c2_i32_22 = arith.constant 2 : i32
    %59 = vector.broadcast %c2_i32_22 : i32 to vector<32x1xi32>
    %60 = arith.addi %6, %59 : vector<32x1xi32>
    %c16_i32_23 = arith.constant 16 : i32
    %61 = vector.broadcast %c16_i32_23 : i32 to vector<32x1xi32>
    %62 = arith.cmpi slt, %60, %61 : vector<32x1xi32>
    %63 = arith.andi %58, %62 : vector<32x1xi1>
    %c3_i32 = arith.constant 3 : i32
    %64 = vector.broadcast %c3_i32 : i32 to vector<32x1xi32>
    %65 = arith.addi %6, %64 : vector<32x1xi32>
    %c0_i32_24 = arith.constant 0 : i32
    %66 = vector.broadcast %c0_i32_24 : i32 to vector<32x1xi32>
    %67 = arith.cmpi sge, %65, %66 : vector<32x1xi32>
    %c3_i32_25 = arith.constant 3 : i32
    %68 = vector.broadcast %c3_i32_25 : i32 to vector<32x1xi32>
    %69 = arith.addi %6, %68 : vector<32x1xi32>
    %c16_i32_26 = arith.constant 16 : i32
    %70 = vector.broadcast %c16_i32_26 : i32 to vector<32x1xi32>
    %71 = arith.cmpi slt, %69, %70 : vector<32x1xi32>
    %72 = arith.andi %67, %71 : vector<32x1xi1>
    %c16_27 = arith.constant 16 : index
    %c0_28 = arith.constant 0 : index
    %73 = vector.load %arg18[%c16_27, %c0_28] : memref<64x128xbf16, #tpu.memory_space<vmem>>, vector<32x128xbf16>
    %c0_29 = arith.constant 0 : index
    %c0_30 = arith.constant 0 : index
    %74 = vector.load %arg5[%c0_29, %c0_30] : memref<128x64xbf16, #tpu.memory_space<vmem>>, vector<128x64xbf16>
    %cst_31 = arith.constant dense<0.000000e+00> : vector<32x64xf32>
    %75 = tpu.matmul %73, %74, %cst_31 {dimension_numbers = #tpu.dot_dimension_numbers<[1], [0], [0], [1], [0, 0, 1, 1], [], []>} : vector<32x128xbf16>, vector<128x64xbf16>, vector<32x64xf32> -> vector<32x64xf32>
    %c0_32 = arith.constant 0 : index
    %c0_33 = arith.constant 0 : index
    %76 = vector.load %arg6[%c0_32, %c0_33] : memref<1x64xf32, #tpu.memory_space<vmem>>, vector<1x64xf32>
    %77 = vector.broadcast %76 : vector<1x64xf32> to vector<32x64xf32>
    %78 = arith.addf %75, %77 : vector<32x64xf32>
    %c13 = arith.constant 13 : index
    %c0_34 = arith.constant 0 : index
    %79 = vector.load %arg18[%c13, %c0_34] : memref<64x128xbf16, #tpu.memory_space<vmem>>, vector<32x128xbf16>
    %c0_i32_35 = arith.constant 0 : i32
    %80 = arith.sitofp %c0_i32_35 : i32 to bf16
    %81 = vector.shape_cast %27 : vector<32x1xi1> to vector<32x1xi1>
    %82 = vector.broadcast %81 : vector<32x1xi1> to vector<32x128xi1>
    %83 = vector.broadcast %80 : bf16 to vector<32x128xbf16>
    %84 = arith.select %82, %79, %83 : vector<32x128xi1>, vector<32x128xbf16>
    %c0_36 = arith.constant 0 : index
    %c0_37 = arith.constant 0 : index
    %85 = vector.load %arg19[%c0_36, %c0_37] : memref<32x896xbf16, #tpu.memory_space<vmem>>, vector<32x128xbf16>
    tpu.vector_store %arg19[%c0_36, %c0_37], %84 {strides = array<i32>} : memref<32x896xbf16, #tpu.memory_space<vmem>>, vector<32x128xbf16>,
    %c14 = arith.constant 14 : index
    %c0_38 = arith.constant 0 : index
    %86 = vector.load %arg18[%c14, %c0_38] : memref<64x128xbf16, #tpu.memory_space<vmem>>, vector<32x128xbf16>
    %c0_i32_39 = arith.constant 0 : i32
    %87 = arith.sitofp %c0_i32_39 : i32 to bf16
    %88 = vector.shape_cast %36 : vector<32x1xi1> to vector<32x1xi1>
    %89 = vector.broadcast %88 : vector<32x1xi1> to vector<32x128xi1>
    %90 = vector.broadcast %87 : bf16 to vector<32x128xbf16>
    %91 = arith.select %89, %86, %90 : vector<32x128xi1>, vector<32x128xbf16>
    %c0_40 = arith.constant 0 : index
    %c128 = arith.constant 128 : index
    %92 = vector.load %arg19[%c0_40, %c128] : memref<32x896xbf16, #tpu.memory_space<vmem>>, vector<32x128xbf16>
    tpu.vector_store %arg19[%c0_40, %c128], %91 {strides = array<i32>} : memref<32x896xbf16, #tpu.memory_space<vmem>>, vector<32x128xbf16>,
    %c15 = arith.constant 15 : index
    %c0_41 = arith.constant 0 : index
    %93 = vector.load %arg18[%c15, %c0_41] : memref<64x128xbf16, #tpu.memory_space<vmem>>, vector<32x128xbf16>
    %c0_i32_42 = arith.constant 0 : i32
    %94 = arith.sitofp %c0_i32_42 : i32 to bf16
    %95 = vector.shape_cast %45 : vector<32x1xi1> to vector<32x1xi1>
    %96 = vector.broadcast %95 : vector<32x1xi1> to vector<32x128xi1>
    %97 = vector.broadcast %94 : bf16 to vector<32x128xbf16>
    %98 = arith.select %96, %93, %97 : vector<32x128xi1>, vector<32x128xbf16>
    %c0_43 = arith.constant 0 : index
    %c256 = arith.constant 256 : index
    %99 = vector.load %arg19[%c0_43, %c256] : memref<32x896xbf16, #tpu.memory_space<vmem>>, vector<32x128xbf16>
    tpu.vector_store %arg19[%c0_43, %c256], %98 {strides = array<i32>} : memref<32x896xbf16, #tpu.memory_space<vmem>>, vector<32x128xbf16>,
    %c16_44 = arith.constant 16 : index
    %c0_45 = arith.constant 0 : index
    %100 = vector.load %arg18[%c16_44, %c0_45] : memref<64x128xbf16, #tpu.memory_space<vmem>>, vector<32x128xbf16>
    %c0_46 = arith.constant 0 : index
    %c384 = arith.constant 384 : index
    %101 = vector.load %arg19[%c0_46, %c384] : memref<32x896xbf16, #tpu.memory_space<vmem>>, vector<32x128xbf16>
    tpu.vector_store %arg19[%c0_46, %c384], %100 {strides = array<i32>} : memref<32x896xbf16, #tpu.memory_space<vmem>>, vector<32x128xbf16>,
    %c17 = arith.constant 17 : index
    %c0_47 = arith.constant 0 : index
    %102 = vector.load %arg18[%c17, %c0_47] : memref<64x128xbf16, #tpu.memory_space<vmem>>, vector<32x128xbf16>
    %c0_i32_48 = arith.constant 0 : i32
    %103 = arith.sitofp %c0_i32_48 : i32 to bf16
    %104 = vector.shape_cast %54 : vector<32x1xi1> to vector<32x1xi1>
    %105 = vector.broadcast %104 : vector<32x1xi1> to vector<32x128xi1>
    %106 = vector.broadcast %103 : bf16 to vector<32x128xbf16>
    %107 = arith.select %105, %102, %106 : vector<32x128xi1>, vector<32x128xbf16>
    %c0_49 = arith.constant 0 : index
    %c512 = arith.constant 512 : index
    %108 = vector.load %arg19[%c0_49, %c512] : memref<32x896xbf16, #tpu.memory_space<vmem>>, vector<32x128xbf16>
    tpu.vector_store %arg19[%c0_49, %c512], %107 {strides = array<i32>} : memref<32x896xbf16, #tpu.memory_space<vmem>>, vector<32x128xbf16>,
    %c18 = arith.constant 18 : index
    %c0_50 = arith.constant 0 : index
    %109 = vector.load %arg18[%c18, %c0_50] : memref<64x128xbf16, #tpu.memory_space<vmem>>, vector<32x128xbf16>
    %c0_i32_51 = arith.constant 0 : i32
    %110 = arith.sitofp %c0_i32_51 : i32 to bf16
    %111 = vector.shape_cast %63 : vector<32x1xi1> to vector<32x1xi1>
    %112 = vector.broadcast %111 : vector<32x1xi1> to vector<32x128xi1>
    %113 = vector.broadcast %110 : bf16 to vector<32x128xbf16>
    %114 = arith.select %112, %109, %113 : vector<32x128xi1>, vector<32x128xbf16>
    %c0_52 = arith.constant 0 : index
    %c640 = arith.constant 640 : index
    %115 = vector.load %arg19[%c0_52, %c640] : memref<32x896xbf16, #tpu.memory_space<vmem>>, vector<32x128xbf16>
    tpu.vector_store %arg19[%c0_52, %c640], %114 {strides = array<i32>} : memref<32x896xbf16, #tpu.memory_space<vmem>>, vector<32x128xbf16>,
    %c19 = arith.constant 19 : index
    %c0_53 = arith.constant 0 : index
    %116 = vector.load %arg18[%c19, %c0_53] : memref<64x128xbf16, #tpu.memory_space<vmem>>, vector<32x128xbf16>
    %c0_i32_54 = arith.constant 0 : i32
    %117 = arith.sitofp %c0_i32_54 : i32 to bf16
    %118 = vector.shape_cast %72 : vector<32x1xi1> to vector<32x1xi1>
    %119 = vector.broadcast %118 : vector<32x1xi1> to vector<32x128xi1>
    %120 = vector.broadcast %117 : bf16 to vector<32x128xbf16>
    %121 = arith.select %119, %116, %120 : vector<32x128xi1>, vector<32x128xbf16>
    %c0_55 = arith.constant 0 : index
    %c768 = arith.constant 768 : index
    %122 = vector.load %arg19[%c0_55, %c768] : memref<32x896xbf16, #tpu.memory_space<vmem>>, vector<32x128xbf16>
    tpu.vector_store %arg19[%c0_55, %c768], %121 {strides = array<i32>} : memref<32x896xbf16, #tpu.memory_space<vmem>>, vector<32x128xbf16>,
    %c0_56 = arith.constant 0 : index
    %c0_57 = arith.constant 0 : index
    %123 = vector.load %arg19[%c0_56, %c0_57] : memref<32x896xbf16, #tpu.memory_space<vmem>>, vector<32x896xbf16>
    %c0_58 = arith.constant 0 : index
    %c0_59 = arith.constant 0 : index
    %124 = vector.load %arg1[%c0_58, %c0_59] : memref<896x64xbf16, #tpu.memory_space<vmem>>, vector<896x64xbf16>
    %cst_60 = arith.constant dense<0.000000e+00> : vector<32x64xf32>
    %125 = tpu.matmul %123, %124, %cst_60 {dimension_numbers = #tpu.dot_dimension_numbers<[1], [0], [0], [1], [0, 0, 1, 1], [], []>} : vector<32x896xbf16>, vector<896x64xbf16>, vector<32x64xf32> -> vector<32x64xf32>
    %c0_61 = arith.constant 0 : index
    %c0_62 = arith.constant 0 : index
    %126 = vector.load %arg2[%c0_61, %c0_62] : memref<1x64xf32, #tpu.memory_space<vmem>>, vector<1x64xf32>
    %127 = vector.broadcast %126 : vector<1x64xf32> to vector<32x64xf32>
    %128 = arith.addf %125, %127 : vector<32x64xf32>
    %cst_63 = arith.constant 0.000000e+00 : f32
    %129 = vector.broadcast %cst_63 : f32 to vector<32x64xf32>
    %130 = arith.maximumf %128, %129 : vector<32x64xf32>
    %131 = arith.truncf %130 : vector<32x64xf32> to vector<32x64xbf16>
    %c16_64 = arith.constant 16 : index
    %c0_65 = arith.constant 0 : index
    %132 = vector.load %arg18[%c16_64, %c0_65] : memref<64x128xbf16, #tpu.memory_space<vmem>>, vector<32x64xbf16>
    tpu.vector_store %arg18[%c16_64, %c0_65], %131 {strides = array<i32>} : memref<64x128xbf16, #tpu.memory_space<vmem>>, vector<32x64xbf16>,
    %c13_66 = arith.constant 13 : index
    %c0_67 = arith.constant 0 : index
    %133 = vector.load %arg18[%c13_66, %c0_67] : memref<64x128xbf16, #tpu.memory_space<vmem>>, vector<32x128xbf16>
    %c0_i32_68 = arith.constant 0 : i32
    %134 = arith.sitofp %c0_i32_68 : i32 to bf16
    %135 = vector.shape_cast %27 : vector<32x1xi1> to vector<32x1xi1>
    %136 = vector.broadcast %135 : vector<32x1xi1> to vector<32x128xi1>
    %137 = vector.broadcast %134 : bf16 to vector<32x128xbf16>
    %138 = arith.select %136, %133, %137 : vector<32x128xi1>, vector<32x128xbf16>
    %c0_69 = arith.constant 0 : index
    %c0_70 = arith.constant 0 : index
    %139 = vector.load %arg19[%c0_69, %c0_70] : memref<32x896xbf16, #tpu.memory_space<vmem>>, vector<32x128xbf16>
    tpu.vector_store %arg19[%c0_69, %c0_70], %138 {strides = array<i32>} : memref<32x896xbf16, #tpu.memory_space<vmem>>, vector<32x128xbf16>,
    %c14_71 = arith.constant 14 : index
    %c0_72 = arith.constant 0 : index
    %140 = vector.load %arg18[%c14_71, %c0_72] : memref<64x128xbf16, #tpu.memory_space<vmem>>, vector<32x128xbf16>
    %c0_i32_73 = arith.constant 0 : i32
    %141 = arith.sitofp %c0_i32_73 : i32 to bf16
    %142 = vector.shape_cast %36 : vector<32x1xi1> to vector<32x1xi1>
    %143 = vector.broadcast %142 : vector<32x1xi1> to vector<32x128xi1>
    %144 = vector.broadcast %141 : bf16 to vector<32x128xbf16>
    %145 = arith.select %143, %140, %144 : vector<32x128xi1>, vector<32x128xbf16>
    %c0_74 = arith.constant 0 : index
    %c128_75 = arith.constant 128 : index
    %146 = vector.load %arg19[%c0_74, %c128_75] : memref<32x896xbf16, #tpu.memory_space<vmem>>, vector<32x128xbf16>
    tpu.vector_store %arg19[%c0_74, %c128_75], %145 {strides = array<i32>} : memref<32x896xbf16, #tpu.memory_space<vmem>>, vector<32x128xbf16>,
    %c15_76 = arith.constant 15 : index
    %c0_77 = arith.constant 0 : index
    %147 = vector.load %arg18[%c15_76, %c0_77] : memref<64x128xbf16, #tpu.memory_space<vmem>>, vector<32x128xbf16>
    %c0_i32_78 = arith.constant 0 : i32
    %148 = arith.sitofp %c0_i32_78 : i32 to bf16
    %149 = vector.shape_cast %45 : vector<32x1xi1> to vector<32x1xi1>
    %150 = vector.broadcast %149 : vector<32x1xi1> to vector<32x128xi1>
    %151 = vector.broadcast %148 : bf16 to vector<32x128xbf16>
    %152 = arith.select %150, %147, %151 : vector<32x128xi1>, vector<32x128xbf16>
    %c0_79 = arith.constant 0 : index
    %c256_80 = arith.constant 256 : index
    %153 = vector.load %arg19[%c0_79, %c256_80] : memref<32x896xbf16, #tpu.memory_space<vmem>>, vector<32x128xbf16>
    tpu.vector_store %arg19[%c0_79, %c256_80], %152 {strides = array<i32>} : memref<32x896xbf16, #tpu.memory_space<vmem>>, vector<32x128xbf16>,
    %c16_81 = arith.constant 16 : index
    %c0_82 = arith.constant 0 : index
    %154 = vector.load %arg18[%c16_81, %c0_82] : memref<64x128xbf16, #tpu.memory_space<vmem>>, vector<32x128xbf16>
    %c0_83 = arith.constant 0 : index
    %c384_84 = arith.constant 384 : index
    %155 = vector.load %arg19[%c0_83, %c384_84] : memref<32x896xbf16, #tpu.memory_space<vmem>>, vector<32x128xbf16>
    tpu.vector_store %arg19[%c0_83, %c384_84], %154 {strides = array<i32>} : memref<32x896xbf16, #tpu.memory_space<vmem>>, vector<32x128xbf16>,
    %c17_85 = arith.constant 17 : index
    %c0_86 = arith.constant 0 : index
    %156 = vector.load %arg18[%c17_85, %c0_86] : memref<64x128xbf16, #tpu.memory_space<vmem>>, vector<32x128xbf16>
    %c0_i32_87 = arith.constant 0 : i32
    %157 = arith.sitofp %c0_i32_87 : i32 to bf16
    %158 = vector.shape_cast %54 : vector<32x1xi1> to vector<32x1xi1>
    %159 = vector.broadcast %158 : vector<32x1xi1> to vector<32x128xi1>
    %160 = vector.broadcast %157 : bf16 to vector<32x128xbf16>
    %161 = arith.select %159, %156, %160 : vector<32x128xi1>, vector<32x128xbf16>
    %c0_88 = arith.constant 0 : index
    %c512_89 = arith.constant 512 : index
    %162 = vector.load %arg19[%c0_88, %c512_89] : memref<32x896xbf16, #tpu.memory_space<vmem>>, vector<32x128xbf16>
    tpu.vector_store %arg19[%c0_88, %c512_89], %161 {strides = array<i32>} : memref<32x896xbf16, #tpu.memory_space<vmem>>, vector<32x128xbf16>,
    %c18_90 = arith.constant 18 : index
    %c0_91 = arith.constant 0 : index
    %163 = vector.load %arg18[%c18_90, %c0_91] : memref<64x128xbf16, #tpu.memory_space<vmem>>, vector<32x128xbf16>
    %c0_i32_92 = arith.constant 0 : i32
    %164 = arith.sitofp %c0_i32_92 : i32 to bf16
    %165 = vector.shape_cast %63 : vector<32x1xi1> to vector<32x1xi1>
    %166 = vector.broadcast %165 : vector<32x1xi1> to vector<32x128xi1>
    %167 = vector.broadcast %164 : bf16 to vector<32x128xbf16>
    %168 = arith.select %166, %163, %167 : vector<32x128xi1>, vector<32x128xbf16>
    %c0_93 = arith.constant 0 : index
    %c640_94 = arith.constant 640 : index
    %169 = vector.load %arg19[%c0_93, %c640_94] : memref<32x896xbf16, #tpu.memory_space<vmem>>, vector<32x128xbf16>
    tpu.vector_store %arg19[%c0_93, %c640_94], %168 {strides = array<i32>} : memref<32x896xbf16, #tpu.memory_space<vmem>>, vector<32x128xbf16>,
    %c19_95 = arith.constant 19 : index
    %c0_96 = arith.constant 0 : index
    %170 = vector.load %arg18[%c19_95, %c0_96] : memref<64x128xbf16, #tpu.memory_space<vmem>>, vector<32x128xbf16>
    %c0_i32_97 = arith.constant 0 : i32
    %171 = arith.sitofp %c0_i32_97 : i32 to bf16
    %172 = vector.shape_cast %72 : vector<32x1xi1> to vector<32x1xi1>
    %173 = vector.broadcast %172 : vector<32x1xi1> to vector<32x128xi1>
    %174 = vector.broadcast %171 : bf16 to vector<32x128xbf16>
    %175 = arith.select %173, %170, %174 : vector<32x128xi1>, vector<32x128xbf16>
    %c0_98 = arith.constant 0 : index
    %c768_99 = arith.constant 768 : index
    %176 = vector.load %arg19[%c0_98, %c768_99] : memref<32x896xbf16, #tpu.memory_space<vmem>>, vector<32x128xbf16>
    tpu.vector_store %arg19[%c0_98, %c768_99], %175 {strides = array<i32>} : memref<32x896xbf16, #tpu.memory_space<vmem>>, vector<32x128xbf16>,
    %c0_100 = arith.constant 0 : index
    %c0_101 = arith.constant 0 : index
    %177 = vector.load %arg19[%c0_100, %c0_101] : memref<32x896xbf16, #tpu.memory_space<vmem>>, vector<32x896xbf16>
    %c0_102 = arith.constant 0 : index
    %c0_103 = arith.constant 0 : index
    %178 = vector.load %arg3[%c0_102, %c0_103] : memref<896x64xbf16, #tpu.memory_space<vmem>>, vector<896x64xbf16>
    %cst_104 = arith.constant dense<0.000000e+00> : vector<32x64xf32>
    %179 = tpu.matmul %177, %178, %cst_104 {dimension_numbers = #tpu.dot_dimension_numbers<[1], [0], [0], [1], [0, 0, 1, 1], [], []>} : vector<32x896xbf16>, vector<896x64xbf16>, vector<32x64xf32> -> vector<32x64xf32>
    %c0_105 = arith.constant 0 : index
    %c0_106 = arith.constant 0 : index
    %180 = vector.load %arg4[%c0_105, %c0_106] : memref<1x64xf32, #tpu.memory_space<vmem>>, vector<1x64xf32>
    %181 = vector.broadcast %180 : vector<1x64xf32> to vector<32x64xf32>
    %182 = arith.addf %179, %181 : vector<32x64xf32>
    %cst_107 = arith.constant 0.000000e+00 : f32
    %183 = vector.broadcast %cst_107 : f32 to vector<32x64xf32>
    %184 = arith.maximumf %182, %183 : vector<32x64xf32>
    %185 = arith.addf %184, %78 : vector<32x64xf32>
    %cst_108 = arith.constant 0.000000e+00 : f32
    %186 = vector.broadcast %cst_108 : f32 to vector<32x64xf32>
    %187 = arith.maximumf %185, %186 : vector<32x64xf32>
    %188 = arith.truncf %187 : vector<32x64xf32> to vector<32x64xbf16>
    %c16_109 = arith.constant 16 : index
    %c0_110 = arith.constant 0 : index
    %189 = vector.load %arg18[%c16_109, %c0_110] : memref<64x128xbf16, #tpu.memory_space<vmem>>, vector<32x64xbf16>
    tpu.vector_store %arg18[%c16_109, %c0_110], %188 {strides = array<i32>} : memref<64x128xbf16, #tpu.memory_space<vmem>>, vector<32x64xbf16>,
    %c-6_i32 = arith.constant -6 : i32
    %190 = vector.broadcast %c-6_i32 : i32 to vector<32x1xi32>
    %191 = arith.addi %6, %190 : vector<32x1xi32>
    %c0_i32_111 = arith.constant 0 : i32
    %192 = vector.broadcast %c0_i32_111 : i32 to vector<32x1xi32>
    %193 = arith.cmpi sge, %191, %192 : vector<32x1xi32>
    %c-6_i32_112 = arith.constant -6 : i32
    %194 = vector.broadcast %c-6_i32_112 : i32 to vector<32x1xi32>
    %195 = arith.addi %6, %194 : vector<32x1xi32>
    %c16_i32_113 = arith.constant 16 : i32
    %196 = vector.broadcast %c16_i32_113 : i32 to vector<32x1xi32>
    %197 = arith.cmpi slt, %195, %196 : vector<32x1xi32>
    %198 = arith.andi %193, %197 : vector<32x1xi1>
    %c-4_i32 = arith.constant -4 : i32
    %199 = vector.broadcast %c-4_i32 : i32 to vector<32x1xi32>
    %200 = arith.addi %6, %199 : vector<32x1xi32>
    %c0_i32_114 = arith.constant 0 : i32
    %201 = vector.broadcast %c0_i32_114 : i32 to vector<32x1xi32>
    %202 = arith.cmpi sge, %200, %201 : vector<32x1xi32>
    %c-4_i32_115 = arith.constant -4 : i32
    %203 = vector.broadcast %c-4_i32_115 : i32 to vector<32x1xi32>
    %204 = arith.addi %6, %203 : vector<32x1xi32>
    %c16_i32_116 = arith.constant 16 : i32
    %205 = vector.broadcast %c16_i32_116 : i32 to vector<32x1xi32>
    %206 = arith.cmpi slt, %204, %205 : vector<32x1xi32>
    %207 = arith.andi %202, %206 : vector<32x1xi1>
    %c-2_i32_117 = arith.constant -2 : i32
    %208 = vector.broadcast %c-2_i32_117 : i32 to vector<32x1xi32>
    %209 = arith.addi %6, %208 : vector<32x1xi32>
    %c0_i32_118 = arith.constant 0 : i32
    %210 = vector.broadcast %c0_i32_118 : i32 to vector<32x1xi32>
    %211 = arith.cmpi sge, %209, %210 : vector<32x1xi32>
    %c-2_i32_119 = arith.constant -2 : i32
    %212 = vector.broadcast %c-2_i32_119 : i32 to vector<32x1xi32>
    %213 = arith.addi %6, %212 : vector<32x1xi32>
    %c16_i32_120 = arith.constant 16 : i32
    %214 = vector.broadcast %c16_i32_120 : i32 to vector<32x1xi32>
    %215 = arith.cmpi slt, %213, %214 : vector<32x1xi32>
    %216 = arith.andi %211, %215 : vector<32x1xi1>
    %c2_i32_121 = arith.constant 2 : i32
    %217 = vector.broadcast %c2_i32_121 : i32 to vector<32x1xi32>
    %218 = arith.addi %6, %217 : vector<32x1xi32>
    %c0_i32_122 = arith.constant 0 : i32
    %219 = vector.broadcast %c0_i32_122 : i32 to vector<32x1xi32>
    %220 = arith.cmpi sge, %218, %219 : vector<32x1xi32>
    %c2_i32_123 = arith.constant 2 : i32
    %221 = vector.broadcast %c2_i32_123 : i32 to vector<32x1xi32>
    %222 = arith.addi %6, %221 : vector<32x1xi32>
    %c16_i32_124 = arith.constant 16 : i32
    %223 = vector.broadcast %c16_i32_124 : i32 to vector<32x1xi32>
    %224 = arith.cmpi slt, %222, %223 : vector<32x1xi32>
    %225 = arith.andi %220, %224 : vector<32x1xi1>
    %c4_i32 = arith.constant 4 : i32
    %226 = vector.broadcast %c4_i32 : i32 to vector<32x1xi32>
    %227 = arith.addi %6, %226 : vector<32x1xi32>
    %c0_i32_125 = arith.constant 0 : i32
    %228 = vector.broadcast %c0_i32_125 : i32 to vector<32x1xi32>
    %229 = arith.cmpi sge, %227, %228 : vector<32x1xi32>
    %c4_i32_126 = arith.constant 4 : i32
    %230 = vector.broadcast %c4_i32_126 : i32 to vector<32x1xi32>
    %231 = arith.addi %6, %230 : vector<32x1xi32>
    %c16_i32_127 = arith.constant 16 : i32
    %232 = vector.broadcast %c16_i32_127 : i32 to vector<32x1xi32>
    %233 = arith.cmpi slt, %231, %232 : vector<32x1xi32>
    %234 = arith.andi %229, %233 : vector<32x1xi1>
    %c6_i32 = arith.constant 6 : i32
    %235 = vector.broadcast %c6_i32 : i32 to vector<32x1xi32>
    %236 = arith.addi %6, %235 : vector<32x1xi32>
    %c0_i32_128 = arith.constant 0 : i32
    %237 = vector.broadcast %c0_i32_128 : i32 to vector<32x1xi32>
    %238 = arith.cmpi sge, %236, %237 : vector<32x1xi32>
    %c6_i32_129 = arith.constant 6 : i32
    %239 = vector.broadcast %c6_i32_129 : i32 to vector<32x1xi32>
    %240 = arith.addi %6, %239 : vector<32x1xi32>
    %c16_i32_130 = arith.constant 16 : i32
    %241 = vector.broadcast %c16_i32_130 : i32 to vector<32x1xi32>
    %242 = arith.cmpi slt, %240, %241 : vector<32x1xi32>
    %243 = arith.andi %238, %242 : vector<32x1xi1>
    %c10 = arith.constant 10 : index
    %c0_131 = arith.constant 0 : index
    %244 = vector.load %arg18[%c10, %c0_131] : memref<64x128xbf16, #tpu.memory_space<vmem>>, vector<32x128xbf16>
    %c0_i32_132 = arith.constant 0 : i32
    %245 = arith.sitofp %c0_i32_132 : i32 to bf16
    %246 = vector.shape_cast %198 : vector<32x1xi1> to vector<32x1xi1>
    %247 = vector.broadcast %246 : vector<32x1xi1> to vector<32x128xi1>
    %248 = vector.broadcast %245 : bf16 to vector<32x128xbf16>
    %249 = arith.select %247, %244, %248 : vector<32x128xi1>, vector<32x128xbf16>
    %c0_133 = arith.constant 0 : index
    %c0_134 = arith.constant 0 : index
    %250 = vector.load %arg19[%c0_133, %c0_134] : memref<32x896xbf16, #tpu.memory_space<vmem>>, vector<32x128xbf16>
    tpu.vector_store %arg19[%c0_133, %c0_134], %249 {strides = array<i32>} : memref<32x896xbf16, #tpu.memory_space<vmem>>, vector<32x128xbf16>,
    %c12 = arith.constant 12 : index
    %c0_135 = arith.constant 0 : index
    %251 = vector.load %arg18[%c12, %c0_135] : memref<64x128xbf16, #tpu.memory_space<vmem>>, vector<32x128xbf16>
    %c0_i32_136 = arith.constant 0 : i32
    %252 = arith.sitofp %c0_i32_136 : i32 to bf16
    %253 = vector.shape_cast %207 : vector<32x1xi1> to vector<32x1xi1>
    %254 = vector.broadcast %253 : vector<32x1xi1> to vector<32x128xi1>
    %255 = vector.broadcast %252 : bf16 to vector<32x128xbf16>
    %256 = arith.select %254, %251, %255 : vector<32x128xi1>, vector<32x128xbf16>
    %c0_137 = arith.constant 0 : index
    %c128_138 = arith.constant 128 : index
    %257 = vector.load %arg19[%c0_137, %c128_138] : memref<32x896xbf16, #tpu.memory_space<vmem>>, vector<32x128xbf16>
    tpu.vector_store %arg19[%c0_137, %c128_138], %256 {strides = array<i32>} : memref<32x896xbf16, #tpu.memory_space<vmem>>, vector<32x128xbf16>,
    %c14_139 = arith.constant 14 : index
    %c0_140 = arith.constant 0 : index
    %258 = vector.load %arg18[%c14_139, %c0_140] : memref<64x128xbf16, #tpu.memory_space<vmem>>, vector<32x128xbf16>
    %c0_i32_141 = arith.constant 0 : i32
    %259 = arith.sitofp %c0_i32_141 : i32 to bf16
    %260 = vector.shape_cast %216 : vector<32x1xi1> to vector<32x1xi1>
    %261 = vector.broadcast %260 : vector<32x1xi1> to vector<32x128xi1>
    %262 = vector.broadcast %259 : bf16 to vector<32x128xbf16>
    %263 = arith.select %261, %258, %262 : vector<32x128xi1>, vector<32x128xbf16>
    %c0_142 = arith.constant 0 : index
    %c256_143 = arith.constant 256 : index
    %264 = vector.load %arg19[%c0_142, %c256_143] : memref<32x896xbf16, #tpu.memory_space<vmem>>, vector<32x128xbf16>
    tpu.vector_store %arg19[%c0_142, %c256_143], %263 {strides = array<i32>} : memref<32x896xbf16, #tpu.memory_space<vmem>>, vector<32x128xbf16>,
    %c16_144 = arith.constant 16 : index
    %c0_145 = arith.constant 0 : index
    %265 = vector.load %arg18[%c16_144, %c0_145] : memref<64x128xbf16, #tpu.memory_space<vmem>>, vector<32x128xbf16>
    %c0_146 = arith.constant 0 : index
    %c384_147 = arith.constant 384 : index
    %266 = vector.load %arg19[%c0_146, %c384_147] : memref<32x896xbf16, #tpu.memory_space<vmem>>, vector<32x128xbf16>
    tpu.vector_store %arg19[%c0_146, %c384_147], %265 {strides = array<i32>} : memref<32x896xbf16, #tpu.memory_space<vmem>>, vector<32x128xbf16>,
    %c18_148 = arith.constant 18 : index
    %c0_149 = arith.constant 0 : index
    %267 = vector.load %arg18[%c18_148, %c0_149] : memref<64x128xbf16, #tpu.memory_space<vmem>>, vector<32x128xbf16>
    %c0_i32_150 = arith.constant 0 : i32
    %268 = arith.sitofp %c0_i32_150 : i32 to bf16
    %269 = vector.shape_cast %225 : vector<32x1xi1> to vector<32x1xi1>
    %270 = vector.broadcast %269 : vector<32x1xi1> to vector<32x128xi1>
    %271 = vector.broadcast %268 : bf16 to vector<32x128xbf16>
    %272 = arith.select %270, %267, %271 : vector<32x128xi1>, vector<32x128xbf16>
    %c0_151 = arith.constant 0 : index
    %c512_152 = arith.constant 512 : index
    %273 = vector.load %arg19[%c0_151, %c512_152] : memref<32x896xbf16, #tpu.memory_space<vmem>>, vector<32x128xbf16>
    tpu.vector_store %arg19[%c0_151, %c512_152], %272 {strides = array<i32>} : memref<32x896xbf16, #tpu.memory_space<vmem>>, vector<32x128xbf16>,
    %c20 = arith.constant 20 : index
    %c0_153 = arith.constant 0 : index
    %274 = vector.load %arg18[%c20, %c0_153] : memref<64x128xbf16, #tpu.memory_space<vmem>>, vector<32x128xbf16>
    %c0_i32_154 = arith.constant 0 : i32
    %275 = arith.sitofp %c0_i32_154 : i32 to bf16
    %276 = vector.shape_cast %234 : vector<32x1xi1> to vector<32x1xi1>
    %277 = vector.broadcast %276 : vector<32x1xi1> to vector<32x128xi1>
    %278 = vector.broadcast %275 : bf16 to vector<32x128xbf16>
    %279 = arith.select %277, %274, %278 : vector<32x128xi1>, vector<32x128xbf16>
    %c0_155 = arith.constant 0 : index
    %c640_156 = arith.constant 640 : index
    %280 = vector.load %arg19[%c0_155, %c640_156] : memref<32x896xbf16, #tpu.memory_space<vmem>>, vector<32x128xbf16>
    tpu.vector_store %arg19[%c0_155, %c640_156], %279 {strides = array<i32>} : memref<32x896xbf16, #tpu.memory_space<vmem>>, vector<32x128xbf16>,
    %c22 = arith.constant 22 : index
    %c0_157 = arith.constant 0 : index
    %281 = vector.load %arg18[%c22, %c0_157] : memref<64x128xbf16, #tpu.memory_space<vmem>>, vector<32x128xbf16>
    %c0_i32_158 = arith.constant 0 : i32
    %282 = arith.sitofp %c0_i32_158 : i32 to bf16
    %283 = vector.shape_cast %243 : vector<32x1xi1> to vector<32x1xi1>
    %284 = vector.broadcast %283 : vector<32x1xi1> to vector<32x128xi1>
    %285 = vector.broadcast %282 : bf16 to vector<32x128xbf16>
    %286 = arith.select %284, %281, %285 : vector<32x128xi1>, vector<32x128xbf16>
    %c0_159 = arith.constant 0 : index
    %c768_160 = arith.constant 768 : index
    %287 = vector.load %arg19[%c0_159, %c768_160] : memref<32x896xbf16, #tpu.memory_space<vmem>>, vector<32x128xbf16>
    tpu.vector_store %arg19[%c0_159, %c768_160], %286 {strides = array<i32>} : memref<32x896xbf16, #tpu.memory_space<vmem>>, vector<32x128xbf16>,
    %c0_161 = arith.constant 0 : index
    %c0_162 = arith.constant 0 : index
    %288 = vector.load %arg19[%c0_161, %c0_162] : memref<32x896xbf16, #tpu.memory_space<vmem>>, vector<32x896xbf16>
    %c0_163 = arith.constant 0 : index
    %c0_164 = arith.constant 0 : index
    %289 = vector.load %arg7[%c0_163, %c0_164] : memref<896x64xbf16, #tpu.memory_space<vmem>>, vector<896x64xbf16>
    %cst_165 = arith.constant dense<0.000000e+00> : vector<32x64xf32>
    %290 = tpu.matmul %288, %289, %cst_165 {dimension_numbers = #tpu.dot_dimension_numbers<[1], [0], [0], [1], [0, 0, 1, 1], [], []>} : vector<32x896xbf16>, vector<896x64xbf16>, vector<32x64xf32> -> vector<32x64xf32>
    %c0_166 = arith.constant 0 : index
    %c0_167 = arith.constant 0 : index
    %291 = vector.load %arg8[%c0_166, %c0_167] : memref<1x64xf32, #tpu.memory_space<vmem>>, vector<1x64xf32>
    %292 = vector.broadcast %291 : vector<1x64xf32> to vector<32x64xf32>
    %293 = arith.addf %290, %292 : vector<32x64xf32>
    %cst_168 = arith.constant 0.000000e+00 : f32
    %294 = vector.broadcast %cst_168 : f32 to vector<32x64xf32>
    %295 = arith.maximumf %293, %294 : vector<32x64xf32>
    %296 = arith.truncf %295 : vector<32x64xf32> to vector<32x64xbf16>
    %c16_169 = arith.constant 16 : index
    %c0_170 = arith.constant 0 : index
    %297 = vector.load %arg18[%c16_169, %c0_170] : memref<64x128xbf16, #tpu.memory_space<vmem>>, vector<32x64xbf16>
    tpu.vector_store %arg18[%c16_169, %c0_170], %296 {strides = array<i32>} : memref<64x128xbf16, #tpu.memory_space<vmem>>, vector<32x64xbf16>,
    %c10_171 = arith.constant 10 : index
    %c0_172 = arith.constant 0 : index
    %298 = vector.load %arg18[%c10_171, %c0_172] : memref<64x128xbf16, #tpu.memory_space<vmem>>, vector<32x128xbf16>
    %c0_i32_173 = arith.constant 0 : i32
    %299 = arith.sitofp %c0_i32_173 : i32 to bf16
    %300 = vector.shape_cast %198 : vector<32x1xi1> to vector<32x1xi1>
    %301 = vector.broadcast %300 : vector<32x1xi1> to vector<32x128xi1>
    %302 = vector.broadcast %299 : bf16 to vector<32x128xbf16>
    %303 = arith.select %301, %298, %302 : vector<32x128xi1>, vector<32x128xbf16>
    %c0_174 = arith.constant 0 : index
    %c0_175 = arith.constant 0 : index
    %304 = vector.load %arg19[%c0_174, %c0_175] : memref<32x896xbf16, #tpu.memory_space<vmem>>, vector<32x128xbf16>
    tpu.vector_store %arg19[%c0_174, %c0_175], %303 {strides = array<i32>} : memref<32x896xbf16, #tpu.memory_space<vmem>>, vector<32x128xbf16>,
    %c12_176 = arith.constant 12 : index
    %c0_177 = arith.constant 0 : index
    %305 = vector.load %arg18[%c12_176, %c0_177] : memref<64x128xbf16, #tpu.memory_space<vmem>>, vector<32x128xbf16>
    %c0_i32_178 = arith.constant 0 : i32
    %306 = arith.sitofp %c0_i32_178 : i32 to bf16
    %307 = vector.shape_cast %207 : vector<32x1xi1> to vector<32x1xi1>
    %308 = vector.broadcast %307 : vector<32x1xi1> to vector<32x128xi1>
    %309 = vector.broadcast %306 : bf16 to vector<32x128xbf16>
    %310 = arith.select %308, %305, %309 : vector<32x128xi1>, vector<32x128xbf16>
    %c0_179 = arith.constant 0 : index
    %c128_180 = arith.constant 128 : index
    %311 = vector.load %arg19[%c0_179, %c128_180] : memref<32x896xbf16, #tpu.memory_space<vmem>>, vector<32x128xbf16>
    tpu.vector_store %arg19[%c0_179, %c128_180], %310 {strides = array<i32>} : memref<32x896xbf16, #tpu.memory_space<vmem>>, vector<32x128xbf16>,
    %c14_181 = arith.constant 14 : index
    %c0_182 = arith.constant 0 : index
    %312 = vector.load %arg18[%c14_181, %c0_182] : memref<64x128xbf16, #tpu.memory_space<vmem>>, vector<32x128xbf16>
    %c0_i32_183 = arith.constant 0 : i32
    %313 = arith.sitofp %c0_i32_183 : i32 to bf16
    %314 = vector.shape_cast %216 : vector<32x1xi1> to vector<32x1xi1>
    %315 = vector.broadcast %314 : vector<32x1xi1> to vector<32x128xi1>
    %316 = vector.broadcast %313 : bf16 to vector<32x128xbf16>
    %317 = arith.select %315, %312, %316 : vector<32x128xi1>, vector<32x128xbf16>
    %c0_184 = arith.constant 0 : index
    %c256_185 = arith.constant 256 : index
    %318 = vector.load %arg19[%c0_184, %c256_185] : memref<32x896xbf16, #tpu.memory_space<vmem>>, vector<32x128xbf16>
    tpu.vector_store %arg19[%c0_184, %c256_185], %317 {strides = array<i32>} : memref<32x896xbf16, #tpu.memory_space<vmem>>, vector<32x128xbf16>,
    %c16_186 = arith.constant 16 : index
    %c0_187 = arith.constant 0 : index
    %319 = vector.load %arg18[%c16_186, %c0_187] : memref<64x128xbf16, #tpu.memory_space<vmem>>, vector<32x128xbf16>
    %c0_188 = arith.constant 0 : index
    %c384_189 = arith.constant 384 : index
    %320 = vector.load %arg19[%c0_188, %c384_189] : memref<32x896xbf16, #tpu.memory_space<vmem>>, vector<32x128xbf16>
    tpu.vector_store %arg19[%c0_188, %c384_189], %319 {strides = array<i32>} : memref<32x896xbf16, #tpu.memory_space<vmem>>, vector<32x128xbf16>,
    %c18_190 = arith.constant 18 : index
    %c0_191 = arith.constant 0 : index
    %321 = vector.load %arg18[%c18_190, %c0_191] : memref<64x128xbf16, #tpu.memory_space<vmem>>, vector<32x128xbf16>
    %c0_i32_192 = arith.constant 0 : i32
    %322 = arith.sitofp %c0_i32_192 : i32 to bf16
    %323 = vector.shape_cast %225 : vector<32x1xi1> to vector<32x1xi1>
    %324 = vector.broadcast %323 : vector<32x1xi1> to vector<32x128xi1>
    %325 = vector.broadcast %322 : bf16 to vector<32x128xbf16>
    %326 = arith.select %324, %321, %325 : vector<32x128xi1>, vector<32x128xbf16>
    %c0_193 = arith.constant 0 : index
    %c512_194 = arith.constant 512 : index
    %327 = vector.load %arg19[%c0_193, %c512_194] : memref<32x896xbf16, #tpu.memory_space<vmem>>, vector<32x128xbf16>
    tpu.vector_store %arg19[%c0_193, %c512_194], %326 {strides = array<i32>} : memref<32x896xbf16, #tpu.memory_space<vmem>>, vector<32x128xbf16>,
    %c20_195 = arith.constant 20 : index
    %c0_196 = arith.constant 0 : index
    %328 = vector.load %arg18[%c20_195, %c0_196] : memref<64x128xbf16, #tpu.memory_space<vmem>>, vector<32x128xbf16>
    %c0_i32_197 = arith.constant 0 : i32
    %329 = arith.sitofp %c0_i32_197 : i32 to bf16
    %330 = vector.shape_cast %234 : vector<32x1xi1> to vector<32x1xi1>
    %331 = vector.broadcast %330 : vector<32x1xi1> to vector<32x128xi1>
    %332 = vector.broadcast %329 : bf16 to vector<32x128xbf16>
    %333 = arith.select %331, %328, %332 : vector<32x128xi1>, vector<32x128xbf16>
    %c0_198 = arith.constant 0 : index
    %c640_199 = arith.constant 640 : index
    %334 = vector.load %arg19[%c0_198, %c640_199] : memref<32x896xbf16, #tpu.memory_space<vmem>>, vector<32x128xbf16>
    tpu.vector_store %arg19[%c0_198, %c640_199], %333 {strides = array<i32>} : memref<32x896xbf16, #tpu.memory_space<vmem>>, vector<32x128xbf16>,
    %c22_200 = arith.constant 22 : index
    %c0_201 = arith.constant 0 : index
    %335 = vector.load %arg18[%c22_200, %c0_201] : memref<64x128xbf16, #tpu.memory_space<vmem>>, vector<32x128xbf16>
    %c0_i32_202 = arith.constant 0 : i32
    %336 = arith.sitofp %c0_i32_202 : i32 to bf16
    %337 = vector.shape_cast %243 : vector<32x1xi1> to vector<32x1xi1>
    %338 = vector.broadcast %337 : vector<32x1xi1> to vector<32x128xi1>
    %339 = vector.broadcast %336 : bf16 to vector<32x128xbf16>
    %340 = arith.select %338, %335, %339 : vector<32x128xi1>, vector<32x128xbf16>
    %c0_203 = arith.constant 0 : index
    %c768_204 = arith.constant 768 : index
    %341 = vector.load %arg19[%c0_203, %c768_204] : memref<32x896xbf16, #tpu.memory_space<vmem>>, vector<32x128xbf16>
    tpu.vector_store %arg19[%c0_203, %c768_204], %340 {strides = array<i32>} : memref<32x896xbf16, #tpu.memory_space<vmem>>, vector<32x128xbf16>,
    %c0_205 = arith.constant 0 : index
    %c0_206 = arith.constant 0 : index
    %342 = vector.load %arg19[%c0_205, %c0_206] : memref<32x896xbf16, #tpu.memory_space<vmem>>, vector<32x896xbf16>
    %c0_207 = arith.constant 0 : index
    %c0_208 = arith.constant 0 : index
    %343 = vector.load %arg9[%c0_207, %c0_208] : memref<896x64xbf16, #tpu.memory_space<vmem>>, vector<896x64xbf16>
    %cst_209 = arith.constant dense<0.000000e+00> : vector<32x64xf32>
    %344 = tpu.matmul %342, %343, %cst_209 {dimension_numbers = #tpu.dot_dimension_numbers<[1], [0], [0], [1], [0, 0, 1, 1], [], []>} : vector<32x896xbf16>, vector<896x64xbf16>, vector<32x64xf32> -> vector<32x64xf32>
    %c0_210 = arith.constant 0 : index
    %c0_211 = arith.constant 0 : index
    %345 = vector.load %arg10[%c0_210, %c0_211] : memref<1x64xf32, #tpu.memory_space<vmem>>, vector<1x64xf32>
    %346 = vector.broadcast %345 : vector<1x64xf32> to vector<32x64xf32>
    %347 = arith.addf %344, %346 : vector<32x64xf32>
    %cst_212 = arith.constant 0.000000e+00 : f32
    %348 = vector.broadcast %cst_212 : f32 to vector<32x64xf32>
    %349 = arith.maximumf %347, %348 : vector<32x64xf32>
    %350 = arith.addf %349, %187 : vector<32x64xf32>
    %cst_213 = arith.constant 0.000000e+00 : f32
    %351 = vector.broadcast %cst_213 : f32 to vector<32x64xf32>
    %352 = arith.maximumf %350, %351 : vector<32x64xf32>
    %353 = arith.truncf %352 : vector<32x64xf32> to vector<32x64xbf16>
    %c16_214 = arith.constant 16 : index
    %c0_215 = arith.constant 0 : index
    %354 = vector.load %arg18[%c16_214, %c0_215] : memref<64x128xbf16, #tpu.memory_space<vmem>>, vector<32x64xbf16>
    tpu.vector_store %arg18[%c16_214, %c0_215], %353 {strides = array<i32>} : memref<64x128xbf16, #tpu.memory_space<vmem>>, vector<32x64xbf16>,
    %c-12_i32 = arith.constant -12 : i32
    %355 = vector.broadcast %c-12_i32 : i32 to vector<32x1xi32>
    %356 = arith.addi %6, %355 : vector<32x1xi32>
    %c0_i32_216 = arith.constant 0 : i32
    %357 = vector.broadcast %c0_i32_216 : i32 to vector<32x1xi32>
    %358 = arith.cmpi sge, %356, %357 : vector<32x1xi32>
    %c-12_i32_217 = arith.constant -12 : i32
    %359 = vector.broadcast %c-12_i32_217 : i32 to vector<32x1xi32>
    %360 = arith.addi %6, %359 : vector<32x1xi32>
    %c16_i32_218 = arith.constant 16 : i32
    %361 = vector.broadcast %c16_i32_218 : i32 to vector<32x1xi32>
    %362 = arith.cmpi slt, %360, %361 : vector<32x1xi32>
    %363 = arith.andi %358, %362 : vector<32x1xi1>
    %c-8_i32 = arith.constant -8 : i32
    %364 = vector.broadcast %c-8_i32 : i32 to vector<32x1xi32>
    %365 = arith.addi %6, %364 : vector<32x1xi32>
    %c0_i32_219 = arith.constant 0 : i32
    %366 = vector.broadcast %c0_i32_219 : i32 to vector<32x1xi32>
    %367 = arith.cmpi sge, %365, %366 : vector<32x1xi32>
    %c-8_i32_220 = arith.constant -8 : i32
    %368 = vector.broadcast %c-8_i32_220 : i32 to vector<32x1xi32>
    %369 = arith.addi %6, %368 : vector<32x1xi32>
    %c16_i32_221 = arith.constant 16 : i32
    %370 = vector.broadcast %c16_i32_221 : i32 to vector<32x1xi32>
    %371 = arith.cmpi slt, %369, %370 : vector<32x1xi32>
    %372 = arith.andi %367, %371 : vector<32x1xi1>
    %c-4_i32_222 = arith.constant -4 : i32
    %373 = vector.broadcast %c-4_i32_222 : i32 to vector<32x1xi32>
    %374 = arith.addi %6, %373 : vector<32x1xi32>
    %c0_i32_223 = arith.constant 0 : i32
    %375 = vector.broadcast %c0_i32_223 : i32 to vector<32x1xi32>
    %376 = arith.cmpi sge, %374, %375 : vector<32x1xi32>
    %c-4_i32_224 = arith.constant -4 : i32
    %377 = vector.broadcast %c-4_i32_224 : i32 to vector<32x1xi32>
    %378 = arith.addi %6, %377 : vector<32x1xi32>
    %c16_i32_225 = arith.constant 16 : i32
    %379 = vector.broadcast %c16_i32_225 : i32 to vector<32x1xi32>
    %380 = arith.cmpi slt, %378, %379 : vector<32x1xi32>
    %381 = arith.andi %376, %380 : vector<32x1xi1>
    %c4_i32_226 = arith.constant 4 : i32
    %382 = vector.broadcast %c4_i32_226 : i32 to vector<32x1xi32>
    %383 = arith.addi %6, %382 : vector<32x1xi32>
    %c0_i32_227 = arith.constant 0 : i32
    %384 = vector.broadcast %c0_i32_227 : i32 to vector<32x1xi32>
    %385 = arith.cmpi sge, %383, %384 : vector<32x1xi32>
    %c4_i32_228 = arith.constant 4 : i32
    %386 = vector.broadcast %c4_i32_228 : i32 to vector<32x1xi32>
    %387 = arith.addi %6, %386 : vector<32x1xi32>
    %c16_i32_229 = arith.constant 16 : i32
    %388 = vector.broadcast %c16_i32_229 : i32 to vector<32x1xi32>
    %389 = arith.cmpi slt, %387, %388 : vector<32x1xi32>
    %390 = arith.andi %385, %389 : vector<32x1xi1>
    %c8_i32 = arith.constant 8 : i32
    %391 = vector.broadcast %c8_i32 : i32 to vector<32x1xi32>
    %392 = arith.addi %6, %391 : vector<32x1xi32>
    %c0_i32_230 = arith.constant 0 : i32
    %393 = vector.broadcast %c0_i32_230 : i32 to vector<32x1xi32>
    %394 = arith.cmpi sge, %392, %393 : vector<32x1xi32>
    %c8_i32_231 = arith.constant 8 : i32
    %395 = vector.broadcast %c8_i32_231 : i32 to vector<32x1xi32>
    %396 = arith.addi %6, %395 : vector<32x1xi32>
    %c16_i32_232 = arith.constant 16 : i32
    %397 = vector.broadcast %c16_i32_232 : i32 to vector<32x1xi32>
    %398 = arith.cmpi slt, %396, %397 : vector<32x1xi32>
    %399 = arith.andi %394, %398 : vector<32x1xi1>
    %c12_i32 = arith.constant 12 : i32
    %400 = vector.broadcast %c12_i32 : i32 to vector<32x1xi32>
    %401 = arith.addi %6, %400 : vector<32x1xi32>
    %c0_i32_233 = arith.constant 0 : i32
    %402 = vector.broadcast %c0_i32_233 : i32 to vector<32x1xi32>
    %403 = arith.cmpi sge, %401, %402 : vector<32x1xi32>
    %c12_i32_234 = arith.constant 12 : i32
    %404 = vector.broadcast %c12_i32_234 : i32 to vector<32x1xi32>
    %405 = arith.addi %6, %404 : vector<32x1xi32>
    %c16_i32_235 = arith.constant 16 : i32
    %406 = vector.broadcast %c16_i32_235 : i32 to vector<32x1xi32>
    %407 = arith.cmpi slt, %405, %406 : vector<32x1xi32>
    %408 = arith.andi %403, %407 : vector<32x1xi1>
    %c4 = arith.constant 4 : index
    %c0_236 = arith.constant 0 : index
    %409 = vector.load %arg18[%c4, %c0_236] : memref<64x128xbf16, #tpu.memory_space<vmem>>, vector<32x128xbf16>
    %c0_i32_237 = arith.constant 0 : i32
    %410 = arith.sitofp %c0_i32_237 : i32 to bf16
    %411 = vector.shape_cast %363 : vector<32x1xi1> to vector<32x1xi1>
    %412 = vector.broadcast %411 : vector<32x1xi1> to vector<32x128xi1>
    %413 = vector.broadcast %410 : bf16 to vector<32x128xbf16>
    %414 = arith.select %412, %409, %413 : vector<32x128xi1>, vector<32x128xbf16>
    %c0_238 = arith.constant 0 : index
    %c0_239 = arith.constant 0 : index
    %415 = vector.load %arg19[%c0_238, %c0_239] : memref<32x896xbf16, #tpu.memory_space<vmem>>, vector<32x128xbf16>
    tpu.vector_store %arg19[%c0_238, %c0_239], %414 {strides = array<i32>} : memref<32x896xbf16, #tpu.memory_space<vmem>>, vector<32x128xbf16>,
    %c8 = arith.constant 8 : index
    %c0_240 = arith.constant 0 : index
    %416 = vector.load %arg18[%c8, %c0_240] : memref<64x128xbf16, #tpu.memory_space<vmem>>, vector<32x128xbf16>
    %c0_i32_241 = arith.constant 0 : i32
    %417 = arith.sitofp %c0_i32_241 : i32 to bf16
    %418 = vector.shape_cast %372 : vector<32x1xi1> to vector<32x1xi1>
    %419 = vector.broadcast %418 : vector<32x1xi1> to vector<32x128xi1>
    %420 = vector.broadcast %417 : bf16 to vector<32x128xbf16>
    %421 = arith.select %419, %416, %420 : vector<32x128xi1>, vector<32x128xbf16>
    %c0_242 = arith.constant 0 : index
    %c128_243 = arith.constant 128 : index
    %422 = vector.load %arg19[%c0_242, %c128_243] : memref<32x896xbf16, #tpu.memory_space<vmem>>, vector<32x128xbf16>
    tpu.vector_store %arg19[%c0_242, %c128_243], %421 {strides = array<i32>} : memref<32x896xbf16, #tpu.memory_space<vmem>>, vector<32x128xbf16>,
    %c12_244 = arith.constant 12 : index
    %c0_245 = arith.constant 0 : index
    %423 = vector.load %arg18[%c12_244, %c0_245] : memref<64x128xbf16, #tpu.memory_space<vmem>>, vector<32x128xbf16>
    %c0_i32_246 = arith.constant 0 : i32
    %424 = arith.sitofp %c0_i32_246 : i32 to bf16
    %425 = vector.shape_cast %381 : vector<32x1xi1> to vector<32x1xi1>
    %426 = vector.broadcast %425 : vector<32x1xi1> to vector<32x128xi1>
    %427 = vector.broadcast %424 : bf16 to vector<32x128xbf16>
    %428 = arith.select %426, %423, %427 : vector<32x128xi1>, vector<32x128xbf16>
    %c0_247 = arith.constant 0 : index
    %c256_248 = arith.constant 256 : index
    %429 = vector.load %arg19[%c0_247, %c256_248] : memref<32x896xbf16, #tpu.memory_space<vmem>>, vector<32x128xbf16>
    tpu.vector_store %arg19[%c0_247, %c256_248], %428 {strides = array<i32>} : memref<32x896xbf16, #tpu.memory_space<vmem>>, vector<32x128xbf16>,
    %c16_249 = arith.constant 16 : index
    %c0_250 = arith.constant 0 : index
    %430 = vector.load %arg18[%c16_249, %c0_250] : memref<64x128xbf16, #tpu.memory_space<vmem>>, vector<32x128xbf16>
    %c0_251 = arith.constant 0 : index
    %c384_252 = arith.constant 384 : index
    %431 = vector.load %arg19[%c0_251, %c384_252] : memref<32x896xbf16, #tpu.memory_space<vmem>>, vector<32x128xbf16>
    tpu.vector_store %arg19[%c0_251, %c384_252], %430 {strides = array<i32>} : memref<32x896xbf16, #tpu.memory_space<vmem>>, vector<32x128xbf16>,
    %c20_253 = arith.constant 20 : index
    %c0_254 = arith.constant 0 : index
    %432 = vector.load %arg18[%c20_253, %c0_254] : memref<64x128xbf16, #tpu.memory_space<vmem>>, vector<32x128xbf16>
    %c0_i32_255 = arith.constant 0 : i32
    %433 = arith.sitofp %c0_i32_255 : i32 to bf16
    %434 = vector.shape_cast %390 : vector<32x1xi1> to vector<32x1xi1>
    %435 = vector.broadcast %434 : vector<32x1xi1> to vector<32x128xi1>
    %436 = vector.broadcast %433 : bf16 to vector<32x128xbf16>
    %437 = arith.select %435, %432, %436 : vector<32x128xi1>, vector<32x128xbf16>
    %c0_256 = arith.constant 0 : index
    %c512_257 = arith.constant 512 : index
    %438 = vector.load %arg19[%c0_256, %c512_257] : memref<32x896xbf16, #tpu.memory_space<vmem>>, vector<32x128xbf16>
    tpu.vector_store %arg19[%c0_256, %c512_257], %437 {strides = array<i32>} : memref<32x896xbf16, #tpu.memory_space<vmem>>, vector<32x128xbf16>,
    %c24 = arith.constant 24 : index
    %c0_258 = arith.constant 0 : index
    %439 = vector.load %arg18[%c24, %c0_258] : memref<64x128xbf16, #tpu.memory_space<vmem>>, vector<32x128xbf16>
    %c0_i32_259 = arith.constant 0 : i32
    %440 = arith.sitofp %c0_i32_259 : i32 to bf16
    %441 = vector.shape_cast %399 : vector<32x1xi1> to vector<32x1xi1>
    %442 = vector.broadcast %441 : vector<32x1xi1> to vector<32x128xi1>
    %443 = vector.broadcast %440 : bf16 to vector<32x128xbf16>
    %444 = arith.select %442, %439, %443 : vector<32x128xi1>, vector<32x128xbf16>
    %c0_260 = arith.constant 0 : index
    %c640_261 = arith.constant 640 : index
    %445 = vector.load %arg19[%c0_260, %c640_261] : memref<32x896xbf16, #tpu.memory_space<vmem>>, vector<32x128xbf16>
    tpu.vector_store %arg19[%c0_260, %c640_261], %444 {strides = array<i32>} : memref<32x896xbf16, #tpu.memory_space<vmem>>, vector<32x128xbf16>,
    %c28 = arith.constant 28 : index
    %c0_262 = arith.constant 0 : index
    %446 = vector.load %arg18[%c28, %c0_262] : memref<64x128xbf16, #tpu.memory_space<vmem>>, vector<32x128xbf16>
    %c0_i32_263 = arith.constant 0 : i32
    %447 = arith.sitofp %c0_i32_263 : i32 to bf16
    %448 = vector.shape_cast %408 : vector<32x1xi1> to vector<32x1xi1>
    %449 = vector.broadcast %448 : vector<32x1xi1> to vector<32x128xi1>
    %450 = vector.broadcast %447 : bf16 to vector<32x128xbf16>
    %451 = arith.select %449, %446, %450 : vector<32x128xi1>, vector<32x128xbf16>
    %c0_264 = arith.constant 0 : index
    %c768_265 = arith.constant 768 : index
    %452 = vector.load %arg19[%c0_264, %c768_265] : memref<32x896xbf16, #tpu.memory_space<vmem>>, vector<32x128xbf16>
    tpu.vector_store %arg19[%c0_264, %c768_265], %451 {strides = array<i32>} : memref<32x896xbf16, #tpu.memory_space<vmem>>, vector<32x128xbf16>,
    %c0_266 = arith.constant 0 : index
    %c0_267 = arith.constant 0 : index
    %453 = vector.load %arg19[%c0_266, %c0_267] : memref<32x896xbf16, #tpu.memory_space<vmem>>, vector<32x896xbf16>
    %c0_268 = arith.constant 0 : index
    %c0_269 = arith.constant 0 : index
    %454 = vector.load %arg11[%c0_268, %c0_269] : memref<896x64xbf16, #tpu.memory_space<vmem>>, vector<896x64xbf16>
    %cst_270 = arith.constant dense<0.000000e+00> : vector<32x64xf32>
    %455 = tpu.matmul %453, %454, %cst_270 {dimension_numbers = #tpu.dot_dimension_numbers<[1], [0], [0], [1], [0, 0, 1, 1], [], []>} : vector<32x896xbf16>, vector<896x64xbf16>, vector<32x64xf32> -> vector<32x64xf32>
    %c0_271 = arith.constant 0 : index
    %c0_272 = arith.constant 0 : index
    %456 = vector.load %arg12[%c0_271, %c0_272] : memref<1x64xf32, #tpu.memory_space<vmem>>, vector<1x64xf32>
    %457 = vector.broadcast %456 : vector<1x64xf32> to vector<32x64xf32>
    %458 = arith.addf %455, %457 : vector<32x64xf32>
    %cst_273 = arith.constant 0.000000e+00 : f32
    %459 = vector.broadcast %cst_273 : f32 to vector<32x64xf32>
    %460 = arith.maximumf %458, %459 : vector<32x64xf32>
    %461 = arith.truncf %460 : vector<32x64xf32> to vector<32x64xbf16>
    %c16_274 = arith.constant 16 : index
    %c0_275 = arith.constant 0 : index
    %462 = vector.load %arg18[%c16_274, %c0_275] : memref<64x128xbf16, #tpu.memory_space<vmem>>, vector<32x64xbf16>
    tpu.vector_store %arg18[%c16_274, %c0_275], %461 {strides = array<i32>} : memref<64x128xbf16, #tpu.memory_space<vmem>>, vector<32x64xbf16>,
    %c4_276 = arith.constant 4 : index
    %c0_277 = arith.constant 0 : index
    %463 = vector.load %arg18[%c4_276, %c0_277] : memref<64x128xbf16, #tpu.memory_space<vmem>>, vector<32x128xbf16>
    %c0_i32_278 = arith.constant 0 : i32
    %464 = arith.sitofp %c0_i32_278 : i32 to bf16
    %465 = vector.shape_cast %363 : vector<32x1xi1> to vector<32x1xi1>
    %466 = vector.broadcast %465 : vector<32x1xi1> to vector<32x128xi1>
    %467 = vector.broadcast %464 : bf16 to vector<32x128xbf16>
    %468 = arith.select %466, %463, %467 : vector<32x128xi1>, vector<32x128xbf16>
    %c0_279 = arith.constant 0 : index
    %c0_280 = arith.constant 0 : index
    %469 = vector.load %arg19[%c0_279, %c0_280] : memref<32x896xbf16, #tpu.memory_space<vmem>>, vector<32x128xbf16>
    tpu.vector_store %arg19[%c0_279, %c0_280], %468 {strides = array<i32>} : memref<32x896xbf16, #tpu.memory_space<vmem>>, vector<32x128xbf16>,
    %c8_281 = arith.constant 8 : index
    %c0_282 = arith.constant 0 : index
    %470 = vector.load %arg18[%c8_281, %c0_282] : memref<64x128xbf16, #tpu.memory_space<vmem>>, vector<32x128xbf16>
    %c0_i32_283 = arith.constant 0 : i32
    %471 = arith.sitofp %c0_i32_283 : i32 to bf16
    %472 = vector.shape_cast %372 : vector<32x1xi1> to vector<32x1xi1>
    %473 = vector.broadcast %472 : vector<32x1xi1> to vector<32x128xi1>
    %474 = vector.broadcast %471 : bf16 to vector<32x128xbf16>
    %475 = arith.select %473, %470, %474 : vector<32x128xi1>, vector<32x128xbf16>
    %c0_284 = arith.constant 0 : index
    %c128_285 = arith.constant 128 : index
    %476 = vector.load %arg19[%c0_284, %c128_285] : memref<32x896xbf16, #tpu.memory_space<vmem>>, vector<32x128xbf16>
    tpu.vector_store %arg19[%c0_284, %c128_285], %475 {strides = array<i32>} : memref<32x896xbf16, #tpu.memory_space<vmem>>, vector<32x128xbf16>,
    %c12_286 = arith.constant 12 : index
    %c0_287 = arith.constant 0 : index
    %477 = vector.load %arg18[%c12_286, %c0_287] : memref<64x128xbf16, #tpu.memory_space<vmem>>, vector<32x128xbf16>
    %c0_i32_288 = arith.constant 0 : i32
    %478 = arith.sitofp %c0_i32_288 : i32 to bf16
    %479 = vector.shape_cast %381 : vector<32x1xi1> to vector<32x1xi1>
    %480 = vector.broadcast %479 : vector<32x1xi1> to vector<32x128xi1>
    %481 = vector.broadcast %478 : bf16 to vector<32x128xbf16>
    %482 = arith.select %480, %477, %481 : vector<32x128xi1>, vector<32x128xbf16>
    %c0_289 = arith.constant 0 : index
    %c256_290 = arith.constant 256 : index
    %483 = vector.load %arg19[%c0_289, %c256_290] : memref<32x896xbf16, #tpu.memory_space<vmem>>, vector<32x128xbf16>
    tpu.vector_store %arg19[%c0_289, %c256_290], %482 {strides = array<i32>} : memref<32x896xbf16, #tpu.memory_space<vmem>>, vector<32x128xbf16>,
    %c16_291 = arith.constant 16 : index
    %c0_292 = arith.constant 0 : index
    %484 = vector.load %arg18[%c16_291, %c0_292] : memref<64x128xbf16, #tpu.memory_space<vmem>>, vector<32x128xbf16>
    %c0_293 = arith.constant 0 : index
    %c384_294 = arith.constant 384 : index
    %485 = vector.load %arg19[%c0_293, %c384_294] : memref<32x896xbf16, #tpu.memory_space<vmem>>, vector<32x128xbf16>
    tpu.vector_store %arg19[%c0_293, %c384_294], %484 {strides = array<i32>} : memref<32x896xbf16, #tpu.memory_space<vmem>>, vector<32x128xbf16>,
    %c20_295 = arith.constant 20 : index
    %c0_296 = arith.constant 0 : index
    %486 = vector.load %arg18[%c20_295, %c0_296] : memref<64x128xbf16, #tpu.memory_space<vmem>>, vector<32x128xbf16>
    %c0_i32_297 = arith.constant 0 : i32
    %487 = arith.sitofp %c0_i32_297 : i32 to bf16
    %488 = vector.shape_cast %390 : vector<32x1xi1> to vector<32x1xi1>
    %489 = vector.broadcast %488 : vector<32x1xi1> to vector<32x128xi1>
    %490 = vector.broadcast %487 : bf16 to vector<32x128xbf16>
    %491 = arith.select %489, %486, %490 : vector<32x128xi1>, vector<32x128xbf16>
    %c0_298 = arith.constant 0 : index
    %c512_299 = arith.constant 512 : index
    %492 = vector.load %arg19[%c0_298, %c512_299] : memref<32x896xbf16, #tpu.memory_space<vmem>>, vector<32x128xbf16>
    tpu.vector_store %arg19[%c0_298, %c512_299], %491 {strides = array<i32>} : memref<32x896xbf16, #tpu.memory_space<vmem>>, vector<32x128xbf16>,
    %c24_300 = arith.constant 24 : index
    %c0_301 = arith.constant 0 : index
    %493 = vector.load %arg18[%c24_300, %c0_301] : memref<64x128xbf16, #tpu.memory_space<vmem>>, vector<32x128xbf16>
    %c0_i32_302 = arith.constant 0 : i32
    %494 = arith.sitofp %c0_i32_302 : i32 to bf16
    %495 = vector.shape_cast %399 : vector<32x1xi1> to vector<32x1xi1>
    %496 = vector.broadcast %495 : vector<32x1xi1> to vector<32x128xi1>
    %497 = vector.broadcast %494 : bf16 to vector<32x128xbf16>
    %498 = arith.select %496, %493, %497 : vector<32x128xi1>, vector<32x128xbf16>
    %c0_303 = arith.constant 0 : index
    %c640_304 = arith.constant 640 : index
    %499 = vector.load %arg19[%c0_303, %c640_304] : memref<32x896xbf16, #tpu.memory_space<vmem>>, vector<32x128xbf16>
    tpu.vector_store %arg19[%c0_303, %c640_304], %498 {strides = array<i32>} : memref<32x896xbf16, #tpu.memory_space<vmem>>, vector<32x128xbf16>,
    %c28_305 = arith.constant 28 : index
    %c0_306 = arith.constant 0 : index
    %500 = vector.load %arg18[%c28_305, %c0_306] : memref<64x128xbf16, #tpu.memory_space<vmem>>, vector<32x128xbf16>
    %c0_i32_307 = arith.constant 0 : i32
    %501 = arith.sitofp %c0_i32_307 : i32 to bf16
    %502 = vector.shape_cast %408 : vector<32x1xi1> to vector<32x1xi1>
    %503 = vector.broadcast %502 : vector<32x1xi1> to vector<32x128xi1>
    %504 = vector.broadcast %501 : bf16 to vector<32x128xbf16>
    %505 = arith.select %503, %500, %504 : vector<32x128xi1>, vector<32x128xbf16>
    %c0_308 = arith.constant 0 : index
    %c768_309 = arith.constant 768 : index
    %506 = vector.load %arg19[%c0_308, %c768_309] : memref<32x896xbf16, #tpu.memory_space<vmem>>, vector<32x128xbf16>
    tpu.vector_store %arg19[%c0_308, %c768_309], %505 {strides = array<i32>} : memref<32x896xbf16, #tpu.memory_space<vmem>>, vector<32x128xbf16>,
    %c0_310 = arith.constant 0 : index
    %c0_311 = arith.constant 0 : index
    %507 = vector.load %arg19[%c0_310, %c0_311] : memref<32x896xbf16, #tpu.memory_space<vmem>>, vector<32x896xbf16>
    %c0_312 = arith.constant 0 : index
    %c0_313 = arith.constant 0 : index
    %508 = vector.load %arg13[%c0_312, %c0_313] : memref<896x64xbf16, #tpu.memory_space<vmem>>, vector<896x64xbf16>
    %cst_314 = arith.constant dense<0.000000e+00> : vector<32x64xf32>
    %509 = tpu.matmul %507, %508, %cst_314 {dimension_numbers = #tpu.dot_dimension_numbers<[1], [0], [0], [1], [0, 0, 1, 1], [], []>} : vector<32x896xbf16>, vector<896x64xbf16>, vector<32x64xf32> -> vector<32x64xf32>
    %c0_315 = arith.constant 0 : index
    %c0_316 = arith.constant 0 : index
    %510 = vector.load %arg14[%c0_315, %c0_316] : memref<1x64xf32, #tpu.memory_space<vmem>>, vector<1x64xf32>
    %511 = vector.broadcast %510 : vector<1x64xf32> to vector<32x64xf32>
    %512 = arith.addf %509, %511 : vector<32x64xf32>
    %cst_317 = arith.constant 0.000000e+00 : f32
    %513 = vector.broadcast %cst_317 : f32 to vector<32x64xf32>
    %514 = arith.maximumf %512, %513 : vector<32x64xf32>
    %515 = arith.addf %514, %352 : vector<32x64xf32>
    %cst_318 = arith.constant 0.000000e+00 : f32
    %516 = vector.broadcast %cst_318 : f32 to vector<32x64xf32>
    %517 = arith.maximumf %515, %516 : vector<32x64xf32>
    %518 = arith.truncf %517 : vector<32x64xf32> to vector<32x64xbf16>
    %c0_319 = arith.constant 0 : index
    %c0_320 = arith.constant 0 : index
    %519 = vector.load %arg15[%c0_319, %c0_320] : memref<64x4xbf16, #tpu.memory_space<vmem>>, vector<64x4xbf16>
    %cst_321 = arith.constant dense<0.000000e+00> : vector<32x4xf32>
    %520 = tpu.matmul %518, %519, %cst_321 {dimension_numbers = #tpu.dot_dimension_numbers<[1], [0], [0], [1], [0, 0, 1, 1], [], []>} : vector<32x64xbf16>, vector<64x4xbf16>, vector<32x4xf32> -> vector<32x4xf32>
    %c0_322 = arith.constant 0 : index
    %c0_323 = arith.constant 0 : index
    %521 = vector.load %arg16[%c0_322, %c0_323] : memref<1x4xf32, #tpu.memory_space<vmem>>, vector<1x4xf32>
    %522 = vector.broadcast %521 : vector<1x4xf32> to vector<32x4xf32>
    %523 = arith.addf %520, %522 : vector<32x4xf32>
    %c0_324 = arith.constant 0 : index
    %c0_325 = arith.constant 0 : index
    %524 = vector.load %arg17[%c0_324, %c0_325] : memref<32x4xf32, #tpu.memory_space<vmem>>, vector<32x4xf32>
    tpu.vector_store %arg17[%c0_324, %c0_325], %523 {strides = array<i32>} : memref<32x4xf32, #tpu.memory_space<vmem>>, vector<32x4xf32>,
    return
  }
}

</mosaic_0001>

<llo_original>
// kernel: tpu_custom_call.1
$region0: #{tpu_custom_call.1}
  #allocation0 [shape = 'u32[]', space=smem, size = 0x4, offset = 0x4, fixed_abs, tag = 'smem constant byte address 0x4 - core index']
  #allocation1 [shape = 'u32[144,128]{1,0:T(1,128)}', space=vmem, size = 0x12000, scoped, tag = 'internal scratch']
  #allocation2 [shape = 'bf16[64,128]{1,0:T(16,128)(2,1)}', space=vmem, size = 0x4000, scoped, tag = 'scratch operand']
  #allocation3 [shape = 'bf16[32,896]{1,0:T(16,128)(2,1)}', space=vmem, size = 0xe000, scoped, tag = 'scratch operand']
  %s0 = inlined_call_operand.vmem [shape: f32[2,68,16], index: 0, kind: input, shape index: {}]
  %s1 = inlined_call_operand.vmem [shape: bf16[896,64], index: 1, kind: input, shape index: {}]
  %s2 = inlined_call_operand.vmem [shape: f32[1,64], index: 2, kind: input, shape index: {}]
  %s3 = inlined_call_operand.vmem [shape: bf16[896,64], index: 3, kind: input, shape index: {}]
  %s4 = inlined_call_operand.vmem [shape: f32[1,64], index: 4, kind: input, shape index: {}]
  %s5 = inlined_call_operand.vmem [shape: bf16[128,64], index: 5, kind: input, shape index: {}]
  %s6 = inlined_call_operand.vmem [shape: f32[1,64], index: 6, kind: input, shape index: {}]
  %s7 = inlined_call_operand.vmem [shape: bf16[896,64], index: 7, kind: input, shape index: {}]
  %s8 = inlined_call_operand.vmem [shape: f32[1,64], index: 8, kind: input, shape index: {}]
  %s9 = inlined_call_operand.vmem [shape: bf16[896,64], index: 9, kind: input, shape index: {}]
  %s10 = inlined_call_operand.vmem [shape: f32[1,64], index: 10, kind: input, shape index: {}]
  %s11 = inlined_call_operand.vmem [shape: bf16[896,64], index: 11, kind: input, shape index: {}]
  %s12 = inlined_call_operand.vmem [shape: f32[1,64], index: 12, kind: input, shape index: {}]
  %s13 = inlined_call_operand.vmem [shape: bf16[896,64], index: 13, kind: input, shape index: {}]
  %s14 = inlined_call_operand.vmem [shape: f32[1,64], index: 14, kind: input, shape index: {}]
  %s15 = inlined_call_operand.vmem [shape: bf16[64,4], index: 15, kind: input, shape index: {}]
  %s16 = inlined_call_operand.vmem [shape: f32[1,4], index: 16, kind: input, shape index: {}]
  %s17 = inlined_call_operand.vmem [shape: f32[32,4], index: 17, kind: output, shape index: {}]
  %s18 = sld [smem:[#allocation0]]
  $region78: #{tpu_custom_call.1} parent=0
    _
  %s20 = ssub.s32 1, %s18
  %s21 = scalar_select 0, %s20, %s18
  // Predicated region
  $region2: #{tpu_custom_call.1} parent=0 // pred_check
    _
  $region3: #{tpu_custom_call.1} parent=0 // pred_check_branch
    %23 = sbr.rel (0) target = $region5
  $region4: #{tpu_custom_call.1} parent=0 // pred_region
    _
  $region5: #{tpu_custom_call.1} parent=0 // pred_fallthru
    _
  // Predicated region
  $region6: #{tpu_custom_call.1} parent=0 // pred_check
    _
  $region7: #{tpu_custom_call.1} parent=0 // pred_check_branch
    %25 = sbr.rel (0) target = $region9
  $region8: #{tpu_custom_call.1} parent=0 // pred_region
    _
  $region9: #{tpu_custom_call.1} parent=0 // pred_fallthru
    _
  // Predicated region
  $region10: #{tpu_custom_call.1} parent=0 // pred_check
    _
  $region11: #{tpu_custom_call.1} parent=0 // pred_check_branch
    %27 = sbr.rel (0) target = $region13
  $region12: #{tpu_custom_call.1} parent=0 // pred_region
    _
  $region13: #{tpu_custom_call.1} parent=0 // pred_fallthru
    _
  // Predicated region
  $region14: #{tpu_custom_call.1} parent=0 // pred_check
    _
  $region15: #{tpu_custom_call.1} parent=0 // pred_check_branch
    %29 = sbr.rel (0) target = $region17
  $region16: #{tpu_custom_call.1} parent=0 // pred_region
    _
  $region17: #{tpu_custom_call.1} parent=0 // pred_fallthru
    _
  // Predicated region
  $region18: #{tpu_custom_call.1} parent=0 // pred_check
    _
  $region19: #{tpu_custom_call.1} parent=0 // pred_check_branch
    %31 = sbr.rel (0) target = $region21
  $region20: #{tpu_custom_call.1} parent=0 // pred_region
    _
  $region21: #{tpu_custom_call.1} parent=0 // pred_fallthru
    _
  // Predicated region
  $region22: #{tpu_custom_call.1} parent=0 // pred_check
    _
  $region23: #{tpu_custom_call.1} parent=0 // pred_check_branch
    %33 = sbr.rel (0) target = $region25
  $region24: #{tpu_custom_call.1} parent=0 // pred_region
    _
  $region25: #{tpu_custom_call.1} parent=0 // pred_fallthru
    _
  // Predicated region
  $region26: #{tpu_custom_call.1} parent=0 // pred_check
    _
  $region27: #{tpu_custom_call.1} parent=0 // pred_check_branch
    %35 = sbr.rel (0) target = $region29
  $region28: #{tpu_custom_call.1} parent=0 // pred_region
    _
  $region29: #{tpu_custom_call.1} parent=0 // pred_fallthru
    _
  // Predicated region
  $region30: #{tpu_custom_call.1} parent=0 // pred_check
    _
  $region31: #{tpu_custom_call.1} parent=0 // pred_check_branch
    %37 = sbr.rel (0) target = $region33
  $region32: #{tpu_custom_call.1} parent=0 // pred_region
    _
  $region33: #{tpu_custom_call.1} parent=0 // pred_fallthru
    _
  // Predicated region
  $region34: #{tpu_custom_call.1} parent=0 // pred_check
    _
  $region35: #{tpu_custom_call.1} parent=0 // pred_check_branch
    %39 = sbr.rel (0) target = $region37
  $region36: #{tpu_custom_call.1} parent=0 // pred_region
    _
  $region37: #{tpu_custom_call.1} parent=0 // pred_fallthru
    _
  // Predicated region
  $region38: #{tpu_custom_call.1} parent=0 // pred_check
    _
  $region39: #{tpu_custom_call.1} parent=0 // pred_check_branch
    %41 = sbr.rel (0) target = $region41
  $region40: #{tpu_custom_call.1} parent=0 // pred_region
    _
  $region41: #{tpu_custom_call.1} parent=0 // pred_fallthru
    _
  // Predicated region
  $region42: #{tpu_custom_call.1} parent=0 // pred_check
    _
  $region43: #{tpu_custom_call.1} parent=0 // pred_check_branch
    %43 = sbr.rel (0) target = $region45
  $region44: #{tpu_custom_call.1} parent=0 // pred_region
    _
  $region45: #{tpu_custom_call.1} parent=0 // pred_fallthru
    _
  // Predicated region
  $region46: #{tpu_custom_call.1} parent=0 // pred_check
    _
  $region47: #{tpu_custom_call.1} parent=0 // pred_check_branch
    %45 = sbr.rel (0) target = $region49
  $region48: #{tpu_custom_call.1} parent=0 // pred_region
    _
  $region49: #{tpu_custom_call.1} parent=0 // pred_fallthru
    _
  // Predicated region
  $region50: #{tpu_custom_call.1} parent=0 // pred_check
    _
  $region51: #{tpu_custom_call.1} parent=0 // pred_check_branch
    %47 = sbr.rel (0) target = $region53
  $region52: #{tpu_custom_call.1} parent=0 // pred_region
    _
  $region53: #{tpu_custom_call.1} parent=0 // pred_fallthru
    _
  // Predicated region
  $region54: #{tpu_custom_call.1} parent=0 // pred_check
    _
  $region55: #{tpu_custom_call.1} parent=0 // pred_check_branch
    %49 = sbr.rel (0) target = $region57
  $region56: #{tpu_custom_call.1} parent=0 // pred_region
    _
  $region57: #{tpu_custom_call.1} parent=0 // pred_fallthru
    _
  // Predicated region
  $region58: #{tpu_custom_call.1} parent=0 // pred_check
    _
  $region59: #{tpu_custom_call.1} parent=0 // pred_check_branch
    %51 = sbr.rel (0) target = $region61
  $region60: #{tpu_custom_call.1} parent=0 // pred_region
    _
  $region61: #{tpu_custom_call.1} parent=0 // pred_fallthru
    _
  // Predicated region
  $region62: #{tpu_custom_call.1} parent=0 // pred_check
    _
  $region63: #{tpu_custom_call.1} parent=0 // pred_check_branch
    %53 = sbr.rel (0) target = $region65
  $region64: #{tpu_custom_call.1} parent=0 // pred_region
    _
  $region65: #{tpu_custom_call.1} parent=0 // pred_fallthru
    _
  // Predicated region
  $region66: #{tpu_custom_call.1} parent=0 // pred_check
    _
  $region67: #{tpu_custom_call.1} parent=0 // pred_check_branch
    %55 = sbr.rel (0) target = $region69
  $region68: #{tpu_custom_call.1} parent=0 // pred_region
    _
  $region69: #{tpu_custom_call.1} parent=0 // pred_fallthru
    _
  %v59 = vlaneseq
  %v60 = vshrl.u32 %v59, 7
  %v61 = vadd.s32 %v60, 8
  %v62 = vadd.s32 %v60, 16
  %v63 = vadd.s32 %v60, 24
  %vm64 = vcmp.ge.s32.totalorder %v60, 16
  %vm65 = vcmp.ge.s32.totalorder %v61, 16
  %vm66 = vcmp.ge.s32.totalorder %v62, 16
  %vm67 = vcmp.ge.s32.totalorder %v63, 16
  %v68 = vsel %vm64, 16, 0
  %v69 = vsel %vm65, 16, 0
  %v70 = vsel %vm66, 16, 0
  %v71 = vsel %vm67, 16, 0
  %v72 = vsub.s32 %v60, %v68
  %v73 = vsub.s32 %v61, %v69
  %v74 = vsub.s32 %v62, %v70
  %v75 = vsub.s32 %v63, %v71
  %76 = vst [vmem:[#allocation2] sm:$0xff] 0
  %77 = vst [vmem:[#allocation2 + $0x8] sm:$0xff] 0
  %78 = vst [vmem:[#allocation2 + $0x10] sm:$0xff] 0
  %79 = vst [vmem:[#allocation2 + $0x18] sm:$0xff] 0
  %v80 = vld [vmem:[%s0] sm:$0xff]
  %v81 = vld [vmem:[%s0 + $0x8] sm:$0xff]
  %v82 = vld [vmem:[%s0 + $0x10] sm:$0xff]
  %v83 = vld [vmem:[%s0 + $0x18] sm:$0xff]
  %v84 = vld [vmem:[%s0 + $0x20] sm:$0xff]
  %v85 = vld [vmem:[%s0 + $0x28] sm:$0xff]
  %v86 = vld [vmem:[%s0 + $0x30] sm:$0xff]
  %v87 = vld [vmem:[%s0 + $0x38] sm:$0xff]
  %v88 = vld [vmem:[%s0 + $0x40] sm:$0xf]
  %89 = vxpose.xlu0.b32.start [1/16] %v80, 128
  %90 = vxpose.xlu0.b32.cont [2/16] %v81, 128
  %91 = vxpose.xlu0.b32.cont [3/16] %v82, 128
  %92 = vxpose.xlu0.b32.cont [4/16] %v83, 128
  %93 = vxpose.xlu0.b32.cont [5/16] %v84, 128
  %94 = vxpose.xlu0.b32.cont [6/16] %v85, 128
  %95 = vxpose.xlu0.b32.cont [7/16] %v86, 128
  %96 = vxpose.xlu0.b32.cont [8/16] %v87, 128
  %97 = vxpose.xlu0.b32.cont [9/16] %v88, 128
  %98 = vxpose.xlu0.b32.cont [10/16] 0.0, 128
  %99 = vxpose.xlu0.b32.cont [11/16] 0.0, 128
  %100 = vxpose.xlu0.b32.cont [12/16] 0.0, 128
  %101 = vxpose.xlu0.b32.cont [13/16] 0.0, 128
  %102 = vxpose.xlu0.b32.cont [14/16] 0.0, 128
  %103 = vxpose.xlu0.b32.cont [15/16] 0.0, 128
  %104 = vxpose.xlu0.b32.end [16/16] 0.0, 128
  %v105 = vpop.trf.xlu0
  %v106 = vpop.trf.xlu0
  %v107 = vpop.trf.xlu0
  %v108 = vpop.trf.xlu0
  %v109 = vpop.trf.xlu0
  %v110 = vpop.trf.xlu0
  %v111 = vpop.trf.xlu0
  %v112 = vpop.trf.xlu0
  %v113 = vpop.trf.xlu0
  %v114 = vpop.trf.xlu0
  %v115 = vpop.trf.xlu0
  %v116 = vpop.trf.xlu0
  %v117 = vpop.trf.xlu0
  %v118 = vpop.trf.xlu0
  %v119 = vpop.trf.xlu0
  %v120 = vpop.trf.xlu0
  %v121 = vpack.c.bf16 %v106, %v105
  %vm122 = vcmask 556032
  %123 = vst.msk [vmem:[#allocation2 + $0x8] sm:$0xff] %vm122, %v121
  %s124 = scalar_lea.vmem %s0, 72
  %v125 = vld [vmem:[%s124] sm:$0xff]
  %v126 = vld [vmem:[%s124 + $0x8] sm:$0xff]
  %v127 = vld [vmem:[%s124 + $0x10] sm:$0xff]
  %v128 = vld [vmem:[%s124 + $0x18] sm:$0xff]
  %v129 = vld [vmem:[%s124 + $0x20] sm:$0xff]
  %v130 = vld [vmem:[%s124 + $0x28] sm:$0xff]
  %v131 = vld [vmem:[%s124 + $0x30] sm:$0xff]
  %v132 = vld [vmem:[%s124 + $0x38] sm:$0xff]
  %v133 = vld [vmem:[%s124 + $0x40] sm:$0xf]
  %134 = vxpose.xlu0.b32.start [1/16] %v125, 128
  %135 = vxpose.xlu0.b32.cont [2/16] %v126, 128
  %136 = vxpose.xlu0.b32.cont [3/16] %v127, 128
  %137 = vxpose.xlu0.b32.cont [4/16] %v128, 128
  %138 = vxpose.xlu0.b32.cont [5/16] %v129, 128
  %139 = vxpose.xlu0.b32.cont [6/16] %v130, 128
  %140 = vxpose.xlu0.b32.cont [7/16] %v131, 128
  %141 = vxpose.xlu0.b32.cont [8/16] %v132, 128
  %142 = vxpose.xlu0.b32.cont [9/16] %v133, 128
  %143 = vxpose.xlu0.b32.cont [10/16] 0.0, 128
  %144 = vxpose.xlu0.b32.cont [11/16] 0.0, 128
  %145 = vxpose.xlu0.b32.cont [12/16] 0.0, 128
  %146 = vxpose.xlu0.b32.cont [13/16] 0.0, 128
  %147 = vxpose.xlu0.b32.cont [14/16] 0.0, 128
  %148 = vxpose.xlu0.b32.cont [15/16] 0.0, 128
  %149 = vxpose.xlu0.b32.end [16/16] 0.0, 128
  %v150 = vpop.trf.xlu0
  %v151 = vpop.trf.xlu0
  %v152 = vpop.trf.xlu0
  %v153 = vpop.trf.xlu0
  %v154 = vpop.trf.xlu0
  %v155 = vpop.trf.xlu0
  %v156 = vpop.trf.xlu0
  %v157 = vpop.trf.xlu0
  %v158 = vpop.trf.xlu0
  %v159 = vpop.trf.xlu0
  %v160 = vpop.trf.xlu0
  %v161 = vpop.trf.xlu0
  %v162 = vpop.trf.xlu0
  %v163 = vpop.trf.xlu0
  %v164 = vpop.trf.xlu0
  %v165 = vpop.trf.xlu0
  %v166 = vpack.c.bf16 %v151, %v150
  %167 = vst.msk [vmem:[#allocation2 + $0x10] sm:$0xff] %vm122, %v166
  %v168 = vadd.s32 %v72, 4294967293
  %v169 = vadd.s32 %v73, 4294967293
  %v170 = vadd.s32 %v74, 4294967293
  %v171 = vadd.s32 %v75, 4294967293
  %vm172 = vcmp.ge.s32.totalorder %v168, 0
  %vm173 = vcmp.ge.s32.totalorder %v169, 0
  %vm174 = vcmp.ge.s32.totalorder %v170, 0
  %vm175 = vcmp.ge.s32.totalorder %v171, 0
  %vm176 = vcmp.lt.s32.totalorder %v168, 16
  %vm177 = vcmp.lt.s32.totalorder %v169, 16
  %vm178 = vcmp.lt.s32.totalorder %v170, 16
  %vm179 = vcmp.lt.s32.totalorder %v171, 16
  %vm180 = vmand %vm172, %vm176
  %vm181 = vmand %vm173, %vm177
  %vm182 = vmand %vm174, %vm178
  %vm183 = vmand %vm175, %vm179
  %v184 = vadd.s32 %v72, 4294967294
  %v185 = vadd.s32 %v73, 4294967294
  %v186 = vadd.s32 %v74, 4294967294
  %v187 = vadd.s32 %v75, 4294967294
  %vm188 = vcmp.ge.s32.totalorder %v184, 0
  %vm189 = vcmp.ge.s32.totalorder %v185, 0
  %vm190 = vcmp.ge.s32.totalorder %v186, 0
  %vm191 = vcmp.ge.s32.totalorder %v187, 0
  %vm192 = vcmp.lt.s32.totalorder %v184, 16
  %vm193 = vcmp.lt.s32.totalorder %v185, 16
  %vm194 = vcmp.lt.s32.totalorder %v186, 16
  %vm195 = vcmp.lt.s32.totalorder %v187, 16
  %vm196 = vmand %vm188, %vm192
  %vm197 = vmand %vm189, %vm193
  %vm198 = vmand %vm190, %vm194
  %vm199 = vmand %vm191, %vm195
  %v200 = vadd.s32 %v72, 4294967295
  %v201 = vadd.s32 %v73, 4294967295
  %v202 = vadd.s32 %v74, 4294967295
  %v203 = vadd.s32 %v75, 4294967295
  %vm204 = vcmp.ge.s32.totalorder %v200, 0
  %vm205 = vcmp.ge.s32.totalorder %v201, 0
  %vm206 = vcmp.ge.s32.totalorder %v202, 0
  %vm207 = vcmp.ge.s32.totalorder %v203, 0
  %vm208 = vcmp.lt.s32.totalorder %v200, 16
  %vm209 = vcmp.lt.s32.totalorder %v201, 16
  %vm210 = vcmp.lt.s32.totalorder %v202, 16
  %vm211 = vcmp.lt.s32.totalorder %v203, 16
  %vm212 = vmand %vm204, %vm208
  %vm213 = vmand %vm205, %vm209
  %vm214 = vmand %vm206, %vm210
  %vm215 = vmand %vm207, %vm211
  %v216 = vadd.s32 %v72, 1
  %v217 = vadd.s32 %v73, 1
  %v218 = vadd.s32 %v74, 1
  %v219 = vadd.s32 %v75, 1
  %vm220 = vcmp.ge.s32.totalorder %v216, 0
  %vm221 = vcmp.ge.s32.totalorder %v217, 0
  %vm222 = vcmp.ge.s32.totalorder %v218, 0
  %vm223 = vcmp.ge.s32.totalorder %v219, 0
  %vm224 = vcmp.lt.s32.totalorder %v216, 16
  %vm225 = vcmp.lt.s32.totalorder %v217, 16
  %vm226 = vcmp.lt.s32.totalorder %v218, 16
  %vm227 = vcmp.lt.s32.totalorder %v219, 16
  %vm228 = vmand %vm220, %vm224
  %vm229 = vmand %vm221, %vm225
  %vm230 = vmand %vm222, %vm226
  %vm231 = vmand %vm223, %vm227
  %v232 = vadd.s32 %v72, 2
  %v233 = vadd.s32 %v73, 2
  %v234 = vadd.s32 %v74, 2
  %v235 = vadd.s32 %v75, 2
  %vm236 = vcmp.ge.s32.totalorder %v232, 0
  %vm237 = vcmp.ge.s32.totalorder %v233, 0
  %vm238 = vcmp.ge.s32.totalorder %v234, 0
  %vm239 = vcmp.ge.s32.totalorder %v235, 0
  %vm240 = vcmp.lt.s32.totalorder %v232, 16
  %vm241 = vcmp.lt.s32.totalorder %v233, 16
  %vm242 = vcmp.lt.s32.totalorder %v234, 16
  %vm243 = vcmp.lt.s32.totalorder %v235, 16
  %vm244 = vmand %vm236, %vm240
  %vm245 = vmand %vm237, %vm241
  %vm246 = vmand %vm238, %vm242
  %vm247 = vmand %vm239, %vm243
  %v248 = vadd.s32 %v72, 3
  %v249 = vadd.s32 %v73, 3
  %v250 = vadd.s32 %v74, 3
  %v251 = vadd.s32 %v75, 3
  %vm252 = vcmp.ge.s32.totalorder %v248, 0
  %vm253 = vcmp.ge.s32.totalorder %v249, 0
  %vm254 = vcmp.ge.s32.totalorder %v250, 0
  %vm255 = vcmp.ge.s32.totalorder %v251, 0
  %vm256 = vcmp.lt.s32.totalorder %v248, 16
  %vm257 = vcmp.lt.s32.totalorder %v249, 16
  %vm258 = vcmp.lt.s32.totalorder %v250, 16
  %vm259 = vcmp.lt.s32.totalorder %v251, 16
  %vm260 = vmand %vm252, %vm256
  %vm261 = vmand %vm253, %vm257
  %vm262 = vmand %vm254, %vm258
  %vm263 = vmand %vm255, %vm259
  %v264 = vld [vmem:[#allocation2 + $0x8] sm:$0xff]
  %v265 = vld [vmem:[#allocation2 + $0x10] sm:$0xff]
  %v266 = vld [vmem:[%s5] sm:$0xf]
  %v267 = vld [vmem:[%s5 + $0x4] sm:$0xf]
  %v268 = vld [vmem:[%s5 + $0x8] sm:$0xf]
  %v269 = vld [vmem:[%s5 + $0xc] sm:$0xf]
  %v270 = vld [vmem:[%s5 + $0x10] sm:$0xf]
  %v271 = vld [vmem:[%s5 + $0x14] sm:$0xf]
  %v272 = vld [vmem:[%s5 + $0x18] sm:$0xf]
  %v273 = vld [vmem:[%s5 + $0x1c] sm:$0xf]
  %v274 = vld [vmem:[%s5 + $0x20] sm:$0xf]
  %v275 = vld [vmem:[%s5 + $0x24] sm:$0xf]
  %v276 = vld [vmem:[%s5 + $0x28] sm:$0xf]
  %v277 = vld [vmem:[%s5 + $0x2c] sm:$0xf]
  %v278 = vld [vmem:[%s5 + $0x30] sm:$0xf]
  %v279 = vld [vmem:[%s5 + $0x34] sm:$0xf]
  %v280 = vld [vmem:[%s5 + $0x38] sm:$0xf]
  %v281 = vld [vmem:[%s5 + $0x3c] sm:$0xf]
  %v282 = vld [vmem:[%s6] sm:$0x1]
  %v284 = vlaneseq
  %v285 = vshrl.u32 %v284, 7
  %v286 = vsub.s32 0, %v285
  %v287 = vrot.slane %v282, %v286
  %v305 = vunpack.c.l.b16 %v266
  %v306 = vunpack.c.l.b16 %v267
  %v307 = vunpack.c.l.b16 %v268
  %v308 = vunpack.c.l.b16 %v269
  %v309 = vunpack.c.l.b16 %v270
  %v310 = vunpack.c.l.b16 %v271
  %v311 = vunpack.c.l.b16 %v272
  %v312 = vunpack.c.l.b16 %v273
  %v313 = vunpack.c.l.b16 %v274
  %v314 = vunpack.c.l.b16 %v275
  %v315 = vunpack.c.l.b16 %v276
  %v316 = vunpack.c.l.b16 %v277
  %v317 = vunpack.c.l.b16 %v278
  %v318 = vunpack.c.l.b16 %v279
  %v319 = vunpack.c.l.b16 %v280
  %v320 = vunpack.c.l.b16 %v281
  %v321 = vpack.c.b16 %v306, %v305
  %v322 = vpack.c.b16 %v308, %v307
  %v323 = vpack.c.b16 %v310, %v309
  %v324 = vpack.c.b16 %v312, %v311
  %v325 = vpack.c.b16 %v314, %v313
  %v326 = vpack.c.b16 %v316, %v315
  %v327 = vpack.c.b16 %v318, %v317
  %v328 = vpack.c.b16 %v320, %v319
  %337 = vmatprep.subr.bf16.mxu0 0
  %338 = vmatpush1.bf16.msra.mxu0 %v321
  %339 = vmatprep.subr.bf16.mxu0 0
  %340 = vmatpush1.bf16.msra.mxu0 %v322
  %341 = vmatprep.subr.bf16.mxu0 0
  %342 = vmatpush1.bf16.msra.mxu0 %v323
  %343 = vmatprep.subr.bf16.mxu0 0
  %344 = vmatpush1.bf16.msra.mxu0 %v324
  %345 = vmatprep.subr.bf16.mxu0 0
  %346 = vmatpush1.bf16.msra.mxu0 %v325
  %347 = vmatprep.subr.bf16.mxu0 0
  %348 = vmatpush1.bf16.msra.mxu0 %v326
  %349 = vmatprep.subr.bf16.mxu0 0
  %350 = vmatpush1.bf16.msra.mxu0 %v327
  %351 = vmatprep.subr.bf16.mxu0 0
  %352 = vmatpush1.bf16.msra.mxu0 %v328
  %353 = vmatprep.subr.bf16.mxu0 0
  %354 = vmatpush1.bf16.msra.mxu0 0
  %355 = vmatprep.subr.bf16.mxu0 0
  %356 = vmatpush1.bf16.msra.mxu0 0
  %357 = vmatprep.subr.bf16.mxu0 0
  %358 = vmatpush1.bf16.msra.mxu0 0
  %359 = vmatprep.subr.bf16.mxu0 0
  %360 = vmatpush1.bf16.msra.mxu0 0
  %361 = vmatprep.subr.bf16.mxu0 0
  %362 = vmatpush1.bf16.msra.mxu0 0
  %363 = vmatprep.subr.bf16.mxu0 0
  %364 = vmatpush1.bf16.msra.mxu0 0
  %365 = vmatprep.subr.bf16.mxu0 0
  %366 = vmatpush1.bf16.msra.mxu0 0
  %367 = vmatprep.subr.bf16.mxu0 0
  %368 = vmatpush1.bf16.msra.mxu0 0
  %369 = vmatprep.mubr.bf16.mxu0 0
  %370 = vmatmul.mubr.bf16.gmra.mrb[0].mxu0 %v264
  %v371 = vpop.f32.mrb[0].mxu0
  %v372 = vadd.f32 %v287, %v371
  %v373 = vpop.f32.mrb[0].mxu0
  %v374 = vpop.f32.mrb[0].mxu0
  %v375 = vadd.f32 %v287, %v374
  %v376 = vpop.f32.mrb[0].mxu0
  %377 = vmatprep.mubr.bf16.mxu0 0
  %378 = vmatmul.mubr.bf16.gmra.mrb[0].mxu0 %v265
  %v379 = vpop.f32.mrb[0].mxu0
  %v380 = vadd.f32 %v287, %v379
  %v381 = vpop.f32.mrb[0].mxu0
  %v382 = vpop.f32.mrb[0].mxu0
  %v383 = vadd.f32 %v287, %v382
  %v384 = vpop.f32.mrb[0].mxu0
  %385 = vdwg.mxu0
  %v386 = vld [vmem:[#allocation2] sm:$0xc0]
  %v387 = vld [vmem:[#allocation2 + $0x10] sm:$0x7f]
  %v388 = vsel %vm180, 1, 0
  %v389 = vsel %vm181, 1, 0
  %v390 = vsel %vm182, 1, 0
  %v391 = vsel %vm183, 1, 0
  %vm392 = vcmp.eq.s32.totalorder %v388, 1
  %vm393 = vcmp.eq.s32.totalorder %v389, 1
  %vm394 = vcmp.eq.s32.totalorder %v390, 1
  %vm395 = vcmp.eq.s32.totalorder %v391, 1
  %vm396 = vmpackc.low %vm392, %vm392
  %vm397 = vmpackc.low %vm393, %vm393
  %vm398 = vmpackc.low %vm394, %vm394
  %vm399 = vmpackc.low %vm395, %vm395
  %v400 = vsel %vm396, 65537, 0
  %v401 = vsel %vm397, 65537, 0
  %v402 = vsel %vm398, 65537, 0
  %v403 = vsel %vm399, 65537, 0
  %v404 = vunpack.c.l.b16 %v400
  %v405 = vunpack.c.l.b16 %v401
  %v406 = vunpack.c.l.b16 %v402
  %v407 = vunpack.c.l.b16 %v403
  %v408 = vpack.c.b16 %v405, %v404
  %v409 = vpack.c.b16 %v407, %v406
  %vm410 = vsmask.f32 6400
  %v412 = vshrl.u32 %v408, 16
  %v414 = vrot.slane %v412, 1
  %v415 = vshll.u32 %v408, 16
  %v417 = vrot.slane %v415, 2
  %v418 = vor.u32 %v414, %v417
  %v420 = vshrl.u32 %v409, 16
  %v422 = vrot.slane %v420, 1
  %v423 = vshll.u32 %v409, 16
  %v425 = vrot.slane %v423, 2
  %v426 = vor.u32 %v422, %v425
  %v427 = vsel %vm410, %v418, %v426
  %vm428 = vcmp.ne.s16.totalorder %v418, 0
  %vm429 = vcmp.ne.s16.totalorder %v427, 0
  %vm430 = vcmp.ne.s16.totalorder %v426, 0
  %v431 = vsel %vm428, %v386, 0
  %v432 = vsel %vm429, %v264, 0
  %v433 = vsel %vm430, %v387, 0
  %vm434 = vsmask.f32 1280
  %v436 = vshrl.u32 %v431, 16
  %v438 = vrot.slane %v436, 6
  %v439 = vshll.u32 %v431, 16
  %v441 = vrot.slane %v439, 7
  %v442 = vor.u32 %v438, %v441
  %v444 = vshrl.u32 %v432, 16
  %v446 = vrot.slane %v444, 6
  %v447 = vshll.u32 %v432, 16
  %v449 = vrot.slane %v447, 7
  %v450 = vor.u32 %v446, %v449
  %v451 = vsel %vm434, %v442, %v450
  %v453 = vshrl.u32 %v433, 16
  %v455 = vrot.slane %v453, 6
  %v456 = vshll.u32 %v433, 16
  %v458 = vrot.slane %v456, 7
  %v459 = vor.u32 %v455, %v458
  %v460 = vsel %vm434, %v450, %v459
  %463 = vst [vmem:[#allocation3] sm:$0xff] %v451
  %464 = vst [vmem:[#allocation3 + $0x38] sm:$0xff] %v460
  %v465 = vld [vmem:[#allocation2] sm:$0x80]
  %v466 = vld [vmem:[#allocation2 + $0x8] sm:$0xff]
  %v467 = vld [vmem:[#allocation2 + $0x10] sm:$0x7f]
  %v468 = vsel %vm196, 1, 0
  %v469 = vsel %vm197, 1, 0
  %v470 = vsel %vm198, 1, 0
  %v471 = vsel %vm199, 1, 0
  %vm472 = vcmp.eq.s32.totalorder %v468, 1
  %vm473 = vcmp.eq.s32.totalorder %v469, 1
  %vm474 = vcmp.eq.s32.totalorder %v470, 1
  %vm475 = vcmp.eq.s32.totalorder %v471, 1
  %vm476 = vmpackc.low %vm472, %vm472
  %vm477 = vmpackc.low %vm473, %vm473
  %vm478 = vmpackc.low %vm474, %vm474
  %vm479 = vmpackc.low %vm475, %vm475
  %v480 = vsel %vm476, 65537, 0
  %v481 = vsel %vm477, 65537, 0
  %v482 = vsel %vm478, 65537, 0
  %v483 = vsel %vm479, 65537, 0
  %v484 = vunpack.c.l.b16 %v480
  %v485 = vunpack.c.l.b16 %v481
  %v486 = vunpack.c.l.b16 %v482
  %v487 = vunpack.c.l.b16 %v483
  %v488 = vpack.c.b16 %v485, %v484
  %v489 = vpack.c.b16 %v487, %v486
  %vm490 = vcmask 1046528
  %v491 = vrot.slane %v488, 1
  %v492 = vrot.slane %v489, 1
  %v493 = vsel %vm490, %v491, %v492
  %vm494 = vcmp.ne.s16.totalorder %v491, 0
  %vm495 = vcmp.ne.s16.totalorder %v493, 0
  %vm496 = vcmp.ne.s16.totalorder %v492, 0
  %v497 = vsel %vm494, %v465, 0
  %v498 = vsel %vm495, %v466, 0
  %v499 = vsel %vm496, %v467, 0
  %vm503 = vcmask 1040384
  %v504 = vrot.slane %v497, 7
  %v505 = vrot.slane %v498, 7
  %v506 = vsel %vm503, %v504, %v505
  %v507 = vrot.slane %v499, 7
  %v508 = vsel %vm503, %v505, %v507
  %511 = vst [vmem:[#allocation3 + $0x8] sm:$0xff] %v506
  %512 = vst [vmem:[#allocation3 + $0x40] sm:$0xff] %v508
  %v513 = vld [vmem:[#allocation2] sm:$0x80]
  %v514 = vld [vmem:[#allocation2 + $0x8] sm:$0xff]
  %v515 = vld [vmem:[#allocation2 + $0x10] sm:$0xff]
  %v516 = vsel %vm212, 1, 0
  %v517 = vsel %vm213, 1, 0
  %v518 = vsel %vm214, 1, 0
  %v519 = vsel %vm215, 1, 0
  %vm520 = vcmp.eq.s32.totalorder %v516, 1
  %vm521 = vcmp.eq.s32.totalorder %v517, 1
  %vm522 = vcmp.eq.s32.totalorder %v518, 1
  %vm523 = vcmp.eq.s32.totalorder %v519, 1
  %vm524 = vmpackc.low %vm520, %vm520
  %vm525 = vmpackc.low %vm521, %vm521
  %vm526 = vmpackc.low %vm522, %vm522
  %vm527 = vmpackc.low %vm523, %vm523
  %v528 = vsel %vm524, 65537, 0
  %v529 = vsel %vm525, 65537, 0
  %v530 = vsel %vm526, 65537, 0
  %v531 = vsel %vm527, 65537, 0
  %v532 = vunpack.c.l.b16 %v528
  %v533 = vunpack.c.l.b16 %v529
  %v534 = vunpack.c.l.b16 %v530
  %v535 = vunpack.c.l.b16 %v531
  %v536 = vpack.c.b16 %v533, %v532
  %v537 = vpack.c.b16 %v535, %v534
  %vm538 = vsmask.f32 7424
  %v540 = vshll.u32 %v536, 16
  %v542 = vrot.slane %v540, 1
  %v543 = vshrl.u32 %v536, 16
  %v545 = vor.u32 %v543, %v542
  %v547 = vshll.u32 %v537, 16
  %v549 = vrot.slane %v547, 1
  %v550 = vsel %vm538, %v545, %v549
  %v551 = vshrl.u32 %v537, 16
  %v553 = vor.u32 %v551, %v549
  %vm554 = vcmp.ne.s16.totalorder %v542, 0
  %vm555 = vcmp.ne.s16.totalorder %v550, 0
  %vm556 = vcmp.ne.s16.totalorder %v553, 0
  %v557 = vsel %vm554, %v513, 0
  %v558 = vsel %vm555, %v514, 0
  %v559 = vsel %vm556, %v515, 0
  %vm560 = vsmask.f32 256
  %v562 = vshrl.u32 %v557, 16
  %v564 = vrot.slane %v562, 7
  %v566 = vshrl.u32 %v558, 16
  %v568 = vrot.slane %v566, 7
  %v569 = vshll.u32 %v558, 16
  %v571 = vor.u32 %v568, %v569
  %v572 = vsel %vm560, %v564, %v571
  %v574 = vshrl.u32 %v559, 16
  %v576 = vrot.slane %v574, 7
  %v577 = vshll.u32 %v559, 16
  %v579 = vor.u32 %v576, %v577
  %v580 = vsel %vm560, %v568, %v579
  %583 = vst [vmem:[#allocation3 + $0x10] sm:$0xff] %v572
  %584 = vst [vmem:[#allocation3 + $0x48] sm:$0xff] %v580
  %v585 = vld [vmem:[#allocation2 + $0x8] sm:$0xff]
  %v586 = vld [vmem:[#allocation2 + $0x10] sm:$0xff]
  %587 = vst [vmem:[#allocation3 + $0x18] sm:$0xff] %v585
  %588 = vst [vmem:[#allocation3 + $0x50] sm:$0xff] %v586
  %v589 = vld [vmem:[#allocation2 + $0x8] sm:$0xff]
  %v590 = vld [vmem:[#allocation2 + $0x10] sm:$0xff]
  %v591 = vld [vmem:[#allocation2 + $0x18] sm:$0x1]
  %v592 = vsel %vm228, 1, 0
  %v593 = vsel %vm229, 1, 0
  %v594 = vsel %vm230, 1, 0
  %v595 = vsel %vm231, 1, 0
  %vm596 = vcmp.eq.s32.totalorder %v592, 1
  %vm597 = vcmp.eq.s32.totalorder %v593, 1
  %vm598 = vcmp.eq.s32.totalorder %v594, 1
  %vm599 = vcmp.eq.s32.totalorder %v595, 1
  %vm600 = vmpackc.low %vm596, %vm596
  %vm601 = vmpackc.low %vm597, %vm597
  %vm602 = vmpackc.low %vm598, %vm598
  %vm603 = vmpackc.low %vm599, %vm599
  %v604 = vsel %vm600, 65537, 0
  %v605 = vsel %vm601, 65537, 0
  %v606 = vsel %vm602, 65537, 0
  %v607 = vsel %vm603, 65537, 0
  %v608 = vunpack.c.l.b16 %v604
  %v609 = vunpack.c.l.b16 %v605
  %v610 = vunpack.c.l.b16 %v606
  %v611 = vunpack.c.l.b16 %v607
  %v612 = vpack.c.b16 %v609, %v608
  %v613 = vpack.c.b16 %v611, %v610
  %v615 = vshrl.u32 %v612, 16
  %v617 = vrot.slane %v615, 7
  %v618 = vshll.u32 %v612, 16
  %v620 = vor.u32 %v617, %v618
  %v622 = vshrl.u32 %v613, 16
  %v624 = vrot.slane %v622, 7
  %v625 = vshll.u32 %v613, 16
  %v627 = vor.u32 %v624, %v625
  %v628 = vsel %vm560, %v617, %v627
  %vm629 = vcmp.ne.s16.totalorder %v620, 0
  %vm630 = vcmp.ne.s16.totalorder %v628, 0
  %vm631 = vcmp.ne.s16.totalorder %v624, 0
  %v632 = vsel %vm629, %v589, 0
  %v633 = vsel %vm630, %v590, 0
  %v634 = vsel %vm631, %v591, 0
  %v636 = vshrl.u32 %v632, 16
  %v638 = vshll.u32 %v632, 16
  %v640 = vrot.slane %v638, 1
  %v641 = vor.u32 %v636, %v640
  %v643 = vshll.u32 %v633, 16
  %v645 = vrot.slane %v643, 1
  %v646 = vsel %vm538, %v641, %v645
  %v647 = vshrl.u32 %v633, 16
  %v649 = vor.u32 %v647, %v645
  %v651 = vshll.u32 %v634, 16
  %v653 = vrot.slane %v651, 1
  %v654 = vsel %vm538, %v649, %v653
  %657 = vst [vmem:[#allocation3 + $0x20] sm:$0xff] %v646
  %658 = vst [vmem:[#allocation3 + $0x58] sm:$0xff] %v654
  %v659 = vld [vmem:[#allocation2 + $0x8] sm:$0xfe]
  %v660 = vld [vmem:[#allocation2 + $0x10] sm:$0xff]
  %v661 = vld [vmem:[#allocation2 + $0x18] sm:$0x1]
  %v662 = vsel %vm244, 1, 0
  %v663 = vsel %vm245, 1, 0
  %v664 = vsel %vm246, 1, 0
  %v665 = vsel %vm247, 1, 0
  %vm666 = vcmp.eq.s32.totalorder %v662, 1
  %vm667 = vcmp.eq.s32.totalorder %v663, 1
  %vm668 = vcmp.eq.s32.totalorder %v664, 1
  %vm669 = vcmp.eq.s32.totalorder %v665, 1
  %vm670 = vmpackc.low %vm666, %vm666
  %vm671 = vmpackc.low %vm667, %vm667
  %vm672 = vmpackc.low %vm668, %vm668
  %vm673 = vmpackc.low %vm669, %vm669
  %v674 = vsel %vm670, 65537, 0
  %v675 = vsel %vm671, 65537, 0
  %v676 = vsel %vm672, 65537, 0
  %v677 = vsel %vm673, 65537, 0
  %v678 = vunpack.c.l.b16 %v674
  %v679 = vunpack.c.l.b16 %v675
  %v680 = vunpack.c.l.b16 %v676
  %v681 = vunpack.c.l.b16 %v677
  %v682 = vpack.c.b16 %v679, %v678
  %v683 = vpack.c.b16 %v681, %v680
  %v684 = vrot.slane %v682, 7
  %v685 = vrot.slane %v683, 7
  %v686 = vsel %vm503, %v684, %v685
  %vm687 = vcmp.ne.s16.totalorder %v684, 0
  %vm688 = vcmp.ne.s16.totalorder %v686, 0
  %vm689 = vcmp.ne.s16.totalorder %v685, 0
  %v690 = vsel %vm687, %v659, 0
  %v691 = vsel %vm688, %v660, 0
  %v692 = vsel %vm689, %v661, 0
  %v696 = vrot.slane %v690, 1
  %v697 = vrot.slane %v691, 1
  %v698 = vsel %vm490, %v696, %v697
  %v699 = vrot.slane %v692, 1
  %v700 = vsel %vm490, %v697, %v699
  %703 = vst [vmem:[#allocation3 + $0x28] sm:$0xff] %v698
  %704 = vst [vmem:[#allocation3 + $0x60] sm:$0xff] %v700
  %v705 = vld [vmem:[#allocation2 + $0x8] sm:$0xfe]
  %v706 = vld [vmem:[#allocation2 + $0x10] sm:$0xff]
  %v707 = vld [vmem:[#allocation2 + $0x18] sm:$0x3]
  %v708 = vsel %vm260, 1, 0
  %v709 = vsel %vm261, 1, 0
  %v710 = vsel %vm262, 1, 0
  %v711 = vsel %vm263, 1, 0
  %vm712 = vcmp.eq.s32.totalorder %v708, 1
  %vm713 = vcmp.eq.s32.totalorder %v709, 1
  %vm714 = vcmp.eq.s32.totalorder %v710, 1
  %vm715 = vcmp.eq.s32.totalorder %v711, 1
  %vm716 = vmpackc.low %vm712, %vm712
  %vm717 = vmpackc.low %vm713, %vm713
  %vm718 = vmpackc.low %vm714, %vm714
  %vm719 = vmpackc.low %vm715, %vm715
  %v720 = vsel %vm716, 65537, 0
  %v721 = vsel %vm717, 65537, 0
  %v722 = vsel %vm718, 65537, 0
  %v723 = vsel %vm719, 65537, 0
  %v724 = vunpack.c.l.b16 %v720
  %v725 = vunpack.c.l.b16 %v721
  %v726 = vunpack.c.l.b16 %v722
  %v727 = vunpack.c.l.b16 %v723
  %v728 = vpack.c.b16 %v725, %v724
  %v729 = vpack.c.b16 %v727, %v726
  %v731 = vshrl.u32 %v728, 16
  %v733 = vrot.slane %v731, 6
  %v734 = vshll.u32 %v728, 16
  %v736 = vrot.slane %v734, 7
  %v737 = vor.u32 %v733, %v736
  %v739 = vshrl.u32 %v729, 16
  %v741 = vrot.slane %v739, 6
  %v742 = vshll.u32 %v729, 16
  %v744 = vrot.slane %v742, 7
  %v745 = vor.u32 %v741, %v744
  %v746 = vsel %vm434, %v737, %v745
  %vm747 = vcmp.ne.s16.totalorder %v737, 0
  %vm748 = vcmp.ne.s16.totalorder %v746, 0
  %vm749 = vcmp.ne.s16.totalorder %v745, 0
  %v750 = vsel %vm747, %v705, 0
  %v751 = vsel %vm748, %v706, 0
  %v752 = vsel %vm749, %v707, 0
  %v754 = vshrl.u32 %v750, 16
  %v756 = vrot.slane %v754, 1
  %v757 = vshll.u32 %v750, 16
  %v759 = vrot.slane %v757, 2
  %v760 = vor.u32 %v756, %v759
  %v762 = vshrl.u32 %v751, 16
  %v764 = vrot.slane %v762, 1
  %v765 = vshll.u32 %v751, 16
  %v767 = vrot.slane %v765, 2
  %v768 = vor.u32 %v764, %v767
  %v769 = vsel %vm410, %v760, %v768
  %v771 = vshrl.u32 %v752, 16
  %v773 = vrot.slane %v771, 1
  %v774 = vshll.u32 %v752, 16
  %v776 = vrot.slane %v774, 2
  %v777 = vor.u32 %v773, %v776
  %v778 = vsel %vm410, %v768, %v777
  %781 = vst [vmem:[#allocation3 + $0x30] sm:$0xff] %v769
  %782 = vst [vmem:[#allocation3 + $0x68] sm:$0xff] %v778
  %v783 = vld [vmem:[#allocation3] sm:$0xff]
  %v784 = vld [vmem:[#allocation3 + $0x8] sm:$0xff]
  %v785 = vld [vmem:[#allocation3 + $0x10] sm:$0xff]
  %v786 = vld [vmem:[#allocation3 + $0x18] sm:$0xff]
  %v787 = vld [vmem:[#allocation3 + $0x20] sm:$0xff]
  %v788 = vld [vmem:[#allocation3 + $0x28] sm:$0xff]
  %v789 = vld [vmem:[#allocation3 + $0x30] sm:$0xff]
  %v790 = vld [vmem:[#allocation3 + $0x38] sm:$0xff]
  %v791 = vld [vmem:[#allocation3 + $0x40] sm:$0xff]
  %v792 = vld [vmem:[#allocation3 + $0x48] sm:$0xff]
  %v793 = vld [vmem:[#allocation3 + $0x50] sm:$0xff]
  %v794 = vld [vmem:[#allocation3 + $0x58] sm:$0xff]
  %v795 = vld [vmem:[#allocation3 + $0x60] sm:$0xff]
  %v796 = vld [vmem:[#allocation3 + $0x68] sm:$0xff]
  %v797 = vld [vmem:[%s1] sm:$0xf]
  %v798 = vld [vmem:[%s1 + $0x4] sm:$0xf]
  %v799 = vld [vmem:[%s1 + $0x8] sm:$0xf]
  %v800 = vld [vmem:[%s1 + $0xc] sm:$0xf]
  %v801 = vld [vmem:[%s1 + $0x10] sm:$0xf]
  %v802 = vld [vmem:[%s1 + $0x14] sm:$0xf]
  %v803 = vld [vmem:[%s1 + $0x18] sm:$0xf]
  %v804 = vld [vmem:[%s1 + $0x1c] sm:$0xf]
  %v805 = vld [vmem:[%s1 + $0x20] sm:$0xf]
  %v806 = vld [vmem:[%s1 + $0x24] sm:$0xf]
  %v807 = vld [vmem:[%s1 + $0x28] sm:$0xf]
  %v808 = vld [vmem:[%s1 + $0x2c] sm:$0xf]
  %v809 = vld [vmem:[%s1 + $0x30] sm:$0xf]
  %v810 = vld [vmem:[%s1 + $0x34] sm:$0xf]
  %v811 = vld [vmem:[%s1 + $0x38] sm:$0xf]
  %v812 = vld [vmem:[%s1 + $0x3c] sm:$0xf]
  %v813 = vld [vmem:[%s1 + $0x40] sm:$0xf]
  %v814 = vld [vmem:[%s1 + $0x44] sm:$0xf]
  %v815 = vld [vmem:[%s1 + $0x48] sm:$0xf]
  %v816 = vld [vmem:[%s1 + $0x4c] sm:$0xf]
  %v817 = vld [vmem:[%s1 + $0x50] sm:$0xf]
  %v818 = vld [vmem:[%s1 + $0x54] sm:$0xf]
  %v819 = vld [vmem:[%s1 + $0x58] sm:$0xf]
  %v820 = vld [vmem:[%s1 + $0x5c] sm:$0xf]
  %v821 = vld [vmem:[%s1 + $0x60] sm:$0xf]
  %v822 = vld [vmem:[%s1 + $0x64] sm:$0xf]
  %v823 = vld [vmem:[%s1 + $0x68] sm:$0xf]
  %v824 = vld [vmem:[%s1 + $0x6c] sm:$0xf]
  %v825 = vld [vmem:[%s1 + $0x70] sm:$0xf]
  %v826 = vld [vmem:[%s1 + $0x74] sm:$0xf]
  %v827 = vld [vmem:[%s1 + $0x78] sm:$0xf]
  %v828 = vld [vmem:[%s1 + $0x7c] sm:$0xf]
  %v829 = vld [vmem:[%s1 + $0x80] sm:$0xf]
  %v830 = vld [vmem:[%s1 + $0x84] sm:$0xf]
  %v831 = vld [vmem:[%s1 + $0x88] sm:$0xf]
  %v832 = vld [vmem:[%s1 + $0x8c] sm:$0xf]
  %v833 = vld [vmem:[%s1 + $0x90] sm:$0xf]
  %v834 = vld [vmem:[%s1 + $0x94] sm:$0xf]
  %v835 = vld [vmem:[%s1 + $0x98] sm:$0xf]
  %v836 = vld [vmem:[%s1 + $0x9c] sm:$0xf]
  %v837 = vld [vmem:[%s1 + $0xa0] sm:$0xf]
  %v838 = vld [vmem:[%s1 + $0xa4] sm:$0xf]
  %v839 = vld [vmem:[%s1 + $0xa8] sm:$0xf]
  %v840 = vld [vmem:[%s1 + $0xac] sm:$0xf]
  %v841 = vld [vmem:[%s1 + $0xb0] sm:$0xf]
  %v842 = vld [vmem:[%s1 + $0xb4] sm:$0xf]
  %v843 = vld [vmem:[%s1 + $0xb8] sm:$0xf]
  %v844 = vld [vmem:[%s1 + $0xbc] sm:$0xf]
  %v845 = vld [vmem:[%s1 + $0xc0] sm:$0xf]
  %v846 = vld [vmem:[%s1 + $0xc4] sm:$0xf]
  %v847 = vld [vmem:[%s1 + $0xc8] sm:$0xf]
  %v848 = vld [vmem:[%s1 + $0xcc] sm:$0xf]
  %v849 = vld [vmem:[%s1 + $0xd0] sm:$0xf]
  %v850 = vld [vmem:[%s1 + $0xd4] sm:$0xf]
  %v851 = vld [vmem:[%s1 + $0xd8] sm:$0xf]
  %v852 = vld [vmem:[%s1 + $0xdc] sm:$0xf]
  %v853 = vld [vmem:[%s1 + $0xe0] sm:$0xf]
  %v854 = vld [vmem:[%s1 + $0xe4] sm:$0xf]
  %v855 = vld [vmem:[%s1 + $0xe8] sm:$0xf]
  %v856 = vld [vmem:[%s1 + $0xec] sm:$0xf]
  %v857 = vld [vmem:[%s1 + $0xf0] sm:$0xf]
  %v858 = vld [vmem:[%s1 + $0xf4] sm:$0xf]
  %v859 = vld [vmem:[%s1 + $0xf8] sm:$0xf]
  %v860 = vld [vmem:[%s1 + $0xfc] sm:$0xf]
  %v861 = vld [vmem:[%s1 + $0x100] sm:$0xf]
  %v862 = vld [vmem:[%s1 + $0x104] sm:$0xf]
  %v863 = vld [vmem:[%s1 + $0x108] sm:$0xf]
  %v864 = vld [vmem:[%s1 + $0x10c] sm:$0xf]
  %v865 = vld [vmem:[%s1 + $0x110] sm:$0xf]
  %v866 = vld [vmem:[%s1 + $0x114] sm:$0xf]
  %v867 = vld [vmem:[%s1 + $0x118] sm:$0xf]
  %v868 = vld [vmem:[%s1 + $0x11c] sm:$0xf]
  %v869 = vld [vmem:[%s1 + $0x120] sm:$0xf]
  %v870 = vld [vmem:[%s1 + $0x124] sm:$0xf]
  %v871 = vld [vmem:[%s1 + $0x128] sm:$0xf]
  %v872 = vld [vmem:[%s1 + $0x12c] sm:$0xf]
  %v873 = vld [vmem:[%s1 + $0x130] sm:$0xf]
  %v874 = vld [vmem:[%s1 + $0x134] sm:$0xf]
  %v875 = vld [vmem:[%s1 + $0x138] sm:$0xf]
  %v876 = vld [vmem:[%s1 + $0x13c] sm:$0xf]
  %v877 = vld [vmem:[%s1 + $0x140] sm:$0xf]
  %v878 = vld [vmem:[%s1 + $0x144] sm:$0xf]
  %v879 = vld [vmem:[%s1 + $0x148] sm:$0xf]
  %v880 = vld [vmem:[%s1 + $0x14c] sm:$0xf]
  %v881 = vld [vmem:[%s1 + $0x150] sm:$0xf]
  %v882 = vld [vmem:[%s1 + $0x154] sm:$0xf]
  %v883 = vld [vmem:[%s1 + $0x158] sm:$0xf]
  %v884 = vld [vmem:[%s1 + $0x15c] sm:$0xf]
  %v885 = vld [vmem:[%s1 + $0x160] sm:$0xf]
  %v886 = vld [vmem:[%s1 + $0x164] sm:$0xf]
  %v887 = vld [vmem:[%s1 + $0x168] sm:$0xf]
  %v888 = vld [vmem:[%s1 + $0x16c] sm:$0xf]
  %v889 = vld [vmem:[%s1 + $0x170] sm:$0xf]
  %v890 = vld [vmem:[%s1 + $0x174] sm:$0xf]
  %v891 = vld [vmem:[%s1 + $0x178] sm:$0xf]
  %v892 = vld [vmem:[%s1 + $0x17c] sm:$0xf]
  %v893 = vld [vmem:[%s1 + $0x180] sm:$0xf]
  %v894 = vld [vmem:[%s1 + $0x184] sm:$0xf]
  %v895 = vld [vmem:[%s1 + $0x188] sm:$0xf]
  %v896 = vld [vmem:[%s1 + $0x18c] sm:$0xf]
  %v897 = vld [vmem:[%s1 + $0x190] sm:$0xf]
  %v898 = vld [vmem:[%s1 + $0x194] sm:$0xf]
  %v899 = vld [vmem:[%s1 + $0x198] sm:$0xf]
  %v900 = vld [vmem:[%s1 + $0x19c] sm:$0xf]
  %v901 = vld [vmem:[%s1 + $0x1a0] sm:$0xf]
  %v902 = vld [vmem:[%s1 + $0x1a4] sm:$0xf]
  %v903 = vld [vmem:[%s1 + $0x1a8] sm:$0xf]
  %v904 = vld [vmem:[%s1 + $0x1ac] sm:$0xf]
  %v905 = vld [vmem:[%s1 + $0x1b0] sm:$0xf]
  %v906 = vld [vmem:[%s1 + $0x1b4] sm:$0xf]
  %v907 = vld [vmem:[%s1 + $0x1b8] sm:$0xf]
  %v908 = vld [vmem:[%s1 + $0x1bc] sm:$0xf]
  %v909 = vld [vmem:[%s2] sm:$0x1]
  %v911 = vlaneseq
  %v912 = vshrl.u32 %v911, 7
  %v913 = vsub.s32 0, %v912
  %v914 = vrot.slane %v909, %v913
  %v1028 = vunpack.c.l.b16 %v797
  %v1029 = vunpack.c.l.b16 %v798
  %v1030 = vunpack.c.l.b16 %v799
  %v1031 = vunpack.c.l.b16 %v800
  %v1032 = vunpack.c.l.b16 %v801
  %v1033 = vunpack.c.l.b16 %v802
  %v1034 = vunpack.c.l.b16 %v803
  %v1035 = vunpack.c.l.b16 %v804
  %v1036 = vunpack.c.l.b16 %v805
  %v1037 = vunpack.c.l.b16 %v806
  %v1038 = vunpack.c.l.b16 %v807
  %v1039 = vunpack.c.l.b16 %v808
  %v1040 = vunpack.c.l.b16 %v809
  %v1041 = vunpack.c.l.b16 %v810
  %v1042 = vunpack.c.l.b16 %v811
  %v1043 = vunpack.c.l.b16 %v812
  %v1044 = vunpack.c.l.b16 %v813
  %v1045 = vunpack.c.l.b16 %v814
  %v1046 = vunpack.c.l.b16 %v815
  %v1047 = vunpack.c.l.b16 %v816
  %v1048 = vunpack.c.l.b16 %v817
  %v1049 = vunpack.c.l.b16 %v818
  %v1050 = vunpack.c.l.b16 %v819
  %v1051 = vunpack.c.l.b16 %v820
  %v1052 = vunpack.c.l.b16 %v821
  %v1053 = vunpack.c.l.b16 %v822
  %v1054 = vunpack.c.l.b16 %v823
  %v1055 = vunpack.c.l.b16 %v824
  %v1056 = vunpack.c.l.b16 %v825
  %v1057 = vunpack.c.l.b16 %v826
  %v1058 = vunpack.c.l.b16 %v827
  %v1059 = vunpack.c.l.b16 %v828
  %v1060 = vunpack.c.l.b16 %v829
  %v1061 = vunpack.c.l.b16 %v830
  %v1062 = vunpack.c.l.b16 %v831
  %v1063 = vunpack.c.l.b16 %v832
  %v1064 = vunpack.c.l.b16 %v833
  %v1065 = vunpack.c.l.b16 %v834
  %v1066 = vunpack.c.l.b16 %v835
  %v1067 = vunpack.c.l.b16 %v836
  %v1068 = vunpack.c.l.b16 %v837
  %v1069 = vunpack.c.l.b16 %v838
  %v1070 = vunpack.c.l.b16 %v839
  %v1071 = vunpack.c.l.b16 %v840
  %v1072 = vunpack.c.l.b16 %v841
  %v1073 = vunpack.c.l.b16 %v842
  %v1074 = vunpack.c.l.b16 %v843
  %v1075 = vunpack.c.l.b16 %v844
  %v1076 = vunpack.c.l.b16 %v845
  %v1077 = vunpack.c.l.b16 %v846
  %v1078 = vunpack.c.l.b16 %v847
  %v1079 = vunpack.c.l.b16 %v848
  %v1080 = vunpack.c.l.b16 %v849
  %v1081 = vunpack.c.l.b16 %v850
  %v1082 = vunpack.c.l.b16 %v851
  %v1083 = vunpack.c.l.b16 %v852
  %v1084 = vunpack.c.l.b16 %v853
  %v1085 = vunpack.c.l.b16 %v854
  %v1086 = vunpack.c.l.b16 %v855
  %v1087 = vunpack.c.l.b16 %v856
  %v1088 = vunpack.c.l.b16 %v857
  %v1089 = vunpack.c.l.b16 %v858
  %v1090 = vunpack.c.l.b16 %v859
  %v1091 = vunpack.c.l.b16 %v860
  %v1092 = vunpack.c.l.b16 %v861
  %v1093 = vunpack.c.l.b16 %v862
  %v1094 = vunpack.c.l.b16 %v863
  %v1095 = vunpack.c.l.b16 %v864
  %v1096 = vunpack.c.l.b16 %v865
  %v1097 = vunpack.c.l.b16 %v866
  %v1098 = vunpack.c.l.b16 %v867
  %v1099 = vunpack.c.l.b16 %v868
  %v1100 = vunpack.c.l.b16 %v869
  %v1101 = vunpack.c.l.b16 %v870
  %v1102 = vunpack.c.l.b16 %v871
  %v1103 = vunpack.c.l.b16 %v872
  %v1104 = vunpack.c.l.b16 %v873
  %v1105 = vunpack.c.l.b16 %v874
  %v1106 = vunpack.c.l.b16 %v875
  %v1107 = vunpack.c.l.b16 %v876
  %v1108 = vunpack.c.l.b16 %v877
  %v1109 = vunpack.c.l.b16 %v878
  %v1110 = vunpack.c.l.b16 %v879
  %v1111 = vunpack.c.l.b16 %v880
  %v1112 = vunpack.c.l.b16 %v881
  %v1113 = vunpack.c.l.b16 %v882
  %v1114 = vunpack.c.l.b16 %v883
  %v1115 = vunpack.c.l.b16 %v884
  %v1116 = vunpack.c.l.b16 %v885
  %v1117 = vunpack.c.l.b16 %v886
  %v1118 = vunpack.c.l.b16 %v887
  %v1119 = vunpack.c.l.b16 %v888
  %v1120 = vunpack.c.l.b16 %v889
  %v1121 = vunpack.c.l.b16 %v890
  %v1122 = vunpack.c.l.b16 %v891
  %v1123 = vunpack.c.l.b16 %v892
  %v1124 = vunpack.c.l.b16 %v893
  %v1125 = vunpack.c.l.b16 %v894
  %v1126 = vunpack.c.l.b16 %v895
  %v1127 = vunpack.c.l.b16 %v896
  %v1128 = vunpack.c.l.b16 %v897
  %v1129 = vunpack.c.l.b16 %v898
  %v1130 = vunpack.c.l.b16 %v899
  %v1131 = vunpack.c.l.b16 %v900
  %v1132 = vunpack.c.l.b16 %v901
  %v1133 = vunpack.c.l.b16 %v902
  %v1134 = vunpack.c.l.b16 %v903
  %v1135 = vunpack.c.l.b16 %v904
  %v1136 = vunpack.c.l.b16 %v905
  %v1137 = vunpack.c.l.b16 %v906
  %v1138 = vunpack.c.l.b16 %v907
  %v1139 = vunpack.c.l.b16 %v908
  %v1140 = vpack.c.b16 %v1029, %v1028
  %v1141 = vpack.c.b16 %v1031, %v1030
  %v1142 = vpack.c.b16 %v1033, %v1032
  %v1143 = vpack.c.b16 %v1035, %v1034
  %v1144 = vpack.c.b16 %v1037, %v1036
  %v1145 = vpack.c.b16 %v1039, %v1038
  %v1146 = vpack.c.b16 %v1041, %v1040
  %v1147 = vpack.c.b16 %v1043, %v1042
  %v1148 = vpack.c.b16 %v1045, %v1044
  %v1149 = vpack.c.b16 %v1047, %v1046
  %v1150 = vpack.c.b16 %v1049, %v1048
  %v1151 = vpack.c.b16 %v1051, %v1050
  %v1152 = vpack.c.b16 %v1053, %v1052
  %v1153 = vpack.c.b16 %v1055, %v1054
  %v1154 = vpack.c.b16 %v1057, %v1056
  %v1155 = vpack.c.b16 %v1059, %v1058
  %v1156 = vpack.c.b16 %v1061, %v1060
  %v1157 = vpack.c.b16 %v1063, %v1062
  %v1158 = vpack.c.b16 %v1065, %v1064
  %v1159 = vpack.c.b16 %v1067, %v1066
  %v1160 = vpack.c.b16 %v1069, %v1068
  %v1161 = vpack.c.b16 %v1071, %v1070
  %v1162 = vpack.c.b16 %v1073, %v1072
  %v1163 = vpack.c.b16 %v1075, %v1074
  %v1164 = vpack.c.b16 %v1077, %v1076
  %v1165 = vpack.c.b16 %v1079, %v1078
  %v1166 = vpack.c.b16 %v1081, %v1080
  %v1167 = vpack.c.b16 %v1083, %v1082
  %v1168 = vpack.c.b16 %v1085, %v1084
  %v1169 = vpack.c.b16 %v1087, %v1086
  %v1170 = vpack.c.b16 %v1089, %v1088
  %v1171 = vpack.c.b16 %v1091, %v1090
  %v1172 = vpack.c.b16 %v1093, %v1092
  %v1173 = vpack.c.b16 %v1095, %v1094
  %v1174 = vpack.c.b16 %v1097, %v1096
  %v1175 = vpack.c.b16 %v1099, %v1098
  %v1176 = vpack.c.b16 %v1101, %v1100
  %v1177 = vpack.c.b16 %v1103, %v1102
  %v1178 = vpack.c.b16 %v1105, %v1104
  %v1179 = vpack.c.b16 %v1107, %v1106
  %v1180 = vpack.c.b16 %v1109, %v1108
  %v1181 = vpack.c.b16 %v1111, %v1110
  %v1182 = vpack.c.b16 %v1113, %v1112
  %v1183 = vpack.c.b16 %v1115, %v1114
  %v1184 = vpack.c.b16 %v1117, %v1116
  %v1185 = vpack.c.b16 %v1119, %v1118
  %v1186 = vpack.c.b16 %v1121, %v1120
  %v1187 = vpack.c.b16 %v1123, %v1122
  %v1188 = vpack.c.b16 %v1125, %v1124
  %v1189 = vpack.c.b16 %v1127, %v1126
  %v1190 = vpack.c.b16 %v1129, %v1128
  %v1191 = vpack.c.b16 %v1131, %v1130
  %v1192 = vpack.c.b16 %v1133, %v1132
  %v1193 = vpack.c.b16 %v1135, %v1134
  %v1194 = vpack.c.b16 %v1137, %v1136
  %v1195 = vpack.c.b16 %v1139, %v1138
  %1252 = vmatprep.subr.bf16.mxu0 0
  %1253 = vmatpush1.bf16.msra.mxu0 %v1140
  %1254 = vmatprep.subr.bf16.mxu0 0
  %1255 = vmatpush1.bf16.msra.mxu0 %v1141
  %1256 = vmatprep.subr.bf16.mxu0 0
  %1257 = vmatpush1.bf16.msra.mxu0 %v1142
  %1258 = vmatprep.subr.bf16.mxu0 0
  %1259 = vmatpush1.bf16.msra.mxu0 %v1143
  %1260 = vmatprep.subr.bf16.mxu0 0
  %1261 = vmatpush1.bf16.msra.mxu0 %v1144
  %1262 = vmatprep.subr.bf16.mxu0 0
  %1263 = vmatpush1.bf16.msra.mxu0 %v1145
  %1264 = vmatprep.subr.bf16.mxu0 0
  %1265 = vmatpush1.bf16.msra.mxu0 %v1146
  %1266 = vmatprep.subr.bf16.mxu0 0
  %1267 = vmatpush1.bf16.msra.mxu0 %v1147
  %1268 = vmatprep.subr.bf16.mxu0 0
  %1269 = vmatpush1.bf16.msra.mxu0 %v1148
  %1270 = vmatprep.subr.bf16.mxu0 0
  %1271 = vmatpush1.bf16.msra.mxu0 %v1149
  %1272 = vmatprep.subr.bf16.mxu0 0
  %1273 = vmatpush1.bf16.msra.mxu0 %v1150
  %1274 = vmatprep.subr.bf16.mxu0 0
  %1275 = vmatpush1.bf16.msra.mxu0 %v1151
  %1276 = vmatprep.subr.bf16.mxu0 0
  %1277 = vmatpush1.bf16.msra.mxu0 %v1152
  %1278 = vmatprep.subr.bf16.mxu0 0
  %1279 = vmatpush1.bf16.msra.mxu0 %v1153
  %1280 = vmatprep.subr.bf16.mxu0 0
  %1281 = vmatpush1.bf16.msra.mxu0 %v1154
  %1282 = vmatprep.subr.bf16.mxu0 0
  %1283 = vmatpush1.bf16.msra.mxu0 %v1155
  %1284 = vmatprep.mubr.bf16.mxu0 %v784
  %1285 = vmatmul.mubr.bf16.gmra.mrb[0].mxu0 %v783
  %v1286 = vpop.f32.mrb[0].mxu0
  %v1287 = vadd.f32 %v914, %v1286
  %v1288 = vpop.f32.mrb[0].mxu0
  %v1289 = vpop.f32.mrb[0].mxu0
  %v1290 = vadd.f32 %v914, %v1289
  %v1291 = vpop.f32.mrb[0].mxu0
  %1292 = vmatprep.mubr.bf16.mxu0 %v791
  %1293 = vmatmul.mubr.bf16.gmra.mrb[0].mxu0 %v790
  %v1294 = vpop.f32.mrb[0].mxu0
  %v1295 = vadd.f32 %v914, %v1294
  %v1296 = vpop.f32.mrb[0].mxu0
  %v1297 = vpop.f32.mrb[0].mxu0
  %v1298 = vadd.f32 %v914, %v1297
  %v1299 = vpop.f32.mrb[0].mxu0
  %1300 = vdwg.mxu0
  %1301 = vmatprep.subr.bf16.mxu0 0
  %1302 = vmatpush1.bf16.msra.mxu0 %v1156
  %1303 = vmatprep.subr.bf16.mxu0 0
  %1304 = vmatpush1.bf16.msra.mxu0 %v1157
  %1305 = vmatprep.subr.bf16.mxu0 0
  %1306 = vmatpush1.bf16.msra.mxu0 %v1158
  %1307 = vmatprep.subr.bf16.mxu0 0
  %1308 = vmatpush1.bf16.msra.mxu0 %v1159
  %1309 = vmatprep.subr.bf16.mxu0 0
  %1310 = vmatpush1.bf16.msra.mxu0 %v1160
  %1311 = vmatprep.subr.bf16.mxu0 0
  %1312 = vmatpush1.bf16.msra.mxu0 %v1161
  %1313 = vmatprep.subr.bf16.mxu0 0
  %1314 = vmatpush1.bf16.msra.mxu0 %v1162
  %1315 = vmatprep.subr.bf16.mxu0 0
  %1316 = vmatpush1.bf16.msra.mxu0 %v1163
  %1317 = vmatprep.subr.bf16.mxu0 0
  %1318 = vmatpush1.bf16.msra.mxu0 %v1164
  %1319 = vmatprep.subr.bf16.mxu0 0
  %1320 = vmatpush1.bf16.msra.mxu0 %v1165
  %1321 = vmatprep.subr.bf16.mxu0 0
  %1322 = vmatpush1.bf16.msra.mxu0 %v1166
  %1323 = vmatprep.subr.bf16.mxu0 0
  %1324 = vmatpush1.bf16.msra.mxu0 %v1167
  %1325 = vmatprep.subr.bf16.mxu0 0
  %1326 = vmatpush1.bf16.msra.mxu0 %v1168
  %1327 = vmatprep.subr.bf16.mxu0 0
  %1328 = vmatpush1.bf16.msra.mxu0 %v1169
  %1329 = vmatprep.subr.bf16.mxu0 0
  %1330 = vmatpush1.bf16.msra.mxu0 %v1170
  %1331 = vmatprep.subr.bf16.mxu0 0
  %1332 = vmatpush1.bf16.msra.mxu0 %v1171
  %1333 = vmatprep.mubr.bf16.mxu0 %v786
  %1334 = vmatmul.mubr.bf16.gmra.mrb[0].mxu0 %v785
  %v1335 = vpop.f32.mrb[0].mxu0
  %v1336 = vadd.f32 %v1287, %v1335
  %v1337 = vpop.f32.mrb[0].mxu0
  %v1338 = vpop.f32.mrb[0].mxu0
  %v1339 = vadd.f32 %v1290, %v1338
  %v1340 = vpop.f32.mrb[0].mxu0
  %1341 = vmatprep.mubr.bf16.mxu0 %v793
  %1342 = vmatmul.mubr.bf16.gmra.mrb[0].mxu0 %v792
  %v1343 = vpop.f32.mrb[0].mxu0
  %v1344 = vadd.f32 %v1295, %v1343
  %v1345 = vpop.f32.mrb[0].mxu0
  %v1346 = vpop.f32.mrb[0].mxu0
  %v1347 = vadd.f32 %v1298, %v1346
  %v1348 = vpop.f32.mrb[0].mxu0
  %1349 = vdwg.mxu0
  %1350 = vmatprep.subr.bf16.mxu0 0
  %1351 = vmatpush1.bf16.msra.mxu0 %v1172
  %1352 = vmatprep.subr.bf16.mxu0 0
  %1353 = vmatpush1.bf16.msra.mxu0 %v1173
  %1354 = vmatprep.subr.bf16.mxu0 0
  %1355 = vmatpush1.bf16.msra.mxu0 %v1174
  %1356 = vmatprep.subr.bf16.mxu0 0
  %1357 = vmatpush1.bf16.msra.mxu0 %v1175
  %1358 = vmatprep.subr.bf16.mxu0 0
  %1359 = vmatpush1.bf16.msra.mxu0 %v1176
  %1360 = vmatprep.subr.bf16.mxu0 0
  %1361 = vmatpush1.bf16.msra.mxu0 %v1177
  %1362 = vmatprep.subr.bf16.mxu0 0
  %1363 = vmatpush1.bf16.msra.mxu0 %v1178
  %1364 = vmatprep.subr.bf16.mxu0 0
  %1365 = vmatpush1.bf16.msra.mxu0 %v1179
  %1366 = vmatprep.subr.bf16.mxu0 0
  %1367 = vmatpush1.bf16.msra.mxu0 %v1180
  %1368 = vmatprep.subr.bf16.mxu0 0
  %1369 = vmatpush1.bf16.msra.mxu0 %v1181
  %1370 = vmatprep.subr.bf16.mxu0 0
  %1371 = vmatpush1.bf16.msra.mxu0 %v1182
  %1372 = vmatprep.subr.bf16.mxu0 0
  %1373 = vmatpush1.bf16.msra.mxu0 %v1183
  %1374 = vmatprep.subr.bf16.mxu0 0
  %1375 = vmatpush1.bf16.msra.mxu0 %v1184
  %1376 = vmatprep.subr.bf16.mxu0 0
  %1377 = vmatpush1.bf16.msra.mxu0 %v1185
  %1378 = vmatprep.subr.bf16.mxu0 0
  %1379 = vmatpush1.bf16.msra.mxu0 %v1186
  %1380 = vmatprep.subr.bf16.mxu0 0
  %1381 = vmatpush1.bf16.msra.mxu0 %v1187
  %1382 = vmatprep.mubr.bf16.mxu0 %v788
  %1383 = vmatmul.mubr.bf16.gmra.mrb[0].mxu0 %v787
  %v1384 = vpop.f32.mrb[0].mxu0
  %v1385 = vadd.f32 %v1336, %v1384
  %v1386 = vpop.f32.mrb[0].mxu0
  %v1387 = vpop.f32.mrb[0].mxu0
  %v1388 = vadd.f32 %v1339, %v1387
  %v1389 = vpop.f32.mrb[0].mxu0
  %1390 = vmatprep.mubr.bf16.mxu0 %v795
  %1391 = vmatmul.mubr.bf16.gmra.mrb[0].mxu0 %v794
  %v1392 = vpop.f32.mrb[0].mxu0
  %v1393 = vadd.f32 %v1344, %v1392
  %v1394 = vpop.f32.mrb[0].mxu0
  %v1395 = vpop.f32.mrb[0].mxu0
  %v1396 = vadd.f32 %v1347, %v1395
  %v1397 = vpop.f32.mrb[0].mxu0
  %1398 = vdwg.mxu0
  %1399 = vmatprep.subr.bf16.mxu0 0
  %1400 = vmatpush1.bf16.msra.mxu0 %v1188
  %1401 = vmatprep.subr.bf16.mxu0 0
  %1402 = vmatpush1.bf16.msra.mxu0 %v1189
  %1403 = vmatprep.subr.bf16.mxu0 0
  %1404 = vmatpush1.bf16.msra.mxu0 %v1190
  %1405 = vmatprep.subr.bf16.mxu0 0
  %1406 = vmatpush1.bf16.msra.mxu0 %v1191
  %1407 = vmatprep.subr.bf16.mxu0 0
  %1408 = vmatpush1.bf16.msra.mxu0 %v1192
  %1409 = vmatprep.subr.bf16.mxu0 0
  %1410 = vmatpush1.bf16.msra.mxu0 %v1193
  %1411 = vmatprep.subr.bf16.mxu0 0
  %1412 = vmatpush1.bf16.msra.mxu0 %v1194
  %1413 = vmatprep.subr.bf16.mxu0 0
  %1414 = vmatpush1.bf16.msra.mxu0 %v1195
  %1415 = vmatprep.subr.bf16.mxu0 0
  %1416 = vmatpush1.bf16.msra.mxu0 0
  %1417 = vmatprep.subr.bf16.mxu0 0
  %1418 = vmatpush1.bf16.msra.mxu0 0
  %1419 = vmatprep.subr.bf16.mxu0 0
  %1420 = vmatpush1.bf16.msra.mxu0 0
  %1421 = vmatprep.subr.bf16.mxu0 0
  %1422 = vmatpush1.bf16.msra.mxu0 0
  %1423 = vmatprep.subr.bf16.mxu0 0
  %1424 = vmatpush1.bf16.msra.mxu0 0
  %1425 = vmatprep.subr.bf16.mxu0 0
  %1426 = vmatpush1.bf16.msra.mxu0 0
  %1427 = vmatprep.subr.bf16.mxu0 0
  %1428 = vmatpush1.bf16.msra.mxu0 0
  %1429 = vmatprep.subr.bf16.mxu0 0
  %1430 = vmatpush1.bf16.msra.mxu0 0
  %1431 = vmatprep.mubr.bf16.mxu0 0
  %1432 = vmatmul.mubr.bf16.gmra.mrb[0].mxu0 %v789
  %v1433 = vpop.f32.mrb[0].mxu0
  %v1434 = vadd.f32 %v1385, %v1433
  %v1435 = vpop.f32.mrb[0].mxu0
  %v1436 = vpop.f32.mrb[0].mxu0
  %v1437 = vadd.f32 %v1388, %v1436
  %v1438 = vpop.f32.mrb[0].mxu0
  %1439 = vmatprep.mubr.bf16.mxu0 0
  %1440 = vmatmul.mubr.bf16.gmra.mrb[0].mxu0 %v796
  %v1441 = vpop.f32.mrb[0].mxu0
  %v1442 = vadd.f32 %v1393, %v1441
  %v1443 = vpop.f32.mrb[0].mxu0
  %v1444 = vpop.f32.mrb[0].mxu0
  %v1445 = vadd.f32 %v1396, %v1444
  %v1446 = vpop.f32.mrb[0].mxu0
  %1447 = vdwg.mxu0
  %v1448 = vmax.f32 %v1434, 0.0
  %v1449 = vmax.f32 %v1437, 0.0
  %v1450 = vmax.f32 %v1442, 0.0
  %v1451 = vmax.f32 %v1445, 0.0
  %v1452 = vpack.c.bf16 %v1449, %v1448
  %v1453 = vpack.c.bf16 %v1451, %v1450
  %vm1454 = vcmask 523264
  %1455 = vst.msk [vmem:[#allocation2 + $0x8] sm:$0xff] %vm1454, %v1452
  %1456 = vst.msk [vmem:[#allocation2 + $0x10] sm:$0xff] %vm1454, %v1453
  %v1457 = vld [vmem:[#allocation2] sm:$0xc0]
  %v1458 = vld [vmem:[#allocation2 + $0x8] sm:$0xff]
  %v1459 = vld [vmem:[#allocation2 + $0x10] sm:$0x7f]
  %v1460 = vsel %vm428, %v1457, 0
  %v1461 = vsel %vm429, %v1458, 0
  %v1462 = vsel %vm430, %v1459, 0
  %v1464 = vshrl.u32 %v1460, 16
  %v1466 = vrot.slane %v1464, 6
  %v1467 = vshll.u32 %v1460, 16
  %v1469 = vrot.slane %v1467, 7
  %v1470 = vor.u32 %v1466, %v1469
  %v1472 = vshrl.u32 %v1461, 16
  %v1474 = vrot.slane %v1472, 6
  %v1475 = vshll.u32 %v1461, 16
  %v1477 = vrot.slane %v1475, 7
  %v1478 = vor.u32 %v1474, %v1477
  %v1479 = vsel %vm434, %v1470, %v1478
  %v1481 = vshrl.u32 %v1462, 16
  %v1483 = vrot.slane %v1481, 6
  %v1484 = vshll.u32 %v1462, 16
  %v1486 = vrot.slane %v1484, 7
  %v1487 = vor.u32 %v1483, %v1486
  %v1488 = vsel %vm434, %v1478, %v1487
  %1491 = vst [vmem:[#allocation3] sm:$0xff] %v1479
  %1492 = vst [vmem:[#allocation3 + $0x38] sm:$0xff] %v1488
  %v1493 = vld [vmem:[#allocation2] sm:$0x80]
  %v1494 = vld [vmem:[#allocation2 + $0x8] sm:$0xff]
  %v1495 = vld [vmem:[#allocation2 + $0x10] sm:$0x7f]
  %v1496 = vsel %vm494, %v1493, 0
  %v1497 = vsel %vm495, %v1494, 0
  %v1498 = vsel %vm496, %v1495, 0
  %v1502 = vrot.slane %v1496, 7
  %v1503 = vrot.slane %v1497, 7
  %v1504 = vsel %vm503, %v1502, %v1503
  %v1505 = vrot.slane %v1498, 7
  %v1506 = vsel %vm503, %v1503, %v1505
  %1509 = vst [vmem:[#allocation3 + $0x8] sm:$0xff] %v1504
  %1510 = vst [vmem:[#allocation3 + $0x40] sm:$0xff] %v1506
  %v1511 = vld [vmem:[#allocation2] sm:$0x80]
  %v1512 = vld [vmem:[#allocation2 + $0x8] sm:$0xff]
  %v1513 = vld [vmem:[#allocation2 + $0x10] sm:$0xff]
  %v1514 = vsel %vm554, %v1511, 0
  %v1515 = vsel %vm555, %v1512, 0
  %v1516 = vsel %vm556, %v1513, 0
  %v1518 = vshrl.u32 %v1514, 16
  %v1520 = vrot.slane %v1518, 7
  %v1522 = vshrl.u32 %v1515, 16
  %v1524 = vrot.slane %v1522, 7
  %v1525 = vshll.u32 %v1515, 16
  %v1527 = vor.u32 %v1524, %v1525
  %v1528 = vsel %vm560, %v1520, %v1527
  %v1530 = vshrl.u32 %v1516, 16
  %v1532 = vrot.slane %v1530, 7
  %v1533 = vshll.u32 %v1516, 16
  %v1535 = vor.u32 %v1532, %v1533
  %v1536 = vsel %vm560, %v1524, %v1535
  %1539 = vst [vmem:[#allocation3 + $0x10] sm:$0xff] %v1528
  %1540 = vst [vmem:[#allocation3 + $0x48] sm:$0xff] %v1536
  %v1541 = vld [vmem:[#allocation2 + $0x8] sm:$0xff]
  %v1542 = vld [vmem:[#allocation2 + $0x10] sm:$0xff]
  %1543 = vst [vmem:[#allocation3 + $0x18] sm:$0xff] %v1541
  %1544 = vst [vmem:[#allocation3 + $0x50] sm:$0xff] %v1542
  %v1545 = vld [vmem:[#allocation2 + $0x8] sm:$0xff]
  %v1546 = vld [vmem:[#allocation2 + $0x10] sm:$0xff]
  %v1547 = vld [vmem:[#allocation2 + $0x18] sm:$0x1]
  %v1548 = vsel %vm629, %v1545, 0
  %v1549 = vsel %vm630, %v1546, 0
  %v1550 = vsel %vm631, %v1547, 0
  %v1552 = vshrl.u32 %v1548, 16
  %v1554 = vshll.u32 %v1548, 16
  %v1556 = vrot.slane %v1554, 1
  %v1557 = vor.u32 %v1552, %v1556
  %v1559 = vshll.u32 %v1549, 16
  %v1561 = vrot.slane %v1559, 1
  %v1562 = vsel %vm538, %v1557, %v1561
  %v1563 = vshrl.u32 %v1549, 16
  %v1565 = vor.u32 %v1563, %v1561
  %v1567 = vshll.u32 %v1550, 16
  %v1569 = vrot.slane %v1567, 1
  %v1570 = vsel %vm538, %v1565, %v1569
  %1573 = vst [vmem:[#allocation3 + $0x20] sm:$0xff] %v1562
  %1574 = vst [vmem:[#allocation3 + $0x58] sm:$0xff] %v1570
  %v1575 = vld [vmem:[#allocation2 + $0x8] sm:$0xfe]
  %v1576 = vld [vmem:[#allocation2 + $0x10] sm:$0xff]
  %v1577 = vld [vmem:[#allocation2 + $0x18] sm:$0x1]
  %v1578 = vsel %vm687, %v1575, 0
  %v1579 = vsel %vm688, %v1576, 0
  %v1580 = vsel %vm689, %v1577, 0
  %v1584 = vrot.slane %v1578, 1
  %v1585 = vrot.slane %v1579, 1
  %v1586 = vsel %vm490, %v1584, %v1585
  %v1587 = vrot.slane %v1580, 1
  %v1588 = vsel %vm490, %v1585, %v1587
  %1591 = vst [vmem:[#allocation3 + $0x28] sm:$0xff] %v1586
  %1592 = vst [vmem:[#allocation3 + $0x60] sm:$0xff] %v1588
  %v1593 = vld [vmem:[#allocation2 + $0x8] sm:$0xfe]
  %v1594 = vld [vmem:[#allocation2 + $0x10] sm:$0xff]
  %v1595 = vld [vmem:[#allocation2 + $0x18] sm:$0x3]
  %v1596 = vsel %vm747, %v1593, 0
  %v1597 = vsel %vm748, %v1594, 0
  %v1598 = vsel %vm749, %v1595, 0
  %v1600 = vshrl.u32 %v1596, 16
  %v1602 = vrot.slane %v1600, 1
  %v1603 = vshll.u32 %v1596, 16
  %v1605 = vrot.slane %v1603, 2
  %v1606 = vor.u32 %v1602, %v1605
  %v1608 = vshrl.u32 %v1597, 16
  %v1610 = vrot.slane %v1608, 1
  %v1611 = vshll.u32 %v1597, 16
  %v1613 = vrot.slane %v1611, 2
  %v1614 = vor.u32 %v1610, %v1613
  %v1615 = vsel %vm410, %v1606, %v1614
  %v1617 = vshrl.u32 %v1598, 16
  %v1619 = vrot.slane %v1617, 1
  %v1620 = vshll.u32 %v1598, 16
  %v1622 = vrot.slane %v1620, 2
  %v1623 = vor.u32 %v1619, %v1622
  %v1624 = vsel %vm410, %v1614, %v1623
  %1627 = vst [vmem:[#allocation3 + $0x30] sm:$0xff] %v1615
  %1628 = vst [vmem:[#allocation3 + $0x68] sm:$0xff] %v1624
  %v1629 = vld [vmem:[#allocation3] sm:$0xff]
  %v1630 = vld [vmem:[#allocation3 + $0x8] sm:$0xff]
  %v1631 = vld [vmem:[#allocation3 + $0x10] sm:$0xff]
  %v1632 = vld [vmem:[#allocation3 + $0x18] sm:$0xff]
  %v1633 = vld [vmem:[#allocation3 + $0x20] sm:$0xff]
  %v1634 = vld [vmem:[#allocation3 + $0x28] sm:$0xff]
  %v1635 = vld [vmem:[#allocation3 + $0x30] sm:$0xff]
  %v1636 = vld [vmem:[#allocation3 + $0x38] sm:$0xff]
  %v1637 = vld [vmem:[#allocation3 + $0x40] sm:$0xff]
  %v1638 = vld [vmem:[#allocation3 + $0x48] sm:$0xff]
  %v1639 = vld [vmem:[#allocation3 + $0x50] sm:$0xff]
  %v1640 = vld [vmem:[#allocation3 + $0x58] sm:$0xff]
  %v1641 = vld [vmem:[#allocation3 + $0x60] sm:$0xff]
  %v1642 = vld [vmem:[#allocation3 + $0x68] sm:$0xff]
  %v1643 = vld [vmem:[%s3] sm:$0xf]
  %v1644 = vld [vmem:[%s3 + $0x4] sm:$0xf]
  %v1645 = vld [vmem:[%s3 + $0x8] sm:$0xf]
  %v1646 = vld [vmem:[%s3 + $0xc] sm:$0xf]
  %v1647 = vld [vmem:[%s3 + $0x10] sm:$0xf]
  %v1648 = vld [vmem:[%s3 + $0x14] sm:$0xf]
  %v1649 = vld [vmem:[%s3 + $0x18] sm:$0xf]
  %v1650 = vld [vmem:[%s3 + $0x1c] sm:$0xf]
  %v1651 = vld [vmem:[%s3 + $0x20] sm:$0xf]
  %v1652 = vld [vmem:[%s3 + $0x24] sm:$0xf]
  %v1653 = vld [vmem:[%s3 + $0x28] sm:$0xf]
  %v1654 = vld [vmem:[%s3 + $0x2c] sm:$0xf]
  %v1655 = vld [vmem:[%s3 + $0x30] sm:$0xf]
  %v1656 = vld [vmem:[%s3 + $0x34] sm:$0xf]
  %v1657 = vld [vmem:[%s3 + $0x38] sm:$0xf]
  %v1658 = vld [vmem:[%s3 + $0x3c] sm:$0xf]
  %v1659 = vld [vmem:[%s3 + $0x40] sm:$0xf]
  %v1660 = vld [vmem:[%s3 + $0x44] sm:$0xf]
  %v1661 = vld [vmem:[%s3 + $0x48] sm:$0xf]
  %v1662 = vld [vmem:[%s3 + $0x4c] sm:$0xf]
  %v1663 = vld [vmem:[%s3 + $0x50] sm:$0xf]
  %v1664 = vld [vmem:[%s3 + $0x54] sm:$0xf]
  %v1665 = vld [vmem:[%s3 + $0x58] sm:$0xf]
  %v1666 = vld [vmem:[%s3 + $0x5c] sm:$0xf]
  %v1667 = vld [vmem:[%s3 + $0x60] sm:$0xf]
  %v1668 = vld [vmem:[%s3 + $0x64] sm:$0xf]
  %v1669 = vld [vmem:[%s3 + $0x68] sm:$0xf]
  %v1670 = vld [vmem:[%s3 + $0x6c] sm:$0xf]
  %v1671 = vld [vmem:[%s3 + $0x70] sm:$0xf]
  %v1672 = vld [vmem:[%s3 + $0x74] sm:$0xf]
  %v1673 = vld [vmem:[%s3 + $0x78] sm:$0xf]
  %v1674 = vld [vmem:[%s3 + $0x7c] sm:$0xf]
  %v1675 = vld [vmem:[%s3 + $0x80] sm:$0xf]
  %v1676 = vld [vmem:[%s3 + $0x84] sm:$0xf]
  %v1677 = vld [vmem:[%s3 + $0x88] sm:$0xf]
  %v1678 = vld [vmem:[%s3 + $0x8c] sm:$0xf]
  %v1679 = vld [vmem:[%s3 + $0x90] sm:$0xf]
  %v1680 = vld [vmem:[%s3 + $0x94] sm:$0xf]
  %v1681 = vld [vmem:[%s3 + $0x98] sm:$0xf]
  %v1682 = vld [vmem:[%s3 + $0x9c] sm:$0xf]
  %v1683 = vld [vmem:[%s3 + $0xa0] sm:$0xf]
  %v1684 = vld [vmem:[%s3 + $0xa4] sm:$0xf]
  %v1685 = vld [vmem:[%s3 + $0xa8] sm:$0xf]
  %v1686 = vld [vmem:[%s3 + $0xac] sm:$0xf]
  %v1687 = vld [vmem:[%s3 + $0xb0] sm:$0xf]
  %v1688 = vld [vmem:[%s3 + $0xb4] sm:$0xf]
  %v1689 = vld [vmem:[%s3 + $0xb8] sm:$0xf]
  %v1690 = vld [vmem:[%s3 + $0xbc] sm:$0xf]
  %v1691 = vld [vmem:[%s3 + $0xc0] sm:$0xf]
  %v1692 = vld [vmem:[%s3 + $0xc4] sm:$0xf]
  %v1693 = vld [vmem:[%s3 + $0xc8] sm:$0xf]
  %v1694 = vld [vmem:[%s3 + $0xcc] sm:$0xf]
  %v1695 = vld [vmem:[%s3 + $0xd0] sm:$0xf]
  %v1696 = vld [vmem:[%s3 + $0xd4] sm:$0xf]
  %v1697 = vld [vmem:[%s3 + $0xd8] sm:$0xf]
  %v1698 = vld [vmem:[%s3 + $0xdc] sm:$0xf]
  %v1699 = vld [vmem:[%s3 + $0xe0] sm:$0xf]
  %v1700 = vld [vmem:[%s3 + $0xe4] sm:$0xf]
  %v1701 = vld [vmem:[%s3 + $0xe8] sm:$0xf]
  %v1702 = vld [vmem:[%s3 + $0xec] sm:$0xf]
  %v1703 = vld [vmem:[%s3 + $0xf0] sm:$0xf]
  %v1704 = vld [vmem:[%s3 + $0xf4] sm:$0xf]
  %v1705 = vld [vmem:[%s3 + $0xf8] sm:$0xf]
  %v1706 = vld [vmem:[%s3 + $0xfc] sm:$0xf]
  %v1707 = vld [vmem:[%s3 + $0x100] sm:$0xf]
  %v1708 = vld [vmem:[%s3 + $0x104] sm:$0xf]
  %v1709 = vld [vmem:[%s3 + $0x108] sm:$0xf]
  %v1710 = vld [vmem:[%s3 + $0x10c] sm:$0xf]
  %v1711 = vld [vmem:[%s3 + $0x110] sm:$0xf]
  %v1712 = vld [vmem:[%s3 + $0x114] sm:$0xf]
  %v1713 = vld [vmem:[%s3 + $0x118] sm:$0xf]
  %v1714 = vld [vmem:[%s3 + $0x11c] sm:$0xf]
  %v1715 = vld [vmem:[%s3 + $0x120] sm:$0xf]
  %v1716 = vld [vmem:[%s3 + $0x124] sm:$0xf]
  %v1717 = vld [vmem:[%s3 + $0x128] sm:$0xf]
  %v1718 = vld [vmem:[%s3 + $0x12c] sm:$0xf]
  %v1719 = vld [vmem:[%s3 + $0x130] sm:$0xf]
  %v1720 = vld [vmem:[%s3 + $0x134] sm:$0xf]
  %v1721 = vld [vmem:[%s3 + $0x138] sm:$0xf]
  %v1722 = vld [vmem:[%s3 + $0x13c] sm:$0xf]
  %v1723 = vld [vmem:[%s3 + $0x140] sm:$0xf]
  %v1724 = vld [vmem:[%s3 + $0x144] sm:$0xf]
  %v1725 = vld [vmem:[%s3 + $0x148] sm:$0xf]
  %v1726 = vld [vmem:[%s3 + $0x14c] sm:$0xf]
  %v1727 = vld [vmem:[%s3 + $0x150] sm:$0xf]
  %v1728 = vld [vmem:[%s3 + $0x154] sm:$0xf]
  %v1729 = vld [vmem:[%s3 + $0x158] sm:$0xf]
  %v1730 = vld [vmem:[%s3 + $0x15c] sm:$0xf]
  %v1731 = vld [vmem:[%s3 + $0x160] sm:$0xf]
  %v1732 = vld [vmem:[%s3 + $0x164] sm:$0xf]
  %v1733 = vld [vmem:[%s3 + $0x168] sm:$0xf]
  %v1734 = vld [vmem:[%s3 + $0x16c] sm:$0xf]
  %v1735 = vld [vmem:[%s3 + $0x170] sm:$0xf]
  %v1736 = vld [vmem:[%s3 + $0x174] sm:$0xf]
  %v1737 = vld [vmem:[%s3 + $0x178] sm:$0xf]
  %v1738 = vld [vmem:[%s3 + $0x17c] sm:$0xf]
  %v1739 = vld [vmem:[%s3 + $0x180] sm:$0xf]
  %v1740 = vld [vmem:[%s3 + $0x184] sm:$0xf]
  %v1741 = vld [vmem:[%s3 + $0x188] sm:$0xf]
  %v1742 = vld [vmem:[%s3 + $0x18c] sm:$0xf]
  %v1743 = vld [vmem:[%s3 + $0x190] sm:$0xf]
  %v1744 = vld [vmem:[%s3 + $0x194] sm:$0xf]
  %v1745 = vld [vmem:[%s3 + $0x198] sm:$0xf]
  %v1746 = vld [vmem:[%s3 + $0x19c] sm:$0xf]
  %v1747 = vld [vmem:[%s3 + $0x1a0] sm:$0xf]
  %v1748 = vld [vmem:[%s3 + $0x1a4] sm:$0xf]
  %v1749 = vld [vmem:[%s3 + $0x1a8] sm:$0xf]
  %v1750 = vld [vmem:[%s3 + $0x1ac] sm:$0xf]
  %v1751 = vld [vmem:[%s3 + $0x1b0] sm:$0xf]
  %v1752 = vld [vmem:[%s3 + $0x1b4] sm:$0xf]
  %v1753 = vld [vmem:[%s3 + $0x1b8] sm:$0xf]
  %v1754 = vld [vmem:[%s3 + $0x1bc] sm:$0xf]
  %v1755 = vld [vmem:[%s4] sm:$0x1]
  %v1757 = vlaneseq
  %v1758 = vshrl.u32 %v1757, 7
  %v1759 = vsub.s32 0, %v1758
  %v1760 = vrot.slane %v1755, %v1759
  %v1874 = vunpack.c.l.b16 %v1643
  %v1875 = vunpack.c.l.b16 %v1644
  %v1876 = vunpack.c.l.b16 %v1645
  %v1877 = vunpack.c.l.b16 %v1646
  %v1878 = vunpack.c.l.b16 %v1647
  %v1879 = vunpack.c.l.b16 %v1648
  %v1880 = vunpack.c.l.b16 %v1649
  %v1881 = vunpack.c.l.b16 %v1650
  %v1882 = vunpack.c.l.b16 %v1651
  %v1883 = vunpack.c.l.b16 %v1652
  %v1884 = vunpack.c.l.b16 %v1653
  %v1885 = vunpack.c.l.b16 %v1654
  %v1886 = vunpack.c.l.b16 %v1655
  %v1887 = vunpack.c.l.b16 %v1656
  %v1888 = vunpack.c.l.b16 %v1657
  %v1889 = vunpack.c.l.b16 %v1658
  %v1890 = vunpack.c.l.b16 %v1659
  %v1891 = vunpack.c.l.b16 %v1660
  %v1892 = vunpack.c.l.b16 %v1661
  %v1893 = vunpack.c.l.b16 %v1662
  %v1894 = vunpack.c.l.b16 %v1663
  %v1895 = vunpack.c.l.b16 %v1664
  %v1896 = vunpack.c.l.b16 %v1665
  %v1897 = vunpack.c.l.b16 %v1666
  %v1898 = vunpack.c.l.b16 %v1667
  %v1899 = vunpack.c.l.b16 %v1668
  %v1900 = vunpack.c.l.b16 %v1669
  %v1901 = vunpack.c.l.b16 %v1670
  %v1902 = vunpack.c.l.b16 %v1671
  %v1903 = vunpack.c.l.b16 %v1672
  %v1904 = vunpack.c.l.b16 %v1673
  %v1905 = vunpack.c.l.b16 %v1674
  %v1906 = vunpack.c.l.b16 %v1675
  %v1907 = vunpack.c.l.b16 %v1676
  %v1908 = vunpack.c.l.b16 %v1677
  %v1909 = vunpack.c.l.b16 %v1678
  %v1910 = vunpack.c.l.b16 %v1679
  %v1911 = vunpack.c.l.b16 %v1680
  %v1912 = vunpack.c.l.b16 %v1681
  %v1913 = vunpack.c.l.b16 %v1682
  %v1914 = vunpack.c.l.b16 %v1683
  %v1915 = vunpack.c.l.b16 %v1684
  %v1916 = vunpack.c.l.b16 %v1685
  %v1917 = vunpack.c.l.b16 %v1686
  %v1918 = vunpack.c.l.b16 %v1687
  %v1919 = vunpack.c.l.b16 %v1688
  %v1920 = vunpack.c.l.b16 %v1689
  %v1921 = vunpack.c.l.b16 %v1690
  %v1922 = vunpack.c.l.b16 %v1691
  %v1923 = vunpack.c.l.b16 %v1692
  %v1924 = vunpack.c.l.b16 %v1693
  %v1925 = vunpack.c.l.b16 %v1694
  %v1926 = vunpack.c.l.b16 %v1695
  %v1927 = vunpack.c.l.b16 %v1696
  %v1928 = vunpack.c.l.b16 %v1697
  %v1929 = vunpack.c.l.b16 %v1698
  %v1930 = vunpack.c.l.b16 %v1699
  %v1931 = vunpack.c.l.b16 %v1700
  %v1932 = vunpack.c.l.b16 %v1701
  %v1933 = vunpack.c.l.b16 %v1702
  %v1934 = vunpack.c.l.b16 %v1703
  %v1935 = vunpack.c.l.b16 %v1704
  %v1936 = vunpack.c.l.b16 %v1705
  %v1937 = vunpack.c.l.b16 %v1706
  %v1938 = vunpack.c.l.b16 %v1707
  %v1939 = vunpack.c.l.b16 %v1708
  %v1940 = vunpack.c.l.b16 %v1709
  %v1941 = vunpack.c.l.b16 %v1710
  %v1942 = vunpack.c.l.b16 %v1711
  %v1943 = vunpack.c.l.b16 %v1712
  %v1944 = vunpack.c.l.b16 %v1713
  %v1945 = vunpack.c.l.b16 %v1714
  %v1946 = vunpack.c.l.b16 %v1715
  %v1947 = vunpack.c.l.b16 %v1716
  %v1948 = vunpack.c.l.b16 %v1717
  %v1949 = vunpack.c.l.b16 %v1718
  %v1950 = vunpack.c.l.b16 %v1719
  %v1951 = vunpack.c.l.b16 %v1720
  %v1952 = vunpack.c.l.b16 %v1721
  %v1953 = vunpack.c.l.b16 %v1722
  %v1954 = vunpack.c.l.b16 %v1723
  %v1955 = vunpack.c.l.b16 %v1724
  %v1956 = vunpack.c.l.b16 %v1725
  %v1957 = vunpack.c.l.b16 %v1726
  %v1958 = vunpack.c.l.b16 %v1727
  %v1959 = vunpack.c.l.b16 %v1728
  %v1960 = vunpack.c.l.b16 %v1729
  %v1961 = vunpack.c.l.b16 %v1730
  %v1962 = vunpack.c.l.b16 %v1731
  %v1963 = vunpack.c.l.b16 %v1732
  %v1964 = vunpack.c.l.b16 %v1733
  %v1965 = vunpack.c.l.b16 %v1734
  %v1966 = vunpack.c.l.b16 %v1735
  %v1967 = vunpack.c.l.b16 %v1736
  %v1968 = vunpack.c.l.b16 %v1737
  %v1969 = vunpack.c.l.b16 %v1738
  %v1970 = vunpack.c.l.b16 %v1739
  %v1971 = vunpack.c.l.b16 %v1740
  %v1972 = vunpack.c.l.b16 %v1741
  %v1973 = vunpack.c.l.b16 %v1742
  %v1974 = vunpack.c.l.b16 %v1743
  %v1975 = vunpack.c.l.b16 %v1744
  %v1976 = vunpack.c.l.b16 %v1745
  %v1977 = vunpack.c.l.b16 %v1746
  %v1978 = vunpack.c.l.b16 %v1747
  %v1979 = vunpack.c.l.b16 %v1748
  %v1980 = vunpack.c.l.b16 %v1749
  %v1981 = vunpack.c.l.b16 %v1750
  %v1982 = vunpack.c.l.b16 %v1751
  %v1983 = vunpack.c.l.b16 %v1752
  %v1984 = vunpack.c.l.b16 %v1753
  %v1985 = vunpack.c.l.b16 %v1754
  %v1986 = vpack.c.b16 %v1875, %v1874
  %v1987 = vpack.c.b16 %v1877, %v1876
  %v1988 = vpack.c.b16 %v1879, %v1878
  %v1989 = vpack.c.b16 %v1881, %v1880
  %v1990 = vpack.c.b16 %v1883, %v1882
  %v1991 = vpack.c.b16 %v1885, %v1884
  %v1992 = vpack.c.b16 %v1887, %v1886
  %v1993 = vpack.c.b16 %v1889, %v1888
  %v1994 = vpack.c.b16 %v1891, %v1890
  %v1995 = vpack.c.b16 %v1893, %v1892
  %v1996 = vpack.c.b16 %v1895, %v1894
  %v1997 = vpack.c.b16 %v1897, %v1896
  %v1998 = vpack.c.b16 %v1899, %v1898
  %v1999 = vpack.c.b16 %v1901, %v1900
  %v2000 = vpack.c.b16 %v1903, %v1902
  %v2001 = vpack.c.b16 %v1905, %v1904
  %v2002 = vpack.c.b16 %v1907, %v1906
  %v2003 = vpack.c.b16 %v1909, %v1908
  %v2004 = vpack.c.b16 %v1911, %v1910
  %v2005 = vpack.c.b16 %v1913, %v1912
  %v2006 = vpack.c.b16 %v1915, %v1914
  %v2007 = vpack.c.b16 %v1917, %v1916
  %v2008 = vpack.c.b16 %v1919, %v1918
  %v2009 = vpack.c.b16 %v1921, %v1920
  %v2010 = vpack.c.b16 %v1923, %v1922
  %v2011 = vpack.c.b16 %v1925, %v1924
  %v2012 = vpack.c.b16 %v1927, %v1926
  %v2013 = vpack.c.b16 %v1929, %v1928
  %v2014 = vpack.c.b16 %v1931, %v1930
  %v2015 = vpack.c.b16 %v1933, %v1932
  %v2016 = vpack.c.b16 %v1935, %v1934
  %v2017 = vpack.c.b16 %v1937, %v1936
  %v2018 = vpack.c.b16 %v1939, %v1938
  %v2019 = vpack.c.b16 %v1941, %v1940
  %v2020 = vpack.c.b16 %v1943, %v1942
  %v2021 = vpack.c.b16 %v1945, %v1944
  %v2022 = vpack.c.b16 %v1947, %v1946
  %v2023 = vpack.c.b16 %v1949, %v1948
  %v2024 = vpack.c.b16 %v1951, %v1950
  %v2025 = vpack.c.b16 %v1953, %v1952
  %v2026 = vpack.c.b16 %v1955, %v1954
  %v2027 = vpack.c.b16 %v1957, %v1956
  %v2028 = vpack.c.b16 %v1959, %v1958
  %v2029 = vpack.c.b16 %v1961, %v1960
  %v2030 = vpack.c.b16 %v1963, %v1962
  %v2031 = vpack.c.b16 %v1965, %v1964
  %v2032 = vpack.c.b16 %v1967, %v1966
  %v2033 = vpack.c.b16 %v1969, %v1968
  %v2034 = vpack.c.b16 %v1971, %v1970
  %v2035 = vpack.c.b16 %v1973, %v1972
  %v2036 = vpack.c.b16 %v1975, %v1974
  %v2037 = vpack.c.b16 %v1977, %v1976
  %v2038 = vpack.c.b16 %v1979, %v1978
  %v2039 = vpack.c.b16 %v1981, %v1980
  %v2040 = vpack.c.b16 %v1983, %v1982
  %v2041 = vpack.c.b16 %v1985, %v1984
  %2098 = vmatprep.subr.bf16.mxu0 0
  %2099 = vmatpush1.bf16.msra.mxu0 %v1986
  %2100 = vmatprep.subr.bf16.mxu0 0
  %2101 = vmatpush1.bf16.msra.mxu0 %v1987
  %2102 = vmatprep.subr.bf16.mxu0 0
  %2103 = vmatpush1.bf16.msra.mxu0 %v1988
  %2104 = vmatprep.subr.bf16.mxu0 0
  %2105 = vmatpush1.bf16.msra.mxu0 %v1989
  %2106 = vmatprep.subr.bf16.mxu0 0
  %2107 = vmatpush1.bf16.msra.mxu0 %v1990
  %2108 = vmatprep.subr.bf16.mxu0 0
  %2109 = vmatpush1.bf16.msra.mxu0 %v1991
  %2110 = vmatprep.subr.bf16.mxu0 0
  %2111 = vmatpush1.bf16.msra.mxu0 %v1992
  %2112 = vmatprep.subr.bf16.mxu0 0
  %2113 = vmatpush1.bf16.msra.mxu0 %v1993
  %2114 = vmatprep.subr.bf16.mxu0 0
  %2115 = vmatpush1.bf16.msra.mxu0 %v1994
  %2116 = vmatprep.subr.bf16.mxu0 0
  %2117 = vmatpush1.bf16.msra.mxu0 %v1995
  %2118 = vmatprep.subr.bf16.mxu0 0
  %2119 = vmatpush1.bf16.msra.mxu0 %v1996
  %2120 = vmatprep.subr.bf16.mxu0 0
  %2121 = vmatpush1.bf16.msra.mxu0 %v1997
  %2122 = vmatprep.subr.bf16.mxu0 0
  %2123 = vmatpush1.bf16.msra.mxu0 %v1998
  %2124 = vmatprep.subr.bf16.mxu0 0
  %2125 = vmatpush1.bf16.msra.mxu0 %v1999
  %2126 = vmatprep.subr.bf16.mxu0 0
  %2127 = vmatpush1.bf16.msra.mxu0 %v2000
  %2128 = vmatprep.subr.bf16.mxu0 0
  %2129 = vmatpush1.bf16.msra.mxu0 %v2001
  %2130 = vmatprep.mubr.bf16.mxu0 %v1630
  %2131 = vmatmul.mubr.bf16.gmra.mrb[0].mxu0 %v1629
  %v2132 = vpop.f32.mrb[0].mxu0
  %v2133 = vadd.f32 %v1760, %v2132
  %v2134 = vpop.f32.mrb[0].mxu0
  %v2135 = vpop.f32.mrb[0].mxu0
  %v2136 = vadd.f32 %v1760, %v2135
  %v2137 = vpop.f32.mrb[0].mxu0
  %2138 = vmatprep.mubr.bf16.mxu0 %v1637
  %2139 = vmatmul.mubr.bf16.gmra.mrb[0].mxu0 %v1636
  %v2140 = vpop.f32.mrb[0].mxu0
  %v2141 = vadd.f32 %v1760, %v2140
  %v2142 = vpop.f32.mrb[0].mxu0
  %v2143 = vpop.f32.mrb[0].mxu0
  %v2144 = vadd.f32 %v1760, %v2143
  %v2145 = vpop.f32.mrb[0].mxu0
  %2146 = vdwg.mxu0
  %2147 = vmatprep.subr.bf16.mxu0 0
  %2148 = vmatpush1.bf16.msra.mxu0 %v2002
  %2149 = vmatprep.subr.bf16.mxu0 0
  %2150 = vmatpush1.bf16.msra.mxu0 %v2003
  %2151 = vmatprep.subr.bf16.mxu0 0
  %2152 = vmatpush1.bf16.msra.mxu0 %v2004
  %2153 = vmatprep.subr.bf16.mxu0 0
  %2154 = vmatpush1.bf16.msra.mxu0 %v2005
  %2155 = vmatprep.subr.bf16.mxu0 0
  %2156 = vmatpush1.bf16.msra.mxu0 %v2006
  %2157 = vmatprep.subr.bf16.mxu0 0
  %2158 = vmatpush1.bf16.msra.mxu0 %v2007
  %2159 = vmatprep.subr.bf16.mxu0 0
  %2160 = vmatpush1.bf16.msra.mxu0 %v2008
  %2161 = vmatprep.subr.bf16.mxu0 0
  %2162 = vmatpush1.bf16.msra.mxu0 %v2009
  %2163 = vmatprep.subr.bf16.mxu0 0
  %2164 = vmatpush1.bf16.msra.mxu0 %v2010
  %2165 = vmatprep.subr.bf16.mxu0 0
  %2166 = vmatpush1.bf16.msra.mxu0 %v2011
  %2167 = vmatprep.subr.bf16.mxu0 0
  %2168 = vmatpush1.bf16.msra.mxu0 %v2012
  %2169 = vmatprep.subr.bf16.mxu0 0
  %2170 = vmatpush1.bf16.msra.mxu0 %v2013
  %2171 = vmatprep.subr.bf16.mxu0 0
  %2172 = vmatpush1.bf16.msra.mxu0 %v2014
  %2173 = vmatprep.subr.bf16.mxu0 0
  %2174 = vmatpush1.bf16.msra.mxu0 %v2015
  %2175 = vmatprep.subr.bf16.mxu0 0
  %2176 = vmatpush1.bf16.msra.mxu0 %v2016
  %2177 = vmatprep.subr.bf16.mxu0 0
  %2178 = vmatpush1.bf16.msra.mxu0 %v2017
  %2179 = vmatprep.mubr.bf16.mxu0 %v1632
  %2180 = vmatmul.mubr.bf16.gmra.mrb[0].mxu0 %v1631
  %v2181 = vpop.f32.mrb[0].mxu0
  %v2182 = vadd.f32 %v2133, %v2181
  %v2183 = vpop.f32.mrb[0].mxu0
  %v2184 = vpop.f32.mrb[0].mxu0
  %v2185 = vadd.f32 %v2136, %v2184
  %v2186 = vpop.f32.mrb[0].mxu0
  %2187 = vmatprep.mubr.bf16.mxu0 %v1639
  %2188 = vmatmul.mubr.bf16.gmra.mrb[0].mxu0 %v1638
  %v2189 = vpop.f32.mrb[0].mxu0
  %v2190 = vadd.f32 %v2141, %v2189
  %v2191 = vpop.f32.mrb[0].mxu0
  %v2192 = vpop.f32.mrb[0].mxu0
  %v2193 = vadd.f32 %v2144, %v2192
  %v2194 = vpop.f32.mrb[0].mxu0
  %2195 = vdwg.mxu0
  %2196 = vmatprep.subr.bf16.mxu0 0
  %2197 = vmatpush1.bf16.msra.mxu0 %v2018
  %2198 = vmatprep.subr.bf16.mxu0 0
  %2199 = vmatpush1.bf16.msra.mxu0 %v2019
  %2200 = vmatprep.subr.bf16.mxu0 0
  %2201 = vmatpush1.bf16.msra.mxu0 %v2020
  %2202 = vmatprep.subr.bf16.mxu0 0
  %2203 = vmatpush1.bf16.msra.mxu0 %v2021
  %2204 = vmatprep.subr.bf16.mxu0 0
  %2205 = vmatpush1.bf16.msra.mxu0 %v2022
  %2206 = vmatprep.subr.bf16.mxu0 0
  %2207 = vmatpush1.bf16.msra.mxu0 %v2023
  %2208 = vmatprep.subr.bf16.mxu0 0
  %2209 = vmatpush1.bf16.msra.mxu0 %v2024
  %2210 = vmatprep.subr.bf16.mxu0 0
  %2211 = vmatpush1.bf16.msra.mxu0 %v2025
  %2212 = vmatprep.subr.bf16.mxu0 0
  %2213 = vmatpush1.bf16.msra.mxu0 %v2026
  %2214 = vmatprep.subr.bf16.mxu0 0
  %2215 = vmatpush1.bf16.msra.mxu0 %v2027
  %2216 = vmatprep.subr.bf16.mxu0 0
  %2217 = vmatpush1.bf16.msra.mxu0 %v2028
  %2218 = vmatprep.subr.bf16.mxu0 0
  %2219 = vmatpush1.bf16.msra.mxu0 %v2029
  %2220 = vmatprep.subr.bf16.mxu0 0
  %2221 = vmatpush1.bf16.msra.mxu0 %v2030
  %2222 = vmatprep.subr.bf16.mxu0 0
  %2223 = vmatpush1.bf16.msra.mxu0 %v2031
  %2224 = vmatprep.subr.bf16.mxu0 0
  %2225 = vmatpush1.bf16.msra.mxu0 %v2032
  %2226 = vmatprep.subr.bf16.mxu0 0
  %2227 = vmatpush1.bf16.msra.mxu0 %v2033
  %2228 = vmatprep.mubr.bf16.mxu0 %v1634
  %2229 = vmatmul.mubr.bf16.gmra.mrb[0].mxu0 %v1633
  %v2230 = vpop.f32.mrb[0].mxu0
  %v2231 = vadd.f32 %v2182, %v2230
  %v2232 = vpop.f32.mrb[0].mxu0
  %v2233 = vpop.f32.mrb[0].mxu0
  %v2234 = vadd.f32 %v2185, %v2233
  %v2235 = vpop.f32.mrb[0].mxu0
  %2236 = vmatprep.mubr.bf16.mxu0 %v1641
  %2237 = vmatmul.mubr.bf16.gmra.mrb[0].mxu0 %v1640
  %v2238 = vpop.f32.mrb[0].mxu0
  %v2239 = vadd.f32 %v2190, %v2238
  %v2240 = vpop.f32.mrb[0].mxu0
  %v2241 = vpop.f32.mrb[0].mxu0
  %v2242 = vadd.f32 %v2193, %v2241
  %v2243 = vpop.f32.mrb[0].mxu0
  %2244 = vdwg.mxu0
  %2245 = vmatprep.subr.bf16.mxu0 0
  %2246 = vmatpush1.bf16.msra.mxu0 %v2034
  %2247 = vmatprep.subr.bf16.mxu0 0
  %2248 = vmatpush1.bf16.msra.mxu0 %v2035
  %2249 = vmatprep.subr.bf16.mxu0 0
  %2250 = vmatpush1.bf16.msra.mxu0 %v2036
  %2251 = vmatprep.subr.bf16.mxu0 0
  %2252 = vmatpush1.bf16.msra.mxu0 %v2037
  %2253 = vmatprep.subr.bf16.mxu0 0
  %2254 = vmatpush1.bf16.msra.mxu0 %v2038
  %2255 = vmatprep.subr.bf16.mxu0 0
  %2256 = vmatpush1.bf16.msra.mxu0 %v2039
  %2257 = vmatprep.subr.bf16.mxu0 0
  %2258 = vmatpush1.bf16.msra.mxu0 %v2040
  %2259 = vmatprep.subr.bf16.mxu0 0
  %2260 = vmatpush1.bf16.msra.mxu0 %v2041
  %2261 = vmatprep.subr.bf16.mxu0 0
  %2262 = vmatpush1.bf16.msra.mxu0 0
  %2263 = vmatprep.subr.bf16.mxu0 0
  %2264 = vmatpush1.bf16.msra.mxu0 0
  %2265 = vmatprep.subr.bf16.mxu0 0
  %2266 = vmatpush1.bf16.msra.mxu0 0
  %2267 = vmatprep.subr.bf16.mxu0 0
  %2268 = vmatpush1.bf16.msra.mxu0 0
  %2269 = vmatprep.subr.bf16.mxu0 0
  %2270 = vmatpush1.bf16.msra.mxu0 0
  %2271 = vmatprep.subr.bf16.mxu0 0
  %2272 = vmatpush1.bf16.msra.mxu0 0
  %2273 = vmatprep.subr.bf16.mxu0 0
  %2274 = vmatpush1.bf16.msra.mxu0 0
  %2275 = vmatprep.subr.bf16.mxu0 0
  %2276 = vmatpush1.bf16.msra.mxu0 0
  %2277 = vmatprep.mubr.bf16.mxu0 0
  %2278 = vmatmul.mubr.bf16.gmra.mrb[0].mxu0 %v1635
  %v2279 = vpop.f32.mrb[0].mxu0
  %v2280 = vadd.f32 %v2231, %v2279
  %v2281 = vpop.f32.mrb[0].mxu0
  %v2282 = vpop.f32.mrb[0].mxu0
  %v2283 = vadd.f32 %v2234, %v2282
  %v2284 = vpop.f32.mrb[0].mxu0
  %2285 = vmatprep.mubr.bf16.mxu0 0
  %2286 = vmatmul.mubr.bf16.gmra.mrb[0].mxu0 %v1642
  %v2287 = vpop.f32.mrb[0].mxu0
  %v2288 = vadd.f32 %v2239, %v2287
  %v2289 = vpop.f32.mrb[0].mxu0
  %v2290 = vpop.f32.mrb[0].mxu0
  %v2291 = vadd.f32 %v2242, %v2290
  %v2292 = vpop.f32.mrb[0].mxu0
  %2293 = vdwg.mxu0
  %v2294 = vmax.f32 %v2280, 0.0
  %v2295 = vmax.f32 %v2283, 0.0
  %v2296 = vmax.f32 %v2288, 0.0
  %v2297 = vmax.f32 %v2291, 0.0
  %v2298 = vadd.f32 %v2294, %v372
  %v2299 = vadd.f32 %v2295, %v375
  %v2300 = vadd.f32 %v2296, %v380
  %v2301 = vadd.f32 %v2297, %v383
  %v2302 = vmax.f32 %v2298, 0.0
  %v2303 = vmax.f32 %v2299, 0.0
  %v2304 = vmax.f32 %v2300, 0.0
  %v2305 = vmax.f32 %v2301, 0.0
  %v2306 = vpack.c.bf16 %v2303, %v2302
  %v2307 = vpack.c.bf16 %v2305, %v2304
  %2308 = vst.msk [vmem:[#allocation2 + $0x8] sm:$0xff] %vm1454, %v2306
  %2309 = vst.msk [vmem:[#allocation2 + $0x10] sm:$0xff] %vm1454, %v2307
  %v2310 = vadd.s32 %v72, 4294967290
  %v2311 = vadd.s32 %v73, 4294967290
  %v2312 = vadd.s32 %v74, 4294967290
  %v2313 = vadd.s32 %v75, 4294967290
  %vm2314 = vcmp.ge.s32.totalorder %v2310, 0
  %vm2315 = vcmp.ge.s32.totalorder %v2311, 0
  %vm2316 = vcmp.ge.s32.totalorder %v2312, 0
  %vm2317 = vcmp.ge.s32.totalorder %v2313, 0
  %vm2318 = vcmp.lt.s32.totalorder %v2310, 16
  %vm2319 = vcmp.lt.s32.totalorder %v2311, 16
  %vm2320 = vcmp.lt.s32.totalorder %v2312, 16
  %vm2321 = vcmp.lt.s32.totalorder %v2313, 16
  %vm2322 = vmand %vm2314, %vm2318
  %vm2323 = vmand %vm2315, %vm2319
  %vm2324 = vmand %vm2316, %vm2320
  %vm2325 = vmand %vm2317, %vm2321
  %v2326 = vadd.s32 %v72, 4294967292
  %v2327 = vadd.s32 %v73, 4294967292
  %v2328 = vadd.s32 %v74, 4294967292
  %v2329 = vadd.s32 %v75, 4294967292
  %vm2330 = vcmp.ge.s32.totalorder %v2326, 0
  %vm2331 = vcmp.ge.s32.totalorder %v2327, 0
  %vm2332 = vcmp.ge.s32.totalorder %v2328, 0
  %vm2333 = vcmp.ge.s32.totalorder %v2329, 0
  %vm2334 = vcmp.lt.s32.totalorder %v2326, 16
  %vm2335 = vcmp.lt.s32.totalorder %v2327, 16
  %vm2336 = vcmp.lt.s32.totalorder %v2328, 16
  %vm2337 = vcmp.lt.s32.totalorder %v2329, 16
  %vm2338 = vmand %vm2330, %vm2334
  %vm2339 = vmand %vm2331, %vm2335
  %vm2340 = vmand %vm2332, %vm2336
  %vm2341 = vmand %vm2333, %vm2337
  %v2342 = vadd.s32 %v72, 4
  %v2343 = vadd.s32 %v73, 4
  %v2344 = vadd.s32 %v74, 4
  %v2345 = vadd.s32 %v75, 4
  %vm2346 = vcmp.ge.s32.totalorder %v2342, 0
  %vm2347 = vcmp.ge.s32.totalorder %v2343, 0
  %vm2348 = vcmp.ge.s32.totalorder %v2344, 0
  %vm2349 = vcmp.ge.s32.totalorder %v2345, 0
  %vm2350 = vcmp.lt.s32.totalorder %v2342, 16
  %vm2351 = vcmp.lt.s32.totalorder %v2343, 16
  %vm2352 = vcmp.lt.s32.totalorder %v2344, 16
  %vm2353 = vcmp.lt.s32.totalorder %v2345, 16
  %vm2354 = vmand %vm2346, %vm2350
  %vm2355 = vmand %vm2347, %vm2351
  %vm2356 = vmand %vm2348, %vm2352
  %vm2357 = vmand %vm2349, %vm2353
  %v2358 = vadd.s32 %v72, 6
  %v2359 = vadd.s32 %v73, 6
  %v2360 = vadd.s32 %v74, 6
  %v2361 = vadd.s32 %v75, 6
  %vm2362 = vcmp.ge.s32.totalorder %v2358, 0
  %vm2363 = vcmp.ge.s32.totalorder %v2359, 0
  %vm2364 = vcmp.ge.s32.totalorder %v2360, 0
  %vm2365 = vcmp.ge.s32.totalorder %v2361, 0
  %vm2366 = vcmp.lt.s32.totalorder %v2358, 16
  %vm2367 = vcmp.lt.s32.totalorder %v2359, 16
  %vm2368 = vcmp.lt.s32.totalorder %v2360, 16
  %vm2369 = vcmp.lt.s32.totalorder %v2361, 16
  %vm2370 = vmand %vm2362, %vm2366
  %vm2371 = vmand %vm2363, %vm2367
  %vm2372 = vmand %vm2364, %vm2368
  %vm2373 = vmand %vm2365, %vm2369
  %v2374 = vld [vmem:[#allocation2] sm:$0xe0]
  %v2375 = vld [vmem:[#allocation2 + $0x8] sm:$0xff]
  %v2376 = vld [vmem:[#allocation2 + $0x10] sm:$0x1f]
  %v2377 = vsel %vm2322, 1, 0
  %v2378 = vsel %vm2323, 1, 0
  %v2379 = vsel %vm2324, 1, 0
  %v2380 = vsel %vm2325, 1, 0
  %vm2381 = vcmp.eq.s32.totalorder %v2377, 1
  %vm2382 = vcmp.eq.s32.totalorder %v2378, 1
  %vm2383 = vcmp.eq.s32.totalorder %v2379, 1
  %vm2384 = vcmp.eq.s32.totalorder %v2380, 1
  %vm2385 = vmpackc.low %vm2381, %vm2381
  %vm2386 = vmpackc.low %vm2382, %vm2382
  %vm2387 = vmpackc.low %vm2383, %vm2383
  %vm2388 = vmpackc.low %vm2384, %vm2384
  %v2389 = vsel %vm2385, 65537, 0
  %v2390 = vsel %vm2386, 65537, 0
  %v2391 = vsel %vm2387, 65537, 0
  %v2392 = vsel %vm2388, 65537, 0
  %v2393 = vunpack.c.l.b16 %v2389
  %v2394 = vunpack.c.l.b16 %v2390
  %v2395 = vunpack.c.l.b16 %v2391
  %v2396 = vunpack.c.l.b16 %v2392
  %v2397 = vpack.c.b16 %v2394, %v2393
  %v2398 = vpack.c.b16 %v2396, %v2395
  %vm2399 = vcmask 1044480
  %v2400 = vrot.slane %v2397, 3
  %v2401 = vrot.slane %v2398, 3
  %v2402 = vsel %vm2399, %v2400, %v2401
  %vm2403 = vcmp.ne.s16.totalorder %v2400, 0
  %vm2404 = vcmp.ne.s16.totalorder %v2402, 0
  %vm2405 = vcmp.ne.s16.totalorder %v2401, 0
  %v2406 = vsel %vm2403, %v2374, 0
  %v2407 = vsel %vm2404, %v2375, 0
  %v2408 = vsel %vm2405, %v2376, 0
  %vm2412 = vcmask 1042432
  %v2413 = vrot.slane %v2406, 5
  %v2414 = vrot.slane %v2407, 5
  %v2415 = vsel %vm2412, %v2413, %v2414
  %v2416 = vrot.slane %v2408, 5
  %v2417 = vsel %vm2412, %v2414, %v2416
  %2420 = vst [vmem:[#allocation3] sm:$0xff] %v2415
  %2421 = vst [vmem:[#allocation3 + $0x38] sm:$0xff] %v2417
  %v2422 = vld [vmem:[#allocation2] sm:$0xc0]
  %v2423 = vld [vmem:[#allocation2 + $0x8] sm:$0xff]
  %v2424 = vld [vmem:[#allocation2 + $0x10] sm:$0x3f]
  %v2425 = vsel %vm2338, 1, 0
  %v2426 = vsel %vm2339, 1, 0
  %v2427 = vsel %vm2340, 1, 0
  %v2428 = vsel %vm2341, 1, 0
  %vm2429 = vcmp.eq.s32.totalorder %v2425, 1
  %vm2430 = vcmp.eq.s32.totalorder %v2426, 1
  %vm2431 = vcmp.eq.s32.totalorder %v2427, 1
  %vm2432 = vcmp.eq.s32.totalorder %v2428, 1
  %vm2433 = vmpackc.low %vm2429, %vm2429
  %vm2434 = vmpackc.low %vm2430, %vm2430
  %vm2435 = vmpackc.low %vm2431, %vm2431
  %vm2436 = vmpackc.low %vm2432, %vm2432
  %v2437 = vsel %vm2433, 65537, 0
  %v2438 = vsel %vm2434, 65537, 0
  %v2439 = vsel %vm2435, 65537, 0
  %v2440 = vsel %vm2436, 65537, 0
  %v2441 = vunpack.c.l.b16 %v2437
  %v2442 = vunpack.c.l.b16 %v2438
  %v2443 = vunpack.c.l.b16 %v2439
  %v2444 = vunpack.c.l.b16 %v2440
  %v2445 = vpack.c.b16 %v2442, %v2441
  %v2446 = vpack.c.b16 %v2444, %v2443
  %vm2447 = vcmask 1045504
  %v2448 = vrot.slane %v2445, 2
  %v2449 = vrot.slane %v2446, 2
  %v2450 = vsel %vm2447, %v2448, %v2449
  %vm2451 = vcmp.ne.s16.totalorder %v2448, 0
  %vm2452 = vcmp.ne.s16.totalorder %v2450, 0
  %vm2453 = vcmp.ne.s16.totalorder %v2449, 0
  %v2454 = vsel %vm2451, %v2422, 0
  %v2455 = vsel %vm2452, %v2423, 0
  %v2456 = vsel %vm2453, %v2424, 0
  %vm2460 = vcmask 1041408
  %v2461 = vrot.slane %v2454, 6
  %v2462 = vrot.slane %v2455, 6
  %v2463 = vsel %vm2460, %v2461, %v2462
  %v2464 = vrot.slane %v2456, 6
  %v2465 = vsel %vm2460, %v2462, %v2464
  %2468 = vst [vmem:[#allocation3 + $0x8] sm:$0xff] %v2463
  %2469 = vst [vmem:[#allocation3 + $0x40] sm:$0xff] %v2465
  %v2470 = vld [vmem:[#allocation2] sm:$0x80]
  %v2471 = vld [vmem:[#allocation2 + $0x8] sm:$0xff]
  %v2472 = vld [vmem:[#allocation2 + $0x10] sm:$0x7f]
  %v2473 = vsel %vm494, %v2470, 0
  %v2474 = vsel %vm495, %v2471, 0
  %v2475 = vsel %vm496, %v2472, 0
  %v2479 = vrot.slane %v2473, 7
  %v2480 = vrot.slane %v2474, 7
  %v2481 = vsel %vm503, %v2479, %v2480
  %v2482 = vrot.slane %v2475, 7
  %v2483 = vsel %vm503, %v2480, %v2482
  %2486 = vst [vmem:[#allocation3 + $0x10] sm:$0xff] %v2481
  %2487 = vst [vmem:[#allocation3 + $0x48] sm:$0xff] %v2483
  %v2488 = vld [vmem:[#allocation2 + $0x8] sm:$0xff]
  %v2489 = vld [vmem:[#allocation2 + $0x10] sm:$0xff]
  %2490 = vst [vmem:[#allocation3 + $0x18] sm:$0xff] %v2488
  %2491 = vst [vmem:[#allocation3 + $0x50] sm:$0xff] %v2489
  %v2492 = vld [vmem:[#allocation2 + $0x8] sm:$0xfe]
  %v2493 = vld [vmem:[#allocation2 + $0x10] sm:$0xff]
  %v2494 = vld [vmem:[#allocation2 + $0x18] sm:$0x1]
  %v2495 = vsel %vm687, %v2492, 0
  %v2496 = vsel %vm688, %v2493, 0
  %v2497 = vsel %vm689, %v2494, 0
  %v2501 = vrot.slane %v2495, 1
  %v2502 = vrot.slane %v2496, 1
  %v2503 = vsel %vm490, %v2501, %v2502
  %v2504 = vrot.slane %v2497, 1
  %v2505 = vsel %vm490, %v2502, %v2504
  %2508 = vst [vmem:[#allocation3 + $0x20] sm:$0xff] %v2503
  %2509 = vst [vmem:[#allocation3 + $0x58] sm:$0xff] %v2505
  %v2510 = vld [vmem:[#allocation2 + $0x8] sm:$0xfc]
  %v2511 = vld [vmem:[#allocation2 + $0x10] sm:$0xff]
  %v2512 = vld [vmem:[#allocation2 + $0x18] sm:$0x3]
  %v2513 = vsel %vm2354, 1, 0
  %v2514 = vsel %vm2355, 1, 0
  %v2515 = vsel %vm2356, 1, 0
  %v2516 = vsel %vm2357, 1, 0
  %vm2517 = vcmp.eq.s32.totalorder %v2513, 1
  %vm2518 = vcmp.eq.s32.totalorder %v2514, 1
  %vm2519 = vcmp.eq.s32.totalorder %v2515, 1
  %vm2520 = vcmp.eq.s32.totalorder %v2516, 1
  %vm2521 = vmpackc.low %vm2517, %vm2517
  %vm2522 = vmpackc.low %vm2518, %vm2518
  %vm2523 = vmpackc.low %vm2519, %vm2519
  %vm2524 = vmpackc.low %vm2520, %vm2520
  %v2525 = vsel %vm2521, 65537, 0
  %v2526 = vsel %vm2522, 65537, 0
  %v2527 = vsel %vm2523, 65537, 0
  %v2528 = vsel %vm2524, 65537, 0
  %v2529 = vunpack.c.l.b16 %v2525
  %v2530 = vunpack.c.l.b16 %v2526
  %v2531 = vunpack.c.l.b16 %v2527
  %v2532 = vunpack.c.l.b16 %v2528
  %v2533 = vpack.c.b16 %v2530, %v2529
  %v2534 = vpack.c.b16 %v2532, %v2531
  %v2535 = vrot.slane %v2533, 6
  %v2536 = vrot.slane %v2534, 6
  %v2537 = vsel %vm2460, %v2535, %v2536
  %vm2538 = vcmp.ne.s16.totalorder %v2535, 0
  %vm2539 = vcmp.ne.s16.totalorder %v2537, 0
  %vm2540 = vcmp.ne.s16.totalorder %v2536, 0
  %v2541 = vsel %vm2538, %v2510, 0
  %v2542 = vsel %vm2539, %v2511, 0
  %v2543 = vsel %vm2540, %v2512, 0
  %v2547 = vrot.slane %v2541, 2
  %v2548 = vrot.slane %v2542, 2
  %v2549 = vsel %vm2447, %v2547, %v2548
  %v2550 = vrot.slane %v2543, 2
  %v2551 = vsel %vm2447, %v2548, %v2550
  %2554 = vst [vmem:[#allocation3 + $0x28] sm:$0xff] %v2549
  %2555 = vst [vmem:[#allocation3 + $0x60] sm:$0xff] %v2551
  %v2556 = vld [vmem:[#allocation2 + $0x8] sm:$0xf8]
  %v2557 = vld [vmem:[#allocation2 + $0x10] sm:$0xff]
  %v2558 = vld [vmem:[#allocation2 + $0x18] sm:$0x7]
  %v2559 = vsel %vm2370, 1, 0
  %v2560 = vsel %vm2371, 1, 0
  %v2561 = vsel %vm2372, 1, 0
  %v2562 = vsel %vm2373, 1, 0
  %vm2563 = vcmp.eq.s32.totalorder %v2559, 1
  %vm2564 = vcmp.eq.s32.totalorder %v2560, 1
  %vm2565 = vcmp.eq.s32.totalorder %v2561, 1
  %vm2566 = vcmp.eq.s32.totalorder %v2562, 1
  %vm2567 = vmpackc.low %vm2563, %vm2563
  %vm2568 = vmpackc.low %vm2564, %vm2564
  %vm2569 = vmpackc.low %vm2565, %vm2565
  %vm2570 = vmpackc.low %vm2566, %vm2566
  %v2571 = vsel %vm2567, 65537, 0
  %v2572 = vsel %vm2568, 65537, 0
  %v2573 = vsel %vm2569, 65537, 0
  %v2574 = vsel %vm2570, 65537, 0
  %v2575 = vunpack.c.l.b16 %v2571
  %v2576 = vunpack.c.l.b16 %v2572
  %v2577 = vunpack.c.l.b16 %v2573
  %v2578 = vunpack.c.l.b16 %v2574
  %v2579 = vpack.c.b16 %v2576, %v2575
  %v2580 = vpack.c.b16 %v2578, %v2577
  %v2581 = vrot.slane %v2579, 5
  %v2582 = vrot.slane %v2580, 5
  %v2583 = vsel %vm2412, %v2581, %v2582
  %vm2584 = vcmp.ne.s16.totalorder %v2581, 0
  %vm2585 = vcmp.ne.s16.totalorder %v2583, 0
  %vm2586 = vcmp.ne.s16.totalorder %v2582, 0
  %v2587 = vsel %vm2584, %v2556, 0
  %v2588 = vsel %vm2585, %v2557, 0
  %v2589 = vsel %vm2586, %v2558, 0
  %v2593 = vrot.slane %v2587, 3
  %v2594 = vrot.slane %v2588, 3
  %v2595 = vsel %vm2399, %v2593, %v2594
  %v2596 = vrot.slane %v2589, 3
  %v2597 = vsel %vm2399, %v2594, %v2596
  %2600 = vst [vmem:[#allocation3 + $0x30] sm:$0xff] %v2595
  %2601 = vst [vmem:[#allocation3 + $0x68] sm:$0xff] %v2597
  %v2602 = vld [vmem:[#allocation3] sm:$0xff]
  %v2603 = vld [vmem:[#allocation3 + $0x8] sm:$0xff]
  %v2604 = vld [vmem:[#allocation3 + $0x10] sm:$0xff]
  %v2605 = vld [vmem:[#allocation3 + $0x18] sm:$0xff]
  %v2606 = vld [vmem:[#allocation3 + $0x20] sm:$0xff]
  %v2607 = vld [vmem:[#allocation3 + $0x28] sm:$0xff]
  %v2608 = vld [vmem:[#allocation3 + $0x30] sm:$0xff]
  %v2609 = vld [vmem:[#allocation3 + $0x38] sm:$0xff]
  %v2610 = vld [vmem:[#allocation3 + $0x40] sm:$0xff]
  %v2611 = vld [vmem:[#allocation3 + $0x48] sm:$0xff]
  %v2612 = vld [vmem:[#allocation3 + $0x50] sm:$0xff]
  %v2613 = vld [vmem:[#allocation3 + $0x58] sm:$0xff]
  %v2614 = vld [vmem:[#allocation3 + $0x60] sm:$0xff]
  %v2615 = vld [vmem:[#allocation3 + $0x68] sm:$0xff]
  %v2616 = vld [vmem:[%s7] sm:$0xf]
  %v2617 = vld [vmem:[%s7 + $0x4] sm:$0xf]
  %v2618 = vld [vmem:[%s7 + $0x8] sm:$0xf]
  %v2619 = vld [vmem:[%s7 + $0xc] sm:$0xf]
  %v2620 = vld [vmem:[%s7 + $0x10] sm:$0xf]
  %v2621 = vld [vmem:[%s7 + $0x14] sm:$0xf]
  %v2622 = vld [vmem:[%s7 + $0x18] sm:$0xf]
  %v2623 = vld [vmem:[%s7 + $0x1c] sm:$0xf]
  %v2624 = vld [vmem:[%s7 + $0x20] sm:$0xf]
  %v2625 = vld [vmem:[%s7 + $0x24] sm:$0xf]
  %v2626 = vld [vmem:[%s7 + $0x28] sm:$0xf]
  %v2627 = vld [vmem:[%s7 + $0x2c] sm:$0xf]
  %v2628 = vld [vmem:[%s7 + $0x30] sm:$0xf]
  %v2629 = vld [vmem:[%s7 + $0x34] sm:$0xf]
  %v2630 = vld [vmem:[%s7 + $0x38] sm:$0xf]
  %v2631 = vld [vmem:[%s7 + $0x3c] sm:$0xf]
  %v2632 = vld [vmem:[%s7 + $0x40] sm:$0xf]
  %v2633 = vld [vmem:[%s7 + $0x44] sm:$0xf]
  %v2634 = vld [vmem:[%s7 + $0x48] sm:$0xf]
  %v2635 = vld [vmem:[%s7 + $0x4c] sm:$0xf]
  %v2636 = vld [vmem:[%s7 + $0x50] sm:$0xf]
  %v2637 = vld [vmem:[%s7 + $0x54] sm:$0xf]
  %v2638 = vld [vmem:[%s7 + $0x58] sm:$0xf]
  %v2639 = vld [vmem:[%s7 + $0x5c] sm:$0xf]
  %v2640 = vld [vmem:[%s7 + $0x60] sm:$0xf]
  %v2641 = vld [vmem:[%s7 + $0x64] sm:$0xf]
  %v2642 = vld [vmem:[%s7 + $0x68] sm:$0xf]
  %v2643 = vld [vmem:[%s7 + $0x6c] sm:$0xf]
  %v2644 = vld [vmem:[%s7 + $0x70] sm:$0xf]
  %v2645 = vld [vmem:[%s7 + $0x74] sm:$0xf]
  %v2646 = vld [vmem:[%s7 + $0x78] sm:$0xf]
  %v2647 = vld [vmem:[%s7 + $0x7c] sm:$0xf]
  %v2648 = vld [vmem:[%s7 + $0x80] sm:$0xf]
  %v2649 = vld [vmem:[%s7 + $0x84] sm:$0xf]
  %v2650 = vld [vmem:[%s7 + $0x88] sm:$0xf]
  %v2651 = vld [vmem:[%s7 + $0x8c] sm:$0xf]
  %v2652 = vld [vmem:[%s7 + $0x90] sm:$0xf]
  %v2653 = vld [vmem:[%s7 + $0x94] sm:$0xf]
  %v2654 = vld [vmem:[%s7 + $0x98] sm:$0xf]
  %v2655 = vld [vmem:[%s7 + $0x9c] sm:$0xf]
  %v2656 = vld [vmem:[%s7 + $0xa0] sm:$0xf]
  %v2657 = vld [vmem:[%s7 + $0xa4] sm:$0xf]
  %v2658 = vld [vmem:[%s7 + $0xa8] sm:$0xf]
  %v2659 = vld [vmem:[%s7 + $0xac] sm:$0xf]
  %v2660 = vld [vmem:[%s7 + $0xb0] sm:$0xf]
  %v2661 = vld [vmem:[%s7 + $0xb4] sm:$0xf]
  %v2662 = vld [vmem:[%s7 + $0xb8] sm:$0xf]
  %v2663 = vld [vmem:[%s7 + $0xbc] sm:$0xf]
  %v2664 = vld [vmem:[%s7 + $0xc0] sm:$0xf]
  %v2665 = vld [vmem:[%s7 + $0xc4] sm:$0xf]
  %v2666 = vld [vmem:[%s7 + $0xc8] sm:$0xf]
  %v2667 = vld [vmem:[%s7 + $0xcc] sm:$0xf]
  %v2668 = vld [vmem:[%s7 + $0xd0] sm:$0xf]
  %v2669 = vld [vmem:[%s7 + $0xd4] sm:$0xf]
  %v2670 = vld [vmem:[%s7 + $0xd8] sm:$0xf]
  %v2671 = vld [vmem:[%s7 + $0xdc] sm:$0xf]
  %v2672 = vld [vmem:[%s7 + $0xe0] sm:$0xf]
  %v2673 = vld [vmem:[%s7 + $0xe4] sm:$0xf]
  %v2674 = vld [vmem:[%s7 + $0xe8] sm:$0xf]
  %v2675 = vld [vmem:[%s7 + $0xec] sm:$0xf]
  %v2676 = vld [vmem:[%s7 + $0xf0] sm:$0xf]
  %v2677 = vld [vmem:[%s7 + $0xf4] sm:$0xf]
  %v2678 = vld [vmem:[%s7 + $0xf8] sm:$0xf]
  %v2679 = vld [vmem:[%s7 + $0xfc] sm:$0xf]
  %v2680 = vld [vmem:[%s7 + $0x100] sm:$0xf]
  %v2681 = vld [vmem:[%s7 + $0x104] sm:$0xf]
  %v2682 = vld [vmem:[%s7 + $0x108] sm:$0xf]
  %v2683 = vld [vmem:[%s7 + $0x10c] sm:$0xf]
  %v2684 = vld [vmem:[%s7 + $0x110] sm:$0xf]
  %v2685 = vld [vmem:[%s7 + $0x114] sm:$0xf]
  %v2686 = vld [vmem:[%s7 + $0x118] sm:$0xf]
  %v2687 = vld [vmem:[%s7 + $0x11c] sm:$0xf]
  %v2688 = vld [vmem:[%s7 + $0x120] sm:$0xf]
  %v2689 = vld [vmem:[%s7 + $0x124] sm:$0xf]
  %v2690 = vld [vmem:[%s7 + $0x128] sm:$0xf]
  %v2691 = vld [vmem:[%s7 + $0x12c] sm:$0xf]
  %v2692 = vld [vmem:[%s7 + $0x130] sm:$0xf]
  %v2693 = vld [vmem:[%s7 + $0x134] sm:$0xf]
  %v2694 = vld [vmem:[%s7 + $0x138] sm:$0xf]
  %v2695 = vld [vmem:[%s7 + $0x13c] sm:$0xf]
  %v2696 = vld [vmem:[%s7 + $0x140] sm:$0xf]
  %v2697 = vld [vmem:[%s7 + $0x144] sm:$0xf]
  %v2698 = vld [vmem:[%s7 + $0x148] sm:$0xf]
  %v2699 = vld [vmem:[%s7 + $0x14c] sm:$0xf]
  %v2700 = vld [vmem:[%s7 + $0x150] sm:$0xf]
  %v2701 = vld [vmem:[%s7 + $0x154] sm:$0xf]
  %v2702 = vld [vmem:[%s7 + $0x158] sm:$0xf]
  %v2703 = vld [vmem:[%s7 + $0x15c] sm:$0xf]
  %v2704 = vld [vmem:[%s7 + $0x160] sm:$0xf]
  %v2705 = vld [vmem:[%s7 + $0x164] sm:$0xf]
  %v2706 = vld [vmem:[%s7 + $0x168] sm:$0xf]
  %v2707 = vld [vmem:[%s7 + $0x16c] sm:$0xf]
  %v2708 = vld [vmem:[%s7 + $0x170] sm:$0xf]
  %v2709 = vld [vmem:[%s7 + $0x174] sm:$0xf]
  %v2710 = vld [vmem:[%s7 + $0x178] sm:$0xf]
  %v2711 = vld [vmem:[%s7 + $0x17c] sm:$0xf]
  %v2712 = vld [vmem:[%s7 + $0x180] sm:$0xf]
  %v2713 = vld [vmem:[%s7 + $0x184] sm:$0xf]
  %v2714 = vld [vmem:[%s7 + $0x188] sm:$0xf]
  %v2715 = vld [vmem:[%s7 + $0x18c] sm:$0xf]
  %v2716 = vld [vmem:[%s7 + $0x190] sm:$0xf]
  %v2717 = vld [vmem:[%s7 + $0x194] sm:$0xf]
  %v2718 = vld [vmem:[%s7 + $0x198] sm:$0xf]
  %v2719 = vld [vmem:[%s7 + $0x19c] sm:$0xf]
  %v2720 = vld [vmem:[%s7 + $0x1a0] sm:$0xf]
  %v2721 = vld [vmem:[%s7 + $0x1a4] sm:$0xf]
  %v2722 = vld [vmem:[%s7 + $0x1a8] sm:$0xf]
  %v2723 = vld [vmem:[%s7 + $0x1ac] sm:$0xf]
  %v2724 = vld [vmem:[%s7 + $0x1b0] sm:$0xf]
  %v2725 = vld [vmem:[%s7 + $0x1b4] sm:$0xf]
  %v2726 = vld [vmem:[%s7 + $0x1b8] sm:$0xf]
  %v2727 = vld [vmem:[%s7 + $0x1bc] sm:$0xf]
  %v2728 = vld [vmem:[%s8] sm:$0x1]
  %v2730 = vlaneseq
  %v2731 = vshrl.u32 %v2730, 7
  %v2732 = vsub.s32 0, %v2731
  %v2733 = vrot.slane %v2728, %v2732
  %v2847 = vunpack.c.l.b16 %v2616
  %v2848 = vunpack.c.l.b16 %v2617
  %v2849 = vunpack.c.l.b16 %v2618
  %v2850 = vunpack.c.l.b16 %v2619
  %v2851 = vunpack.c.l.b16 %v2620
  %v2852 = vunpack.c.l.b16 %v2621
  %v2853 = vunpack.c.l.b16 %v2622
  %v2854 = vunpack.c.l.b16 %v2623
  %v2855 = vunpack.c.l.b16 %v2624
  %v2856 = vunpack.c.l.b16 %v2625
  %v2857 = vunpack.c.l.b16 %v2626
  %v2858 = vunpack.c.l.b16 %v2627
  %v2859 = vunpack.c.l.b16 %v2628
  %v2860 = vunpack.c.l.b16 %v2629
  %v2861 = vunpack.c.l.b16 %v2630
  %v2862 = vunpack.c.l.b16 %v2631
  %v2863 = vunpack.c.l.b16 %v2632
  %v2864 = vunpack.c.l.b16 %v2633
  %v2865 = vunpack.c.l.b16 %v2634
  %v2866 = vunpack.c.l.b16 %v2635
  %v2867 = vunpack.c.l.b16 %v2636
  %v2868 = vunpack.c.l.b16 %v2637
  %v2869 = vunpack.c.l.b16 %v2638
  %v2870 = vunpack.c.l.b16 %v2639
  %v2871 = vunpack.c.l.b16 %v2640
  %v2872 = vunpack.c.l.b16 %v2641
  %v2873 = vunpack.c.l.b16 %v2642
  %v2874 = vunpack.c.l.b16 %v2643
  %v2875 = vunpack.c.l.b16 %v2644
  %v2876 = vunpack.c.l.b16 %v2645
  %v2877 = vunpack.c.l.b16 %v2646
  %v2878 = vunpack.c.l.b16 %v2647
  %v2879 = vunpack.c.l.b16 %v2648
  %v2880 = vunpack.c.l.b16 %v2649
  %v2881 = vunpack.c.l.b16 %v2650
  %v2882 = vunpack.c.l.b16 %v2651
  %v2883 = vunpack.c.l.b16 %v2652
  %v2884 = vunpack.c.l.b16 %v2653
  %v2885 = vunpack.c.l.b16 %v2654
  %v2886 = vunpack.c.l.b16 %v2655
  %v2887 = vunpack.c.l.b16 %v2656
  %v2888 = vunpack.c.l.b16 %v2657
  %v2889 = vunpack.c.l.b16 %v2658
  %v2890 = vunpack.c.l.b16 %v2659
  %v2891 = vunpack.c.l.b16 %v2660
  %v2892 = vunpack.c.l.b16 %v2661
  %v2893 = vunpack.c.l.b16 %v2662
  %v2894 = vunpack.c.l.b16 %v2663
  %v2895 = vunpack.c.l.b16 %v2664
  %v2896 = vunpack.c.l.b16 %v2665
  %v2897 = vunpack.c.l.b16 %v2666
  %v2898 = vunpack.c.l.b16 %v2667
  %v2899 = vunpack.c.l.b16 %v2668
  %v2900 = vunpack.c.l.b16 %v2669
  %v2901 = vunpack.c.l.b16 %v2670
  %v2902 = vunpack.c.l.b16 %v2671
  %v2903 = vunpack.c.l.b16 %v2672
  %v2904 = vunpack.c.l.b16 %v2673
  %v2905 = vunpack.c.l.b16 %v2674
  %v2906 = vunpack.c.l.b16 %v2675
  %v2907 = vunpack.c.l.b16 %v2676
  %v2908 = vunpack.c.l.b16 %v2677
  %v2909 = vunpack.c.l.b16 %v2678
  %v2910 = vunpack.c.l.b16 %v2679
  %v2911 = vunpack.c.l.b16 %v2680
  %v2912 = vunpack.c.l.b16 %v2681
  %v2913 = vunpack.c.l.b16 %v2682
  %v2914 = vunpack.c.l.b16 %v2683
  %v2915 = vunpack.c.l.b16 %v2684
  %v2916 = vunpack.c.l.b16 %v2685
  %v2917 = vunpack.c.l.b16 %v2686
  %v2918 = vunpack.c.l.b16 %v2687
  %v2919 = vunpack.c.l.b16 %v2688
  %v2920 = vunpack.c.l.b16 %v2689
  %v2921 = vunpack.c.l.b16 %v2690
  %v2922 = vunpack.c.l.b16 %v2691
  %v2923 = vunpack.c.l.b16 %v2692
  %v2924 = vunpack.c.l.b16 %v2693
  %v2925 = vunpack.c.l.b16 %v2694
  %v2926 = vunpack.c.l.b16 %v2695
  %v2927 = vunpack.c.l.b16 %v2696
  %v2928 = vunpack.c.l.b16 %v2697
  %v2929 = vunpack.c.l.b16 %v2698
  %v2930 = vunpack.c.l.b16 %v2699
  %v2931 = vunpack.c.l.b16 %v2700
  %v2932 = vunpack.c.l.b16 %v2701
  %v2933 = vunpack.c.l.b16 %v2702
  %v2934 = vunpack.c.l.b16 %v2703
  %v2935 = vunpack.c.l.b16 %v2704
  %v2936 = vunpack.c.l.b16 %v2705
  %v2937 = vunpack.c.l.b16 %v2706
  %v2938 = vunpack.c.l.b16 %v2707
  %v2939 = vunpack.c.l.b16 %v2708
  %v2940 = vunpack.c.l.b16 %v2709
  %v2941 = vunpack.c.l.b16 %v2710
  %v2942 = vunpack.c.l.b16 %v2711
  %v2943 = vunpack.c.l.b16 %v2712
  %v2944 = vunpack.c.l.b16 %v2713
  %v2945 = vunpack.c.l.b16 %v2714
  %v2946 = vunpack.c.l.b16 %v2715
  %v2947 = vunpack.c.l.b16 %v2716
  %v2948 = vunpack.c.l.b16 %v2717
  %v2949 = vunpack.c.l.b16 %v2718
  %v2950 = vunpack.c.l.b16 %v2719
  %v2951 = vunpack.c.l.b16 %v2720
  %v2952 = vunpack.c.l.b16 %v2721
  %v2953 = vunpack.c.l.b16 %v2722
  %v2954 = vunpack.c.l.b16 %v2723
  %v2955 = vunpack.c.l.b16 %v2724
  %v2956 = vunpack.c.l.b16 %v2725
  %v2957 = vunpack.c.l.b16 %v2726
  %v2958 = vunpack.c.l.b16 %v2727
  %v2959 = vpack.c.b16 %v2848, %v2847
  %v2960 = vpack.c.b16 %v2850, %v2849
  %v2961 = vpack.c.b16 %v2852, %v2851
  %v2962 = vpack.c.b16 %v2854, %v2853
  %v2963 = vpack.c.b16 %v2856, %v2855
  %v2964 = vpack.c.b16 %v2858, %v2857
  %v2965 = vpack.c.b16 %v2860, %v2859
  %v2966 = vpack.c.b16 %v2862, %v2861
  %v2967 = vpack.c.b16 %v2864, %v2863
  %v2968 = vpack.c.b16 %v2866, %v2865
  %v2969 = vpack.c.b16 %v2868, %v2867
  %v2970 = vpack.c.b16 %v2870, %v2869
  %v2971 = vpack.c.b16 %v2872, %v2871
  %v2972 = vpack.c.b16 %v2874, %v2873
  %v2973 = vpack.c.b16 %v2876, %v2875
  %v2974 = vpack.c.b16 %v2878, %v2877
  %v2975 = vpack.c.b16 %v2880, %v2879
  %v2976 = vpack.c.b16 %v2882, %v2881
  %v2977 = vpack.c.b16 %v2884, %v2883
  %v2978 = vpack.c.b16 %v2886, %v2885
  %v2979 = vpack.c.b16 %v2888, %v2887
  %v2980 = vpack.c.b16 %v2890, %v2889
  %v2981 = vpack.c.b16 %v2892, %v2891
  %v2982 = vpack.c.b16 %v2894, %v2893
  %v2983 = vpack.c.b16 %v2896, %v2895
  %v2984 = vpack.c.b16 %v2898, %v2897
  %v2985 = vpack.c.b16 %v2900, %v2899
  %v2986 = vpack.c.b16 %v2902, %v2901
  %v2987 = vpack.c.b16 %v2904, %v2903
  %v2988 = vpack.c.b16 %v2906, %v2905
  %v2989 = vpack.c.b16 %v2908, %v2907
  %v2990 = vpack.c.b16 %v2910, %v2909
  %v2991 = vpack.c.b16 %v2912, %v2911
  %v2992 = vpack.c.b16 %v2914, %v2913
  %v2993 = vpack.c.b16 %v2916, %v2915
  %v2994 = vpack.c.b16 %v2918, %v2917
  %v2995 = vpack.c.b16 %v2920, %v2919
  %v2996 = vpack.c.b16 %v2922, %v2921
  %v2997 = vpack.c.b16 %v2924, %v2923
  %v2998 = vpack.c.b16 %v2926, %v2925
  %v2999 = vpack.c.b16 %v2928, %v2927
  %v3000 = vpack.c.b16 %v2930, %v2929
  %v3001 = vpack.c.b16 %v2932, %v2931
  %v3002 = vpack.c.b16 %v2934, %v2933
  %v3003 = vpack.c.b16 %v2936, %v2935
  %v3004 = vpack.c.b16 %v2938, %v2937
  %v3005 = vpack.c.b16 %v2940, %v2939
  %v3006 = vpack.c.b16 %v2942, %v2941
  %v3007 = vpack.c.b16 %v2944, %v2943
  %v3008 = vpack.c.b16 %v2946, %v2945
  %v3009 = vpack.c.b16 %v2948, %v2947
  %v3010 = vpack.c.b16 %v2950, %v2949
  %v3011 = vpack.c.b16 %v2952, %v2951
  %v3012 = vpack.c.b16 %v2954, %v2953
  %v3013 = vpack.c.b16 %v2956, %v2955
  %v3014 = vpack.c.b16 %v2958, %v2957
  %3071 = vmatprep.subr.bf16.mxu0 0
  %3072 = vmatpush1.bf16.msra.mxu0 %v2959
  %3073 = vmatprep.subr.bf16.mxu0 0
  %3074 = vmatpush1.bf16.msra.mxu0 %v2960
  %3075 = vmatprep.subr.bf16.mxu0 0
  %3076 = vmatpush1.bf16.msra.mxu0 %v2961
  %3077 = vmatprep.subr.bf16.mxu0 0
  %3078 = vmatpush1.bf16.msra.mxu0 %v2962
  %3079 = vmatprep.subr.bf16.mxu0 0
  %3080 = vmatpush1.bf16.msra.mxu0 %v2963
  %3081 = vmatprep.subr.bf16.mxu0 0
  %3082 = vmatpush1.bf16.msra.mxu0 %v2964
  %3083 = vmatprep.subr.bf16.mxu0 0
  %3084 = vmatpush1.bf16.msra.mxu0 %v2965
  %3085 = vmatprep.subr.bf16.mxu0 0
  %3086 = vmatpush1.bf16.msra.mxu0 %v2966
  %3087 = vmatprep.subr.bf16.mxu0 0
  %3088 = vmatpush1.bf16.msra.mxu0 %v2967
  %3089 = vmatprep.subr.bf16.mxu0 0
  %3090 = vmatpush1.bf16.msra.mxu0 %v2968
  %3091 = vmatprep.subr.bf16.mxu0 0
  %3092 = vmatpush1.bf16.msra.mxu0 %v2969
  %3093 = vmatprep.subr.bf16.mxu0 0
  %3094 = vmatpush1.bf16.msra.mxu0 %v2970
  %3095 = vmatprep.subr.bf16.mxu0 0
  %3096 = vmatpush1.bf16.msra.mxu0 %v2971
  %3097 = vmatprep.subr.bf16.mxu0 0
  %3098 = vmatpush1.bf16.msra.mxu0 %v2972
  %3099 = vmatprep.subr.bf16.mxu0 0
  %3100 = vmatpush1.bf16.msra.mxu0 %v2973
  %3101 = vmatprep.subr.bf16.mxu0 0
  %3102 = vmatpush1.bf16.msra.mxu0 %v2974
  %3103 = vmatprep.mubr.bf16.mxu0 %v2603
  %3104 = vmatmul.mubr.bf16.gmra.mrb[0].mxu0 %v2602
  %v3105 = vpop.f32.mrb[0].mxu0
  %v3106 = vadd.f32 %v2733, %v3105
  %v3107 = vpop.f32.mrb[0].mxu0
  %v3108 = vpop.f32.mrb[0].mxu0
  %v3109 = vadd.f32 %v2733, %v3108
  %v3110 = vpop.f32.mrb[0].mxu0
  %3111 = vmatprep.mubr.bf16.mxu0 %v2610
  %3112 = vmatmul.mubr.bf16.gmra.mrb[0].mxu0 %v2609
  %v3113 = vpop.f32.mrb[0].mxu0
  %v3114 = vadd.f32 %v2733, %v3113
  %v3115 = vpop.f32.mrb[0].mxu0
  %v3116 = vpop.f32.mrb[0].mxu0
  %v3117 = vadd.f32 %v2733, %v3116
  %v3118 = vpop.f32.mrb[0].mxu0
  %3119 = vdwg.mxu0
  %3120 = vmatprep.subr.bf16.mxu0 0
  %3121 = vmatpush1.bf16.msra.mxu0 %v2975
  %3122 = vmatprep.subr.bf16.mxu0 0
  %3123 = vmatpush1.bf16.msra.mxu0 %v2976
  %3124 = vmatprep.subr.bf16.mxu0 0
  %3125 = vmatpush1.bf16.msra.mxu0 %v2977
  %3126 = vmatprep.subr.bf16.mxu0 0
  %3127 = vmatpush1.bf16.msra.mxu0 %v2978
  %3128 = vmatprep.subr.bf16.mxu0 0
  %3129 = vmatpush1.bf16.msra.mxu0 %v2979
  %3130 = vmatprep.subr.bf16.mxu0 0
  %3131 = vmatpush1.bf16.msra.mxu0 %v2980
  %3132 = vmatprep.subr.bf16.mxu0 0
  %3133 = vmatpush1.bf16.msra.mxu0 %v2981
  %3134 = vmatprep.subr.bf16.mxu0 0
  %3135 = vmatpush1.bf16.msra.mxu0 %v2982
  %3136 = vmatprep.subr.bf16.mxu0 0
  %3137 = vmatpush1.bf16.msra.mxu0 %v2983
  %3138 = vmatprep.subr.bf16.mxu0 0
  %3139 = vmatpush1.bf16.msra.mxu0 %v2984
  %3140 = vmatprep.subr.bf16.mxu0 0
  %3141 = vmatpush1.bf16.msra.mxu0 %v2985
  %3142 = vmatprep.subr.bf16.mxu0 0
  %3143 = vmatpush1.bf16.msra.mxu0 %v2986
  %3144 = vmatprep.subr.bf16.mxu0 0
  %3145 = vmatpush1.bf16.msra.mxu0 %v2987
  %3146 = vmatprep.subr.bf16.mxu0 0
  %3147 = vmatpush1.bf16.msra.mxu0 %v2988
  %3148 = vmatprep.subr.bf16.mxu0 0
  %3149 = vmatpush1.bf16.msra.mxu0 %v2989
  %3150 = vmatprep.subr.bf16.mxu0 0
  %3151 = vmatpush1.bf16.msra.mxu0 %v2990
  %3152 = vmatprep.mubr.bf16.mxu0 %v2605
  %3153 = vmatmul.mubr.bf16.gmra.mrb[0].mxu0 %v2604
  %v3154 = vpop.f32.mrb[0].mxu0
  %v3155 = vadd.f32 %v3106, %v3154
  %v3156 = vpop.f32.mrb[0].mxu0
  %v3157 = vpop.f32.mrb[0].mxu0
  %v3158 = vadd.f32 %v3109, %v3157
  %v3159 = vpop.f32.mrb[0].mxu0
  %3160 = vmatprep.mubr.bf16.mxu0 %v2612
  %3161 = vmatmul.mubr.bf16.gmra.mrb[0].mxu0 %v2611
  %v3162 = vpop.f32.mrb[0].mxu0
  %v3163 = vadd.f32 %v3114, %v3162
  %v3164 = vpop.f32.mrb[0].mxu0
  %v3165 = vpop.f32.mrb[0].mxu0
  %v3166 = vadd.f32 %v3117, %v3165
  %v3167 = vpop.f32.mrb[0].mxu0
  %3168 = vdwg.mxu0
  %3169 = vmatprep.subr.bf16.mxu0 0
  %3170 = vmatpush1.bf16.msra.mxu0 %v2991
  %3171 = vmatprep.subr.bf16.mxu0 0
  %3172 = vmatpush1.bf16.msra.mxu0 %v2992
  %3173 = vmatprep.subr.bf16.mxu0 0
  %3174 = vmatpush1.bf16.msra.mxu0 %v2993
  %3175 = vmatprep.subr.bf16.mxu0 0
  %3176 = vmatpush1.bf16.msra.mxu0 %v2994
  %3177 = vmatprep.subr.bf16.mxu0 0
  %3178 = vmatpush1.bf16.msra.mxu0 %v2995
  %3179 = vmatprep.subr.bf16.mxu0 0
  %3180 = vmatpush1.bf16.msra.mxu0 %v2996
  %3181 = vmatprep.subr.bf16.mxu0 0
  %3182 = vmatpush1.bf16.msra.mxu0 %v2997
  %3183 = vmatprep.subr.bf16.mxu0 0
  %3184 = vmatpush1.bf16.msra.mxu0 %v2998
  %3185 = vmatprep.subr.bf16.mxu0 0
  %3186 = vmatpush1.bf16.msra.mxu0 %v2999
  %3187 = vmatprep.subr.bf16.mxu0 0
  %3188 = vmatpush1.bf16.msra.mxu0 %v3000
  %3189 = vmatprep.subr.bf16.mxu0 0
  %3190 = vmatpush1.bf16.msra.mxu0 %v3001
  %3191 = vmatprep.subr.bf16.mxu0 0
  %3192 = vmatpush1.bf16.msra.mxu0 %v3002
  %3193 = vmatprep.subr.bf16.mxu0 0
  %3194 = vmatpush1.bf16.msra.mxu0 %v3003
  %3195 = vmatprep.subr.bf16.mxu0 0
  %3196 = vmatpush1.bf16.msra.mxu0 %v3004
  %3197 = vmatprep.subr.bf16.mxu0 0
  %3198 = vmatpush1.bf16.msra.mxu0 %v3005
  %3199 = vmatprep.subr.bf16.mxu0 0
  %3200 = vmatpush1.bf16.msra.mxu0 %v3006
  %3201 = vmatprep.mubr.bf16.mxu0 %v2607
  %3202 = vmatmul.mubr.bf16.gmra.mrb[0].mxu0 %v2606
  %v3203 = vpop.f32.mrb[0].mxu0
  %v3204 = vadd.f32 %v3155, %v3203
  %v3205 = vpop.f32.mrb[0].mxu0
  %v3206 = vpop.f32.mrb[0].mxu0
  %v3207 = vadd.f32 %v3158, %v3206
  %v3208 = vpop.f32.mrb[0].mxu0
  %3209 = vmatprep.mubr.bf16.mxu0 %v2614
  %3210 = vmatmul.mubr.bf16.gmra.mrb[0].mxu0 %v2613
  %v3211 = vpop.f32.mrb[0].mxu0
  %v3212 = vadd.f32 %v3163, %v3211
  %v3213 = vpop.f32.mrb[0].mxu0
  %v3214 = vpop.f32.mrb[0].mxu0
  %v3215 = vadd.f32 %v3166, %v3214
  %v3216 = vpop.f32.mrb[0].mxu0
  %3217 = vdwg.mxu0
  %3218 = vmatprep.subr.bf16.mxu0 0
  %3219 = vmatpush1.bf16.msra.mxu0 %v3007
  %3220 = vmatprep.subr.bf16.mxu0 0
  %3221 = vmatpush1.bf16.msra.mxu0 %v3008
  %3222 = vmatprep.subr.bf16.mxu0 0
  %3223 = vmatpush1.bf16.msra.mxu0 %v3009
  %3224 = vmatprep.subr.bf16.mxu0 0
  %3225 = vmatpush1.bf16.msra.mxu0 %v3010
  %3226 = vmatprep.subr.bf16.mxu0 0
  %3227 = vmatpush1.bf16.msra.mxu0 %v3011
  %3228 = vmatprep.subr.bf16.mxu0 0
  %3229 = vmatpush1.bf16.msra.mxu0 %v3012
  %3230 = vmatprep.subr.bf16.mxu0 0
  %3231 = vmatpush1.bf16.msra.mxu0 %v3013
  %3232 = vmatprep.subr.bf16.mxu0 0
  %3233 = vmatpush1.bf16.msra.mxu0 %v3014
  %3234 = vmatprep.subr.bf16.mxu0 0
  %3235 = vmatpush1.bf16.msra.mxu0 0
  %3236 = vmatprep.subr.bf16.mxu0 0
  %3237 = vmatpush1.bf16.msra.mxu0 0
  %3238 = vmatprep.subr.bf16.mxu0 0
  %3239 = vmatpush1.bf16.msra.mxu0 0
  %3240 = vmatprep.subr.bf16.mxu0 0
  %3241 = vmatpush1.bf16.msra.mxu0 0
  %3242 = vmatprep.subr.bf16.mxu0 0
  %3243 = vmatpush1.bf16.msra.mxu0 0
  %3244 = vmatprep.subr.bf16.mxu0 0
  %3245 = vmatpush1.bf16.msra.mxu0 0
  %3246 = vmatprep.subr.bf16.mxu0 0
  %3247 = vmatpush1.bf16.msra.mxu0 0
  %3248 = vmatprep.subr.bf16.mxu0 0
  %3249 = vmatpush1.bf16.msra.mxu0 0
  %3250 = vmatprep.mubr.bf16.mxu0 0
  %3251 = vmatmul.mubr.bf16.gmra.mrb[0].mxu0 %v2608
  %v3252 = vpop.f32.mrb[0].mxu0
  %v3253 = vadd.f32 %v3204, %v3252
  %v3254 = vpop.f32.mrb[0].mxu0
  %v3255 = vpop.f32.mrb[0].mxu0
  %v3256 = vadd.f32 %v3207, %v3255
  %v3257 = vpop.f32.mrb[0].mxu0
  %3258 = vmatprep.mubr.bf16.mxu0 0
  %3259 = vmatmul.mubr.bf16.gmra.mrb[0].mxu0 %v2615
  %v3260 = vpop.f32.mrb[0].mxu0
  %v3261 = vadd.f32 %v3212, %v3260
  %v3262 = vpop.f32.mrb[0].mxu0
  %v3263 = vpop.f32.mrb[0].mxu0
  %v3264 = vadd.f32 %v3215, %v3263
  %v3265 = vpop.f32.mrb[0].mxu0
  %3266 = vdwg.mxu0
  %v3267 = vmax.f32 %v3253, 0.0
  %v3268 = vmax.f32 %v3256, 0.0
  %v3269 = vmax.f32 %v3261, 0.0
  %v3270 = vmax.f32 %v3264, 0.0
  %v3271 = vpack.c.bf16 %v3268, %v3267
  %v3272 = vpack.c.bf16 %v3270, %v3269
  %3273 = vst.msk [vmem:[#allocation2 + $0x8] sm:$0xff] %vm1454, %v3271
  %3274 = vst.msk [vmem:[#allocation2 + $0x10] sm:$0xff] %vm1454, %v3272
  %v3275 = vld [vmem:[#allocation2] sm:$0xe0]
  %v3276 = vld [vmem:[#allocation2 + $0x8] sm:$0xff]
  %v3277 = vld [vmem:[#allocation2 + $0x10] sm:$0x1f]
  %v3278 = vsel %vm2403, %v3275, 0
  %v3279 = vsel %vm2404, %v3276, 0
  %v3280 = vsel %vm2405, %v3277, 0
  %v3284 = vrot.slane %v3278, 5
  %v3285 = vrot.slane %v3279, 5
  %v3286 = vsel %vm2412, %v3284, %v3285
  %v3287 = vrot.slane %v3280, 5
  %v3288 = vsel %vm2412, %v3285, %v3287
  %3291 = vst [vmem:[#allocation3] sm:$0xff] %v3286
  %3292 = vst [vmem:[#allocation3 + $0x38] sm:$0xff] %v3288
  %v3293 = vld [vmem:[#allocation2] sm:$0xc0]
  %v3294 = vld [vmem:[#allocation2 + $0x8] sm:$0xff]
  %v3295 = vld [vmem:[#allocation2 + $0x10] sm:$0x3f]
  %v3296 = vsel %vm2451, %v3293, 0
  %v3297 = vsel %vm2452, %v3294, 0
  %v3298 = vsel %vm2453, %v3295, 0
  %v3302 = vrot.slane %v3296, 6
  %v3303 = vrot.slane %v3297, 6
  %v3304 = vsel %vm2460, %v3302, %v3303
  %v3305 = vrot.slane %v3298, 6
  %v3306 = vsel %vm2460, %v3303, %v3305
  %3309 = vst [vmem:[#allocation3 + $0x8] sm:$0xff] %v3304
  %3310 = vst [vmem:[#allocation3 + $0x40] sm:$0xff] %v3306
  %v3311 = vld [vmem:[#allocation2] sm:$0x80]
  %v3312 = vld [vmem:[#allocation2 + $0x8] sm:$0xff]
  %v3313 = vld [vmem:[#allocation2 + $0x10] sm:$0x7f]
  %v3314 = vsel %vm494, %v3311, 0
  %v3315 = vsel %vm495, %v3312, 0
  %v3316 = vsel %vm496, %v3313, 0
  %v3320 = vrot.slane %v3314, 7
  %v3321 = vrot.slane %v3315, 7
  %v3322 = vsel %vm503, %v3320, %v3321
  %v3323 = vrot.slane %v3316, 7
  %v3324 = vsel %vm503, %v3321, %v3323
  %3327 = vst [vmem:[#allocation3 + $0x10] sm:$0xff] %v3322
  %3328 = vst [vmem:[#allocation3 + $0x48] sm:$0xff] %v3324
  %v3329 = vld [vmem:[#allocation2 + $0x8] sm:$0xff]
  %v3330 = vld [vmem:[#allocation2 + $0x10] sm:$0xff]
  %3331 = vst [vmem:[#allocation3 + $0x18] sm:$0xff] %v3329
  %3332 = vst [vmem:[#allocation3 + $0x50] sm:$0xff] %v3330
  %v3333 = vld [vmem:[#allocation2 + $0x8] sm:$0xfe]
  %v3334 = vld [vmem:[#allocation2 + $0x10] sm:$0xff]
  %v3335 = vld [vmem:[#allocation2 + $0x18] sm:$0x1]
  %v3336 = vsel %vm687, %v3333, 0
  %v3337 = vsel %vm688, %v3334, 0
  %v3338 = vsel %vm689, %v3335, 0
  %v3342 = vrot.slane %v3336, 1
  %v3343 = vrot.slane %v3337, 1
  %v3344 = vsel %vm490, %v3342, %v3343
  %v3345 = vrot.slane %v3338, 1
  %v3346 = vsel %vm490, %v3343, %v3345
  %3349 = vst [vmem:[#allocation3 + $0x20] sm:$0xff] %v3344
  %3350 = vst [vmem:[#allocation3 + $0x58] sm:$0xff] %v3346
  %v3351 = vld [vmem:[#allocation2 + $0x8] sm:$0xfc]
  %v3352 = vld [vmem:[#allocation2 + $0x10] sm:$0xff]
  %v3353 = vld [vmem:[#allocation2 + $0x18] sm:$0x3]
  %v3354 = vsel %vm2538, %v3351, 0
  %v3355 = vsel %vm2539, %v3352, 0
  %v3356 = vsel %vm2540, %v3353, 0
  %v3360 = vrot.slane %v3354, 2
  %v3361 = vrot.slane %v3355, 2
  %v3362 = vsel %vm2447, %v3360, %v3361
  %v3363 = vrot.slane %v3356, 2
  %v3364 = vsel %vm2447, %v3361, %v3363
  %3367 = vst [vmem:[#allocation3 + $0x28] sm:$0xff] %v3362
  %3368 = vst [vmem:[#allocation3 + $0x60] sm:$0xff] %v3364
  %v3369 = vld [vmem:[#allocation2 + $0x8] sm:$0xf8]
  %v3370 = vld [vmem:[#allocation2 + $0x10] sm:$0xff]
  %v3371 = vld [vmem:[#allocation2 + $0x18] sm:$0x7]
  %v3372 = vsel %vm2584, %v3369, 0
  %v3373 = vsel %vm2585, %v3370, 0
  %v3374 = vsel %vm2586, %v3371, 0
  %v3378 = vrot.slane %v3372, 3
  %v3379 = vrot.slane %v3373, 3
  %v3380 = vsel %vm2399, %v3378, %v3379
  %v3381 = vrot.slane %v3374, 3
  %v3382 = vsel %vm2399, %v3379, %v3381
  %3385 = vst [vmem:[#allocation3 + $0x30] sm:$0xff] %v3380
  %3386 = vst [vmem:[#allocation3 + $0x68] sm:$0xff] %v3382
  %v3387 = vld [vmem:[#allocation3] sm:$0xff]
  %v3388 = vld [vmem:[#allocation3 + $0x8] sm:$0xff]
  %v3389 = vld [vmem:[#allocation3 + $0x10] sm:$0xff]
  %v3390 = vld [vmem:[#allocation3 + $0x18] sm:$0xff]
  %v3391 = vld [vmem:[#allocation3 + $0x20] sm:$0xff]
  %v3392 = vld [vmem:[#allocation3 + $0x28] sm:$0xff]
  %v3393 = vld [vmem:[#allocation3 + $0x30] sm:$0xff]
  %v3394 = vld [vmem:[#allocation3 + $0x38] sm:$0xff]
  %v3395 = vld [vmem:[#allocation3 + $0x40] sm:$0xff]
  %v3396 = vld [vmem:[#allocation3 + $0x48] sm:$0xff]
  %v3397 = vld [vmem:[#allocation3 + $0x50] sm:$0xff]
  %v3398 = vld [vmem:[#allocation3 + $0x58] sm:$0xff]
  %v3399 = vld [vmem:[#allocation3 + $0x60] sm:$0xff]
  %v3400 = vld [vmem:[#allocation3 + $0x68] sm:$0xff]
  %v3401 = vld [vmem:[%s9] sm:$0xf]
  %v3402 = vld [vmem:[%s9 + $0x4] sm:$0xf]
  %v3403 = vld [vmem:[%s9 + $0x8] sm:$0xf]
  %v3404 = vld [vmem:[%s9 + $0xc] sm:$0xf]
  %v3405 = vld [vmem:[%s9 + $0x10] sm:$0xf]
  %v3406 = vld [vmem:[%s9 + $0x14] sm:$0xf]
  %v3407 = vld [vmem:[%s9 + $0x18] sm:$0xf]
  %v3408 = vld [vmem:[%s9 + $0x1c] sm:$0xf]
  %v3409 = vld [vmem:[%s9 + $0x20] sm:$0xf]
  %v3410 = vld [vmem:[%s9 + $0x24] sm:$0xf]
  %v3411 = vld [vmem:[%s9 + $0x28] sm:$0xf]
  %v3412 = vld [vmem:[%s9 + $0x2c] sm:$0xf]
  %v3413 = vld [vmem:[%s9 + $0x30] sm:$0xf]
  %v3414 = vld [vmem:[%s9 + $0x34] sm:$0xf]
  %v3415 = vld [vmem:[%s9 + $0x38] sm:$0xf]
  %v3416 = vld [vmem:[%s9 + $0x3c] sm:$0xf]
  %v3417 = vld [vmem:[%s9 + $0x40] sm:$0xf]
  %v3418 = vld [vmem:[%s9 + $0x44] sm:$0xf]
  %v3419 = vld [vmem:[%s9 + $0x48] sm:$0xf]
  %v3420 = vld [vmem:[%s9 + $0x4c] sm:$0xf]
  %v3421 = vld [vmem:[%s9 + $0x50] sm:$0xf]
  %v3422 = vld [vmem:[%s9 + $0x54] sm:$0xf]
  %v3423 = vld [vmem:[%s9 + $0x58] sm:$0xf]
  %v3424 = vld [vmem:[%s9 + $0x5c] sm:$0xf]
  %v3425 = vld [vmem:[%s9 + $0x60] sm:$0xf]
  %v3426 = vld [vmem:[%s9 + $0x64] sm:$0xf]
  %v3427 = vld [vmem:[%s9 + $0x68] sm:$0xf]
  %v3428 = vld [vmem:[%s9 + $0x6c] sm:$0xf]
  %v3429 = vld [vmem:[%s9 + $0x70] sm:$0xf]
  %v3430 = vld [vmem:[%s9 + $0x74] sm:$0xf]
  %v3431 = vld [vmem:[%s9 + $0x78] sm:$0xf]
  %v3432 = vld [vmem:[%s9 + $0x7c] sm:$0xf]
  %v3433 = vld [vmem:[%s9 + $0x80] sm:$0xf]
  %v3434 = vld [vmem:[%s9 + $0x84] sm:$0xf]
  %v3435 = vld [vmem:[%s9 + $0x88] sm:$0xf]
  %v3436 = vld [vmem:[%s9 + $0x8c] sm:$0xf]
  %v3437 = vld [vmem:[%s9 + $0x90] sm:$0xf]
  %v3438 = vld [vmem:[%s9 + $0x94] sm:$0xf]
  %v3439 = vld [vmem:[%s9 + $0x98] sm:$0xf]
  %v3440 = vld [vmem:[%s9 + $0x9c] sm:$0xf]
  %v3441 = vld [vmem:[%s9 + $0xa0] sm:$0xf]
  %v3442 = vld [vmem:[%s9 + $0xa4] sm:$0xf]
  %v3443 = vld [vmem:[%s9 + $0xa8] sm:$0xf]
  %v3444 = vld [vmem:[%s9 + $0xac] sm:$0xf]
  %v3445 = vld [vmem:[%s9 + $0xb0] sm:$0xf]
  %v3446 = vld [vmem:[%s9 + $0xb4] sm:$0xf]
  %v3447 = vld [vmem:[%s9 + $0xb8] sm:$0xf]
  %v3448 = vld [vmem:[%s9 + $0xbc] sm:$0xf]
  %v3449 = vld [vmem:[%s9 + $0xc0] sm:$0xf]
  %v3450 = vld [vmem:[%s9 + $0xc4] sm:$0xf]
  %v3451 = vld [vmem:[%s9 + $0xc8] sm:$0xf]
  %v3452 = vld [vmem:[%s9 + $0xcc] sm:$0xf]
  %v3453 = vld [vmem:[%s9 + $0xd0] sm:$0xf]
  %v3454 = vld [vmem:[%s9 + $0xd4] sm:$0xf]
  %v3455 = vld [vmem:[%s9 + $0xd8] sm:$0xf]
  %v3456 = vld [vmem:[%s9 + $0xdc] sm:$0xf]
  %v3457 = vld [vmem:[%s9 + $0xe0] sm:$0xf]
  %v3458 = vld [vmem:[%s9 + $0xe4] sm:$0xf]
  %v3459 = vld [vmem:[%s9 + $0xe8] sm:$0xf]
  %v3460 = vld [vmem:[%s9 + $0xec] sm:$0xf]
  %v3461 = vld [vmem:[%s9 + $0xf0] sm:$0xf]
  %v3462 = vld [vmem:[%s9 + $0xf4] sm:$0xf]
  %v3463 = vld [vmem:[%s9 + $0xf8] sm:$0xf]
  %v3464 = vld [vmem:[%s9 + $0xfc] sm:$0xf]
  %v3465 = vld [vmem:[%s9 + $0x100] sm:$0xf]
  %v3466 = vld [vmem:[%s9 + $0x104] sm:$0xf]
  %v3467 = vld [vmem:[%s9 + $0x108] sm:$0xf]
  %v3468 = vld [vmem:[%s9 + $0x10c] sm:$0xf]
  %v3469 = vld [vmem:[%s9 + $0x110] sm:$0xf]
  %v3470 = vld [vmem:[%s9 + $0x114] sm:$0xf]
  %v3471 = vld [vmem:[%s9 + $0x118] sm:$0xf]
  %v3472 = vld [vmem:[%s9 + $0x11c] sm:$0xf]
  %v3473 = vld [vmem:[%s9 + $0x120] sm:$0xf]
  %v3474 = vld [vmem:[%s9 + $0x124] sm:$0xf]
  %v3475 = vld [vmem:[%s9 + $0x128] sm:$0xf]
  %v3476 = vld [vmem:[%s9 + $0x12c] sm:$0xf]
  %v3477 = vld [vmem:[%s9 + $0x130] sm:$0xf]
  %v3478 = vld [vmem:[%s9 + $0x134] sm:$0xf]
  %v3479 = vld [vmem:[%s9 + $0x138] sm:$0xf]
  %v3480 = vld [vmem:[%s9 + $0x13c] sm:$0xf]
  %v3481 = vld [vmem:[%s9 + $0x140] sm:$0xf]
  %v3482 = vld [vmem:[%s9 + $0x144] sm:$0xf]
  %v3483 = vld [vmem:[%s9 + $0x148] sm:$0xf]
  %v3484 = vld [vmem:[%s9 + $0x14c] sm:$0xf]
  %v3485 = vld [vmem:[%s9 + $0x150] sm:$0xf]
  %v3486 = vld [vmem:[%s9 + $0x154] sm:$0xf]
  %v3487 = vld [vmem:[%s9 + $0x158] sm:$0xf]
  %v3488 = vld [vmem:[%s9 + $0x15c] sm:$0xf]
  %v3489 = vld [vmem:[%s9 + $0x160] sm:$0xf]
  %v3490 = vld [vmem:[%s9 + $0x164] sm:$0xf]
  %v3491 = vld [vmem:[%s9 + $0x168] sm:$0xf]
  %v3492 = vld [vmem:[%s9 + $0x16c] sm:$0xf]
  %v3493 = vld [vmem:[%s9 + $0x170] sm:$0xf]
  %v3494 = vld [vmem:[%s9 + $0x174] sm:$0xf]
  %v3495 = vld [vmem:[%s9 + $0x178] sm:$0xf]
  %v3496 = vld [vmem:[%s9 + $0x17c] sm:$0xf]
  %v3497 = vld [vmem:[%s9 + $0x180] sm:$0xf]
  %v3498 = vld [vmem:[%s9 + $0x184] sm:$0xf]
  %v3499 = vld [vmem:[%s9 + $0x188] sm:$0xf]
  %v3500 = vld [vmem:[%s9 + $0x18c] sm:$0xf]
  %v3501 = vld [vmem:[%s9 + $0x190] sm:$0xf]
  %v3502 = vld [vmem:[%s9 + $0x194] sm:$0xf]
  %v3503 = vld [vmem:[%s9 + $0x198] sm:$0xf]
  %v3504 = vld [vmem:[%s9 + $0x19c] sm:$0xf]
  %v3505 = vld [vmem:[%s9 + $0x1a0] sm:$0xf]
  %v3506 = vld [vmem:[%s9 + $0x1a4] sm:$0xf]
  %v3507 = vld [vmem:[%s9 + $0x1a8] sm:$0xf]
  %v3508 = vld [vmem:[%s9 + $0x1ac] sm:$0xf]
  %v3509 = vld [vmem:[%s9 + $0x1b0] sm:$0xf]
  %v3510 = vld [vmem:[%s9 + $0x1b4] sm:$0xf]
  %v3511 = vld [vmem:[%s9 + $0x1b8] sm:$0xf]
  %v3512 = vld [vmem:[%s9 + $0x1bc] sm:$0xf]
  %v3513 = vld [vmem:[%s10] sm:$0x1]
  %v3515 = vlaneseq
  %v3516 = vshrl.u32 %v3515, 7
  %v3517 = vsub.s32 0, %v3516
  %v3518 = vrot.slane %v3513, %v3517
  %v3632 = vunpack.c.l.b16 %v3401
  %v3633 = vunpack.c.l.b16 %v3402
  %v3634 = vunpack.c.l.b16 %v3403
  %v3635 = vunpack.c.l.b16 %v3404
  %v3636 = vunpack.c.l.b16 %v3405
  %v3637 = vunpack.c.l.b16 %v3406
  %v3638 = vunpack.c.l.b16 %v3407
  %v3639 = vunpack.c.l.b16 %v3408
  %v3640 = vunpack.c.l.b16 %v3409
  %v3641 = vunpack.c.l.b16 %v3410
  %v3642 = vunpack.c.l.b16 %v3411
  %v3643 = vunpack.c.l.b16 %v3412
  %v3644 = vunpack.c.l.b16 %v3413
  %v3645 = vunpack.c.l.b16 %v3414
  %v3646 = vunpack.c.l.b16 %v3415
  %v3647 = vunpack.c.l.b16 %v3416
  %v3648 = vunpack.c.l.b16 %v3417
  %v3649 = vunpack.c.l.b16 %v3418
  %v3650 = vunpack.c.l.b16 %v3419
  %v3651 = vunpack.c.l.b16 %v3420
  %v3652 = vunpack.c.l.b16 %v3421
  %v3653 = vunpack.c.l.b16 %v3422
  %v3654 = vunpack.c.l.b16 %v3423
  %v3655 = vunpack.c.l.b16 %v3424
  %v3656 = vunpack.c.l.b16 %v3425
  %v3657 = vunpack.c.l.b16 %v3426
  %v3658 = vunpack.c.l.b16 %v3427
  %v3659 = vunpack.c.l.b16 %v3428
  %v3660 = vunpack.c.l.b16 %v3429
  %v3661 = vunpack.c.l.b16 %v3430
  %v3662 = vunpack.c.l.b16 %v3431
  %v3663 = vunpack.c.l.b16 %v3432
  %v3664 = vunpack.c.l.b16 %v3433
  %v3665 = vunpack.c.l.b16 %v3434
  %v3666 = vunpack.c.l.b16 %v3435
  %v3667 = vunpack.c.l.b16 %v3436
  %v3668 = vunpack.c.l.b16 %v3437
  %v3669 = vunpack.c.l.b16 %v3438
  %v3670 = vunpack.c.l.b16 %v3439
  %v3671 = vunpack.c.l.b16 %v3440
  %v3672 = vunpack.c.l.b16 %v3441
  %v3673 = vunpack.c.l.b16 %v3442
  %v3674 = vunpack.c.l.b16 %v3443
  %v3675 = vunpack.c.l.b16 %v3444
  %v3676 = vunpack.c.l.b16 %v3445
  %v3677 = vunpack.c.l.b16 %v3446
  %v3678 = vunpack.c.l.b16 %v3447
  %v3679 = vunpack.c.l.b16 %v3448
  %v3680 = vunpack.c.l.b16 %v3449
  %v3681 = vunpack.c.l.b16 %v3450
  %v3682 = vunpack.c.l.b16 %v3451
  %v3683 = vunpack.c.l.b16 %v3452
  %v3684 = vunpack.c.l.b16 %v3453
  %v3685 = vunpack.c.l.b16 %v3454
  %v3686 = vunpack.c.l.b16 %v3455
  %v3687 = vunpack.c.l.b16 %v3456
  %v3688 = vunpack.c.l.b16 %v3457
  %v3689 = vunpack.c.l.b16 %v3458
  %v3690 = vunpack.c.l.b16 %v3459
  %v3691 = vunpack.c.l.b16 %v3460
  %v3692 = vunpack.c.l.b16 %v3461
  %v3693 = vunpack.c.l.b16 %v3462
  %v3694 = vunpack.c.l.b16 %v3463
  %v3695 = vunpack.c.l.b16 %v3464
  %v3696 = vunpack.c.l.b16 %v3465
  %v3697 = vunpack.c.l.b16 %v3466
  %v3698 = vunpack.c.l.b16 %v3467
  %v3699 = vunpack.c.l.b16 %v3468
  %v3700 = vunpack.c.l.b16 %v3469
  %v3701 = vunpack.c.l.b16 %v3470
  %v3702 = vunpack.c.l.b16 %v3471
  %v3703 = vunpack.c.l.b16 %v3472
  %v3704 = vunpack.c.l.b16 %v3473
  %v3705 = vunpack.c.l.b16 %v3474
  %v3706 = vunpack.c.l.b16 %v3475
  %v3707 = vunpack.c.l.b16 %v3476
  %v3708 = vunpack.c.l.b16 %v3477
  %v3709 = vunpack.c.l.b16 %v3478
  %v3710 = vunpack.c.l.b16 %v3479
  %v3711 = vunpack.c.l.b16 %v3480
  %v3712 = vunpack.c.l.b16 %v3481
  %v3713 = vunpack.c.l.b16 %v3482
  %v3714 = vunpack.c.l.b16 %v3483
  %v3715 = vunpack.c.l.b16 %v3484
  %v3716 = vunpack.c.l.b16 %v3485
  %v3717 = vunpack.c.l.b16 %v3486
  %v3718 = vunpack.c.l.b16 %v3487
  %v3719 = vunpack.c.l.b16 %v3488
  %v3720 = vunpack.c.l.b16 %v3489
  %v3721 = vunpack.c.l.b16 %v3490
  %v3722 = vunpack.c.l.b16 %v3491
  %v3723 = vunpack.c.l.b16 %v3492
  %v3724 = vunpack.c.l.b16 %v3493
  %v3725 = vunpack.c.l.b16 %v3494
  %v3726 = vunpack.c.l.b16 %v3495
  %v3727 = vunpack.c.l.b16 %v3496
  %v3728 = vunpack.c.l.b16 %v3497
  %v3729 = vunpack.c.l.b16 %v3498
  %v3730 = vunpack.c.l.b16 %v3499
  %v3731 = vunpack.c.l.b16 %v3500
  %v3732 = vunpack.c.l.b16 %v3501
  %v3733 = vunpack.c.l.b16 %v3502
  %v3734 = vunpack.c.l.b16 %v3503
  %v3735 = vunpack.c.l.b16 %v3504
  %v3736 = vunpack.c.l.b16 %v3505
  %v3737 = vunpack.c.l.b16 %v3506
  %v3738 = vunpack.c.l.b16 %v3507
  %v3739 = vunpack.c.l.b16 %v3508
  %v3740 = vunpack.c.l.b16 %v3509
  %v3741 = vunpack.c.l.b16 %v3510
  %v3742 = vunpack.c.l.b16 %v3511
  %v3743 = vunpack.c.l.b16 %v3512
  %v3744 = vpack.c.b16 %v3633, %v3632
  %v3745 = vpack.c.b16 %v3635, %v3634
  %v3746 = vpack.c.b16 %v3637, %v3636
  %v3747 = vpack.c.b16 %v3639, %v3638
  %v3748 = vpack.c.b16 %v3641, %v3640
  %v3749 = vpack.c.b16 %v3643, %v3642
  %v3750 = vpack.c.b16 %v3645, %v3644
  %v3751 = vpack.c.b16 %v3647, %v3646
  %v3752 = vpack.c.b16 %v3649, %v3648
  %v3753 = vpack.c.b16 %v3651, %v3650
  %v3754 = vpack.c.b16 %v3653, %v3652
  %v3755 = vpack.c.b16 %v3655, %v3654
  %v3756 = vpack.c.b16 %v3657, %v3656
  %v3757 = vpack.c.b16 %v3659, %v3658
  %v3758 = vpack.c.b16 %v3661, %v3660
  %v3759 = vpack.c.b16 %v3663, %v3662
  %v3760 = vpack.c.b16 %v3665, %v3664
  %v3761 = vpack.c.b16 %v3667, %v3666
  %v3762 = vpack.c.b16 %v3669, %v3668
  %v3763 = vpack.c.b16 %v3671, %v3670
  %v3764 = vpack.c.b16 %v3673, %v3672
  %v3765 = vpack.c.b16 %v3675, %v3674
  %v3766 = vpack.c.b16 %v3677, %v3676
  %v3767 = vpack.c.b16 %v3679, %v3678
  %v3768 = vpack.c.b16 %v3681, %v3680
  %v3769 = vpack.c.b16 %v3683, %v3682
  %v3770 = vpack.c.b16 %v3685, %v3684
  %v3771 = vpack.c.b16 %v3687, %v3686
  %v3772 = vpack.c.b16 %v3689, %v3688
  %v3773 = vpack.c.b16 %v3691, %v3690
  %v3774 = vpack.c.b16 %v3693, %v3692
  %v3775 = vpack.c.b16 %v3695, %v3694
  %v3776 = vpack.c.b16 %v3697, %v3696
  %v3777 = vpack.c.b16 %v3699, %v3698
  %v3778 = vpack.c.b16 %v3701, %v3700
  %v3779 = vpack.c.b16 %v3703, %v3702
  %v3780 = vpack.c.b16 %v3705, %v3704
  %v3781 = vpack.c.b16 %v3707, %v3706
  %v3782 = vpack.c.b16 %v3709, %v3708
  %v3783 = vpack.c.b16 %v3711, %v3710
  %v3784 = vpack.c.b16 %v3713, %v3712
  %v3785 = vpack.c.b16 %v3715, %v3714
  %v3786 = vpack.c.b16 %v3717, %v3716
  %v3787 = vpack.c.b16 %v3719, %v3718
  %v3788 = vpack.c.b16 %v3721, %v3720
  %v3789 = vpack.c.b16 %v3723, %v3722
  %v3790 = vpack.c.b16 %v3725, %v3724
  %v3791 = vpack.c.b16 %v3727, %v3726
  %v3792 = vpack.c.b16 %v3729, %v3728
  %v3793 = vpack.c.b16 %v3731, %v3730
  %v3794 = vpack.c.b16 %v3733, %v3732
  %v3795 = vpack.c.b16 %v3735, %v3734
  %v3796 = vpack.c.b16 %v3737, %v3736
  %v3797 = vpack.c.b16 %v3739, %v3738
  %v3798 = vpack.c.b16 %v3741, %v3740
  %v3799 = vpack.c.b16 %v3743, %v3742
  %3856 = vmatprep.subr.bf16.mxu0 0
  %3857 = vmatpush1.bf16.msra.mxu0 %v3744
  %3858 = vmatprep.subr.bf16.mxu0 0
  %3859 = vmatpush1.bf16.msra.mxu0 %v3745
  %3860 = vmatprep.subr.bf16.mxu0 0
  %3861 = vmatpush1.bf16.msra.mxu0 %v3746
  %3862 = vmatprep.subr.bf16.mxu0 0
  %3863 = vmatpush1.bf16.msra.mxu0 %v3747
  %3864 = vmatprep.subr.bf16.mxu0 0
  %3865 = vmatpush1.bf16.msra.mxu0 %v3748
  %3866 = vmatprep.subr.bf16.mxu0 0
  %3867 = vmatpush1.bf16.msra.mxu0 %v3749
  %3868 = vmatprep.subr.bf16.mxu0 0
  %3869 = vmatpush1.bf16.msra.mxu0 %v3750
  %3870 = vmatprep.subr.bf16.mxu0 0
  %3871 = vmatpush1.bf16.msra.mxu0 %v3751
  %3872 = vmatprep.subr.bf16.mxu0 0
  %3873 = vmatpush1.bf16.msra.mxu0 %v3752
  %3874 = vmatprep.subr.bf16.mxu0 0
  %3875 = vmatpush1.bf16.msra.mxu0 %v3753
  %3876 = vmatprep.subr.bf16.mxu0 0
  %3877 = vmatpush1.bf16.msra.mxu0 %v3754
  %3878 = vmatprep.subr.bf16.mxu0 0
  %3879 = vmatpush1.bf16.msra.mxu0 %v3755
  %3880 = vmatprep.subr.bf16.mxu0 0
  %3881 = vmatpush1.bf16.msra.mxu0 %v3756
  %3882 = vmatprep.subr.bf16.mxu0 0
  %3883 = vmatpush1.bf16.msra.mxu0 %v3757
  %3884 = vmatprep.subr.bf16.mxu0 0
  %3885 = vmatpush1.bf16.msra.mxu0 %v3758
  %3886 = vmatprep.subr.bf16.mxu0 0
  %3887 = vmatpush1.bf16.msra.mxu0 %v3759
  %3888 = vmatprep.mubr.bf16.mxu0 %v3388
  %3889 = vmatmul.mubr.bf16.gmra.mrb[0].mxu0 %v3387
  %v3890 = vpop.f32.mrb[0].mxu0
  %v3891 = vadd.f32 %v3518, %v3890
  %v3892 = vpop.f32.mrb[0].mxu0
  %v3893 = vpop.f32.mrb[0].mxu0
  %v3894 = vadd.f32 %v3518, %v3893
  %v3895 = vpop.f32.mrb[0].mxu0
  %3896 = vmatprep.mubr.bf16.mxu0 %v3395
  %3897 = vmatmul.mubr.bf16.gmra.mrb[0].mxu0 %v3394
  %v3898 = vpop.f32.mrb[0].mxu0
  %v3899 = vadd.f32 %v3518, %v3898
  %v3900 = vpop.f32.mrb[0].mxu0
  %v3901 = vpop.f32.mrb[0].mxu0
  %v3902 = vadd.f32 %v3518, %v3901
  %v3903 = vpop.f32.mrb[0].mxu0
  %3904 = vdwg.mxu0
  %3905 = vmatprep.subr.bf16.mxu0 0
  %3906 = vmatpush1.bf16.msra.mxu0 %v3760
  %3907 = vmatprep.subr.bf16.mxu0 0
  %3908 = vmatpush1.bf16.msra.mxu0 %v3761
  %3909 = vmatprep.subr.bf16.mxu0 0
  %3910 = vmatpush1.bf16.msra.mxu0 %v3762
  %3911 = vmatprep.subr.bf16.mxu0 0
  %3912 = vmatpush1.bf16.msra.mxu0 %v3763
  %3913 = vmatprep.subr.bf16.mxu0 0
  %3914 = vmatpush1.bf16.msra.mxu0 %v3764
  %3915 = vmatprep.subr.bf16.mxu0 0
  %3916 = vmatpush1.bf16.msra.mxu0 %v3765
  %3917 = vmatprep.subr.bf16.mxu0 0
  %3918 = vmatpush1.bf16.msra.mxu0 %v3766
  %3919 = vmatprep.subr.bf16.mxu0 0
  %3920 = vmatpush1.bf16.msra.mxu0 %v3767
  %3921 = vmatprep.subr.bf16.mxu0 0
  %3922 = vmatpush1.bf16.msra.mxu0 %v3768
  %3923 = vmatprep.subr.bf16.mxu0 0
  %3924 = vmatpush1.bf16.msra.mxu0 %v3769
  %3925 = vmatprep.subr.bf16.mxu0 0
  %3926 = vmatpush1.bf16.msra.mxu0 %v3770
  %3927 = vmatprep.subr.bf16.mxu0 0
  %3928 = vmatpush1.bf16.msra.mxu0 %v3771
  %3929 = vmatprep.subr.bf16.mxu0 0
  %3930 = vmatpush1.bf16.msra.mxu0 %v3772
  %3931 = vmatprep.subr.bf16.mxu0 0
  %3932 = vmatpush1.bf16.msra.mxu0 %v3773
  %3933 = vmatprep.subr.bf16.mxu0 0
  %3934 = vmatpush1.bf16.msra.mxu0 %v3774
  %3935 = vmatprep.subr.bf16.mxu0 0
  %3936 = vmatpush1.bf16.msra.mxu0 %v3775
  %3937 = vmatprep.mubr.bf16.mxu0 %v3390
  %3938 = vmatmul.mubr.bf16.gmra.mrb[0].mxu0 %v3389
  %v3939 = vpop.f32.mrb[0].mxu0
  %v3940 = vadd.f32 %v3891, %v3939
  %v3941 = vpop.f32.mrb[0].mxu0
  %v3942 = vpop.f32.mrb[0].mxu0
  %v3943 = vadd.f32 %v3894, %v3942
  %v3944 = vpop.f32.mrb[0].mxu0
  %3945 = vmatprep.mubr.bf16.mxu0 %v3397
  %3946 = vmatmul.mubr.bf16.gmra.mrb[0].mxu0 %v3396
  %v3947 = vpop.f32.mrb[0].mxu0
  %v3948 = vadd.f32 %v3899, %v3947
  %v3949 = vpop.f32.mrb[0].mxu0
  %v3950 = vpop.f32.mrb[0].mxu0
  %v3951 = vadd.f32 %v3902, %v3950
  %v3952 = vpop.f32.mrb[0].mxu0
  %3953 = vdwg.mxu0
  %3954 = vmatprep.subr.bf16.mxu0 0
  %3955 = vmatpush1.bf16.msra.mxu0 %v3776
  %3956 = vmatprep.subr.bf16.mxu0 0
  %3957 = vmatpush1.bf16.msra.mxu0 %v3777
  %3958 = vmatprep.subr.bf16.mxu0 0
  %3959 = vmatpush1.bf16.msra.mxu0 %v3778
  %3960 = vmatprep.subr.bf16.mxu0 0
  %3961 = vmatpush1.bf16.msra.mxu0 %v3779
  %3962 = vmatprep.subr.bf16.mxu0 0
  %3963 = vmatpush1.bf16.msra.mxu0 %v3780
  %3964 = vmatprep.subr.bf16.mxu0 0
  %3965 = vmatpush1.bf16.msra.mxu0 %v3781
  %3966 = vmatprep.subr.bf16.mxu0 0
  %3967 = vmatpush1.bf16.msra.mxu0 %v3782
  %3968 = vmatprep.subr.bf16.mxu0 0
  %3969 = vmatpush1.bf16.msra.mxu0 %v3783
  %3970 = vmatprep.subr.bf16.mxu0 0
  %3971 = vmatpush1.bf16.msra.mxu0 %v3784
  %3972 = vmatprep.subr.bf16.mxu0 0
  %3973 = vmatpush1.bf16.msra.mxu0 %v3785
  %3974 = vmatprep.subr.bf16.mxu0 0
  %3975 = vmatpush1.bf16.msra.mxu0 %v3786
  %3976 = vmatprep.subr.bf16.mxu0 0
  %3977 = vmatpush1.bf16.msra.mxu0 %v3787
  %3978 = vmatprep.subr.bf16.mxu0 0
  %3979 = vmatpush1.bf16.msra.mxu0 %v3788
  %3980 = vmatprep.subr.bf16.mxu0 0
  %3981 = vmatpush1.bf16.msra.mxu0 %v3789
  %3982 = vmatprep.subr.bf16.mxu0 0
  %3983 = vmatpush1.bf16.msra.mxu0 %v3790
  %3984 = vmatprep.subr.bf16.mxu0 0
  %3985 = vmatpush1.bf16.msra.mxu0 %v3791
  %3986 = vmatprep.mubr.bf16.mxu0 %v3392
  %3987 = vmatmul.mubr.bf16.gmra.mrb[0].mxu0 %v3391
  %v3988 = vpop.f32.mrb[0].mxu0
  %v3989 = vadd.f32 %v3940, %v3988
  %v3990 = vpop.f32.mrb[0].mxu0
  %v3991 = vpop.f32.mrb[0].mxu0
  %v3992 = vadd.f32 %v3943, %v3991
  %v3993 = vpop.f32.mrb[0].mxu0
  %3994 = vmatprep.mubr.bf16.mxu0 %v3399
  %3995 = vmatmul.mubr.bf16.gmra.mrb[0].mxu0 %v3398
  %v3996 = vpop.f32.mrb[0].mxu0
  %v3997 = vadd.f32 %v3948, %v3996
  %v3998 = vpop.f32.mrb[0].mxu0
  %v3999 = vpop.f32.mrb[0].mxu0
  %v4000 = vadd.f32 %v3951, %v3999
  %v4001 = vpop.f32.mrb[0].mxu0
  %4002 = vdwg.mxu0
  %4003 = vmatprep.subr.bf16.mxu0 0
  %4004 = vmatpush1.bf16.msra.mxu0 %v3792
  %4005 = vmatprep.subr.bf16.mxu0 0
  %4006 = vmatpush1.bf16.msra.mxu0 %v3793
  %4007 = vmatprep.subr.bf16.mxu0 0
  %4008 = vmatpush1.bf16.msra.mxu0 %v3794
  %4009 = vmatprep.subr.bf16.mxu0 0
  %4010 = vmatpush1.bf16.msra.mxu0 %v3795
  %4011 = vmatprep.subr.bf16.mxu0 0
  %4012 = vmatpush1.bf16.msra.mxu0 %v3796
  %4013 = vmatprep.subr.bf16.mxu0 0
  %4014 = vmatpush1.bf16.msra.mxu0 %v3797
  %4015 = vmatprep.subr.bf16.mxu0 0
  %4016 = vmatpush1.bf16.msra.mxu0 %v3798
  %4017 = vmatprep.subr.bf16.mxu0 0
  %4018 = vmatpush1.bf16.msra.mxu0 %v3799
  %4019 = vmatprep.subr.bf16.mxu0 0
  %4020 = vmatpush1.bf16.msra.mxu0 0
  %4021 = vmatprep.subr.bf16.mxu0 0
  %4022 = vmatpush1.bf16.msra.mxu0 0
  %4023 = vmatprep.subr.bf16.mxu0 0
  %4024 = vmatpush1.bf16.msra.mxu0 0
  %4025 = vmatprep.subr.bf16.mxu0 0
  %4026 = vmatpush1.bf16.msra.mxu0 0
  %4027 = vmatprep.subr.bf16.mxu0 0
  %4028 = vmatpush1.bf16.msra.mxu0 0
  %4029 = vmatprep.subr.bf16.mxu0 0
  %4030 = vmatpush1.bf16.msra.mxu0 0
  %4031 = vmatprep.subr.bf16.mxu0 0
  %4032 = vmatpush1.bf16.msra.mxu0 0
  %4033 = vmatprep.subr.bf16.mxu0 0
  %4034 = vmatpush1.bf16.msra.mxu0 0
  %4035 = vmatprep.mubr.bf16.mxu0 0
  %4036 = vmatmul.mubr.bf16.gmra.mrb[0].mxu0 %v3393
  %v4037 = vpop.f32.mrb[0].mxu0
  %v4038 = vadd.f32 %v3989, %v4037
  %v4039 = vpop.f32.mrb[0].mxu0
  %v4040 = vpop.f32.mrb[0].mxu0
  %v4041 = vadd.f32 %v3992, %v4040
  %v4042 = vpop.f32.mrb[0].mxu0
  %4043 = vmatprep.mubr.bf16.mxu0 0
  %4044 = vmatmul.mubr.bf16.gmra.mrb[0].mxu0 %v3400
  %v4045 = vpop.f32.mrb[0].mxu0
  %v4046 = vadd.f32 %v3997, %v4045
  %v4047 = vpop.f32.mrb[0].mxu0
  %v4048 = vpop.f32.mrb[0].mxu0
  %v4049 = vadd.f32 %v4000, %v4048
  %v4050 = vpop.f32.mrb[0].mxu0
  %4051 = vdwg.mxu0
  %v4052 = vmax.f32 %v4038, 0.0
  %v4053 = vmax.f32 %v4041, 0.0
  %v4054 = vmax.f32 %v4046, 0.0
  %v4055 = vmax.f32 %v4049, 0.0
  %v4056 = vadd.f32 %v4052, %v2302
  %v4057 = vadd.f32 %v4053, %v2303
  %v4058 = vadd.f32 %v4054, %v2304
  %v4059 = vadd.f32 %v4055, %v2305
  %v4060 = vmax.f32 %v4056, 0.0
  %v4061 = vmax.f32 %v4057, 0.0
  %v4062 = vmax.f32 %v4058, 0.0
  %v4063 = vmax.f32 %v4059, 0.0
  %v4064 = vpack.c.bf16 %v4061, %v4060
  %v4065 = vpack.c.bf16 %v4063, %v4062
  %4066 = vst.msk [vmem:[#allocation2 + $0x8] sm:$0xff] %vm1454, %v4064
  %4067 = vst.msk [vmem:[#allocation2 + $0x10] sm:$0xff] %vm1454, %v4065
  %v4068 = vadd.s32 %v72, 4294967284
  %v4069 = vadd.s32 %v73, 4294967284
  %v4070 = vadd.s32 %v74, 4294967284
  %v4071 = vadd.s32 %v75, 4294967284
  %vm4072 = vcmp.ge.s32.totalorder %v4068, 0
  %vm4073 = vcmp.ge.s32.totalorder %v4069, 0
  %vm4074 = vcmp.ge.s32.totalorder %v4070, 0
  %vm4075 = vcmp.ge.s32.totalorder %v4071, 0
  %vm4076 = vcmp.lt.s32.totalorder %v4068, 16
  %vm4077 = vcmp.lt.s32.totalorder %v4069, 16
  %vm4078 = vcmp.lt.s32.totalorder %v4070, 16
  %vm4079 = vcmp.lt.s32.totalorder %v4071, 16
  %vm4080 = vmand %vm4072, %vm4076
  %vm4081 = vmand %vm4073, %vm4077
  %vm4082 = vmand %vm4074, %vm4078
  %vm4083 = vmand %vm4075, %vm4079
  %v4084 = vadd.s32 %v72, 4294967288
  %v4085 = vadd.s32 %v73, 4294967288
  %v4086 = vadd.s32 %v74, 4294967288
  %v4087 = vadd.s32 %v75, 4294967288
  %vm4088 = vcmp.ge.s32.totalorder %v4084, 0
  %vm4089 = vcmp.ge.s32.totalorder %v4085, 0
  %vm4090 = vcmp.ge.s32.totalorder %v4086, 0
  %vm4091 = vcmp.ge.s32.totalorder %v4087, 0
  %vm4092 = vcmp.lt.s32.totalorder %v4084, 16
  %vm4093 = vcmp.lt.s32.totalorder %v4085, 16
  %vm4094 = vcmp.lt.s32.totalorder %v4086, 16
  %vm4095 = vcmp.lt.s32.totalorder %v4087, 16
  %vm4096 = vmand %vm4088, %vm4092
  %vm4097 = vmand %vm4089, %vm4093
  %vm4098 = vmand %vm4090, %vm4094
  %vm4099 = vmand %vm4091, %vm4095
  %v4100 = vadd.s32 %v72, 8
  %v4101 = vadd.s32 %v73, 8
  %v4102 = vadd.s32 %v74, 8
  %v4103 = vadd.s32 %v75, 8
  %vm4104 = vcmp.ge.s32.totalorder %v4100, 0
  %vm4105 = vcmp.ge.s32.totalorder %v4101, 0
  %vm4106 = vcmp.ge.s32.totalorder %v4102, 0
  %vm4107 = vcmp.ge.s32.totalorder %v4103, 0
  %vm4108 = vcmp.lt.s32.totalorder %v4100, 16
  %vm4109 = vcmp.lt.s32.totalorder %v4101, 16
  %vm4110 = vcmp.lt.s32.totalorder %v4102, 16
  %vm4111 = vcmp.lt.s32.totalorder %v4103, 16
  %vm4112 = vmand %vm4104, %vm4108
  %vm4113 = vmand %vm4105, %vm4109
  %vm4114 = vmand %vm4106, %vm4110
  %vm4115 = vmand %vm4107, %vm4111
  %v4116 = vadd.s32 %v72, 12
  %v4117 = vadd.s32 %v73, 12
  %v4118 = vadd.s32 %v74, 12
  %v4119 = vadd.s32 %v75, 12
  %vm4120 = vcmp.ge.s32.totalorder %v4116, 0
  %vm4121 = vcmp.ge.s32.totalorder %v4117, 0
  %vm4122 = vcmp.ge.s32.totalorder %v4118, 0
  %vm4123 = vcmp.ge.s32.totalorder %v4119, 0
  %vm4124 = vcmp.lt.s32.totalorder %v4116, 16
  %vm4125 = vcmp.lt.s32.totalorder %v4117, 16
  %vm4126 = vcmp.lt.s32.totalorder %v4118, 16
  %vm4127 = vcmp.lt.s32.totalorder %v4119, 16
  %vm4128 = vmand %vm4120, %vm4124
  %vm4129 = vmand %vm4121, %vm4125
  %vm4130 = vmand %vm4122, %vm4126
  %vm4131 = vmand %vm4123, %vm4127
  %v4132 = vld [vmem:[#allocation2] sm:$0xfc]
  %v4133 = vld [vmem:[#allocation2 + $0x8] sm:$0xff]
  %v4134 = vld [vmem:[#allocation2 + $0x10] sm:$0x3]
  %v4135 = vsel %vm4080, 1, 0
  %v4136 = vsel %vm4081, 1, 0
  %v4137 = vsel %vm4082, 1, 0
  %v4138 = vsel %vm4083, 1, 0
  %vm4139 = vcmp.eq.s32.totalorder %v4135, 1
  %vm4140 = vcmp.eq.s32.totalorder %v4136, 1
  %vm4141 = vcmp.eq.s32.totalorder %v4137, 1
  %vm4142 = vcmp.eq.s32.totalorder %v4138, 1
  %vm4143 = vmpackc.low %vm4139, %vm4139
  %vm4144 = vmpackc.low %vm4140, %vm4140
  %vm4145 = vmpackc.low %vm4141, %vm4141
  %vm4146 = vmpackc.low %vm4142, %vm4142
  %v4147 = vsel %vm4143, 65537, 0
  %v4148 = vsel %vm4144, 65537, 0
  %v4149 = vsel %vm4145, 65537, 0
  %v4150 = vsel %vm4146, 65537, 0
  %v4151 = vunpack.c.l.b16 %v4147
  %v4152 = vunpack.c.l.b16 %v4148
  %v4153 = vunpack.c.l.b16 %v4149
  %v4154 = vunpack.c.l.b16 %v4150
  %v4155 = vpack.c.b16 %v4152, %v4151
  %v4156 = vpack.c.b16 %v4154, %v4153
  %v4157 = vrot.slane %v4155, 6
  %v4158 = vrot.slane %v4156, 6
  %v4159 = vsel %vm2460, %v4157, %v4158
  %vm4160 = vcmp.ne.s16.totalorder %v4157, 0
  %vm4161 = vcmp.ne.s16.totalorder %v4159, 0
  %vm4162 = vcmp.ne.s16.totalorder %v4158, 0
  %v4163 = vsel %vm4160, %v4132, 0
  %v4164 = vsel %vm4161, %v4133, 0
  %v4165 = vsel %vm4162, %v4134, 0
  %v4169 = vrot.slane %v4163, 2
  %v4170 = vrot.slane %v4164, 2
  %v4171 = vsel %vm2447, %v4169, %v4170
  %v4172 = vrot.slane %v4165, 2
  %v4173 = vsel %vm2447, %v4170, %v4172
  %4176 = vst [vmem:[#allocation3] sm:$0xff] %v4171
  %4177 = vst [vmem:[#allocation3 + $0x38] sm:$0xff] %v4173
  %v4178 = vld [vmem:[#allocation2] sm:$0xf0]
  %v4179 = vld [vmem:[#allocation2 + $0x8] sm:$0xff]
  %v4180 = vld [vmem:[#allocation2 + $0x10] sm:$0xf]
  %v4181 = vsel %vm4096, 1, 0
  %v4182 = vsel %vm4097, 1, 0
  %v4183 = vsel %vm4098, 1, 0
  %v4184 = vsel %vm4099, 1, 0
  %vm4185 = vcmp.eq.s32.totalorder %v4181, 1
  %vm4186 = vcmp.eq.s32.totalorder %v4182, 1
  %vm4187 = vcmp.eq.s32.totalorder %v4183, 1
  %vm4188 = vcmp.eq.s32.totalorder %v4184, 1
  %vm4189 = vmpackc.low %vm4185, %vm4185
  %vm4190 = vmpackc.low %vm4186, %vm4186
  %vm4191 = vmpackc.low %vm4187, %vm4187
  %vm4192 = vmpackc.low %vm4188, %vm4188
  %v4193 = vsel %vm4189, 65537, 0
  %v4194 = vsel %vm4190, 65537, 0
  %v4195 = vsel %vm4191, 65537, 0
  %v4196 = vsel %vm4192, 65537, 0
  %v4197 = vunpack.c.l.b16 %v4193
  %v4198 = vunpack.c.l.b16 %v4194
  %v4199 = vunpack.c.l.b16 %v4195
  %v4200 = vunpack.c.l.b16 %v4196
  %v4201 = vpack.c.b16 %v4197, %v4197
  %v4202 = vpack.c.b16 %v4199, %v4198
  %v4203 = vpack.c.b16 %v4200, %v4200
  %vm4204 = vcmp.ne.s16.totalorder %v4201, 0
  %vm4205 = vcmp.ne.s16.totalorder %v4202, 0
  %vm4206 = vcmp.ne.s16.totalorder %v4203, 0
  %v4207 = vsel %vm4204, %v4178, 0
  %v4208 = vsel %vm4205, %v4179, 0
  %v4209 = vsel %vm4206, %v4180, 0
  %vm4213 = vcmask 1043456
  %v4214 = vrot.slane %v4207, 4
  %v4215 = vrot.slane %v4208, 4
  %v4216 = vsel %vm4213, %v4214, %v4215
  %v4217 = vrot.slane %v4209, 4
  %v4218 = vsel %vm4213, %v4215, %v4217
  %4221 = vst [vmem:[#allocation3 + $0x8] sm:$0xff] %v4216
  %4222 = vst [vmem:[#allocation3 + $0x40] sm:$0xff] %v4218
  %v4223 = vld [vmem:[#allocation2] sm:$0xc0]
  %v4224 = vld [vmem:[#allocation2 + $0x8] sm:$0xff]
  %v4225 = vld [vmem:[#allocation2 + $0x10] sm:$0x3f]
  %v4226 = vsel %vm2451, %v4223, 0
  %v4227 = vsel %vm2452, %v4224, 0
  %v4228 = vsel %vm2453, %v4225, 0
  %v4232 = vrot.slane %v4226, 6
  %v4233 = vrot.slane %v4227, 6
  %v4234 = vsel %vm2460, %v4232, %v4233
  %v4235 = vrot.slane %v4228, 6
  %v4236 = vsel %vm2460, %v4233, %v4235
  %4239 = vst [vmem:[#allocation3 + $0x10] sm:$0xff] %v4234
  %4240 = vst [vmem:[#allocation3 + $0x48] sm:$0xff] %v4236
  %v4241 = vld [vmem:[#allocation2 + $0x8] sm:$0xff]
  %v4242 = vld [vmem:[#allocation2 + $0x10] sm:$0xff]
  %4243 = vst [vmem:[#allocation3 + $0x18] sm:$0xff] %v4241
  %4244 = vst [vmem:[#allocation3 + $0x50] sm:$0xff] %v4242
  %v4245 = vld [vmem:[#allocation2 + $0x8] sm:$0xfc]
  %v4246 = vld [vmem:[#allocation2 + $0x10] sm:$0xff]
  %v4247 = vld [vmem:[#allocation2 + $0x18] sm:$0x3]
  %v4248 = vsel %vm2538, %v4245, 0
  %v4249 = vsel %vm2539, %v4246, 0
  %v4250 = vsel %vm2540, %v4247, 0
  %v4254 = vrot.slane %v4248, 2
  %v4255 = vrot.slane %v4249, 2
  %v4256 = vsel %vm2447, %v4254, %v4255
  %v4257 = vrot.slane %v4250, 2
  %v4258 = vsel %vm2447, %v4255, %v4257
  %4261 = vst [vmem:[#allocation3 + $0x20] sm:$0xff] %v4256
  %4262 = vst [vmem:[#allocation3 + $0x58] sm:$0xff] %v4258
  %v4263 = vld [vmem:[#allocation2 + $0x8] sm:$0xf0]
  %v4264 = vld [vmem:[#allocation2 + $0x10] sm:$0xff]
  %v4265 = vld [vmem:[#allocation2 + $0x18] sm:$0xf]
  %v4266 = vsel %vm4112, 1, 0
  %v4267 = vsel %vm4113, 1, 0
  %v4268 = vsel %vm4114, 1, 0
  %v4269 = vsel %vm4115, 1, 0
  %vm4270 = vcmp.eq.s32.totalorder %v4266, 1
  %vm4271 = vcmp.eq.s32.totalorder %v4267, 1
  %vm4272 = vcmp.eq.s32.totalorder %v4268, 1
  %vm4273 = vcmp.eq.s32.totalorder %v4269, 1
  %vm4274 = vmpackc.low %vm4270, %vm4270
  %vm4275 = vmpackc.low %vm4271, %vm4271
  %vm4276 = vmpackc.low %vm4272, %vm4272
  %vm4277 = vmpackc.low %vm4273, %vm4273
  %v4278 = vsel %vm4274, 65537, 0
  %v4279 = vsel %vm4275, 65537, 0
  %v4280 = vsel %vm4276, 65537, 0
  %v4281 = vsel %vm4277, 65537, 0
  %v4282 = vunpack.c.l.b16 %v4278
  %v4283 = vunpack.c.l.b16 %v4279
  %v4284 = vunpack.c.l.b16 %v4280
  %v4285 = vunpack.c.l.b16 %v4281
  %v4286 = vpack.c.b16 %v4282, %v4282
  %v4287 = vpack.c.b16 %v4284, %v4283
  %v4288 = vpack.c.b16 %v4285, %v4285
  %vm4289 = vcmp.ne.s16.totalorder %v4286, 0
  %vm4290 = vcmp.ne.s16.totalorder %v4287, 0
  %vm4291 = vcmp.ne.s16.totalorder %v4288, 0
  %v4292 = vsel %vm4289, %v4263, 0
  %v4293 = vsel %vm4290, %v4264, 0
  %v4294 = vsel %vm4291, %v4265, 0
  %v4298 = vrot.slane %v4292, 4
  %v4299 = vrot.slane %v4293, 4
  %v4300 = vsel %vm4213, %v4298, %v4299
  %v4301 = vrot.slane %v4294, 4
  %v4302 = vsel %vm4213, %v4299, %v4301
  %4305 = vst [vmem:[#allocation3 + $0x28] sm:$0xff] %v4300
  %4306 = vst [vmem:[#allocation3 + $0x60] sm:$0xff] %v4302
  %v4307 = vld [vmem:[#allocation2 + $0x8] sm:$0xc0]
  %v4308 = vld [vmem:[#allocation2 + $0x10] sm:$0xff]
  %v4309 = vld [vmem:[#allocation2 + $0x18] sm:$0x3f]
  %v4310 = vsel %vm4128, 1, 0
  %v4311 = vsel %vm4129, 1, 0
  %v4312 = vsel %vm4130, 1, 0
  %v4313 = vsel %vm4131, 1, 0
  %vm4314 = vcmp.eq.s32.totalorder %v4310, 1
  %vm4315 = vcmp.eq.s32.totalorder %v4311, 1
  %vm4316 = vcmp.eq.s32.totalorder %v4312, 1
  %vm4317 = vcmp.eq.s32.totalorder %v4313, 1
  %vm4318 = vmpackc.low %vm4314, %vm4314
  %vm4319 = vmpackc.low %vm4315, %vm4315
  %vm4320 = vmpackc.low %vm4316, %vm4316
  %vm4321 = vmpackc.low %vm4317, %vm4317
  %v4322 = vsel %vm4318, 65537, 0
  %v4323 = vsel %vm4319, 65537, 0
  %v4324 = vsel %vm4320, 65537, 0
  %v4325 = vsel %vm4321, 65537, 0
  %v4326 = vunpack.c.l.b16 %v4322
  %v4327 = vunpack.c.l.b16 %v4323
  %v4328 = vunpack.c.l.b16 %v4324
  %v4329 = vunpack.c.l.b16 %v4325
  %v4330 = vpack.c.b16 %v4327, %v4326
  %v4331 = vpack.c.b16 %v4329, %v4328
  %v4332 = vrot.slane %v4330, 2
  %v4333 = vrot.slane %v4331, 2
  %v4334 = vsel %vm2447, %v4332, %v4333
  %vm4335 = vcmp.ne.s16.totalorder %v4332, 0
  %vm4336 = vcmp.ne.s16.totalorder %v4334, 0
  %vm4337 = vcmp.ne.s16.totalorder %v4333, 0
  %v4338 = vsel %vm4335, %v4307, 0
  %v4339 = vsel %vm4336, %v4308, 0
  %v4340 = vsel %vm4337, %v4309, 0
  %v4344 = vrot.slane %v4338, 6
  %v4345 = vrot.slane %v4339, 6
  %v4346 = vsel %vm2460, %v4344, %v4345
  %v4347 = vrot.slane %v4340, 6
  %v4348 = vsel %vm2460, %v4345, %v4347
  %4351 = vst [vmem:[#allocation3 + $0x30] sm:$0xff] %v4346
  %4352 = vst [vmem:[#allocation3 + $0x68] sm:$0xff] %v4348
  %v4353 = vld [vmem:[#allocation3] sm:$0xff]
  %v4354 = vld [vmem:[#allocation3 + $0x8] sm:$0xff]
  %v4355 = vld [vmem:[#allocation3 + $0x10] sm:$0xff]
  %v4356 = vld [vmem:[#allocation3 + $0x18] sm:$0xff]
  %v4357 = vld [vmem:[#allocation3 + $0x20] sm:$0xff]
  %v4358 = vld [vmem:[#allocation3 + $0x28] sm:$0xff]
  %v4359 = vld [vmem:[#allocation3 + $0x30] sm:$0xff]
  %v4360 = vld [vmem:[#allocation3 + $0x38] sm:$0xff]
  %v4361 = vld [vmem:[#allocation3 + $0x40] sm:$0xff]
  %v4362 = vld [vmem:[#allocation3 + $0x48] sm:$0xff]
  %v4363 = vld [vmem:[#allocation3 + $0x50] sm:$0xff]
  %v4364 = vld [vmem:[#allocation3 + $0x58] sm:$0xff]
  %v4365 = vld [vmem:[#allocation3 + $0x60] sm:$0xff]
  %v4366 = vld [vmem:[#allocation3 + $0x68] sm:$0xff]
  %v4367 = vld [vmem:[%s11] sm:$0xf]
  %v4368 = vld [vmem:[%s11 + $0x4] sm:$0xf]
  %v4369 = vld [vmem:[%s11 + $0x8] sm:$0xf]
  %v4370 = vld [vmem:[%s11 + $0xc] sm:$0xf]
  %v4371 = vld [vmem:[%s11 + $0x10] sm:$0xf]
  %v4372 = vld [vmem:[%s11 + $0x14] sm:$0xf]
  %v4373 = vld [vmem:[%s11 + $0x18] sm:$0xf]
  %v4374 = vld [vmem:[%s11 + $0x1c] sm:$0xf]
  %v4375 = vld [vmem:[%s11 + $0x20] sm:$0xf]
  %v4376 = vld [vmem:[%s11 + $0x24] sm:$0xf]
  %v4377 = vld [vmem:[%s11 + $0x28] sm:$0xf]
  %v4378 = vld [vmem:[%s11 + $0x2c] sm:$0xf]
  %v4379 = vld [vmem:[%s11 + $0x30] sm:$0xf]
  %v4380 = vld [vmem:[%s11 + $0x34] sm:$0xf]
  %v4381 = vld [vmem:[%s11 + $0x38] sm:$0xf]
  %v4382 = vld [vmem:[%s11 + $0x3c] sm:$0xf]
  %v4383 = vld [vmem:[%s11 + $0x40] sm:$0xf]
  %v4384 = vld [vmem:[%s11 + $0x44] sm:$0xf]
  %v4385 = vld [vmem:[%s11 + $0x48] sm:$0xf]
  %v4386 = vld [vmem:[%s11 + $0x4c] sm:$0xf]
  %v4387 = vld [vmem:[%s11 + $0x50] sm:$0xf]
  %v4388 = vld [vmem:[%s11 + $0x54] sm:$0xf]
  %v4389 = vld [vmem:[%s11 + $0x58] sm:$0xf]
  %v4390 = vld [vmem:[%s11 + $0x5c] sm:$0xf]
  %v4391 = vld [vmem:[%s11 + $0x60] sm:$0xf]
  %v4392 = vld [vmem:[%s11 + $0x64] sm:$0xf]
  %v4393 = vld [vmem:[%s11 + $0x68] sm:$0xf]
  %v4394 = vld [vmem:[%s11 + $0x6c] sm:$0xf]
  %v4395 = vld [vmem:[%s11 + $0x70] sm:$0xf]
  %v4396 = vld [vmem:[%s11 + $0x74] sm:$0xf]
  %v4397 = vld [vmem:[%s11 + $0x78] sm:$0xf]
  %v4398 = vld [vmem:[%s11 + $0x7c] sm:$0xf]
  %v4399 = vld [vmem:[%s11 + $0x80] sm:$0xf]
  %v4400 = vld [vmem:[%s11 + $0x84] sm:$0xf]
  %v4401 = vld [vmem:[%s11 + $0x88] sm:$0xf]
  %v4402 = vld [vmem:[%s11 + $0x8c] sm:$0xf]
  %v4403 = vld [vmem:[%s11 + $0x90] sm:$0xf]
  %v4404 = vld [vmem:[%s11 + $0x94] sm:$0xf]
  %v4405 = vld [vmem:[%s11 + $0x98] sm:$0xf]
  %v4406 = vld [vmem:[%s11 + $0x9c] sm:$0xf]
  %v4407 = vld [vmem:[%s11 + $0xa0] sm:$0xf]
  %v4408 = vld [vmem:[%s11 + $0xa4] sm:$0xf]
  %v4409 = vld [vmem:[%s11 + $0xa8] sm:$0xf]
  %v4410 = vld [vmem:[%s11 + $0xac] sm:$0xf]
  %v4411 = vld [vmem:[%s11 + $0xb0] sm:$0xf]
  %v4412 = vld [vmem:[%s11 + $0xb4] sm:$0xf]
  %v4413 = vld [vmem:[%s11 + $0xb8] sm:$0xf]
  %v4414 = vld [vmem:[%s11 + $0xbc] sm:$0xf]
  %v4415 = vld [vmem:[%s11 + $0xc0] sm:$0xf]
  %v4416 = vld [vmem:[%s11 + $0xc4] sm:$0xf]
  %v4417 = vld [vmem:[%s11 + $0xc8] sm:$0xf]
  %v4418 = vld [vmem:[%s11 + $0xcc] sm:$0xf]
  %v4419 = vld [vmem:[%s11 + $0xd0] sm:$0xf]
  %v4420 = vld [vmem:[%s11 + $0xd4] sm:$0xf]
  %v4421 = vld [vmem:[%s11 + $0xd8] sm:$0xf]
  %v4422 = vld [vmem:[%s11 + $0xdc] sm:$0xf]
  %v4423 = vld [vmem:[%s11 + $0xe0] sm:$0xf]
  %v4424 = vld [vmem:[%s11 + $0xe4] sm:$0xf]
  %v4425 = vld [vmem:[%s11 + $0xe8] sm:$0xf]
  %v4426 = vld [vmem:[%s11 + $0xec] sm:$0xf]
  %v4427 = vld [vmem:[%s11 + $0xf0] sm:$0xf]
  %v4428 = vld [vmem:[%s11 + $0xf4] sm:$0xf]
  %v4429 = vld [vmem:[%s11 + $0xf8] sm:$0xf]
  %v4430 = vld [vmem:[%s11 + $0xfc] sm:$0xf]
  %v4431 = vld [vmem:[%s11 + $0x100] sm:$0xf]
  %v4432 = vld [vmem:[%s11 + $0x104] sm:$0xf]
  %v4433 = vld [vmem:[%s11 + $0x108] sm:$0xf]
  %v4434 = vld [vmem:[%s11 + $0x10c] sm:$0xf]
  %v4435 = vld [vmem:[%s11 + $0x110] sm:$0xf]
  %v4436 = vld [vmem:[%s11 + $0x114] sm:$0xf]
  %v4437 = vld [vmem:[%s11 + $0x118] sm:$0xf]
  %v4438 = vld [vmem:[%s11 + $0x11c] sm:$0xf]
  %v4439 = vld [vmem:[%s11 + $0x120] sm:$0xf]
  %v4440 = vld [vmem:[%s11 + $0x124] sm:$0xf]
  %v4441 = vld [vmem:[%s11 + $0x128] sm:$0xf]
  %v4442 = vld [vmem:[%s11 + $0x12c] sm:$0xf]
  %v4443 = vld [vmem:[%s11 + $0x130] sm:$0xf]
  %v4444 = vld [vmem:[%s11 + $0x134] sm:$0xf]
  %v4445 = vld [vmem:[%s11 + $0x138] sm:$0xf]
  %v4446 = vld [vmem:[%s11 + $0x13c] sm:$0xf]
  %v4447 = vld [vmem:[%s11 + $0x140] sm:$0xf]
  %v4448 = vld [vmem:[%s11 + $0x144] sm:$0xf]
  %v4449 = vld [vmem:[%s11 + $0x148] sm:$0xf]
  %v4450 = vld [vmem:[%s11 + $0x14c] sm:$0xf]
  %v4451 = vld [vmem:[%s11 + $0x150] sm:$0xf]
  %v4452 = vld [vmem:[%s11 + $0x154] sm:$0xf]
  %v4453 = vld [vmem:[%s11 + $0x158] sm:$0xf]
  %v4454 = vld [vmem:[%s11 + $0x15c] sm:$0xf]
  %v4455 = vld [vmem:[%s11 + $0x160] sm:$0xf]
  %v4456 = vld [vmem:[%s11 + $0x164] sm:$0xf]
  %v4457 = vld [vmem:[%s11 + $0x168] sm:$0xf]
  %v4458 = vld [vmem:[%s11 + $0x16c] sm:$0xf]
  %v4459 = vld [vmem:[%s11 + $0x170] sm:$0xf]
  %v4460 = vld [vmem:[%s11 + $0x174] sm:$0xf]
  %v4461 = vld [vmem:[%s11 + $0x178] sm:$0xf]
  %v4462 = vld [vmem:[%s11 + $0x17c] sm:$0xf]
  %v4463 = vld [vmem:[%s11 + $0x180] sm:$0xf]
  %v4464 = vld [vmem:[%s11 + $0x184] sm:$0xf]
  %v4465 = vld [vmem:[%s11 + $0x188] sm:$0xf]
  %v4466 = vld [vmem:[%s11 + $0x18c] sm:$0xf]
  %v4467 = vld [vmem:[%s11 + $0x190] sm:$0xf]
  %v4468 = vld [vmem:[%s11 + $0x194] sm:$0xf]
  %v4469 = vld [vmem:[%s11 + $0x198] sm:$0xf]
  %v4470 = vld [vmem:[%s11 + $0x19c] sm:$0xf]
  %v4471 = vld [vmem:[%s11 + $0x1a0] sm:$0xf]
  %v4472 = vld [vmem:[%s11 + $0x1a4] sm:$0xf]
  %v4473 = vld [vmem:[%s11 + $0x1a8] sm:$0xf]
  %v4474 = vld [vmem:[%s11 + $0x1ac] sm:$0xf]
  %v4475 = vld [vmem:[%s11 + $0x1b0] sm:$0xf]
  %v4476 = vld [vmem:[%s11 + $0x1b4] sm:$0xf]
  %v4477 = vld [vmem:[%s11 + $0x1b8] sm:$0xf]
  %v4478 = vld [vmem:[%s11 + $0x1bc] sm:$0xf]
  %v4479 = vld [vmem:[%s12] sm:$0x1]
  %v4481 = vlaneseq
  %v4482 = vshrl.u32 %v4481, 7
  %v4483 = vsub.s32 0, %v4482
  %v4484 = vrot.slane %v4479, %v4483
  %v4598 = vunpack.c.l.b16 %v4367
  %v4599 = vunpack.c.l.b16 %v4368
  %v4600 = vunpack.c.l.b16 %v4369
  %v4601 = vunpack.c.l.b16 %v4370
  %v4602 = vunpack.c.l.b16 %v4371
  %v4603 = vunpack.c.l.b16 %v4372
  %v4604 = vunpack.c.l.b16 %v4373
  %v4605 = vunpack.c.l.b16 %v4374
  %v4606 = vunpack.c.l.b16 %v4375
  %v4607 = vunpack.c.l.b16 %v4376
  %v4608 = vunpack.c.l.b16 %v4377
  %v4609 = vunpack.c.l.b16 %v4378
  %v4610 = vunpack.c.l.b16 %v4379
  %v4611 = vunpack.c.l.b16 %v4380
  %v4612 = vunpack.c.l.b16 %v4381
  %v4613 = vunpack.c.l.b16 %v4382
  %v4614 = vunpack.c.l.b16 %v4383
  %v4615 = vunpack.c.l.b16 %v4384
  %v4616 = vunpack.c.l.b16 %v4385
  %v4617 = vunpack.c.l.b16 %v4386
  %v4618 = vunpack.c.l.b16 %v4387
  %v4619 = vunpack.c.l.b16 %v4388
  %v4620 = vunpack.c.l.b16 %v4389
  %v4621 = vunpack.c.l.b16 %v4390
  %v4622 = vunpack.c.l.b16 %v4391
  %v4623 = vunpack.c.l.b16 %v4392
  %v4624 = vunpack.c.l.b16 %v4393
  %v4625 = vunpack.c.l.b16 %v4394
  %v4626 = vunpack.c.l.b16 %v4395
  %v4627 = vunpack.c.l.b16 %v4396
  %v4628 = vunpack.c.l.b16 %v4397
  %v4629 = vunpack.c.l.b16 %v4398
  %v4630 = vunpack.c.l.b16 %v4399
  %v4631 = vunpack.c.l.b16 %v4400
  %v4632 = vunpack.c.l.b16 %v4401
  %v4633 = vunpack.c.l.b16 %v4402
  %v4634 = vunpack.c.l.b16 %v4403
  %v4635 = vunpack.c.l.b16 %v4404
  %v4636 = vunpack.c.l.b16 %v4405
  %v4637 = vunpack.c.l.b16 %v4406
  %v4638 = vunpack.c.l.b16 %v4407
  %v4639 = vunpack.c.l.b16 %v4408
  %v4640 = vunpack.c.l.b16 %v4409
  %v4641 = vunpack.c.l.b16 %v4410
  %v4642 = vunpack.c.l.b16 %v4411
  %v4643 = vunpack.c.l.b16 %v4412
  %v4644 = vunpack.c.l.b16 %v4413
  %v4645 = vunpack.c.l.b16 %v4414
  %v4646 = vunpack.c.l.b16 %v4415
  %v4647 = vunpack.c.l.b16 %v4416
  %v4648 = vunpack.c.l.b16 %v4417
  %v4649 = vunpack.c.l.b16 %v4418
  %v4650 = vunpack.c.l.b16 %v4419
  %v4651 = vunpack.c.l.b16 %v4420
  %v4652 = vunpack.c.l.b16 %v4421
  %v4653 = vunpack.c.l.b16 %v4422
  %v4654 = vunpack.c.l.b16 %v4423
  %v4655 = vunpack.c.l.b16 %v4424
  %v4656 = vunpack.c.l.b16 %v4425
  %v4657 = vunpack.c.l.b16 %v4426
  %v4658 = vunpack.c.l.b16 %v4427
  %v4659 = vunpack.c.l.b16 %v4428
  %v4660 = vunpack.c.l.b16 %v4429
  %v4661 = vunpack.c.l.b16 %v4430
  %v4662 = vunpack.c.l.b16 %v4431
  %v4663 = vunpack.c.l.b16 %v4432
  %v4664 = vunpack.c.l.b16 %v4433
  %v4665 = vunpack.c.l.b16 %v4434
  %v4666 = vunpack.c.l.b16 %v4435
  %v4667 = vunpack.c.l.b16 %v4436
  %v4668 = vunpack.c.l.b16 %v4437
  %v4669 = vunpack.c.l.b16 %v4438
  %v4670 = vunpack.c.l.b16 %v4439
  %v4671 = vunpack.c.l.b16 %v4440
  %v4672 = vunpack.c.l.b16 %v4441
  %v4673 = vunpack.c.l.b16 %v4442
  %v4674 = vunpack.c.l.b16 %v4443
  %v4675 = vunpack.c.l.b16 %v4444
  %v4676 = vunpack.c.l.b16 %v4445
  %v4677 = vunpack.c.l.b16 %v4446
  %v4678 = vunpack.c.l.b16 %v4447
  %v4679 = vunpack.c.l.b16 %v4448
  %v4680 = vunpack.c.l.b16 %v4449
  %v4681 = vunpack.c.l.b16 %v4450
  %v4682 = vunpack.c.l.b16 %v4451
  %v4683 = vunpack.c.l.b16 %v4452
  %v4684 = vunpack.c.l.b16 %v4453
  %v4685 = vunpack.c.l.b16 %v4454
  %v4686 = vunpack.c.l.b16 %v4455
  %v4687 = vunpack.c.l.b16 %v4456
  %v4688 = vunpack.c.l.b16 %v4457
  %v4689 = vunpack.c.l.b16 %v4458
  %v4690 = vunpack.c.l.b16 %v4459
  %v4691 = vunpack.c.l.b16 %v4460
  %v4692 = vunpack.c.l.b16 %v4461
  %v4693 = vunpack.c.l.b16 %v4462
  %v4694 = vunpack.c.l.b16 %v4463
  %v4695 = vunpack.c.l.b16 %v4464
  %v4696 = vunpack.c.l.b16 %v4465
  %v4697 = vunpack.c.l.b16 %v4466
  %v4698 = vunpack.c.l.b16 %v4467
  %v4699 = vunpack.c.l.b16 %v4468
  %v4700 = vunpack.c.l.b16 %v4469
  %v4701 = vunpack.c.l.b16 %v4470
  %v4702 = vunpack.c.l.b16 %v4471
  %v4703 = vunpack.c.l.b16 %v4472
  %v4704 = vunpack.c.l.b16 %v4473
  %v4705 = vunpack.c.l.b16 %v4474
  %v4706 = vunpack.c.l.b16 %v4475
  %v4707 = vunpack.c.l.b16 %v4476
  %v4708 = vunpack.c.l.b16 %v4477
  %v4709 = vunpack.c.l.b16 %v4478
  %v4710 = vpack.c.b16 %v4599, %v4598
  %v4711 = vpack.c.b16 %v4601, %v4600
  %v4712 = vpack.c.b16 %v4603, %v4602
  %v4713 = vpack.c.b16 %v4605, %v4604
  %v4714 = vpack.c.b16 %v4607, %v4606
  %v4715 = vpack.c.b16 %v4609, %v4608
  %v4716 = vpack.c.b16 %v4611, %v4610
  %v4717 = vpack.c.b16 %v4613, %v4612
  %v4718 = vpack.c.b16 %v4615, %v4614
  %v4719 = vpack.c.b16 %v4617, %v4616
  %v4720 = vpack.c.b16 %v4619, %v4618
  %v4721 = vpack.c.b16 %v4621, %v4620
  %v4722 = vpack.c.b16 %v4623, %v4622
  %v4723 = vpack.c.b16 %v4625, %v4624
  %v4724 = vpack.c.b16 %v4627, %v4626
  %v4725 = vpack.c.b16 %v4629, %v4628
  %v4726 = vpack.c.b16 %v4631, %v4630
  %v4727 = vpack.c.b16 %v4633, %v4632
  %v4728 = vpack.c.b16 %v4635, %v4634
  %v4729 = vpack.c.b16 %v4637, %v4636
  %v4730 = vpack.c.b16 %v4639, %v4638
  %v4731 = vpack.c.b16 %v4641, %v4640
  %v4732 = vpack.c.b16 %v4643, %v4642
  %v4733 = vpack.c.b16 %v4645, %v4644
  %v4734 = vpack.c.b16 %v4647, %v4646
  %v4735 = vpack.c.b16 %v4649, %v4648
  %v4736 = vpack.c.b16 %v4651, %v4650
  %v4737 = vpack.c.b16 %v4653, %v4652
  %v4738 = vpack.c.b16 %v4655, %v4654
  %v4739 = vpack.c.b16 %v4657, %v4656
  %v4740 = vpack.c.b16 %v4659, %v4658
  %v4741 = vpack.c.b16 %v4661, %v4660
  %v4742 = vpack.c.b16 %v4663, %v4662
  %v4743 = vpack.c.b16 %v4665, %v4664
  %v4744 = vpack.c.b16 %v4667, %v4666
  %v4745 = vpack.c.b16 %v4669, %v4668
  %v4746 = vpack.c.b16 %v4671, %v4670
  %v4747 = vpack.c.b16 %v4673, %v4672
  %v4748 = vpack.c.b16 %v4675, %v4674
  %v4749 = vpack.c.b16 %v4677, %v4676
  %v4750 = vpack.c.b16 %v4679, %v4678
  %v4751 = vpack.c.b16 %v4681, %v4680
  %v4752 = vpack.c.b16 %v4683, %v4682
  %v4753 = vpack.c.b16 %v4685, %v4684
  %v4754 = vpack.c.b16 %v4687, %v4686
  %v4755 = vpack.c.b16 %v4689, %v4688
  %v4756 = vpack.c.b16 %v4691, %v4690
  %v4757 = vpack.c.b16 %v4693, %v4692
  %v4758 = vpack.c.b16 %v4695, %v4694
  %v4759 = vpack.c.b16 %v4697, %v4696
  %v4760 = vpack.c.b16 %v4699, %v4698
  %v4761 = vpack.c.b16 %v4701, %v4700
  %v4762 = vpack.c.b16 %v4703, %v4702
  %v4763 = vpack.c.b16 %v4705, %v4704
  %v4764 = vpack.c.b16 %v4707, %v4706
  %v4765 = vpack.c.b16 %v4709, %v4708
  %4822 = vmatprep.subr.bf16.mxu0 0
  %4823 = vmatpush1.bf16.msra.mxu0 %v4710
  %4824 = vmatprep.subr.bf16.mxu0 0
  %4825 = vmatpush1.bf16.msra.mxu0 %v4711
  %4826 = vmatprep.subr.bf16.mxu0 0
  %4827 = vmatpush1.bf16.msra.mxu0 %v4712
  %4828 = vmatprep.subr.bf16.mxu0 0
  %4829 = vmatpush1.bf16.msra.mxu0 %v4713
  %4830 = vmatprep.subr.bf16.mxu0 0
  %4831 = vmatpush1.bf16.msra.mxu0 %v4714
  %4832 = vmatprep.subr.bf16.mxu0 0
  %4833 = vmatpush1.bf16.msra.mxu0 %v4715
  %4834 = vmatprep.subr.bf16.mxu0 0
  %4835 = vmatpush1.bf16.msra.mxu0 %v4716
  %4836 = vmatprep.subr.bf16.mxu0 0
  %4837 = vmatpush1.bf16.msra.mxu0 %v4717
  %4838 = vmatprep.subr.bf16.mxu0 0
  %4839 = vmatpush1.bf16.msra.mxu0 %v4718
  %4840 = vmatprep.subr.bf16.mxu0 0
  %4841 = vmatpush1.bf16.msra.mxu0 %v4719
  %4842 = vmatprep.subr.bf16.mxu0 0
  %4843 = vmatpush1.bf16.msra.mxu0 %v4720
  %4844 = vmatprep.subr.bf16.mxu0 0
  %4845 = vmatpush1.bf16.msra.mxu0 %v4721
  %4846 = vmatprep.subr.bf16.mxu0 0
  %4847 = vmatpush1.bf16.msra.mxu0 %v4722
  %4848 = vmatprep.subr.bf16.mxu0 0
  %4849 = vmatpush1.bf16.msra.mxu0 %v4723
  %4850 = vmatprep.subr.bf16.mxu0 0
  %4851 = vmatpush1.bf16.msra.mxu0 %v4724
  %4852 = vmatprep.subr.bf16.mxu0 0
  %4853 = vmatpush1.bf16.msra.mxu0 %v4725
  %4854 = vmatprep.mubr.bf16.mxu0 %v4354
  %4855 = vmatmul.mubr.bf16.gmra.mrb[0].mxu0 %v4353
  %v4856 = vpop.f32.mrb[0].mxu0
  %v4857 = vadd.f32 %v4484, %v4856
  %v4858 = vpop.f32.mrb[0].mxu0
  %v4859 = vpop.f32.mrb[0].mxu0
  %v4860 = vadd.f32 %v4484, %v4859
  %v4861 = vpop.f32.mrb[0].mxu0
  %4862 = vmatprep.mubr.bf16.mxu0 %v4361
  %4863 = vmatmul.mubr.bf16.gmra.mrb[0].mxu0 %v4360
  %v4864 = vpop.f32.mrb[0].mxu0
  %v4865 = vadd.f32 %v4484, %v4864
  %v4866 = vpop.f32.mrb[0].mxu0
  %v4867 = vpop.f32.mrb[0].mxu0
  %v4868 = vadd.f32 %v4484, %v4867
  %v4869 = vpop.f32.mrb[0].mxu0
  %4870 = vdwg.mxu0
  %4871 = vmatprep.subr.bf16.mxu0 0
  %4872 = vmatpush1.bf16.msra.mxu0 %v4726
  %4873 = vmatprep.subr.bf16.mxu0 0
  %4874 = vmatpush1.bf16.msra.mxu0 %v4727
  %4875 = vmatprep.subr.bf16.mxu0 0
  %4876 = vmatpush1.bf16.msra.mxu0 %v4728
  %4877 = vmatprep.subr.bf16.mxu0 0
  %4878 = vmatpush1.bf16.msra.mxu0 %v4729
  %4879 = vmatprep.subr.bf16.mxu0 0
  %4880 = vmatpush1.bf16.msra.mxu0 %v4730
  %4881 = vmatprep.subr.bf16.mxu0 0
  %4882 = vmatpush1.bf16.msra.mxu0 %v4731
  %4883 = vmatprep.subr.bf16.mxu0 0
  %4884 = vmatpush1.bf16.msra.mxu0 %v4732
  %4885 = vmatprep.subr.bf16.mxu0 0
  %4886 = vmatpush1.bf16.msra.mxu0 %v4733
  %4887 = vmatprep.subr.bf16.mxu0 0
  %4888 = vmatpush1.bf16.msra.mxu0 %v4734
  %4889 = vmatprep.subr.bf16.mxu0 0
  %4890 = vmatpush1.bf16.msra.mxu0 %v4735
  %4891 = vmatprep.subr.bf16.mxu0 0
  %4892 = vmatpush1.bf16.msra.mxu0 %v4736
  %4893 = vmatprep.subr.bf16.mxu0 0
  %4894 = vmatpush1.bf16.msra.mxu0 %v4737
  %4895 = vmatprep.subr.bf16.mxu0 0
  %4896 = vmatpush1.bf16.msra.mxu0 %v4738
  %4897 = vmatprep.subr.bf16.mxu0 0
  %4898 = vmatpush1.bf16.msra.mxu0 %v4739
  %4899 = vmatprep.subr.bf16.mxu0 0
  %4900 = vmatpush1.bf16.msra.mxu0 %v4740
  %4901 = vmatprep.subr.bf16.mxu0 0
  %4902 = vmatpush1.bf16.msra.mxu0 %v4741
  %4903 = vmatprep.mubr.bf16.mxu0 %v4356
  %4904 = vmatmul.mubr.bf16.gmra.mrb[0].mxu0 %v4355
  %v4905 = vpop.f32.mrb[0].mxu0
  %v4906 = vadd.f32 %v4857, %v4905
  %v4907 = vpop.f32.mrb[0].mxu0
  %v4908 = vpop.f32.mrb[0].mxu0
  %v4909 = vadd.f32 %v4860, %v4908
  %v4910 = vpop.f32.mrb[0].mxu0
  %4911 = vmatprep.mubr.bf16.mxu0 %v4363
  %4912 = vmatmul.mubr.bf16.gmra.mrb[0].mxu0 %v4362
  %v4913 = vpop.f32.mrb[0].mxu0
  %v4914 = vadd.f32 %v4865, %v4913
  %v4915 = vpop.f32.mrb[0].mxu0
  %v4916 = vpop.f32.mrb[0].mxu0
  %v4917 = vadd.f32 %v4868, %v4916
  %v4918 = vpop.f32.mrb[0].mxu0
  %4919 = vdwg.mxu0
  %4920 = vmatprep.subr.bf16.mxu0 0
  %4921 = vmatpush1.bf16.msra.mxu0 %v4742
  %4922 = vmatprep.subr.bf16.mxu0 0
  %4923 = vmatpush1.bf16.msra.mxu0 %v4743
  %4924 = vmatprep.subr.bf16.mxu0 0
  %4925 = vmatpush1.bf16.msra.mxu0 %v4744
  %4926 = vmatprep.subr.bf16.mxu0 0
  %4927 = vmatpush1.bf16.msra.mxu0 %v4745
  %4928 = vmatprep.subr.bf16.mxu0 0
  %4929 = vmatpush1.bf16.msra.mxu0 %v4746
  %4930 = vmatprep.subr.bf16.mxu0 0
  %4931 = vmatpush1.bf16.msra.mxu0 %v4747
  %4932 = vmatprep.subr.bf16.mxu0 0
  %4933 = vmatpush1.bf16.msra.mxu0 %v4748
  %4934 = vmatprep.subr.bf16.mxu0 0
  %4935 = vmatpush1.bf16.msra.mxu0 %v4749
  %4936 = vmatprep.subr.bf16.mxu0 0
  %4937 = vmatpush1.bf16.msra.mxu0 %v4750
  %4938 = vmatprep.subr.bf16.mxu0 0
  %4939 = vmatpush1.bf16.msra.mxu0 %v4751
  %4940 = vmatprep.subr.bf16.mxu0 0
  %4941 = vmatpush1.bf16.msra.mxu0 %v4752
  %4942 = vmatprep.subr.bf16.mxu0 0
  %4943 = vmatpush1.bf16.msra.mxu0 %v4753
  %4944 = vmatprep.subr.bf16.mxu0 0
  %4945 = vmatpush1.bf16.msra.mxu0 %v4754
  %4946 = vmatprep.subr.bf16.mxu0 0
  %4947 = vmatpush1.bf16.msra.mxu0 %v4755
  %4948 = vmatprep.subr.bf16.mxu0 0
  %4949 = vmatpush1.bf16.msra.mxu0 %v4756
  %4950 = vmatprep.subr.bf16.mxu0 0
  %4951 = vmatpush1.bf16.msra.mxu0 %v4757
  %4952 = vmatprep.mubr.bf16.mxu0 %v4358
  %4953 = vmatmul.mubr.bf16.gmra.mrb[0].mxu0 %v4357
  %v4954 = vpop.f32.mrb[0].mxu0
  %v4955 = vadd.f32 %v4906, %v4954
  %v4956 = vpop.f32.mrb[0].mxu0
  %v4957 = vpop.f32.mrb[0].mxu0
  %v4958 = vadd.f32 %v4909, %v4957
  %v4959 = vpop.f32.mrb[0].mxu0
  %4960 = vmatprep.mubr.bf16.mxu0 %v4365
  %4961 = vmatmul.mubr.bf16.gmra.mrb[0].mxu0 %v4364
  %v4962 = vpop.f32.mrb[0].mxu0
  %v4963 = vadd.f32 %v4914, %v4962
  %v4964 = vpop.f32.mrb[0].mxu0
  %v4965 = vpop.f32.mrb[0].mxu0
  %v4966 = vadd.f32 %v4917, %v4965
  %v4967 = vpop.f32.mrb[0].mxu0
  %4968 = vdwg.mxu0
  %4969 = vmatprep.subr.bf16.mxu0 0
  %4970 = vmatpush1.bf16.msra.mxu0 %v4758
  %4971 = vmatprep.subr.bf16.mxu0 0
  %4972 = vmatpush1.bf16.msra.mxu0 %v4759
  %4973 = vmatprep.subr.bf16.mxu0 0
  %4974 = vmatpush1.bf16.msra.mxu0 %v4760
  %4975 = vmatprep.subr.bf16.mxu0 0
  %4976 = vmatpush1.bf16.msra.mxu0 %v4761
  %4977 = vmatprep.subr.bf16.mxu0 0
  %4978 = vmatpush1.bf16.msra.mxu0 %v4762
  %4979 = vmatprep.subr.bf16.mxu0 0
  %4980 = vmatpush1.bf16.msra.mxu0 %v4763
  %4981 = vmatprep.subr.bf16.mxu0 0
  %4982 = vmatpush1.bf16.msra.mxu0 %v4764
  %4983 = vmatprep.subr.bf16.mxu0 0
  %4984 = vmatpush1.bf16.msra.mxu0 %v4765
  %4985 = vmatprep.subr.bf16.mxu0 0
  %4986 = vmatpush1.bf16.msra.mxu0 0
  %4987 = vmatprep.subr.bf16.mxu0 0
  %4988 = vmatpush1.bf16.msra.mxu0 0
  %4989 = vmatprep.subr.bf16.mxu0 0
  %4990 = vmatpush1.bf16.msra.mxu0 0
  %4991 = vmatprep.subr.bf16.mxu0 0
  %4992 = vmatpush1.bf16.msra.mxu0 0
  %4993 = vmatprep.subr.bf16.mxu0 0
  %4994 = vmatpush1.bf16.msra.mxu0 0
  %4995 = vmatprep.subr.bf16.mxu0 0
  %4996 = vmatpush1.bf16.msra.mxu0 0
  %4997 = vmatprep.subr.bf16.mxu0 0
  %4998 = vmatpush1.bf16.msra.mxu0 0
  %4999 = vmatprep.subr.bf16.mxu0 0
  %5000 = vmatpush1.bf16.msra.mxu0 0
  %5001 = vmatprep.mubr.bf16.mxu0 0
  %5002 = vmatmul.mubr.bf16.gmra.mrb[0].mxu0 %v4359
  %v5003 = vpop.f32.mrb[0].mxu0
  %v5004 = vadd.f32 %v4955, %v5003
  %v5005 = vpop.f32.mrb[0].mxu0
  %v5006 = vpop.f32.mrb[0].mxu0
  %v5007 = vadd.f32 %v4958, %v5006
  %v5008 = vpop.f32.mrb[0].mxu0
  %5009 = vmatprep.mubr.bf16.mxu0 0
  %5010 = vmatmul.mubr.bf16.gmra.mrb[0].mxu0 %v4366
  %v5011 = vpop.f32.mrb[0].mxu0
  %v5012 = vadd.f32 %v4963, %v5011
  %v5013 = vpop.f32.mrb[0].mxu0
  %v5014 = vpop.f32.mrb[0].mxu0
  %v5015 = vadd.f32 %v4966, %v5014
  %v5016 = vpop.f32.mrb[0].mxu0
  %5017 = vdwg.mxu0
  %v5018 = vmax.f32 %v5004, 0.0
  %v5019 = vmax.f32 %v5007, 0.0
  %v5020 = vmax.f32 %v5012, 0.0
  %v5021 = vmax.f32 %v5015, 0.0
  %v5022 = vpack.c.bf16 %v5019, %v5018
  %v5023 = vpack.c.bf16 %v5021, %v5020
  %5024 = vst.msk [vmem:[#allocation2 + $0x8] sm:$0xff] %vm1454, %v5022
  %5025 = vst.msk [vmem:[#allocation2 + $0x10] sm:$0xff] %vm1454, %v5023
  %v5026 = vld [vmem:[#allocation2] sm:$0xfc]
  %v5027 = vld [vmem:[#allocation2 + $0x8] sm:$0xff]
  %v5028 = vld [vmem:[#allocation2 + $0x10] sm:$0x3]
  %v5029 = vsel %vm4160, %v5026, 0
  %v5030 = vsel %vm4161, %v5027, 0
  %v5031 = vsel %vm4162, %v5028, 0
  %v5035 = vrot.slane %v5029, 2
  %v5036 = vrot.slane %v5030, 2
  %v5037 = vsel %vm2447, %v5035, %v5036
  %v5038 = vrot.slane %v5031, 2
  %v5039 = vsel %vm2447, %v5036, %v5038
  %5042 = vst [vmem:[#allocation3] sm:$0xff] %v5037
  %5043 = vst [vmem:[#allocation3 + $0x38] sm:$0xff] %v5039
  %v5044 = vld [vmem:[#allocation2] sm:$0xf0]
  %v5045 = vld [vmem:[#allocation2 + $0x8] sm:$0xff]
  %v5046 = vld [vmem:[#allocation2 + $0x10] sm:$0xf]
  %v5047 = vsel %vm4204, %v5044, 0
  %v5048 = vsel %vm4205, %v5045, 0
  %v5049 = vsel %vm4206, %v5046, 0
  %v5053 = vrot.slane %v5047, 4
  %v5054 = vrot.slane %v5048, 4
  %v5055 = vsel %vm4213, %v5053, %v5054
  %v5056 = vrot.slane %v5049, 4
  %v5057 = vsel %vm4213, %v5054, %v5056
  %5060 = vst [vmem:[#allocation3 + $0x8] sm:$0xff] %v5055
  %5061 = vst [vmem:[#allocation3 + $0x40] sm:$0xff] %v5057
  %v5062 = vld [vmem:[#allocation2] sm:$0xc0]
  %v5063 = vld [vmem:[#allocation2 + $0x8] sm:$0xff]
  %v5064 = vld [vmem:[#allocation2 + $0x10] sm:$0x3f]
  %v5065 = vsel %vm2451, %v5062, 0
  %v5066 = vsel %vm2452, %v5063, 0
  %v5067 = vsel %vm2453, %v5064, 0
  %v5071 = vrot.slane %v5065, 6
  %v5072 = vrot.slane %v5066, 6
  %v5073 = vsel %vm2460, %v5071, %v5072
  %v5074 = vrot.slane %v5067, 6
  %v5075 = vsel %vm2460, %v5072, %v5074
  %5078 = vst [vmem:[#allocation3 + $0x10] sm:$0xff] %v5073
  %5079 = vst [vmem:[#allocation3 + $0x48] sm:$0xff] %v5075
  %v5080 = vld [vmem:[#allocation2 + $0x8] sm:$0xff]
  %v5081 = vld [vmem:[#allocation2 + $0x10] sm:$0xff]
  %5082 = vst [vmem:[#allocation3 + $0x18] sm:$0xff] %v5080
  %5083 = vst [vmem:[#allocation3 + $0x50] sm:$0xff] %v5081
  %v5084 = vld [vmem:[#allocation2 + $0x8] sm:$0xfc]
  %v5085 = vld [vmem:[#allocation2 + $0x10] sm:$0xff]
  %v5086 = vld [vmem:[#allocation2 + $0x18] sm:$0x3]
  %v5087 = vsel %vm2538, %v5084, 0
  %v5088 = vsel %vm2539, %v5085, 0
  %v5089 = vsel %vm2540, %v5086, 0
  %v5093 = vrot.slane %v5087, 2
  %v5094 = vrot.slane %v5088, 2
  %v5095 = vsel %vm2447, %v5093, %v5094
  %v5096 = vrot.slane %v5089, 2
  %v5097 = vsel %vm2447, %v5094, %v5096
  %5100 = vst [vmem:[#allocation3 + $0x20] sm:$0xff] %v5095
  %5101 = vst [vmem:[#allocation3 + $0x58] sm:$0xff] %v5097
  %v5102 = vld [vmem:[#allocation2 + $0x8] sm:$0xf0]
  %v5103 = vld [vmem:[#allocation2 + $0x10] sm:$0xff]
  %v5104 = vld [vmem:[#allocation2 + $0x18] sm:$0xf]
  %v5105 = vsel %vm4289, %v5102, 0
  %v5106 = vsel %vm4290, %v5103, 0
  %v5107 = vsel %vm4291, %v5104, 0
  %v5111 = vrot.slane %v5105, 4
  %v5112 = vrot.slane %v5106, 4
  %v5113 = vsel %vm4213, %v5111, %v5112
  %v5114 = vrot.slane %v5107, 4
  %v5115 = vsel %vm4213, %v5112, %v5114
  %5118 = vst [vmem:[#allocation3 + $0x28] sm:$0xff] %v5113
  %5119 = vst [vmem:[#allocation3 + $0x60] sm:$0xff] %v5115
  %v5120 = vld [vmem:[#allocation2 + $0x8] sm:$0xc0]
  %v5121 = vld [vmem:[#allocation2 + $0x10] sm:$0xff]
  %v5122 = vld [vmem:[#allocation2 + $0x18] sm:$0x3f]
  %v5123 = vsel %vm4335, %v5120, 0
  %v5124 = vsel %vm4336, %v5121, 0
  %v5125 = vsel %vm4337, %v5122, 0
  %v5129 = vrot.slane %v5123, 6
  %v5130 = vrot.slane %v5124, 6
  %v5131 = vsel %vm2460, %v5129, %v5130
  %v5132 = vrot.slane %v5125, 6
  %v5133 = vsel %vm2460, %v5130, %v5132
  %5136 = vst [vmem:[#allocation3 + $0x30] sm:$0xff] %v5131
  %5137 = vst [vmem:[#allocation3 + $0x68] sm:$0xff] %v5133
  %v5138 = vld [vmem:[#allocation3] sm:$0xff]
  %v5139 = vld [vmem:[#allocation3 + $0x8] sm:$0xff]
  %v5140 = vld [vmem:[#allocation3 + $0x10] sm:$0xff]
  %v5141 = vld [vmem:[#allocation3 + $0x18] sm:$0xff]
  %v5142 = vld [vmem:[#allocation3 + $0x20] sm:$0xff]
  %v5143 = vld [vmem:[#allocation3 + $0x28] sm:$0xff]
  %v5144 = vld [vmem:[#allocation3 + $0x30] sm:$0xff]
  %v5145 = vld [vmem:[#allocation3 + $0x38] sm:$0xff]
  %v5146 = vld [vmem:[#allocation3 + $0x40] sm:$0xff]
  %v5147 = vld [vmem:[#allocation3 + $0x48] sm:$0xff]
  %v5148 = vld [vmem:[#allocation3 + $0x50] sm:$0xff]
  %v5149 = vld [vmem:[#allocation3 + $0x58] sm:$0xff]
  %v5150 = vld [vmem:[#allocation3 + $0x60] sm:$0xff]
  %v5151 = vld [vmem:[#allocation3 + $0x68] sm:$0xff]
  %v5152 = vld [vmem:[%s13] sm:$0xf]
  %v5153 = vld [vmem:[%s13 + $0x4] sm:$0xf]
  %v5154 = vld [vmem:[%s13 + $0x8] sm:$0xf]
  %v5155 = vld [vmem:[%s13 + $0xc] sm:$0xf]
  %v5156 = vld [vmem:[%s13 + $0x10] sm:$0xf]
  %v5157 = vld [vmem:[%s13 + $0x14] sm:$0xf]
  %v5158 = vld [vmem:[%s13 + $0x18] sm:$0xf]
  %v5159 = vld [vmem:[%s13 + $0x1c] sm:$0xf]
  %v5160 = vld [vmem:[%s13 + $0x20] sm:$0xf]
  %v5161 = vld [vmem:[%s13 + $0x24] sm:$0xf]
  %v5162 = vld [vmem:[%s13 + $0x28] sm:$0xf]
  %v5163 = vld [vmem:[%s13 + $0x2c] sm:$0xf]
  %v5164 = vld [vmem:[%s13 + $0x30] sm:$0xf]
  %v5165 = vld [vmem:[%s13 + $0x34] sm:$0xf]
  %v5166 = vld [vmem:[%s13 + $0x38] sm:$0xf]
  %v5167 = vld [vmem:[%s13 + $0x3c] sm:$0xf]
  %v5168 = vld [vmem:[%s13 + $0x40] sm:$0xf]
  %v5169 = vld [vmem:[%s13 + $0x44] sm:$0xf]
  %v5170 = vld [vmem:[%s13 + $0x48] sm:$0xf]
  %v5171 = vld [vmem:[%s13 + $0x4c] sm:$0xf]
  %v5172 = vld [vmem:[%s13 + $0x50] sm:$0xf]
  %v5173 = vld [vmem:[%s13 + $0x54] sm:$0xf]
  %v5174 = vld [vmem:[%s13 + $0x58] sm:$0xf]
  %v5175 = vld [vmem:[%s13 + $0x5c] sm:$0xf]
  %v5176 = vld [vmem:[%s13 + $0x60] sm:$0xf]
  %v5177 = vld [vmem:[%s13 + $0x64] sm:$0xf]
  %v5178 = vld [vmem:[%s13 + $0x68] sm:$0xf]
  %v5179 = vld [vmem:[%s13 + $0x6c] sm:$0xf]
  %v5180 = vld [vmem:[%s13 + $0x70] sm:$0xf]
  %v5181 = vld [vmem:[%s13 + $0x74] sm:$0xf]
  %v5182 = vld [vmem:[%s13 + $0x78] sm:$0xf]
  %v5183 = vld [vmem:[%s13 + $0x7c] sm:$0xf]
  %v5184 = vld [vmem:[%s13 + $0x80] sm:$0xf]
  %v5185 = vld [vmem:[%s13 + $0x84] sm:$0xf]
  %v5186 = vld [vmem:[%s13 + $0x88] sm:$0xf]
  %v5187 = vld [vmem:[%s13 + $0x8c] sm:$0xf]
  %v5188 = vld [vmem:[%s13 + $0x90] sm:$0xf]
  %v5189 = vld [vmem:[%s13 + $0x94] sm:$0xf]
  %v5190 = vld [vmem:[%s13 + $0x98] sm:$0xf]
  %v5191 = vld [vmem:[%s13 + $0x9c] sm:$0xf]
  %v5192 = vld [vmem:[%s13 + $0xa0] sm:$0xf]
  %v5193 = vld [vmem:[%s13 + $0xa4] sm:$0xf]
  %v5194 = vld [vmem:[%s13 + $0xa8] sm:$0xf]
  %v5195 = vld [vmem:[%s13 + $0xac] sm:$0xf]
  %v5196 = vld [vmem:[%s13 + $0xb0] sm:$0xf]
  %v5197 = vld [vmem:[%s13 + $0xb4] sm:$0xf]
  %v5198 = vld [vmem:[%s13 + $0xb8] sm:$0xf]
  %v5199 = vld [vmem:[%s13 + $0xbc] sm:$0xf]
  %v5200 = vld [vmem:[%s13 + $0xc0] sm:$0xf]
  %v5201 = vld [vmem:[%s13 + $0xc4] sm:$0xf]
  %v5202 = vld [vmem:[%s13 + $0xc8] sm:$0xf]
  %v5203 = vld [vmem:[%s13 + $0xcc] sm:$0xf]
  %v5204 = vld [vmem:[%s13 + $0xd0] sm:$0xf]
  %v5205 = vld [vmem:[%s13 + $0xd4] sm:$0xf]
  %v5206 = vld [vmem:[%s13 + $0xd8] sm:$0xf]
  %v5207 = vld [vmem:[%s13 + $0xdc] sm:$0xf]
  %v5208 = vld [vmem:[%s13 + $0xe0] sm:$0xf]
  %v5209 = vld [vmem:[%s13 + $0xe4] sm:$0xf]
  %v5210 = vld [vmem:[%s13 + $0xe8] sm:$0xf]
  %v5211 = vld [vmem:[%s13 + $0xec] sm:$0xf]
  %v5212 = vld [vmem:[%s13 + $0xf0] sm:$0xf]
  %v5213 = vld [vmem:[%s13 + $0xf4] sm:$0xf]
  %v5214 = vld [vmem:[%s13 + $0xf8] sm:$0xf]
  %v5215 = vld [vmem:[%s13 + $0xfc] sm:$0xf]
  %v5216 = vld [vmem:[%s13 + $0x100] sm:$0xf]
  %v5217 = vld [vmem:[%s13 + $0x104] sm:$0xf]
  %v5218 = vld [vmem:[%s13 + $0x108] sm:$0xf]
  %v5219 = vld [vmem:[%s13 + $0x10c] sm:$0xf]
  %v5220 = vld [vmem:[%s13 + $0x110] sm:$0xf]
  %v5221 = vld [vmem:[%s13 + $0x114] sm:$0xf]
  %v5222 = vld [vmem:[%s13 + $0x118] sm:$0xf]
  %v5223 = vld [vmem:[%s13 + $0x11c] sm:$0xf]
  %v5224 = vld [vmem:[%s13 + $0x120] sm:$0xf]
  %v5225 = vld [vmem:[%s13 + $0x124] sm:$0xf]
  %v5226 = vld [vmem:[%s13 + $0x128] sm:$0xf]
  %v5227 = vld [vmem:[%s13 + $0x12c] sm:$0xf]
  %v5228 = vld [vmem:[%s13 + $0x130] sm:$0xf]
  %v5229 = vld [vmem:[%s13 + $0x134] sm:$0xf]
  %v5230 = vld [vmem:[%s13 + $0x138] sm:$0xf]
  %v5231 = vld [vmem:[%s13 + $0x13c] sm:$0xf]
  %v5232 = vld [vmem:[%s13 + $0x140] sm:$0xf]
  %v5233 = vld [vmem:[%s13 + $0x144] sm:$0xf]
  %v5234 = vld [vmem:[%s13 + $0x148] sm:$0xf]
  %v5235 = vld [vmem:[%s13 + $0x14c] sm:$0xf]
  %v5236 = vld [vmem:[%s13 + $0x150] sm:$0xf]
  %v5237 = vld [vmem:[%s13 + $0x154] sm:$0xf]
  %v5238 = vld [vmem:[%s13 + $0x158] sm:$0xf]
  %v5239 = vld [vmem:[%s13 + $0x15c] sm:$0xf]
  %v5240 = vld [vmem:[%s13 + $0x160] sm:$0xf]
  %v5241 = vld [vmem:[%s13 + $0x164] sm:$0xf]
  %v5242 = vld [vmem:[%s13 + $0x168] sm:$0xf]
  %v5243 = vld [vmem:[%s13 + $0x16c] sm:$0xf]
  %v5244 = vld [vmem:[%s13 + $0x170] sm:$0xf]
  %v5245 = vld [vmem:[%s13 + $0x174] sm:$0xf]
  %v5246 = vld [vmem:[%s13 + $0x178] sm:$0xf]
  %v5247 = vld [vmem:[%s13 + $0x17c] sm:$0xf]
  %v5248 = vld [vmem:[%s13 + $0x180] sm:$0xf]
  %v5249 = vld [vmem:[%s13 + $0x184] sm:$0xf]
  %v5250 = vld [vmem:[%s13 + $0x188] sm:$0xf]
  %v5251 = vld [vmem:[%s13 + $0x18c] sm:$0xf]
  %v5252 = vld [vmem:[%s13 + $0x190] sm:$0xf]
  %v5253 = vld [vmem:[%s13 + $0x194] sm:$0xf]
  %v5254 = vld [vmem:[%s13 + $0x198] sm:$0xf]
  %v5255 = vld [vmem:[%s13 + $0x19c] sm:$0xf]
  %v5256 = vld [vmem:[%s13 + $0x1a0] sm:$0xf]
  %v5257 = vld [vmem:[%s13 + $0x1a4] sm:$0xf]
  %v5258 = vld [vmem:[%s13 + $0x1a8] sm:$0xf]
  %v5259 = vld [vmem:[%s13 + $0x1ac] sm:$0xf]
  %v5260 = vld [vmem:[%s13 + $0x1b0] sm:$0xf]
  %v5261 = vld [vmem:[%s13 + $0x1b4] sm:$0xf]
  %v5262 = vld [vmem:[%s13 + $0x1b8] sm:$0xf]
  %v5263 = vld [vmem:[%s13 + $0x1bc] sm:$0xf]
  %v5264 = vld [vmem:[%s14] sm:$0x1]
  %v5266 = vlaneseq
  %v5267 = vshrl.u32 %v5266, 7
  %v5268 = vsub.s32 0, %v5267
  %v5269 = vrot.slane %v5264, %v5268
  %v5383 = vunpack.c.l.b16 %v5152
  %v5384 = vunpack.c.l.b16 %v5153
  %v5385 = vunpack.c.l.b16 %v5154
  %v5386 = vunpack.c.l.b16 %v5155
  %v5387 = vunpack.c.l.b16 %v5156
  %v5388 = vunpack.c.l.b16 %v5157
  %v5389 = vunpack.c.l.b16 %v5158
  %v5390 = vunpack.c.l.b16 %v5159
  %v5391 = vunpack.c.l.b16 %v5160
  %v5392 = vunpack.c.l.b16 %v5161
  %v5393 = vunpack.c.l.b16 %v5162
  %v5394 = vunpack.c.l.b16 %v5163
  %v5395 = vunpack.c.l.b16 %v5164
  %v5396 = vunpack.c.l.b16 %v5165
  %v5397 = vunpack.c.l.b16 %v5166
  %v5398 = vunpack.c.l.b16 %v5167
  %v5399 = vunpack.c.l.b16 %v5168
  %v5400 = vunpack.c.l.b16 %v5169
  %v5401 = vunpack.c.l.b16 %v5170
  %v5402 = vunpack.c.l.b16 %v5171
  %v5403 = vunpack.c.l.b16 %v5172
  %v5404 = vunpack.c.l.b16 %v5173
  %v5405 = vunpack.c.l.b16 %v5174
  %v5406 = vunpack.c.l.b16 %v5175
  %v5407 = vunpack.c.l.b16 %v5176
  %v5408 = vunpack.c.l.b16 %v5177
  %v5409 = vunpack.c.l.b16 %v5178
  %v5410 = vunpack.c.l.b16 %v5179
  %v5411 = vunpack.c.l.b16 %v5180
  %v5412 = vunpack.c.l.b16 %v5181
  %v5413 = vunpack.c.l.b16 %v5182
  %v5414 = vunpack.c.l.b16 %v5183
  %v5415 = vunpack.c.l.b16 %v5184
  %v5416 = vunpack.c.l.b16 %v5185
  %v5417 = vunpack.c.l.b16 %v5186
  %v5418 = vunpack.c.l.b16 %v5187
  %v5419 = vunpack.c.l.b16 %v5188
  %v5420 = vunpack.c.l.b16 %v5189
  %v5421 = vunpack.c.l.b16 %v5190
  %v5422 = vunpack.c.l.b16 %v5191
  %v5423 = vunpack.c.l.b16 %v5192
  %v5424 = vunpack.c.l.b16 %v5193
  %v5425 = vunpack.c.l.b16 %v5194
  %v5426 = vunpack.c.l.b16 %v5195
  %v5427 = vunpack.c.l.b16 %v5196
  %v5428 = vunpack.c.l.b16 %v5197
  %v5429 = vunpack.c.l.b16 %v5198
  %v5430 = vunpack.c.l.b16 %v5199
  %v5431 = vunpack.c.l.b16 %v5200
  %v5432 = vunpack.c.l.b16 %v5201
  %v5433 = vunpack.c.l.b16 %v5202
  %v5434 = vunpack.c.l.b16 %v5203
  %v5435 = vunpack.c.l.b16 %v5204
  %v5436 = vunpack.c.l.b16 %v5205
  %v5437 = vunpack.c.l.b16 %v5206
  %v5438 = vunpack.c.l.b16 %v5207
  %v5439 = vunpack.c.l.b16 %v5208
  %v5440 = vunpack.c.l.b16 %v5209
  %v5441 = vunpack.c.l.b16 %v5210
  %v5442 = vunpack.c.l.b16 %v5211
  %v5443 = vunpack.c.l.b16 %v5212
  %v5444 = vunpack.c.l.b16 %v5213
  %v5445 = vunpack.c.l.b16 %v5214
  %v5446 = vunpack.c.l.b16 %v5215
  %v5447 = vunpack.c.l.b16 %v5216
  %v5448 = vunpack.c.l.b16 %v5217
  %v5449 = vunpack.c.l.b16 %v5218
  %v5450 = vunpack.c.l.b16 %v5219
  %v5451 = vunpack.c.l.b16 %v5220
  %v5452 = vunpack.c.l.b16 %v5221
  %v5453 = vunpack.c.l.b16 %v5222
  %v5454 = vunpack.c.l.b16 %v5223
  %v5455 = vunpack.c.l.b16 %v5224
  %v5456 = vunpack.c.l.b16 %v5225
  %v5457 = vunpack.c.l.b16 %v5226
  %v5458 = vunpack.c.l.b16 %v5227
  %v5459 = vunpack.c.l.b16 %v5228
  %v5460 = vunpack.c.l.b16 %v5229
  %v5461 = vunpack.c.l.b16 %v5230
  %v5462 = vunpack.c.l.b16 %v5231
  %v5463 = vunpack.c.l.b16 %v5232
  %v5464 = vunpack.c.l.b16 %v5233
  %v5465 = vunpack.c.l.b16 %v5234
  %v5466 = vunpack.c.l.b16 %v5235
  %v5467 = vunpack.c.l.b16 %v5236
  %v5468 = vunpack.c.l.b16 %v5237
  %v5469 = vunpack.c.l.b16 %v5238
  %v5470 = vunpack.c.l.b16 %v5239
  %v5471 = vunpack.c.l.b16 %v5240
  %v5472 = vunpack.c.l.b16 %v5241
  %v5473 = vunpack.c.l.b16 %v5242
  %v5474 = vunpack.c.l.b16 %v5243
  %v5475 = vunpack.c.l.b16 %v5244
  %v5476 = vunpack.c.l.b16 %v5245
  %v5477 = vunpack.c.l.b16 %v5246
  %v5478 = vunpack.c.l.b16 %v5247
  %v5479 = vunpack.c.l.b16 %v5248
  %v5480 = vunpack.c.l.b16 %v5249
  %v5481 = vunpack.c.l.b16 %v5250
  %v5482 = vunpack.c.l.b16 %v5251
  %v5483 = vunpack.c.l.b16 %v5252
  %v5484 = vunpack.c.l.b16 %v5253
  %v5485 = vunpack.c.l.b16 %v5254
  %v5486 = vunpack.c.l.b16 %v5255
  %v5487 = vunpack.c.l.b16 %v5256
  %v5488 = vunpack.c.l.b16 %v5257
  %v5489 = vunpack.c.l.b16 %v5258
  %v5490 = vunpack.c.l.b16 %v5259
  %v5491 = vunpack.c.l.b16 %v5260
  %v5492 = vunpack.c.l.b16 %v5261
  %v5493 = vunpack.c.l.b16 %v5262
  %v5494 = vunpack.c.l.b16 %v5263
  %v5495 = vpack.c.b16 %v5384, %v5383
  %v5496 = vpack.c.b16 %v5386, %v5385
  %v5497 = vpack.c.b16 %v5388, %v5387
  %v5498 = vpack.c.b16 %v5390, %v5389
  %v5499 = vpack.c.b16 %v5392, %v5391
  %v5500 = vpack.c.b16 %v5394, %v5393
  %v5501 = vpack.c.b16 %v5396, %v5395
  %v5502 = vpack.c.b16 %v5398, %v5397
  %v5503 = vpack.c.b16 %v5400, %v5399
  %v5504 = vpack.c.b16 %v5402, %v5401
  %v5505 = vpack.c.b16 %v5404, %v5403
  %v5506 = vpack.c.b16 %v5406, %v5405
  %v5507 = vpack.c.b16 %v5408, %v5407
  %v5508 = vpack.c.b16 %v5410, %v5409
  %v5509 = vpack.c.b16 %v5412, %v5411
  %v5510 = vpack.c.b16 %v5414, %v5413
  %v5511 = vpack.c.b16 %v5416, %v5415
  %v5512 = vpack.c.b16 %v5418, %v5417
  %v5513 = vpack.c.b16 %v5420, %v5419
  %v5514 = vpack.c.b16 %v5422, %v5421
  %v5515 = vpack.c.b16 %v5424, %v5423
  %v5516 = vpack.c.b16 %v5426, %v5425
  %v5517 = vpack.c.b16 %v5428, %v5427
  %v5518 = vpack.c.b16 %v5430, %v5429
  %v5519 = vpack.c.b16 %v5432, %v5431
  %v5520 = vpack.c.b16 %v5434, %v5433
  %v5521 = vpack.c.b16 %v5436, %v5435
  %v5522 = vpack.c.b16 %v5438, %v5437
  %v5523 = vpack.c.b16 %v5440, %v5439
  %v5524 = vpack.c.b16 %v5442, %v5441
  %v5525 = vpack.c.b16 %v5444, %v5443
  %v5526 = vpack.c.b16 %v5446, %v5445
  %v5527 = vpack.c.b16 %v5448, %v5447
  %v5528 = vpack.c.b16 %v5450, %v5449
  %v5529 = vpack.c.b16 %v5452, %v5451
  %v5530 = vpack.c.b16 %v5454, %v5453
  %v5531 = vpack.c.b16 %v5456, %v5455
  %v5532 = vpack.c.b16 %v5458, %v5457
  %v5533 = vpack.c.b16 %v5460, %v5459
  %v5534 = vpack.c.b16 %v5462, %v5461
  %v5535 = vpack.c.b16 %v5464, %v5463
  %v5536 = vpack.c.b16 %v5466, %v5465
  %v5537 = vpack.c.b16 %v5468, %v5467
  %v5538 = vpack.c.b16 %v5470, %v5469
  %v5539 = vpack.c.b16 %v5472, %v5471
  %v5540 = vpack.c.b16 %v5474, %v5473
  %v5541 = vpack.c.b16 %v5476, %v5475
  %v5542 = vpack.c.b16 %v5478, %v5477
  %v5543 = vpack.c.b16 %v5480, %v5479
  %v5544 = vpack.c.b16 %v5482, %v5481
  %v5545 = vpack.c.b16 %v5484, %v5483
  %v5546 = vpack.c.b16 %v5486, %v5485
  %v5547 = vpack.c.b16 %v5488, %v5487
  %v5548 = vpack.c.b16 %v5490, %v5489
  %v5549 = vpack.c.b16 %v5492, %v5491
  %v5550 = vpack.c.b16 %v5494, %v5493
  %5607 = vmatprep.subr.bf16.mxu0 0
  %5608 = vmatpush1.bf16.msra.mxu0 %v5495
  %5609 = vmatprep.subr.bf16.mxu0 0
  %5610 = vmatpush1.bf16.msra.mxu0 %v5496
  %5611 = vmatprep.subr.bf16.mxu0 0
  %5612 = vmatpush1.bf16.msra.mxu0 %v5497
  %5613 = vmatprep.subr.bf16.mxu0 0
  %5614 = vmatpush1.bf16.msra.mxu0 %v5498
  %5615 = vmatprep.subr.bf16.mxu0 0
  %5616 = vmatpush1.bf16.msra.mxu0 %v5499
  %5617 = vmatprep.subr.bf16.mxu0 0
  %5618 = vmatpush1.bf16.msra.mxu0 %v5500
  %5619 = vmatprep.subr.bf16.mxu0 0
  %5620 = vmatpush1.bf16.msra.mxu0 %v5501
  %5621 = vmatprep.subr.bf16.mxu0 0
  %5622 = vmatpush1.bf16.msra.mxu0 %v5502
  %5623 = vmatprep.subr.bf16.mxu0 0
  %5624 = vmatpush1.bf16.msra.mxu0 %v5503
  %5625 = vmatprep.subr.bf16.mxu0 0
  %5626 = vmatpush1.bf16.msra.mxu0 %v5504
  %5627 = vmatprep.subr.bf16.mxu0 0
  %5628 = vmatpush1.bf16.msra.mxu0 %v5505
  %5629 = vmatprep.subr.bf16.mxu0 0
  %5630 = vmatpush1.bf16.msra.mxu0 %v5506
  %5631 = vmatprep.subr.bf16.mxu0 0
  %5632 = vmatpush1.bf16.msra.mxu0 %v5507
  %5633 = vmatprep.subr.bf16.mxu0 0
  %5634 = vmatpush1.bf16.msra.mxu0 %v5508
  %5635 = vmatprep.subr.bf16.mxu0 0
  %5636 = vmatpush1.bf16.msra.mxu0 %v5509
  %5637 = vmatprep.subr.bf16.mxu0 0
  %5638 = vmatpush1.bf16.msra.mxu0 %v5510
  %5639 = vmatprep.mubr.bf16.mxu0 %v5139
  %5640 = vmatmul.mubr.bf16.gmra.mrb[0].mxu0 %v5138
  %v5641 = vpop.f32.mrb[0].mxu0
  %v5642 = vadd.f32 %v5269, %v5641
  %v5643 = vpop.f32.mrb[0].mxu0
  %v5644 = vpop.f32.mrb[0].mxu0
  %v5645 = vadd.f32 %v5269, %v5644
  %v5646 = vpop.f32.mrb[0].mxu0
  %5647 = vmatprep.mubr.bf16.mxu0 %v5146
  %5648 = vmatmul.mubr.bf16.gmra.mrb[0].mxu0 %v5145
  %v5649 = vpop.f32.mrb[0].mxu0
  %v5650 = vadd.f32 %v5269, %v5649
  %v5651 = vpop.f32.mrb[0].mxu0
  %v5652 = vpop.f32.mrb[0].mxu0
  %v5653 = vadd.f32 %v5269, %v5652
  %v5654 = vpop.f32.mrb[0].mxu0
  %5655 = vdwg.mxu0
  %5656 = vmatprep.subr.bf16.mxu0 0
  %5657 = vmatpush1.bf16.msra.mxu0 %v5511
  %5658 = vmatprep.subr.bf16.mxu0 0
  %5659 = vmatpush1.bf16.msra.mxu0 %v5512
  %5660 = vmatprep.subr.bf16.mxu0 0
  %5661 = vmatpush1.bf16.msra.mxu0 %v5513
  %5662 = vmatprep.subr.bf16.mxu0 0
  %5663 = vmatpush1.bf16.msra.mxu0 %v5514
  %5664 = vmatprep.subr.bf16.mxu0 0
  %5665 = vmatpush1.bf16.msra.mxu0 %v5515
  %5666 = vmatprep.subr.bf16.mxu0 0
  %5667 = vmatpush1.bf16.msra.mxu0 %v5516
  %5668 = vmatprep.subr.bf16.mxu0 0
  %5669 = vmatpush1.bf16.msra.mxu0 %v5517
  %5670 = vmatprep.subr.bf16.mxu0 0
  %5671 = vmatpush1.bf16.msra.mxu0 %v5518
  %5672 = vmatprep.subr.bf16.mxu0 0
  %5673 = vmatpush1.bf16.msra.mxu0 %v5519
  %5674 = vmatprep.subr.bf16.mxu0 0
  %5675 = vmatpush1.bf16.msra.mxu0 %v5520
  %5676 = vmatprep.subr.bf16.mxu0 0
  %5677 = vmatpush1.bf16.msra.mxu0 %v5521
  %5678 = vmatprep.subr.bf16.mxu0 0
  %5679 = vmatpush1.bf16.msra.mxu0 %v5522
  %5680 = vmatprep.subr.bf16.mxu0 0
  %5681 = vmatpush1.bf16.msra.mxu0 %v5523
  %5682 = vmatprep.subr.bf16.mxu0 0
  %5683 = vmatpush1.bf16.msra.mxu0 %v5524
  %5684 = vmatprep.subr.bf16.mxu0 0
  %5685 = vmatpush1.bf16.msra.mxu0 %v5525
  %5686 = vmatprep.subr.bf16.mxu0 0
  %5687 = vmatpush1.bf16.msra.mxu0 %v5526
  %5688 = vmatprep.mubr.bf16.mxu0 %v5141
  %5689 = vmatmul.mubr.bf16.gmra.mrb[0].mxu0 %v5140
  %v5690 = vpop.f32.mrb[0].mxu0
  %v5691 = vadd.f32 %v5642, %v5690
  %v5692 = vpop.f32.mrb[0].mxu0
  %v5693 = vpop.f32.mrb[0].mxu0
  %v5694 = vadd.f32 %v5645, %v5693
  %v5695 = vpop.f32.mrb[0].mxu0
  %5696 = vmatprep.mubr.bf16.mxu0 %v5148
  %5697 = vmatmul.mubr.bf16.gmra.mrb[0].mxu0 %v5147
  %v5698 = vpop.f32.mrb[0].mxu0
  %v5699 = vadd.f32 %v5650, %v5698
  %v5700 = vpop.f32.mrb[0].mxu0
  %v5701 = vpop.f32.mrb[0].mxu0
  %v5702 = vadd.f32 %v5653, %v5701
  %v5703 = vpop.f32.mrb[0].mxu0
  %5704 = vdwg.mxu0
  %5705 = vmatprep.subr.bf16.mxu0 0
  %5706 = vmatpush1.bf16.msra.mxu0 %v5527
  %5707 = vmatprep.subr.bf16.mxu0 0
  %5708 = vmatpush1.bf16.msra.mxu0 %v5528
  %5709 = vmatprep.subr.bf16.mxu0 0
  %5710 = vmatpush1.bf16.msra.mxu0 %v5529
  %5711 = vmatprep.subr.bf16.mxu0 0
  %5712 = vmatpush1.bf16.msra.mxu0 %v5530
  %5713 = vmatprep.subr.bf16.mxu0 0
  %5714 = vmatpush1.bf16.msra.mxu0 %v5531
  %5715 = vmatprep.subr.bf16.mxu0 0
  %5716 = vmatpush1.bf16.msra.mxu0 %v5532
  %5717 = vmatprep.subr.bf16.mxu0 0
  %5718 = vmatpush1.bf16.msra.mxu0 %v5533
  %5719 = vmatprep.subr.bf16.mxu0 0
  %5720 = vmatpush1.bf16.msra.mxu0 %v5534
  %5721 = vmatprep.subr.bf16.mxu0 0
  %5722 = vmatpush1.bf16.msra.mxu0 %v5535
  %5723 = vmatprep.subr.bf16.mxu0 0
  %5724 = vmatpush1.bf16.msra.mxu0 %v5536
  %5725 = vmatprep.subr.bf16.mxu0 0
  %5726 = vmatpush1.bf16.msra.mxu0 %v5537
  %5727 = vmatprep.subr.bf16.mxu0 0
  %5728 = vmatpush1.bf16.msra.mxu0 %v5538
  %5729 = vmatprep.subr.bf16.mxu0 0
  %5730 = vmatpush1.bf16.msra.mxu0 %v5539
  %5731 = vmatprep.subr.bf16.mxu0 0
  %5732 = vmatpush1.bf16.msra.mxu0 %v5540
  %5733 = vmatprep.subr.bf16.mxu0 0
  %5734 = vmatpush1.bf16.msra.mxu0 %v5541
  %5735 = vmatprep.subr.bf16.mxu0 0
  %5736 = vmatpush1.bf16.msra.mxu0 %v5542
  %5737 = vmatprep.mubr.bf16.mxu0 %v5143
  %5738 = vmatmul.mubr.bf16.gmra.mrb[0].mxu0 %v5142
  %v5739 = vpop.f32.mrb[0].mxu0
  %v5740 = vadd.f32 %v5691, %v5739
  %v5741 = vpop.f32.mrb[0].mxu0
  %v5742 = vpop.f32.mrb[0].mxu0
  %v5743 = vadd.f32 %v5694, %v5742
  %v5744 = vpop.f32.mrb[0].mxu0
  %5745 = vmatprep.mubr.bf16.mxu0 %v5150
  %5746 = vmatmul.mubr.bf16.gmra.mrb[0].mxu0 %v5149
  %v5747 = vpop.f32.mrb[0].mxu0
  %v5748 = vadd.f32 %v5699, %v5747
  %v5749 = vpop.f32.mrb[0].mxu0
  %v5750 = vpop.f32.mrb[0].mxu0
  %v5751 = vadd.f32 %v5702, %v5750
  %v5752 = vpop.f32.mrb[0].mxu0
  %5753 = vdwg.mxu0
  %5754 = vmatprep.subr.bf16.mxu0 0
  %5755 = vmatpush1.bf16.msra.mxu0 %v5543
  %5756 = vmatprep.subr.bf16.mxu0 0
  %5757 = vmatpush1.bf16.msra.mxu0 %v5544
  %5758 = vmatprep.subr.bf16.mxu0 0
  %5759 = vmatpush1.bf16.msra.mxu0 %v5545
  %5760 = vmatprep.subr.bf16.mxu0 0
  %5761 = vmatpush1.bf16.msra.mxu0 %v5546
  %5762 = vmatprep.subr.bf16.mxu0 0
  %5763 = vmatpush1.bf16.msra.mxu0 %v5547
  %5764 = vmatprep.subr.bf16.mxu0 0
  %5765 = vmatpush1.bf16.msra.mxu0 %v5548
  %5766 = vmatprep.subr.bf16.mxu0 0
  %5767 = vmatpush1.bf16.msra.mxu0 %v5549
  %5768 = vmatprep.subr.bf16.mxu0 0
  %5769 = vmatpush1.bf16.msra.mxu0 %v5550
  %5770 = vmatprep.subr.bf16.mxu0 0
  %5771 = vmatpush1.bf16.msra.mxu0 0
  %5772 = vmatprep.subr.bf16.mxu0 0
  %5773 = vmatpush1.bf16.msra.mxu0 0
  %5774 = vmatprep.subr.bf16.mxu0 0
  %5775 = vmatpush1.bf16.msra.mxu0 0
  %5776 = vmatprep.subr.bf16.mxu0 0
  %5777 = vmatpush1.bf16.msra.mxu0 0
  %5778 = vmatprep.subr.bf16.mxu0 0
  %5779 = vmatpush1.bf16.msra.mxu0 0
  %5780 = vmatprep.subr.bf16.mxu0 0
  %5781 = vmatpush1.bf16.msra.mxu0 0
  %5782 = vmatprep.subr.bf16.mxu0 0
  %5783 = vmatpush1.bf16.msra.mxu0 0
  %5784 = vmatprep.subr.bf16.mxu0 0
  %5785 = vmatpush1.bf16.msra.mxu0 0
  %5786 = vmatprep.mubr.bf16.mxu0 0
  %5787 = vmatmul.mubr.bf16.gmra.mrb[0].mxu0 %v5144
  %v5788 = vpop.f32.mrb[0].mxu0
  %v5789 = vadd.f32 %v5740, %v5788
  %v5790 = vpop.f32.mrb[0].mxu0
  %v5791 = vpop.f32.mrb[0].mxu0
  %v5792 = vadd.f32 %v5743, %v5791
  %v5793 = vpop.f32.mrb[0].mxu0
  %5794 = vmatprep.mubr.bf16.mxu0 0
  %5795 = vmatmul.mubr.bf16.gmra.mrb[0].mxu0 %v5151
  %v5796 = vpop.f32.mrb[0].mxu0
  %v5797 = vadd.f32 %v5748, %v5796
  %v5798 = vpop.f32.mrb[0].mxu0
  %v5799 = vpop.f32.mrb[0].mxu0
  %v5800 = vadd.f32 %v5751, %v5799
  %v5801 = vpop.f32.mrb[0].mxu0
  %5802 = vdwg.mxu0
  %v5803 = vmax.f32 %v5789, 0.0
  %v5804 = vmax.f32 %v5792, 0.0
  %v5805 = vmax.f32 %v5797, 0.0
  %v5806 = vmax.f32 %v5800, 0.0
  %v5807 = vadd.f32 %v5803, %v4060
  %v5808 = vadd.f32 %v5804, %v4061
  %v5809 = vadd.f32 %v5805, %v4062
  %v5810 = vadd.f32 %v5806, %v4063
  %v5811 = vmax.f32 %v5807, 0.0
  %v5812 = vmax.f32 %v5808, 0.0
  %v5813 = vmax.f32 %v5809, 0.0
  %v5814 = vmax.f32 %v5810, 0.0
  %v5815 = vpack.c.bf16 %v5812, %v5811
  %v5816 = vpack.c.bf16 %v5814, %v5813
  %v5817 = vld [vmem:[%s15] sm:$0xf]
  %v5818 = vld [vmem:[%s15 + $0x4] sm:$0xf]
  %v5819 = vld [vmem:[%s15 + $0x8] sm:$0xf]
  %v5820 = vld [vmem:[%s15 + $0xc] sm:$0xf]
  %v5821 = vld [vmem:[%s15 + $0x10] sm:$0xf]
  %v5822 = vld [vmem:[%s15 + $0x14] sm:$0xf]
  %v5823 = vld [vmem:[%s15 + $0x18] sm:$0xf]
  %v5824 = vld [vmem:[%s15 + $0x1c] sm:$0xf]
  %v5825 = vld [vmem:[%s16] sm:$0x1]
  %v5827 = vlaneseq
  %v5828 = vshrl.u32 %v5827, 7
  %v5829 = vsub.s32 0, %v5828
  %v5830 = vrot.slane %v5825, %v5829
  %v5840 = vunpack.c.l.b16 %v5817
  %v5841 = vunpack.c.l.b16 %v5818
  %v5842 = vunpack.c.l.b16 %v5819
  %v5843 = vunpack.c.l.b16 %v5820
  %v5844 = vunpack.c.l.b16 %v5821
  %v5845 = vunpack.c.l.b16 %v5822
  %v5846 = vunpack.c.l.b16 %v5823
  %v5847 = vunpack.c.l.b16 %v5824
  %v5848 = vpack.c.b16 %v5841, %v5840
  %v5849 = vpack.c.b16 %v5843, %v5842
  %v5850 = vpack.c.b16 %v5845, %v5844
  %v5851 = vpack.c.b16 %v5847, %v5846
  %v5857 = vsel %vm1454, %v5815, 0
  %v5860 = vsel %vm1454, %v5816, 0
  %5862 = vmatprep.subr.bf16.mxu0 0
  %5863 = vmatpush1.bf16.msra.mxu0 %v5848
  %5864 = vmatprep.subr.bf16.mxu0 0
  %5865 = vmatpush1.bf16.msra.mxu0 %v5849
  %5866 = vmatprep.subr.bf16.mxu0 0
  %5867 = vmatpush1.bf16.msra.mxu0 %v5850
  %5868 = vmatprep.subr.bf16.mxu0 0
  %5869 = vmatpush1.bf16.msra.mxu0 %v5851
  %5870 = vmatprep.subr.bf16.mxu0 0
  %5871 = vmatpush1.bf16.msra.mxu0 0
  %5872 = vmatprep.subr.bf16.mxu0 0
  %5873 = vmatpush1.bf16.msra.mxu0 0
  %5874 = vmatprep.subr.bf16.mxu0 0
  %5875 = vmatpush1.bf16.msra.mxu0 0
  %5876 = vmatprep.subr.bf16.mxu0 0
  %5877 = vmatpush1.bf16.msra.mxu0 0
  %5878 = vmatprep.subr.bf16.mxu0 0
  %5879 = vmatpush1.bf16.msra.mxu0 0
  %5880 = vmatprep.subr.bf16.mxu0 0
  %5881 = vmatpush1.bf16.msra.mxu0 0
  %5882 = vmatprep.subr.bf16.mxu0 0
  %5883 = vmatpush1.bf16.msra.mxu0 0
  %5884 = vmatprep.subr.bf16.mxu0 0
  %5885 = vmatpush1.bf16.msra.mxu0 0
  %5886 = vmatprep.subr.bf16.mxu0 0
  %5887 = vmatpush1.bf16.msra.mxu0 0
  %5888 = vmatprep.subr.bf16.mxu0 0
  %5889 = vmatpush1.bf16.msra.mxu0 0
  %5890 = vmatprep.subr.bf16.mxu0 0
  %5891 = vmatpush1.bf16.msra.mxu0 0
  %5892 = vmatprep.subr.bf16.mxu0 0
  %5893 = vmatpush1.bf16.msra.mxu0 0
  %5894 = vmatprep.mubr.bf16.mxu0 0
  %5895 = vmatmul.mubr.bf16.gmra.mrb[0].mxu0 %v5857
  %v5896 = vpop.f32.mrb[0].mxu0
  %v5897 = vadd.f32 %v5830, %v5896
  %v5898 = vpop.f32.mrb[0].mxu0
  %v5899 = vpop.f32.mrb[0].mxu0
  %v5900 = vadd.f32 %v5830, %v5899
  %v5901 = vpop.f32.mrb[0].mxu0
  %5902 = vmatprep.mubr.bf16.mxu0 0
  %5903 = vmatmul.mubr.bf16.gmra.mrb[0].mxu0 %v5860
  %v5904 = vpop.f32.mrb[0].mxu0
  %v5905 = vadd.f32 %v5830, %v5904
  %v5906 = vpop.f32.mrb[0].mxu0
  %v5907 = vpop.f32.mrb[0].mxu0
  %v5908 = vadd.f32 %v5830, %v5907
  %v5909 = vpop.f32.mrb[0].mxu0
  %5910 = vdwg.mxu0
  %vm5911 = vcmask 31744
  %5912 = vst.msk [vmem:[%s17] sm:$0xff] %vm5911, %v5897
  %5913 = vst.msk [vmem:[%s17 + $0x8] sm:$0xff] %vm5911, %v5900
  %5914 = vst.msk [vmem:[%s17 + $0x10] sm:$0xff] %vm5911, %v5905
  %5915 = vst.msk [vmem:[%s17 + $0x18] sm:$0xff] %vm5911, %v5908
  // Predicated region
  $region70: #{tpu_custom_call.1} parent=0 // pred_check
    _
  $region71: #{tpu_custom_call.1} parent=0 // pred_check_branch
    %5917 = sbr.rel (0) target = $region73
  $region72: #{tpu_custom_call.1} parent=0 // pred_region
    _
  $region73: #{tpu_custom_call.1} parent=0 // pred_fallthru
    _
  // Predicated region
  $region74: #{tpu_custom_call.1} parent=0 // pred_check
    _
  $region75: #{tpu_custom_call.1} parent=0 // pred_check_branch
    %5919 = sbr.rel (0) target = $region77
  $region76: #{tpu_custom_call.1} parent=0 // pred_region
    _
  $region77: #{tpu_custom_call.1} parent=0 // pred_fallthru
    _

</llo_original>
